<compile_context>
chip_gen: v5e
topology: v5e:2x2
jax: 0.10.0
libtpu: 0.0.40
codegen_flags: <defaults>
</compile_context>

<pallas_src>
import functools

import jax
import jax.numpy as jnp
from jax import lax
from jax.experimental import pallas as pl
from jax.experimental.pallas import tpu as pltpu


def _round_up(x, m):
    return (x + m - 1) // m * m


def _cdiv(a, b):
    return (a + b - 1) // b


# Peak per-kernel VMEM (double-buffered blocks) is ~2 MB; 8 MiB leaves ample
# headroom under every chip's scoped default (16/32/32 MiB on v5e/v6e/v7x).
_VMEM_LIMIT = 8 * 1024 * 1024


# ----------------------------------------------------------------------------
# Kernels
# ----------------------------------------------------------------------------
def _matmul_bias_relu_kernel(a_ref, w_ref, b_ref, o_ref):
    """o = relu(A @ W + b); A/W bf16, f32 accumulation on the MXU."""
    acc = jnp.dot(a_ref[...], w_ref[...], preferred_element_type=jnp.float32)
    o_ref[...] = jnp.maximum(acc + b_ref[...], 0.0).astype(o_ref.dtype)


def _fused_fc_block_kernel(a_ref, w1_ref, b1_ref, w2_ref, o_ref):
    """One hidden-column block of q = relu(A@W1+b1) @ W2; hidden stays in VMEM."""
    h = jnp.dot(a_ref[...], w1_ref[...], preferred_element_type=jnp.float32)
    h = jnp.maximum(h + b1_ref[...], 0.0)
    q = jnp.dot(h.astype(w2_ref.dtype), w2_ref[...],
                preferred_element_type=jnp.float32)
    o_ref[0] = q


# ----------------------------------------------------------------------------
# Wrappers
# ----------------------------------------------------------------------------
def pallas_conv_matmul(a_bf16, w_bf16, b_f32, *, tm_max=512, min_blocks=2):
    """relu((M,K)@(K,N)+b) with M tiled into >=min_blocks 16-aligned blocks.

    The leading grid axis is 'parallel' so the input DMA pipelines and, on
    v7x, the two TensorCores split the blocks.  Weight/bias blocks are
    grid-constant so they stay VMEM-resident across the grid.
    """
    M, K = a_bf16.shape
    Kw, N = w_bf16.shape
    assert K == Kw

    nblk = max(min_blocks, _cdiv(M, tm_max))
    tm = _round_up(_cdiv(M, nblk), 16)          # bf16-friendly (16-row) tiles
    Mp = tm * nblk
    if Mp != M:
        a_bf16 = jnp.pad(a_bf16, ((0, Mp - M), (0, 0)))

    out = pl.pallas_call(
        _matmul_bias_relu_kernel,
        out_shape=jax.ShapeDtypeStruct((Mp, N), jnp.bfloat16),
        grid=(nblk,),
        in_specs=[
            pl.BlockSpec((tm, K), lambda i: (i, 0)),
            pl.BlockSpec((K, N), lambda i: (0, 0)),
            pl.BlockSpec((1, N), lambda i: (0, 0)),
        ],
        out_specs=pl.BlockSpec((tm, N), lambda i: (i, 0)),
        compiler_params=pltpu.CompilerParams(
            dimension_semantics=("parallel",),
            vmem_limit_bytes=_VMEM_LIMIT,
        ),
    )(a_bf16, w_bf16, b_f32)
    return out[:M] if Mp != M else out


def pallas_fused_fc(a_bf16, w1, b1, w2, *, n_blocks=4):
    """q = relu(A@W1+b1) @ W2, fused, hidden split into parallel column blocks.

    Splitting the 512-wide hidden into n_blocks column groups gives the kernel
    a multi-block 'parallel' grid: wf1's block DMAs pipeline with compute and
    v7x can put half the blocks on each TensorCore.  Partial q's are summed
    (f32) by the caller; ReLU distributes over hidden columns so this is exact.
    """
    M, K = a_bf16.shape
    Kw, H = w1.shape
    Hw, N = w2.shape
    assert K == Kw and H == Hw and H % n_blocks == 0
    th = H // n_blocks

    Mp = _round_up(M, 16)
    if Mp != M:
        a_bf16 = jnp.pad(a_bf16, ((0, Mp - M), (0, 0)))

    out = pl.pallas_call(
        _fused_fc_block_kernel,
        out_shape=jax.ShapeDtypeStruct((n_blocks, Mp, N), jnp.float32),
        grid=(n_blocks,),
        in_specs=[
            pl.BlockSpec((Mp, K), lambda i: (0, 0)),   # A, grid-constant
            pl.BlockSpec((K, th), lambda i: (0, i)),   # W1 column block
            pl.BlockSpec((1, th), lambda i: (0, i)),   # b1 column block
            pl.BlockSpec((th, N), lambda i: (i, 0)),   # W2 row block
        ],
        out_specs=pl.BlockSpec((1, Mp, N), lambda i: (i, 0, 0)),
        compiler_params=pltpu.CompilerParams(
            dimension_semantics=("parallel",),
            vmem_limit_bytes=_VMEM_LIMIT,
        ),
    )(a_bf16, w1, b1, w2)
    return jnp.sum(out, axis=0)[:M]


# ----------------------------------------------------------------------------
# im2col glue (JAX, outside the kernels)
# TODO(synk): move patch extraction in-kernel (tap accumulation) to remove the
# remaining im2col HBM traffic between pallas_calls.
# ----------------------------------------------------------------------------
def _im2col(x_nhwc, k, s):
    """Extract valid conv patches; column order is (kh, kw, ci)."""
    B, H, W, C = x_nhwc.shape
    OH = (H - k) // s + 1
    OW = (W - k) // s + 1
    cols = []
    for kh in range(k):
        for kw in range(k):
            cols.append(x_nhwc[:, kh:kh + s * OH:s, kw:kw + s * OW:s, :])
    patches = jnp.stack(cols, axis=3)            # (B, OH, OW, k*k, C)
    return patches.reshape(B * OH * OW, k * k * C), (B, OH, OW)


# ----------------------------------------------------------------------------
# Parameters
# ----------------------------------------------------------------------------
def init_params(key):
    """Deterministic synthetic init (PyTorch-default-style uniform)."""
    def u(k, shape, fan_in):
        bound = 1.0 / float(fan_in) ** 0.5
        return jax.random.uniform(k, shape, jnp.float32, -bound, bound)

    ks = jax.random.split(key, 10)
    p = {}
    p["w1"] = u(ks[0], (32, 4, 8, 8), 4 * 8 * 8)
    p["b1"] = u(ks[1], (32,), 4 * 8 * 8)
    p["w2"] = u(ks[2], (64, 32, 4, 4), 32 * 4 * 4)
    p["b2"] = u(ks[3], (64,), 32 * 4 * 4)
    p["w3"] = u(ks[4], (64, 64, 3, 3), 64 * 3 * 3)
    p["b3"] = u(ks[5], (64,), 64 * 3 * 3)
    p["wf1"] = u(ks[6], (512, 7 * 7 * 64), 7 * 7 * 64)
    p["bf1"] = u(ks[7], (512,), 7 * 7 * 64)
    p["wf2"] = u(ks[8], (2, 512), 512)
    p["bf2"] = u(ks[9], (2,), 512)
    return p


def prepare_params(p):
    """One-time weight prep: transpose to matmul slabs, cast to bf16.

    Conv weights (O,I,KH,KW) -> (KH*KW*CI, CO) slabs whose row order matches
    im2col's (kh,kw,ci) column order — no channel padding.  fc1's rows are
    permuted from torch's (C,H,W) flatten order to our (H,W,C) layout so the
    conv3 output flattens straight into it.  Only fc2's output is padded
    (2 -> 128) so the kernel's final store stays lane-dense.
    """
    def conv_w(w_oihw):
        CO, CI, KH, KW = w_oihw.shape
        return (jnp.transpose(w_oihw, (2, 3, 1, 0))
                .reshape(KH * KW * CI, CO).astype(jnp.bfloat16))

    def bias_row(b):
        return b.reshape(1, -1).astype(jnp.float32)

    f = {}
    f["w1"], f["b1"] = conv_w(p["w1"]), bias_row(p["b1"])   # (256, 32)
    f["w2"], f["b2"] = conv_w(p["w2"]), bias_row(p["b2"])   # (512, 64)
    f["w3"], f["b3"] = conv_w(p["w3"]), bias_row(p["b3"])   # (576, 64)

    # fc1: torch flatten order is (c, h, w); our conv3 output is (h, w, c).
    wf1 = jnp.transpose(p["wf1"].reshape(512, 64, 7, 7), (2, 3, 1, 0))
    f["wf1"] = wf1.reshape(7 * 7 * 64, 512).astype(jnp.bfloat16)   # (3136, 512)
    f["bf1"] = bias_row(p["bf1"])

    f["wf2"] = (jnp.zeros((512, 128), jnp.float32)
                .at[:, :2].set(p["wf2"].T).astype(jnp.bfloat16))
    f["bf2"] = p["bf2"].astype(jnp.float32)                        # (2,)
    return f


# ----------------------------------------------------------------------------
# Forward
# ----------------------------------------------------------------------------
def dqn_forward(fp, x_nchw):
    x = jnp.transpose(x_nchw, (0, 2, 3, 1)).astype(jnp.bfloat16)   # NHWC bf16
    B = x.shape[0]

    # conv1: 8x8 s4, 4 -> 32 channels, (B,20,20,32)
    cols, (_, OH, OW) = _im2col(x, 8, 4)                           # (B*400, 256)
    out = pallas_conv_matmul(cols, fp["w1"], fp["b1"]).reshape(B, OH, OW, 32)

    # conv2: 4x4 s2, 32 -> 64 channels, (B,9,9,64)
    cols, (_, OH, OW) = _im2col(out, 4, 2)                         # (B*81, 512)
    out = pallas_conv_matmul(cols, fp["w2"], fp["b2"]).reshape(B, OH, OW, 64)

    # conv3: 3x3 s1, 64 -> 64 channels, (B*49, 64)
    cols, (_, OH, OW) = _im2col(out, 3, 1)                         # (B*49, 576)
    out = pallas_conv_matmul(cols, fp["w3"], fp["b3"])

    # fused fc1+fc2; conv3 output flattens in (h,w,c) order matching wf1's
    # row permutation -> no transpose, no padded K rows.
    flat = out.reshape(B, 7 * 7 * 64)                              # (B, 3136)
    q = pallas_fused_fc(flat, fp["wf1"], fp["bf1"], fp["wf2"])
    return q[:, :2] + fp["bf2"]


def dqn_reference(params, x_nchw):
    """Pure-JAX f32 reference (lax.conv) matching the torch module exactly."""
    def conv(x, w, b, s):
        y = lax.conv_general_dilated(
            x, w, window_strides=(s, s), padding="VALID",
            dimension_numbers=("NCHW", "OIHW", "NCHW"),
            precision=lax.Precision.HIGHEST)
        return jnp.maximum(y + b[None, :, None, None], 0.0)

    out = conv(x_nchw, params["w1"], params["b1"], 4)
    out = conv(out, params["w2"], params["b2"], 2)
    out = conv(out, params["w3"], params["b3"], 1)
    flat = out.reshape(out.shape[0], -1)
    h = jnp.maximum(flat @ params["wf1"].T + params["bf1"], 0.0)
    return h @ params["wf2"].T + params["bf2"]


if __name__ == "__main__":
    key = jax.random.PRNGKey(0)
    pkey, xkey = jax.random.split(key)
    params = init_params(pkey)
    fparams = prepare_params(params)          # one-time weight prep (hoisted)
    # batch=2; the 84x84x4 input size is forced by fc1's 7*7*64 input dim
    x = jax.random.uniform(xkey, (2, 4, 84, 84), jnp.float32)

    fwd = jax.jit(dqn_forward)
    q = jax.block_until_ready(fwd(fparams, x))

    q_ref = dqn_reference(params, x)
    assert q.shape == (2, 2)
    # bf16 operands with f32 accumulation through 5 layers
    assert jnp.allclose(q, q_ref, rtol=3e-2, atol=3e-2), (q, q_ref)
    print("KERNEL_OK")
</pallas_src>

<mosaic_0001>
module attributes {stable_mosaic.version = 11 : i64} {
  func.func @_matmul_bias_relu_kernel(%arg0: i32, %arg1: memref<400x256xbf16, #tpu.memory_space<vmem>>, %arg2: memref<256x32xbf16, #tpu.memory_space<vmem>>, %arg3: memref<1x32xf32, #tpu.memory_space<vmem>>, %arg4: memref<400x32xbf16, #tpu.memory_space<vmem>>) attributes {dimension_semantics = [#tpu.dimension_semantics<parallel>], iteration_bounds = array<i64: 2>, scalar_prefetch = 0 : i64, scratch_operands = 0 : i64, tpu.core_type = #tpu.core_type<tc>, window_params = [{transform_indices = @transform_0, window_bounds = array<i64: 400, 256>}, {pipeline_mode = #tpu.pipeline_mode<synchronous>, transform_indices = @transform_1, window_bounds = array<i64: 256, 32>}, {pipeline_mode = #tpu.pipeline_mode<synchronous>, transform_indices = @transform_2, window_bounds = array<i64: 1, 32>}, {transform_indices = @transform_3, window_bounds = array<i64: 400, 32>}]} {
    %c0 = arith.constant 0 : index
    %c0_0 = arith.constant 0 : index
    %0 = vector.load %arg1[%c0, %c0_0] : memref<400x256xbf16, #tpu.memory_space<vmem>>, vector<400x256xbf16>
    %c0_1 = arith.constant 0 : index
    %c0_2 = arith.constant 0 : index
    %1 = vector.load %arg2[%c0_1, %c0_2] : memref<256x32xbf16, #tpu.memory_space<vmem>>, vector<256x32xbf16>
    %cst = arith.constant dense<0.000000e+00> : vector<400x32xf32>
    %2 = tpu.matmul %0, %1, %cst {dimension_numbers = #tpu.dot_dimension_numbers<[1], [0], [0], [1], [0, 0, 1, 1], [], []>} : vector<400x256xbf16>, vector<256x32xbf16>, vector<400x32xf32> -> vector<400x32xf32>
    %c0_3 = arith.constant 0 : index
    %c0_4 = arith.constant 0 : index
    %3 = vector.load %arg3[%c0_3, %c0_4] : memref<1x32xf32, #tpu.memory_space<vmem>>, vector<1x32xf32>
    %4 = vector.broadcast %3 : vector<1x32xf32> to vector<400x32xf32>
    %5 = arith.addf %2, %4 : vector<400x32xf32>
    %cst_5 = arith.constant 0.000000e+00 : f32
    %6 = vector.broadcast %cst_5 : f32 to vector<400x32xf32>
    %7 = arith.maximumf %5, %6 : vector<400x32xf32>
    %8 = arith.truncf %7 : vector<400x32xf32> to vector<400x32xbf16>
    %c0_6 = arith.constant 0 : index
    %c0_7 = arith.constant 0 : index
    %9 = vector.load %arg4[%c0_6, %c0_7] : memref<400x32xbf16, #tpu.memory_space<vmem>>, vector<400x32xbf16>
    tpu.vector_store %arg4[%c0_6, %c0_7], %8 {strides = array<i32>} : memref<400x32xbf16, #tpu.memory_space<vmem>>, vector<400x32xbf16>,
    return
  }
  func.func @transform_0(%arg0: i32) -> (i32, i32) {
    %c0_i32 = arith.constant 0 : i32
    %c0_i32_0 = arith.constant 0 : i32
    return %arg0, %c0_i32 : i32, i32
  }
  func.func @transform_1(%arg0: i32) -> (i32, i32) {
    %c0_i32 = arith.constant 0 : i32
    %c0_i32_0 = arith.constant 0 : i32
    %c0_i32_1 = arith.constant 0 : i32
    return %c0_i32, %c0_i32_0 : i32, i32
  }
  func.func @transform_2(%arg0: i32) -> (i32, i32) {
    %c0_i32 = arith.constant 0 : i32
    %c0_i32_0 = arith.constant 0 : i32
    %c0_i32_1 = arith.constant 0 : i32
    return %c0_i32, %c0_i32_0 : i32, i32
  }
  func.func @transform_3(%arg0: i32) -> (i32, i32) {
    %c0_i32 = arith.constant 0 : i32
    %c0_i32_0 = arith.constant 0 : i32
    return %arg0, %c0_i32 : i32, i32
  }
}

module attributes {stable_mosaic.version = 11 : i64} {
  func.func @_matmul_bias_relu_kernel(%arg0: i32, %arg1: memref<96x512xbf16, #tpu.memory_space<vmem>>, %arg2: memref<512x64xbf16, #tpu.memory_space<vmem>>, %arg3: memref<1x64xf32, #tpu.memory_space<vmem>>, %arg4: memref<96x64xbf16, #tpu.memory_space<vmem>>) attributes {dimension_semantics = [#tpu.dimension_semantics<parallel>], iteration_bounds = array<i64: 2>, scalar_prefetch = 0 : i64, scratch_operands = 0 : i64, tpu.core_type = #tpu.core_type<tc>, window_params = [{transform_indices = @transform_0, window_bounds = array<i64: 96, 512>}, {pipeline_mode = #tpu.pipeline_mode<synchronous>, transform_indices = @transform_1, window_bounds = array<i64: 512, 64>}, {pipeline_mode = #tpu.pipeline_mode<synchronous>, transform_indices = @transform_2, window_bounds = array<i64: 1, 64>}, {transform_indices = @transform_3, window_bounds = array<i64: 96, 64>}]} {
    %c0 = arith.constant 0 : index
    %c0_0 = arith.constant 0 : index
    %0 = vector.load %arg1[%c0, %c0_0] : memref<96x512xbf16, #tpu.memory_space<vmem>>, vector<96x512xbf16>
    %c0_1 = arith.constant 0 : index
    %c0_2 = arith.constant 0 : index
    %1 = vector.load %arg2[%c0_1, %c0_2] : memref<512x64xbf16, #tpu.memory_space<vmem>>, vector<512x64xbf16>
    %cst = arith.constant dense<0.000000e+00> : vector<96x64xf32>
    %2 = tpu.matmul %0, %1, %cst {dimension_numbers = #tpu.dot_dimension_numbers<[1], [0], [0], [1], [0, 0, 1, 1], [], []>} : vector<96x512xbf16>, vector<512x64xbf16>, vector<96x64xf32> -> vector<96x64xf32>
    %c0_3 = arith.constant 0 : index
    %c0_4 = arith.constant 0 : index
    %3 = vector.load %arg3[%c0_3, %c0_4] : memref<1x64xf32, #tpu.memory_space<vmem>>, vector<1x64xf32>
    %4 = vector.broadcast %3 : vector<1x64xf32> to vector<96x64xf32>
    %5 = arith.addf %2, %4 : vector<96x64xf32>
    %cst_5 = arith.constant 0.000000e+00 : f32
    %6 = vector.broadcast %cst_5 : f32 to vector<96x64xf32>
    %7 = arith.maximumf %5, %6 : vector<96x64xf32>
    %8 = arith.truncf %7 : vector<96x64xf32> to vector<96x64xbf16>
    %c0_6 = arith.constant 0 : index
    %c0_7 = arith.constant 0 : index
    %9 = vector.load %arg4[%c0_6, %c0_7] : memref<96x64xbf16, #tpu.memory_space<vmem>>, vector<96x64xbf16>
    tpu.vector_store %arg4[%c0_6, %c0_7], %8 {strides = array<i32>} : memref<96x64xbf16, #tpu.memory_space<vmem>>, vector<96x64xbf16>,
    return
  }
  func.func @transform_0(%arg0: i32) -> (i32, i32) {
    %c0_i32 = arith.constant 0 : i32
    %c0_i32_0 = arith.constant 0 : i32
    return %arg0, %c0_i32 : i32, i32
  }
  func.func @transform_1(%arg0: i32) -> (i32, i32) {
    %c0_i32 = arith.constant 0 : i32
    %c0_i32_0 = arith.constant 0 : i32
    %c0_i32_1 = arith.constant 0 : i32
    return %c0_i32, %c0_i32_0 : i32, i32
  }
  func.func @transform_2(%arg0: i32) -> (i32, i32) {
    %c0_i32 = arith.constant 0 : i32
    %c0_i32_0 = arith.constant 0 : i32
    %c0_i32_1 = arith.constant 0 : i32
    return %c0_i32, %c0_i32_0 : i32, i32
  }
  func.func @transform_3(%arg0: i32) -> (i32, i32) {
    %c0_i32 = arith.constant 0 : i32
    %c0_i32_0 = arith.constant 0 : i32
    return %arg0, %c0_i32 : i32, i32
  }
}

module attributes {stable_mosaic.version = 11 : i64} {
  func.func @_matmul_bias_relu_kernel(%arg0: i32, %arg1: memref<64x576xbf16, #tpu.memory_space<vmem>>, %arg2: memref<576x64xbf16, #tpu.memory_space<vmem>>, %arg3: memref<1x64xf32, #tpu.memory_space<vmem>>, %arg4: memref<64x64xbf16, #tpu.memory_space<vmem>>) attributes {dimension_semantics = [#tpu.dimension_semantics<parallel>], iteration_bounds = array<i64: 2>, scalar_prefetch = 0 : i64, scratch_operands = 0 : i64, tpu.core_type = #tpu.core_type<tc>, window_params = [{transform_indices = @transform_0, window_bounds = array<i64: 64, 576>}, {pipeline_mode = #tpu.pipeline_mode<synchronous>, transform_indices = @transform_1, window_bounds = array<i64: 576, 64>}, {pipeline_mode = #tpu.pipeline_mode<synchronous>, transform_indices = @transform_2, window_bounds = array<i64: 1, 64>}, {transform_indices = @transform_3, window_bounds = array<i64: 64, 64>}]} {
    %c0 = arith.constant 0 : index
    %c0_0 = arith.constant 0 : index
    %0 = vector.load %arg1[%c0, %c0_0] : memref<64x576xbf16, #tpu.memory_space<vmem>>, vector<64x576xbf16>
    %c0_1 = arith.constant 0 : index
    %c0_2 = arith.constant 0 : index
    %1 = vector.load %arg2[%c0_1, %c0_2] : memref<576x64xbf16, #tpu.memory_space<vmem>>, vector<576x64xbf16>
    %cst = arith.constant dense<0.000000e+00> : vector<64x64xf32>
    %2 = tpu.matmul %0, %1, %cst {dimension_numbers = #tpu.dot_dimension_numbers<[1], [0], [0], [1], [0, 0, 1, 1], [], []>} : vector<64x576xbf16>, vector<576x64xbf16>, vector<64x64xf32> -> vector<64x64xf32>
    %c0_3 = arith.constant 0 : index
    %c0_4 = arith.constant 0 : index
    %3 = vector.load %arg3[%c0_3, %c0_4] : memref<1x64xf32, #tpu.memory_space<vmem>>, vector<1x64xf32>
    %4 = vector.broadcast %3 : vector<1x64xf32> to vector<64x64xf32>
    %5 = arith.addf %2, %4 : vector<64x64xf32>
    %cst_5 = arith.constant 0.000000e+00 : f32
    %6 = vector.broadcast %cst_5 : f32 to vector<64x64xf32>
    %7 = arith.maximumf %5, %6 : vector<64x64xf32>
    %8 = arith.truncf %7 : vector<64x64xf32> to vector<64x64xbf16>
    %c0_6 = arith.constant 0 : index
    %c0_7 = arith.constant 0 : index
    %9 = vector.load %arg4[%c0_6, %c0_7] : memref<64x64xbf16, #tpu.memory_space<vmem>>, vector<64x64xbf16>
    tpu.vector_store %arg4[%c0_6, %c0_7], %8 {strides = array<i32>} : memref<64x64xbf16, #tpu.memory_space<vmem>>, vector<64x64xbf16>,
    return
  }
  func.func @transform_0(%arg0: i32) -> (i32, i32) {
    %c0_i32 = arith.constant 0 : i32
    %c0_i32_0 = arith.constant 0 : i32
    return %arg0, %c0_i32 : i32, i32
  }
  func.func @transform_1(%arg0: i32) -> (i32, i32) {
    %c0_i32 = arith.constant 0 : i32
    %c0_i32_0 = arith.constant 0 : i32
    %c0_i32_1 = arith.constant 0 : i32
    return %c0_i32, %c0_i32_0 : i32, i32
  }
  func.func @transform_2(%arg0: i32) -> (i32, i32) {
    %c0_i32 = arith.constant 0 : i32
    %c0_i32_0 = arith.constant 0 : i32
    %c0_i32_1 = arith.constant 0 : i32
    return %c0_i32, %c0_i32_0 : i32, i32
  }
  func.func @transform_3(%arg0: i32) -> (i32, i32) {
    %c0_i32 = arith.constant 0 : i32
    %c0_i32_0 = arith.constant 0 : i32
    return %arg0, %c0_i32 : i32, i32
  }
}

module attributes {stable_mosaic.version = 11 : i64} {
  func.func @_fused_fc_block_kernel(%arg0: i32, %arg1: memref<16x3136xbf16, #tpu.memory_space<vmem>>, %arg2: memref<3136x128xbf16, #tpu.memory_space<vmem>>, %arg3: memref<1x128xf32, #tpu.memory_space<vmem>>, %arg4: memref<128x128xbf16, #tpu.memory_space<vmem>>, %arg5: memref<1x16x128xf32, #tpu.memory_space<vmem>>) attributes {dimension_semantics = [#tpu.dimension_semantics<parallel>], iteration_bounds = array<i64: 4>, scalar_prefetch = 0 : i64, scratch_operands = 0 : i64, tpu.core_type = #tpu.core_type<tc>, window_params = [{pipeline_mode = #tpu.pipeline_mode<synchronous>, transform_indices = @transform_0, window_bounds = array<i64: 16, 3136>}, {transform_indices = @transform_1, window_bounds = array<i64: 3136, 128>}, {transform_indices = @transform_2, window_bounds = array<i64: 1, 128>}, {transform_indices = @transform_3, window_bounds = array<i64: 128, 128>}, {transform_indices = @transform_4, window_bounds = array<i64: 1, 16, 128>}]} {
    %c0 = arith.constant 0 : index
    %c0_0 = arith.constant 0 : index
    %0 = vector.load %arg1[%c0, %c0_0] : memref<16x3136xbf16, #tpu.memory_space<vmem>>, vector<16x3136xbf16>
    %c0_1 = arith.constant 0 : index
    %c0_2 = arith.constant 0 : index
    %1 = vector.load %arg2[%c0_1, %c0_2] : memref<3136x128xbf16, #tpu.memory_space<vmem>>, vector<3136x128xbf16>
    %cst = arith.constant dense<0.000000e+00> : vector<16x128xf32>
    %2 = tpu.matmul %0, %1, %cst {dimension_numbers = #tpu.dot_dimension_numbers<[1], [0], [0], [1], [0, 0, 1, 1], [], []>} : vector<16x3136xbf16>, vector<3136x128xbf16>, vector<16x128xf32> -> vector<16x128xf32>
    %c0_3 = arith.constant 0 : index
    %c0_4 = arith.constant 0 : index
    %3 = vector.load %arg3[%c0_3, %c0_4] : memref<1x128xf32, #tpu.memory_space<vmem>>, vector<1x128xf32>
    %4 = vector.broadcast %3 : vector<1x128xf32> to vector<16x128xf32>
    %5 = arith.addf %2, %4 : vector<16x128xf32>
    %cst_5 = arith.constant 0.000000e+00 : f32
    %6 = vector.broadcast %cst_5 : f32 to vector<16x128xf32>
    %7 = arith.maximumf %5, %6 : vector<16x128xf32>
    %8 = arith.truncf %7 : vector<16x128xf32> to vector<16x128xbf16>
    %c0_6 = arith.constant 0 : index
    %c0_7 = arith.constant 0 : index
    %9 = vector.load %arg4[%c0_6, %c0_7] : memref<128x128xbf16, #tpu.memory_space<vmem>>, vector<128x128xbf16>
    %cst_8 = arith.constant dense<0.000000e+00> : vector<16x128xf32>
    %10 = tpu.matmul %8, %9, %cst_8 {dimension_numbers = #tpu.dot_dimension_numbers<[1], [0], [0], [1], [0, 0, 1, 1], [], []>} : vector<16x128xbf16>, vector<128x128xbf16>, vector<16x128xf32> -> vector<16x128xf32>
    %c0_9 = arith.constant 0 : index
    %c0_10 = arith.constant 0 : index
    %c0_11 = arith.constant 0 : index
    %11 = vector.load %arg5[%c0_9, %c0_10, %c0_11] : memref<1x16x128xf32, #tpu.memory_space<vmem>>, vector<1x16x128xf32>
    %12 = vector.shape_cast %11 : vector<1x16x128xf32> to vector<16x128xf32>
    %13 = vector.shape_cast %10 : vector<16x128xf32> to vector<1x16x128xf32>
    tpu.vector_store %arg5[%c0_9, %c0_10, %c0_11], %13 {strides = array<i32>} : memref<1x16x128xf32, #tpu.memory_space<vmem>>, vector<1x16x128xf32>,
    return
  }
  func.func @transform_0(%arg0: i32) -> (i32, i32) {
    %c0_i32 = arith.constant 0 : i32
    %c0_i32_0 = arith.constant 0 : i32
    %c0_i32_1 = arith.constant 0 : i32
    return %c0_i32, %c0_i32_0 : i32, i32
  }
  func.func @transform_1(%arg0: i32) -> (i32, i32) {
    %c0_i32 = arith.constant 0 : i32
    %c0_i32_0 = arith.constant 0 : i32
    return %c0_i32, %arg0 : i32, i32
  }
  func.func @transform_2(%arg0: i32) -> (i32, i32) {
    %c0_i32 = arith.constant 0 : i32
    %c0_i32_0 = arith.constant 0 : i32
    return %c0_i32, %arg0 : i32, i32
  }
  func.func @transform_3(%arg0: i32) -> (i32, i32) {
    %c0_i32 = arith.constant 0 : i32
    %c0_i32_0 = arith.constant 0 : i32
    return %arg0, %c0_i32 : i32, i32
  }
  func.func @transform_4(%arg0: i32) -> (i32, i32, i32) {
    %c0_i32 = arith.constant 0 : i32
    %c0_i32_0 = arith.constant 0 : i32
    %c0_i32_1 = arith.constant 0 : i32
    return %arg0, %c0_i32, %c0_i32_0 : i32, i32, i32
  }
}

</mosaic_0001>

<llo_original>
// kernel: dqn_forward.4
$region0: #{dqn_forward.4}
  #allocation0 [shape = 'u32[]', space=smem, size = 0x4, offset = 0x4, fixed_abs, tag = 'smem constant byte address 0x4 - core index']
  #allocation1 [shape = 'u32[72,128]{1,0:T(1,128)}', space=vmem, size = 0x9000, scoped, tag = 'internal scratch']
  %s0 = inlined_call_operand.vmem [shape: bf16[800,256], index: 0, kind: input, shape index: {}]
  %s1 = inlined_call_operand.vmem [shape: bf16[256,32], index: 1, kind: input, shape index: {}]
  %s2 = inlined_call_operand.vmem [shape: f32[1,32], index: 2, kind: input, shape index: {}]
  %s3 = inlined_call_operand.vmem [shape: bf16[800,32], index: 3, kind: output, shape index: {}]
  %s4 = sld [smem:[#allocation0]]
  $region45: #{dqn_forward.4} parent=0
    _
  %s6 = ssub.s32 1, %s4
  %s7 = scalar_select 0, %s6, %s4
  loop: start=0, step=1, limit=4
  $region2: #{dqn_forward.4} parent=0 // loop_pre_header
    _
  $region3: #{dqn_forward.4} parent=0 // loop_header
    %s9 = sphi 0, %s13
    %p10 = scmp.ge.s32.totalorder %s9, 4
    %s19 = sphi 0, %s21
    %s22 = sphi 0, %s19
    %s23 = sphi 0, %s22
    %s39 = sphi 0, %s23
    %s43 = sphi 0, %s43
    %s45 = sphi 0, %s43
    %s46 = sphi 0, %s45
    %s60 = sphi 0, %s46
    %s64 = sphi 0, %s64
    %s66 = sphi 0, %s64
    %s67 = sphi 0, %s66
    %s81 = sphi 0, %s67
    %s87 = sphi 0, %s89
    %s90 = sphi 0, %s87
    %s91 = sphi 0, %s90
    %s107 = sphi 0, %s91
  $region4: #{dqn_forward.4} parent=0 // loop_header_branch
    %12 = sbr.rel (%p10) target = $region8
  $region5: #{dqn_forward.4} parent=0 // loop_body
    %s14 = ssub.s32 %s9, 1
    %s15 = ssub.s32 %s9, 2
    %s16 = sadd.s32 %s9, 1
    %s17 = ssub.s32 %s9, %s16
    %p18 = scmp.eq.s32.totalorder %s17, 0
    %s20 = sadd.s32 %s19, 1
    %s21 = scalar_select %p18, %s19, %s20
    %p24 = pneg %p18
    %p25 = scmp.eq.s32.totalorder %s9, 1
    %p26 = por %p24, %p25
    %p27 = scmp.ne.s32.totalorder %s19, %s22
    %p28 = scmp.eq.s32.totalorder %s9, 0
    %p29 = por %p27, %p28
    %p30 = scmp.ne.s32.totalorder %s19, %s22
    %p31 = scmp.eq.s32.totalorder %s14, 1
    %p32 = por %p30, %p31
    %p33 = scmp.ne.s32.totalorder %s22, %s23
    %p34 = scmp.eq.s32.totalorder %s14, 0
    %p35 = por %p33, %p34
    %p36 = scmp.ne.s32.totalorder %s22, %s23
    %p37 = scmp.eq.s32.totalorder %s15, 1
    %p38 = por %p36, %p37
    %p40 = scmp.ne.s32.totalorder %s23, %s39
    %p41 = scmp.eq.s32.totalorder %s15, 0
    %p42 = por %p40, %p41
    %s44 = sadd.s32 %s43, 1
    %p47 = scmp.eq.s32.totalorder %s9, 1
    %p48 = scmp.ne.s32.totalorder %s43, %s45
    %p49 = scmp.eq.s32.totalorder %s9, 0
    %p50 = por %p48, %p49
    %p51 = scmp.ne.s32.totalorder %s43, %s45
    %p52 = scmp.eq.s32.totalorder %s14, 1
    %p53 = por %p51, %p52
    %p54 = scmp.ne.s32.totalorder %s45, %s46
    %p55 = scmp.eq.s32.totalorder %s14, 0
    %p56 = por %p54, %p55
    %p57 = scmp.ne.s32.totalorder %s45, %s46
    %p58 = scmp.eq.s32.totalorder %s15, 1
    %p59 = por %p57, %p58
    %p61 = scmp.ne.s32.totalorder %s46, %s60
    %p62 = scmp.eq.s32.totalorder %s15, 0
    %p63 = por %p61, %p62
    %s65 = sadd.s32 %s64, 1
    %p68 = scmp.eq.s32.totalorder %s9, 1
    %p69 = scmp.ne.s32.totalorder %s64, %s66
    %p70 = scmp.eq.s32.totalorder %s9, 0
    %p71 = por %p69, %p70
    %p72 = scmp.ne.s32.totalorder %s64, %s66
    %p73 = scmp.eq.s32.totalorder %s14, 1
    %p74 = por %p72, %p73
    %p75 = scmp.ne.s32.totalorder %s66, %s67
    %p76 = scmp.eq.s32.totalorder %s14, 0
    %p77 = por %p75, %p76
    %p78 = scmp.ne.s32.totalorder %s66, %s67
    %p79 = scmp.eq.s32.totalorder %s15, 1
    %p80 = por %p78, %p79
    %p82 = scmp.ne.s32.totalorder %s67, %s81
    %p83 = scmp.eq.s32.totalorder %s15, 0
    %p84 = por %p82, %p83
    %s85 = ssub.s32 %s9, %s16
    %p86 = scmp.eq.s32.totalorder %s85, 0
    %s88 = sadd.s32 %s87, 1
    %s89 = scalar_select %p86, %s87, %s88
    %p92 = pneg %p86
    %p93 = scmp.eq.s32.totalorder %s9, 1
    %p94 = por %p92, %p93
    %p95 = scmp.ne.s32.totalorder %s87, %s90
    %p96 = scmp.eq.s32.totalorder %s9, 0
    %p97 = por %p95, %p96
    %p98 = scmp.ne.s32.totalorder %s87, %s90
    %p99 = scmp.eq.s32.totalorder %s14, 1
    %p100 = por %p98, %p99
    %p101 = scmp.ne.s32.totalorder %s90, %s91
    %p102 = scmp.eq.s32.totalorder %s14, 0
    %p103 = por %p101, %p102
    %p104 = scmp.ne.s32.totalorder %s90, %s91
    %p105 = scmp.eq.s32.totalorder %s15, 1
    %p106 = por %p104, %p105
    %p108 = scmp.ne.s32.totalorder %s91, %s107
    %p109 = scmp.eq.s32.totalorder %s15, 0
    %p110 = por %p108, %p109
    %p111 = scmp.le.s32.totalorder 1, %s9
    %p112 = scmp.lt.s32.totalorder %s9, 3
    %p113 = pnand %p111, %p112
    %p114 = pneg %p113
    // Predicated region
    $region9: #{dqn_forward.4} parent=5 // pred_check
      _
    $region10: #{dqn_forward.4} parent=5 // pred_check_branch
      %116 = sbr.rel (%p113) target = $region12
    $region11: #{dqn_forward.4} parent=5 // pred_region
      %s117 = ssub.s32 %s9, 1
      // Predicated region
      $region13: #{dqn_forward.4} parent=11 // pred_check
        %p118 = pneg %p56
      $region14: #{dqn_forward.4} parent=11 // pred_check_branch
        %120 = sbr.rel (%p118) target = $region16
      $region15: #{dqn_forward.4} parent=11 // pred_region
        _
      $region16: #{dqn_forward.4} parent=11 // pred_fallthru
        _
      // Predicated region
      $region17: #{dqn_forward.4} parent=11 // pred_check
        %p121 = pneg %p77
      $region18: #{dqn_forward.4} parent=11 // pred_check_branch
        %123 = sbr.rel (%p121) target = $region20
      $region19: #{dqn_forward.4} parent=11 // pred_region
        _
      $region20: #{dqn_forward.4} parent=11 // pred_fallthru
        _
    $region12: #{dqn_forward.4} parent=5 // pred_fallthru
      _
    %p124 = scmp.lt.s32.totalorder %s9, 2
    // Predicated region
    $region21: #{dqn_forward.4} parent=5 // pred_check
      %p125 = pneg %p124
    $region22: #{dqn_forward.4} parent=5 // pred_check_branch
      %127 = sbr.rel (%p125) target = $region24
    $region23: #{dqn_forward.4} parent=5 // pred_region
      // Predicated region
      $region25: #{dqn_forward.4} parent=23 // pred_check
        %p128 = pneg %p29
      $region26: #{dqn_forward.4} parent=23 // pred_check_branch
        %130 = sbr.rel (%p128) target = $region28
      $region27: #{dqn_forward.4} parent=23 // pred_region
        %s131 = smul.u32 50, %s9
        %p132 = scmp.lt.s32.totalorder %s131, 99
        %s133 = scalar_select %p132, %s131, 99
        %s134 = smul.addr %s133, 2
        %s135 = smul.addr %s134, 4
        %s136 = scalar_lea.vmem %s0, %s135
        %s137 = smul.u32 50, %s9
      $region28: #{dqn_forward.4} parent=23 // pred_fallthru
        _
    $region24: #{dqn_forward.4} parent=5 // pred_fallthru
      _
    %p138 = scmp.le.s32.totalorder 1, %s9
    %p139 = scmp.lt.s32.totalorder %s9, 3
    %p140 = pnand %p138, %p139
    %p141 = pneg %p140
    // Predicated region
    $region29: #{dqn_forward.4} parent=5 // pred_check
      _
    $region30: #{dqn_forward.4} parent=5 // pred_check_branch
      %143 = sbr.rel (%p140) target = $region32
    $region31: #{dqn_forward.4} parent=5 // pred_region
      %s144 = ssub.s32 %s9, 1
      %s145 = smul.u32 50, %s14
      %p146 = scmp.lt.s32.totalorder %s145, 99
      %s147 = scalar_select %p146, %s145, 99
      %s148 = smul.addr %s147, 2
      %s149 = smul.addr %s148, 4
      %s150 = scalar_lea.vmem %s0, %s149
      %p151 = pneg %p35
      %p152 = pneg %p32
      %p153 = pneg %p56
      %p154 = pneg %p53
      %p155 = pneg %p77
      %p156 = pneg %p74
      %p157 = pneg %p103
      %p158 = pneg %p100
      %s159 = smul.u32 50, %s14
      %p160 = scmp.lt.s32.totalorder %s159, 99
      %s161 = scalar_select %p160, %s159, 99
      %s162 = smul.addr %s161, 4
      %s163 = scalar_lea.vmem %s3, %s162
      %s164 = smul.u32 50, %s14
      %p165 = scmp.lt.s32.totalorder %s164, 99
      %s166 = scalar_select %p165, %s164, 99
      %s167 = smul.addr %s166, 2
      %s168 = smul.addr %s167, 4
      %s169 = scalar_lea.vmem %s0, %s168
      %s170 = smul.u32 50, %s14
      %s171 = smul.u32 50, %s14
      %p172 = scmp.lt.s32.totalorder %s171, 99
      %s173 = scalar_select %p172, %s171, 99
      %s174 = smul.addr %s173, 4
      %s175 = scalar_lea.vmem %s3, %s174
      %s176 = smul.u32 50, %s14
      %v177 = vld [vmem:[%s169] sm:$0xff]
      %v178 = vld [vmem:[%s169 + $0x8] sm:$0xff]
      %v179 = vld [vmem:[%s169 + $0x10] sm:$0xff]
      %v180 = vld [vmem:[%s169 + $0x18] sm:$0xff]
      %v181 = vld [vmem:[%s169 + $0x20] sm:$0xff]
      %v182 = vld [vmem:[%s169 + $0x28] sm:$0xff]
      %v183 = vld [vmem:[%s169 + $0x30] sm:$0xff]
      %v184 = vld [vmem:[%s169 + $0x38] sm:$0xff]
      %v185 = vld [vmem:[%s169 + $0x40] sm:$0xff]
      %v186 = vld [vmem:[%s169 + $0x48] sm:$0xff]
      %v187 = vld [vmem:[%s169 + $0x50] sm:$0xff]
      %v188 = vld [vmem:[%s169 + $0x58] sm:$0xff]
      %v189 = vld [vmem:[%s169 + $0x60] sm:$0xff]
      %v190 = vld [vmem:[%s169 + $0x68] sm:$0xff]
      %v191 = vld [vmem:[%s169 + $0x70] sm:$0xff]
      %v192 = vld [vmem:[%s169 + $0x78] sm:$0xff]
      %v193 = vld [vmem:[%s169 + $0x80] sm:$0xff]
      %v194 = vld [vmem:[%s169 + $0x88] sm:$0xff]
      %v195 = vld [vmem:[%s169 + $0x90] sm:$0xff]
      %v196 = vld [vmem:[%s169 + $0x98] sm:$0xff]
      %v197 = vld [vmem:[%s169 + $0xa0] sm:$0xff]
      %v198 = vld [vmem:[%s169 + $0xa8] sm:$0xff]
      %v199 = vld [vmem:[%s169 + $0xb0] sm:$0xff]
      %v200 = vld [vmem:[%s169 + $0xb8] sm:$0xff]
      %v201 = vld [vmem:[%s169 + $0xc0] sm:$0xff]
      %v202 = vld [vmem:[%s169 + $0xc8] sm:$0xff]
      %v203 = vld [vmem:[%s169 + $0xd0] sm:$0xff]
      %v204 = vld [vmem:[%s169 + $0xd8] sm:$0xff]
      %v205 = vld [vmem:[%s169 + $0xe0] sm:$0xff]
      %v206 = vld [vmem:[%s169 + $0xe8] sm:$0xff]
      %v207 = vld [vmem:[%s169 + $0xf0] sm:$0xff]
      %v208 = vld [vmem:[%s169 + $0xf8] sm:$0xff]
      %v209 = vld [vmem:[%s169 + $0x100] sm:$0xff]
      %v210 = vld [vmem:[%s169 + $0x108] sm:$0xff]
      %v211 = vld [vmem:[%s169 + $0x110] sm:$0xff]
      %v212 = vld [vmem:[%s169 + $0x118] sm:$0xff]
      %v213 = vld [vmem:[%s169 + $0x120] sm:$0xff]
      %v214 = vld [vmem:[%s169 + $0x128] sm:$0xff]
      %v215 = vld [vmem:[%s169 + $0x130] sm:$0xff]
      %v216 = vld [vmem:[%s169 + $0x138] sm:$0xff]
      %v217 = vld [vmem:[%s169 + $0x140] sm:$0xff]
      %v218 = vld [vmem:[%s169 + $0x148] sm:$0xff]
      %v219 = vld [vmem:[%s169 + $0x150] sm:$0xff]
      %v220 = vld [vmem:[%s169 + $0x158] sm:$0xff]
      %v221 = vld [vmem:[%s169 + $0x160] sm:$0xff]
      %v222 = vld [vmem:[%s169 + $0x168] sm:$0xff]
      %v223 = vld [vmem:[%s169 + $0x170] sm:$0xff]
      %v224 = vld [vmem:[%s169 + $0x178] sm:$0xff]
      %v225 = vld [vmem:[%s169 + $0x180] sm:$0xff]
      %v226 = vld [vmem:[%s169 + $0x188] sm:$0xff]
      %v227 = vld [vmem:[%s1] sm:$0xf]
      %v228 = vld [vmem:[%s1 + $0x4] sm:$0xf]
      %v229 = vld [vmem:[%s1 + $0x8] sm:$0xf]
      %v230 = vld [vmem:[%s1 + $0xc] sm:$0xf]
      %v231 = vld [vmem:[%s1 + $0x10] sm:$0xf]
      %v232 = vld [vmem:[%s1 + $0x14] sm:$0xf]
      %v233 = vld [vmem:[%s1 + $0x18] sm:$0xf]
      %v234 = vld [vmem:[%s1 + $0x1c] sm:$0xf]
      %v235 = vld [vmem:[%s1 + $0x20] sm:$0xf]
      %v236 = vld [vmem:[%s1 + $0x24] sm:$0xf]
      %v237 = vld [vmem:[%s1 + $0x28] sm:$0xf]
      %v238 = vld [vmem:[%s1 + $0x2c] sm:$0xf]
      %v239 = vld [vmem:[%s1 + $0x30] sm:$0xf]
      %v240 = vld [vmem:[%s1 + $0x34] sm:$0xf]
      %v241 = vld [vmem:[%s1 + $0x38] sm:$0xf]
      %v242 = vld [vmem:[%s1 + $0x3c] sm:$0xf]
      %v243 = vld [vmem:[%s1 + $0x40] sm:$0xf]
      %v244 = vld [vmem:[%s1 + $0x44] sm:$0xf]
      %v245 = vld [vmem:[%s1 + $0x48] sm:$0xf]
      %v246 = vld [vmem:[%s1 + $0x4c] sm:$0xf]
      %v247 = vld [vmem:[%s1 + $0x50] sm:$0xf]
      %v248 = vld [vmem:[%s1 + $0x54] sm:$0xf]
      %v249 = vld [vmem:[%s1 + $0x58] sm:$0xf]
      %v250 = vld [vmem:[%s1 + $0x5c] sm:$0xf]
      %v251 = vld [vmem:[%s1 + $0x60] sm:$0xf]
      %v252 = vld [vmem:[%s1 + $0x64] sm:$0xf]
      %v253 = vld [vmem:[%s1 + $0x68] sm:$0xf]
      %v254 = vld [vmem:[%s1 + $0x6c] sm:$0xf]
      %v255 = vld [vmem:[%s1 + $0x70] sm:$0xf]
      %v256 = vld [vmem:[%s1 + $0x74] sm:$0xf]
      %v257 = vld [vmem:[%s1 + $0x78] sm:$0xf]
      %v258 = vld [vmem:[%s1 + $0x7c] sm:$0xf]
      %v259 = vld [vmem:[%s2] sm:$0x1]
      %v261 = vperm.slane %v259, 0
      %v313 = vunpack.c.l.b16 %v177
      %v314 = vunpack.c.h.b16 %v177
      %v315 = vunpack.c.l.b16 %v178
      %v316 = vunpack.c.h.b16 %v178
      %v317 = vunpack.c.l.b16 %v179
      %v318 = vunpack.c.h.b16 %v179
      %v319 = vunpack.c.l.b16 %v180
      %v320 = vunpack.c.h.b16 %v180
      %v321 = vunpack.c.l.b16 %v181
      %v322 = vunpack.c.h.b16 %v181
      %v323 = vunpack.c.l.b16 %v182
      %v324 = vunpack.c.h.b16 %v182
      %v325 = vunpack.c.l.b16 %v183
      %v326 = vunpack.c.h.b16 %v183
      %v327 = vunpack.c.l.b16 %v184
      %v328 = vunpack.c.h.b16 %v184
      %v329 = vunpack.c.l.b16 %v185
      %v330 = vunpack.c.h.b16 %v185
      %v331 = vunpack.c.l.b16 %v186
      %v332 = vunpack.c.h.b16 %v186
      %v333 = vunpack.c.l.b16 %v187
      %v334 = vunpack.c.h.b16 %v187
      %v335 = vunpack.c.l.b16 %v188
      %v336 = vunpack.c.h.b16 %v188
      %v337 = vunpack.c.l.b16 %v189
      %v338 = vunpack.c.h.b16 %v189
      %v339 = vunpack.c.l.b16 %v190
      %v340 = vunpack.c.h.b16 %v190
      %v341 = vunpack.c.l.b16 %v191
      %v342 = vunpack.c.h.b16 %v191
      %v343 = vunpack.c.l.b16 %v192
      %v344 = vunpack.c.h.b16 %v192
      %v345 = vunpack.c.l.b16 %v193
      %v346 = vunpack.c.h.b16 %v193
      %v347 = vunpack.c.l.b16 %v194
      %v348 = vunpack.c.h.b16 %v194
      %v349 = vunpack.c.l.b16 %v195
      %v350 = vunpack.c.h.b16 %v195
      %v351 = vunpack.c.l.b16 %v196
      %v352 = vunpack.c.h.b16 %v196
      %v353 = vunpack.c.l.b16 %v197
      %v354 = vunpack.c.h.b16 %v197
      %v355 = vunpack.c.l.b16 %v198
      %v356 = vunpack.c.h.b16 %v198
      %v357 = vunpack.c.l.b16 %v199
      %v358 = vunpack.c.h.b16 %v199
      %v359 = vunpack.c.l.b16 %v200
      %v360 = vunpack.c.h.b16 %v200
      %v361 = vunpack.c.l.b16 %v201
      %v362 = vunpack.c.h.b16 %v201
      %v363 = vunpack.c.l.b16 %v202
      %v364 = vunpack.c.h.b16 %v202
      %v365 = vunpack.c.l.b16 %v203
      %v366 = vunpack.c.h.b16 %v203
      %v367 = vunpack.c.l.b16 %v204
      %v368 = vunpack.c.h.b16 %v204
      %v369 = vunpack.c.l.b16 %v205
      %v370 = vunpack.c.h.b16 %v205
      %v371 = vunpack.c.l.b16 %v206
      %v372 = vunpack.c.h.b16 %v206
      %v373 = vunpack.c.l.b16 %v207
      %v374 = vunpack.c.h.b16 %v207
      %v375 = vunpack.c.l.b16 %v208
      %v376 = vunpack.c.h.b16 %v208
      %v377 = vunpack.c.l.b16 %v209
      %v378 = vunpack.c.h.b16 %v209
      %v379 = vunpack.c.l.b16 %v210
      %v380 = vunpack.c.h.b16 %v210
      %v381 = vunpack.c.l.b16 %v211
      %v382 = vunpack.c.h.b16 %v211
      %v383 = vunpack.c.l.b16 %v212
      %v384 = vunpack.c.h.b16 %v212
      %v385 = vunpack.c.l.b16 %v213
      %v386 = vunpack.c.h.b16 %v213
      %v387 = vunpack.c.l.b16 %v214
      %v388 = vunpack.c.h.b16 %v214
      %v389 = vunpack.c.l.b16 %v215
      %v390 = vunpack.c.h.b16 %v215
      %v391 = vunpack.c.l.b16 %v216
      %v392 = vunpack.c.h.b16 %v216
      %v393 = vunpack.c.l.b16 %v217
      %v394 = vunpack.c.h.b16 %v217
      %v395 = vunpack.c.l.b16 %v218
      %v396 = vunpack.c.h.b16 %v218
      %v397 = vunpack.c.l.b16 %v219
      %v398 = vunpack.c.h.b16 %v219
      %v399 = vunpack.c.l.b16 %v220
      %v400 = vunpack.c.h.b16 %v220
      %v401 = vunpack.c.l.b16 %v221
      %v402 = vunpack.c.h.b16 %v221
      %v403 = vunpack.c.l.b16 %v222
      %v404 = vunpack.c.h.b16 %v222
      %v405 = vunpack.c.l.b16 %v223
      %v406 = vunpack.c.h.b16 %v223
      %v407 = vunpack.c.l.b16 %v224
      %v408 = vunpack.c.h.b16 %v224
      %v409 = vunpack.c.l.b16 %v225
      %v410 = vunpack.c.h.b16 %v225
      %v411 = vunpack.c.l.b16 %v226
      %v412 = vunpack.c.h.b16 %v226
      %v413 = vpack.c.b16 %v315, %v313
      %v414 = vpack.c.b16 %v316, %v314
      %v415 = vpack.c.b16 %v319, %v317
      %v416 = vpack.c.b16 %v320, %v318
      %v417 = vpack.c.b16 %v323, %v321
      %v418 = vpack.c.b16 %v324, %v322
      %v419 = vpack.c.b16 %v327, %v325
      %v420 = vpack.c.b16 %v328, %v326
      %v421 = vpack.c.b16 %v331, %v329
      %v422 = vpack.c.b16 %v332, %v330
      %v423 = vpack.c.b16 %v335, %v333
      %v424 = vpack.c.b16 %v336, %v334
      %v425 = vpack.c.b16 %v339, %v337
      %v426 = vpack.c.b16 %v340, %v338
      %v427 = vpack.c.b16 %v343, %v341
      %v428 = vpack.c.b16 %v344, %v342
      %v429 = vpack.c.b16 %v347, %v345
      %v430 = vpack.c.b16 %v348, %v346
      %v431 = vpack.c.b16 %v351, %v349
      %v432 = vpack.c.b16 %v352, %v350
      %v433 = vpack.c.b16 %v355, %v353
      %v434 = vpack.c.b16 %v356, %v354
      %v435 = vpack.c.b16 %v359, %v357
      %v436 = vpack.c.b16 %v360, %v358
      %v437 = vpack.c.b16 %v363, %v361
      %v438 = vpack.c.b16 %v364, %v362
      %v439 = vpack.c.b16 %v367, %v365
      %v440 = vpack.c.b16 %v368, %v366
      %v441 = vpack.c.b16 %v371, %v369
      %v442 = vpack.c.b16 %v372, %v370
      %v443 = vpack.c.b16 %v375, %v373
      %v444 = vpack.c.b16 %v376, %v374
      %v445 = vpack.c.b16 %v379, %v377
      %v446 = vpack.c.b16 %v380, %v378
      %v447 = vpack.c.b16 %v383, %v381
      %v448 = vpack.c.b16 %v384, %v382
      %v449 = vpack.c.b16 %v387, %v385
      %v450 = vpack.c.b16 %v388, %v386
      %v451 = vpack.c.b16 %v391, %v389
      %v452 = vpack.c.b16 %v392, %v390
      %v453 = vpack.c.b16 %v395, %v393
      %v454 = vpack.c.b16 %v396, %v394
      %v455 = vpack.c.b16 %v399, %v397
      %v456 = vpack.c.b16 %v400, %v398
      %v457 = vpack.c.b16 %v403, %v401
      %v458 = vpack.c.b16 %v404, %v402
      %v459 = vpack.c.b16 %v407, %v405
      %v460 = vpack.c.b16 %v408, %v406
      %v461 = vpack.c.b16 %v411, %v409
      %v462 = vpack.c.b16 %v412, %v410
      %v545 = vunpack.c.l.b16 %v227
      %v546 = vunpack.c.l.b16 %v228
      %v547 = vunpack.c.l.b16 %v229
      %v548 = vunpack.c.l.b16 %v230
      %v549 = vunpack.c.l.b16 %v231
      %v550 = vunpack.c.l.b16 %v232
      %v551 = vunpack.c.l.b16 %v233
      %v552 = vunpack.c.l.b16 %v234
      %v553 = vunpack.c.l.b16 %v235
      %v554 = vunpack.c.l.b16 %v236
      %v555 = vunpack.c.l.b16 %v237
      %v556 = vunpack.c.l.b16 %v238
      %v557 = vunpack.c.l.b16 %v239
      %v558 = vunpack.c.l.b16 %v240
      %v559 = vunpack.c.l.b16 %v241
      %v560 = vunpack.c.l.b16 %v242
      %v561 = vunpack.c.l.b16 %v243
      %v562 = vunpack.c.l.b16 %v244
      %v563 = vunpack.c.l.b16 %v245
      %v564 = vunpack.c.l.b16 %v246
      %v565 = vunpack.c.l.b16 %v247
      %v566 = vunpack.c.l.b16 %v248
      %v567 = vunpack.c.l.b16 %v249
      %v568 = vunpack.c.l.b16 %v250
      %v569 = vunpack.c.l.b16 %v251
      %v570 = vunpack.c.l.b16 %v252
      %v571 = vunpack.c.l.b16 %v253
      %v572 = vunpack.c.l.b16 %v254
      %v573 = vunpack.c.l.b16 %v255
      %v574 = vunpack.c.l.b16 %v256
      %v575 = vunpack.c.l.b16 %v257
      %v576 = vunpack.c.l.b16 %v258
      %v577 = vpack.c.b16 %v546, %v545
      %v578 = vpack.c.b16 %v548, %v547
      %v579 = vpack.c.b16 %v550, %v549
      %v580 = vpack.c.b16 %v552, %v551
      %v581 = vpack.c.b16 %v554, %v553
      %v582 = vpack.c.b16 %v556, %v555
      %v583 = vpack.c.b16 %v558, %v557
      %v584 = vpack.c.b16 %v560, %v559
      %v585 = vpack.c.b16 %v562, %v561
      %v586 = vpack.c.b16 %v564, %v563
      %v587 = vpack.c.b16 %v566, %v565
      %v588 = vpack.c.b16 %v568, %v567
      %v589 = vpack.c.b16 %v570, %v569
      %v590 = vpack.c.b16 %v572, %v571
      %v591 = vpack.c.b16 %v574, %v573
      %v592 = vpack.c.b16 %v576, %v575
      %609 = vmatpush.bf16.msra.mxu0 %v584
      %610 = vmatpush.bf16.msra.mxu0 %v583
      %611 = vmatpush.bf16.msra.mxu0 %v582
      %612 = vmatpush.bf16.msra.mxu0 %v581
      %613 = vmatpush.bf16.msra.mxu0 %v580
      %614 = vmatpush.bf16.msra.mxu0 %v579
      %615 = vmatpush.bf16.msra.mxu0 %v578
      %616 = vmatpush.bf16.msra.mxu0 %v577
      %617 = vmatmul.bf16.gmra.mxu0 %v413
      %v618 = vpop.f32.mrf.mxu0
      %v619 = vadd.f32 %v261, %v618
      %v620 = vpop.f32.mrf.mxu0
      %v621 = vadd.f32 %v261, %v620
      %622 = vmatmul.bf16.gmra.mxu0 %v415
      %v623 = vpop.f32.mrf.mxu0
      %v624 = vadd.f32 %v261, %v623
      %v625 = vpop.f32.mrf.mxu0
      %v626 = vadd.f32 %v261, %v625
      %627 = vmatmul.bf16.gmra.mxu0 %v417
      %v628 = vpop.f32.mrf.mxu0
      %v629 = vadd.f32 %v261, %v628
      %v630 = vpop.f32.mrf.mxu0
      %v631 = vadd.f32 %v261, %v630
      %632 = vmatmul.bf16.gmra.mxu0 %v419
      %v633 = vpop.f32.mrf.mxu0
      %v634 = vadd.f32 %v261, %v633
      %v635 = vpop.f32.mrf.mxu0
      %v636 = vadd.f32 %v261, %v635
      %637 = vmatmul.bf16.gmra.mxu0 %v421
      %v638 = vpop.f32.mrf.mxu0
      %v639 = vadd.f32 %v261, %v638
      %v640 = vpop.f32.mrf.mxu0
      %v641 = vadd.f32 %v261, %v640
      %642 = vmatmul.bf16.gmra.mxu0 %v423
      %v643 = vpop.f32.mrf.mxu0
      %v644 = vadd.f32 %v261, %v643
      %v645 = vpop.f32.mrf.mxu0
      %v646 = vadd.f32 %v261, %v645
      %647 = vmatmul.bf16.gmra.mxu0 %v425
      %v648 = vpop.f32.mrf.mxu0
      %v649 = vadd.f32 %v261, %v648
      %v650 = vpop.f32.mrf.mxu0
      %v651 = vadd.f32 %v261, %v650
      %652 = vmatmul.bf16.gmra.mxu0 %v427
      %v653 = vpop.f32.mrf.mxu0
      %v654 = vadd.f32 %v261, %v653
      %v655 = vpop.f32.mrf.mxu0
      %v656 = vadd.f32 %v261, %v655
      %657 = vmatmul.bf16.gmra.mxu0 %v429
      %v658 = vpop.f32.mrf.mxu0
      %v659 = vadd.f32 %v261, %v658
      %v660 = vpop.f32.mrf.mxu0
      %v661 = vadd.f32 %v261, %v660
      %662 = vmatmul.bf16.gmra.mxu0 %v431
      %v663 = vpop.f32.mrf.mxu0
      %v664 = vadd.f32 %v261, %v663
      %v665 = vpop.f32.mrf.mxu0
      %v666 = vadd.f32 %v261, %v665
      %667 = vmatmul.bf16.gmra.mxu0 %v433
      %v668 = vpop.f32.mrf.mxu0
      %v669 = vadd.f32 %v261, %v668
      %v670 = vpop.f32.mrf.mxu0
      %v671 = vadd.f32 %v261, %v670
      %672 = vmatmul.bf16.gmra.mxu0 %v435
      %v673 = vpop.f32.mrf.mxu0
      %v674 = vadd.f32 %v261, %v673
      %v675 = vpop.f32.mrf.mxu0
      %v676 = vadd.f32 %v261, %v675
      %677 = vmatmul.bf16.gmra.mxu0 %v437
      %v678 = vpop.f32.mrf.mxu0
      %v679 = vadd.f32 %v261, %v678
      %v680 = vpop.f32.mrf.mxu0
      %v681 = vadd.f32 %v261, %v680
      %682 = vmatmul.bf16.gmra.mxu0 %v439
      %v683 = vpop.f32.mrf.mxu0
      %v684 = vadd.f32 %v261, %v683
      %v685 = vpop.f32.mrf.mxu0
      %v686 = vadd.f32 %v261, %v685
      %687 = vmatmul.bf16.gmra.mxu0 %v441
      %v688 = vpop.f32.mrf.mxu0
      %v689 = vadd.f32 %v261, %v688
      %v690 = vpop.f32.mrf.mxu0
      %v691 = vadd.f32 %v261, %v690
      %692 = vmatmul.bf16.gmra.mxu0 %v443
      %v693 = vpop.f32.mrf.mxu0
      %v694 = vadd.f32 %v261, %v693
      %v695 = vpop.f32.mrf.mxu0
      %v696 = vadd.f32 %v261, %v695
      %697 = vmatmul.bf16.gmra.mxu0 %v445
      %v698 = vpop.f32.mrf.mxu0
      %v699 = vadd.f32 %v261, %v698
      %v700 = vpop.f32.mrf.mxu0
      %v701 = vadd.f32 %v261, %v700
      %702 = vmatmul.bf16.gmra.mxu0 %v447
      %v703 = vpop.f32.mrf.mxu0
      %v704 = vadd.f32 %v261, %v703
      %v705 = vpop.f32.mrf.mxu0
      %v706 = vadd.f32 %v261, %v705
      %707 = vmatmul.bf16.gmra.mxu0 %v449
      %v708 = vpop.f32.mrf.mxu0
      %v709 = vadd.f32 %v261, %v708
      %v710 = vpop.f32.mrf.mxu0
      %v711 = vadd.f32 %v261, %v710
      %712 = vmatmul.bf16.gmra.mxu0 %v451
      %v713 = vpop.f32.mrf.mxu0
      %v714 = vadd.f32 %v261, %v713
      %v715 = vpop.f32.mrf.mxu0
      %v716 = vadd.f32 %v261, %v715
      %717 = vmatmul.bf16.gmra.mxu0 %v453
      %v718 = vpop.f32.mrf.mxu0
      %v719 = vadd.f32 %v261, %v718
      %v720 = vpop.f32.mrf.mxu0
      %v721 = vadd.f32 %v261, %v720
      %722 = vmatmul.bf16.gmra.mxu0 %v455
      %v723 = vpop.f32.mrf.mxu0
      %v724 = vadd.f32 %v261, %v723
      %v725 = vpop.f32.mrf.mxu0
      %v726 = vadd.f32 %v261, %v725
      %727 = vmatmul.bf16.gmra.mxu0 %v457
      %v728 = vpop.f32.mrf.mxu0
      %v729 = vadd.f32 %v261, %v728
      %v730 = vpop.f32.mrf.mxu0
      %v731 = vadd.f32 %v261, %v730
      %732 = vmatmul.bf16.gmra.mxu0 %v459
      %v733 = vpop.f32.mrf.mxu0
      %v734 = vadd.f32 %v261, %v733
      %v735 = vpop.f32.mrf.mxu0
      %v736 = vadd.f32 %v261, %v735
      %737 = vmatmul.bf16.gmra.mxu0 %v461
      %v738 = vpop.f32.mrf.mxu0
      %v739 = vadd.f32 %v261, %v738
      %v740 = vpop.f32.mrf.mxu0
      %v741 = vadd.f32 %v261, %v740
      %742 = vdwg.mxu0
      %743 = vmatpush.bf16.msra.mxu0 %v592
      %744 = vmatpush.bf16.msra.mxu0 %v591
      %745 = vmatpush.bf16.msra.mxu0 %v590
      %746 = vmatpush.bf16.msra.mxu0 %v589
      %747 = vmatpush.bf16.msra.mxu0 %v588
      %748 = vmatpush.bf16.msra.mxu0 %v587
      %749 = vmatpush.bf16.msra.mxu0 %v586
      %750 = vmatpush.bf16.msra.mxu0 %v585
      %751 = vmatmul.bf16.gmra.mxu0 %v414
      %v752 = vpop.f32.mrf.mxu0
      %v753 = vadd.f32 %v619, %v752
      %v754 = vpop.f32.mrf.mxu0
      %v755 = vadd.f32 %v621, %v754
      %756 = vmatmul.bf16.gmra.mxu0 %v416
      %v757 = vpop.f32.mrf.mxu0
      %v758 = vadd.f32 %v624, %v757
      %v759 = vpop.f32.mrf.mxu0
      %v760 = vadd.f32 %v626, %v759
      %761 = vmatmul.bf16.gmra.mxu0 %v418
      %v762 = vpop.f32.mrf.mxu0
      %v763 = vadd.f32 %v629, %v762
      %v764 = vpop.f32.mrf.mxu0
      %v765 = vadd.f32 %v631, %v764
      %766 = vmatmul.bf16.gmra.mxu0 %v420
      %v767 = vpop.f32.mrf.mxu0
      %v768 = vadd.f32 %v634, %v767
      %v769 = vpop.f32.mrf.mxu0
      %v770 = vadd.f32 %v636, %v769
      %771 = vmatmul.bf16.gmra.mxu0 %v422
      %v772 = vpop.f32.mrf.mxu0
      %v773 = vadd.f32 %v639, %v772
      %v774 = vpop.f32.mrf.mxu0
      %v775 = vadd.f32 %v641, %v774
      %776 = vmatmul.bf16.gmra.mxu0 %v424
      %v777 = vpop.f32.mrf.mxu0
      %v778 = vadd.f32 %v644, %v777
      %v779 = vpop.f32.mrf.mxu0
      %v780 = vadd.f32 %v646, %v779
      %781 = vmatmul.bf16.gmra.mxu0 %v426
      %v782 = vpop.f32.mrf.mxu0
      %v783 = vadd.f32 %v649, %v782
      %v784 = vpop.f32.mrf.mxu0
      %v785 = vadd.f32 %v651, %v784
      %786 = vmatmul.bf16.gmra.mxu0 %v428
      %v787 = vpop.f32.mrf.mxu0
      %v788 = vadd.f32 %v654, %v787
      %v789 = vpop.f32.mrf.mxu0
      %v790 = vadd.f32 %v656, %v789
      %791 = vmatmul.bf16.gmra.mxu0 %v430
      %v792 = vpop.f32.mrf.mxu0
      %v793 = vadd.f32 %v659, %v792
      %v794 = vpop.f32.mrf.mxu0
      %v795 = vadd.f32 %v661, %v794
      %796 = vmatmul.bf16.gmra.mxu0 %v432
      %v797 = vpop.f32.mrf.mxu0
      %v798 = vadd.f32 %v664, %v797
      %v799 = vpop.f32.mrf.mxu0
      %v800 = vadd.f32 %v666, %v799
      %801 = vmatmul.bf16.gmra.mxu0 %v434
      %v802 = vpop.f32.mrf.mxu0
      %v803 = vadd.f32 %v669, %v802
      %v804 = vpop.f32.mrf.mxu0
      %v805 = vadd.f32 %v671, %v804
      %806 = vmatmul.bf16.gmra.mxu0 %v436
      %v807 = vpop.f32.mrf.mxu0
      %v808 = vadd.f32 %v674, %v807
      %v809 = vpop.f32.mrf.mxu0
      %v810 = vadd.f32 %v676, %v809
      %811 = vmatmul.bf16.gmra.mxu0 %v438
      %v812 = vpop.f32.mrf.mxu0
      %v813 = vadd.f32 %v679, %v812
      %v814 = vpop.f32.mrf.mxu0
      %v815 = vadd.f32 %v681, %v814
      %816 = vmatmul.bf16.gmra.mxu0 %v440
      %v817 = vpop.f32.mrf.mxu0
      %v818 = vadd.f32 %v684, %v817
      %v819 = vpop.f32.mrf.mxu0
      %v820 = vadd.f32 %v686, %v819
      %821 = vmatmul.bf16.gmra.mxu0 %v442
      %v822 = vpop.f32.mrf.mxu0
      %v823 = vadd.f32 %v689, %v822
      %v824 = vpop.f32.mrf.mxu0
      %v825 = vadd.f32 %v691, %v824
      %826 = vmatmul.bf16.gmra.mxu0 %v444
      %v827 = vpop.f32.mrf.mxu0
      %v828 = vadd.f32 %v694, %v827
      %v829 = vpop.f32.mrf.mxu0
      %v830 = vadd.f32 %v696, %v829
      %831 = vmatmul.bf16.gmra.mxu0 %v446
      %v832 = vpop.f32.mrf.mxu0
      %v833 = vadd.f32 %v699, %v832
      %v834 = vpop.f32.mrf.mxu0
      %v835 = vadd.f32 %v701, %v834
      %836 = vmatmul.bf16.gmra.mxu0 %v448
      %v837 = vpop.f32.mrf.mxu0
      %v838 = vadd.f32 %v704, %v837
      %v839 = vpop.f32.mrf.mxu0
      %v840 = vadd.f32 %v706, %v839
      %841 = vmatmul.bf16.gmra.mxu0 %v450
      %v842 = vpop.f32.mrf.mxu0
      %v843 = vadd.f32 %v709, %v842
      %v844 = vpop.f32.mrf.mxu0
      %v845 = vadd.f32 %v711, %v844
      %846 = vmatmul.bf16.gmra.mxu0 %v452
      %v847 = vpop.f32.mrf.mxu0
      %v848 = vadd.f32 %v714, %v847
      %v849 = vpop.f32.mrf.mxu0
      %v850 = vadd.f32 %v716, %v849
      %851 = vmatmul.bf16.gmra.mxu0 %v454
      %v852 = vpop.f32.mrf.mxu0
      %v853 = vadd.f32 %v719, %v852
      %v854 = vpop.f32.mrf.mxu0
      %v855 = vadd.f32 %v721, %v854
      %856 = vmatmul.bf16.gmra.mxu0 %v456
      %v857 = vpop.f32.mrf.mxu0
      %v858 = vadd.f32 %v724, %v857
      %v859 = vpop.f32.mrf.mxu0
      %v860 = vadd.f32 %v726, %v859
      %861 = vmatmul.bf16.gmra.mxu0 %v458
      %v862 = vpop.f32.mrf.mxu0
      %v863 = vadd.f32 %v729, %v862
      %v864 = vpop.f32.mrf.mxu0
      %v865 = vadd.f32 %v731, %v864
      %866 = vmatmul.bf16.gmra.mxu0 %v460
      %v867 = vpop.f32.mrf.mxu0
      %v868 = vadd.f32 %v734, %v867
      %v869 = vpop.f32.mrf.mxu0
      %v870 = vadd.f32 %v736, %v869
      %871 = vmatmul.bf16.gmra.mxu0 %v462
      %v872 = vpop.f32.mrf.mxu0
      %v873 = vadd.f32 %v739, %v872
      %v874 = vpop.f32.mrf.mxu0
      %v875 = vadd.f32 %v741, %v874
      %876 = vdwg.mxu0
      %v877 = vmax.f32 %v753, 0.0
      %v878 = vmax.f32 %v755, 0.0
      %v879 = vmax.f32 %v758, 0.0
      %v880 = vmax.f32 %v760, 0.0
      %v881 = vmax.f32 %v763, 0.0
      %v882 = vmax.f32 %v765, 0.0
      %v883 = vmax.f32 %v768, 0.0
      %v884 = vmax.f32 %v770, 0.0
      %v885 = vmax.f32 %v773, 0.0
      %v886 = vmax.f32 %v775, 0.0
      %v887 = vmax.f32 %v778, 0.0
      %v888 = vmax.f32 %v780, 0.0
      %v889 = vmax.f32 %v783, 0.0
      %v890 = vmax.f32 %v785, 0.0
      %v891 = vmax.f32 %v788, 0.0
      %v892 = vmax.f32 %v790, 0.0
      %v893 = vmax.f32 %v793, 0.0
      %v894 = vmax.f32 %v795, 0.0
      %v895 = vmax.f32 %v798, 0.0
      %v896 = vmax.f32 %v800, 0.0
      %v897 = vmax.f32 %v803, 0.0
      %v898 = vmax.f32 %v805, 0.0
      %v899 = vmax.f32 %v808, 0.0
      %v900 = vmax.f32 %v810, 0.0
      %v901 = vmax.f32 %v813, 0.0
      %v902 = vmax.f32 %v815, 0.0
      %v903 = vmax.f32 %v818, 0.0
      %v904 = vmax.f32 %v820, 0.0
      %v905 = vmax.f32 %v823, 0.0
      %v906 = vmax.f32 %v825, 0.0
      %v907 = vmax.f32 %v828, 0.0
      %v908 = vmax.f32 %v830, 0.0
      %v909 = vmax.f32 %v833, 0.0
      %v910 = vmax.f32 %v835, 0.0
      %v911 = vmax.f32 %v838, 0.0
      %v912 = vmax.f32 %v840, 0.0
      %v913 = vmax.f32 %v843, 0.0
      %v914 = vmax.f32 %v845, 0.0
      %v915 = vmax.f32 %v848, 0.0
      %v916 = vmax.f32 %v850, 0.0
      %v917 = vmax.f32 %v853, 0.0
      %v918 = vmax.f32 %v855, 0.0
      %v919 = vmax.f32 %v858, 0.0
      %v920 = vmax.f32 %v860, 0.0
      %v921 = vmax.f32 %v863, 0.0
      %v922 = vmax.f32 %v865, 0.0
      %v923 = vmax.f32 %v868, 0.0
      %v924 = vmax.f32 %v870, 0.0
      %v925 = vmax.f32 %v873, 0.0
      %v926 = vmax.f32 %v875, 0.0
      %v927 = vpack.c.bf16 %v877, %v877
      %v928 = vpack.c.bf16 %v878, %v878
      %v929 = vpack.c.bf16 %v879, %v879
      %v930 = vpack.c.bf16 %v880, %v880
      %v931 = vpack.c.bf16 %v881, %v881
      %v932 = vpack.c.bf16 %v882, %v882
      %v933 = vpack.c.bf16 %v883, %v883
      %v934 = vpack.c.bf16 %v884, %v884
      %v935 = vpack.c.bf16 %v885, %v885
      %v936 = vpack.c.bf16 %v886, %v886
      %v937 = vpack.c.bf16 %v887, %v887
      %v938 = vpack.c.bf16 %v888, %v888
      %v939 = vpack.c.bf16 %v889, %v889
      %v940 = vpack.c.bf16 %v890, %v890
      %v941 = vpack.c.bf16 %v891, %v891
      %v942 = vpack.c.bf16 %v892, %v892
      %v943 = vpack.c.bf16 %v893, %v893
      %v944 = vpack.c.bf16 %v894, %v894
      %v945 = vpack.c.bf16 %v895, %v895
      %v946 = vpack.c.bf16 %v896, %v896
      %v947 = vpack.c.bf16 %v897, %v897
      %v948 = vpack.c.bf16 %v898, %v898
      %v949 = vpack.c.bf16 %v899, %v899
      %v950 = vpack.c.bf16 %v900, %v900
      %v951 = vpack.c.bf16 %v901, %v901
      %v952 = vpack.c.bf16 %v902, %v902
      %v953 = vpack.c.bf16 %v903, %v903
      %v954 = vpack.c.bf16 %v904, %v904
      %v955 = vpack.c.bf16 %v905, %v905
      %v956 = vpack.c.bf16 %v906, %v906
      %v957 = vpack.c.bf16 %v907, %v907
      %v958 = vpack.c.bf16 %v908, %v908
      %v959 = vpack.c.bf16 %v909, %v909
      %v960 = vpack.c.bf16 %v910, %v910
      %v961 = vpack.c.bf16 %v911, %v911
      %v962 = vpack.c.bf16 %v912, %v912
      %v963 = vpack.c.bf16 %v913, %v913
      %v964 = vpack.c.bf16 %v914, %v914
      %v965 = vpack.c.bf16 %v915, %v915
      %v966 = vpack.c.bf16 %v916, %v916
      %v967 = vpack.c.bf16 %v917, %v917
      %v968 = vpack.c.bf16 %v918, %v918
      %v969 = vpack.c.bf16 %v919, %v919
      %v970 = vpack.c.bf16 %v920, %v920
      %v971 = vpack.c.bf16 %v921, %v921
      %v972 = vpack.c.bf16 %v922, %v922
      %v973 = vpack.c.bf16 %v923, %v923
      %v974 = vpack.c.bf16 %v924, %v924
      %v975 = vpack.c.bf16 %v925, %v925
      %v976 = vpack.c.bf16 %v926, %v926
      %vm977 = vcmask 257024
      %978 = vst.msk [vmem:[%s175] sm:$0xf] %vm977, %v927
      %979 = vst.msk [vmem:[%s175 + $0x4] sm:$0xf] %vm977, %v928
      %980 = vst.msk [vmem:[%s175 + $0x8] sm:$0xf] %vm977, %v929
      %981 = vst.msk [vmem:[%s175 + $0xc] sm:$0xf] %vm977, %v930
      %982 = vst.msk [vmem:[%s175 + $0x10] sm:$0xf] %vm977, %v931
      %983 = vst.msk [vmem:[%s175 + $0x14] sm:$0xf] %vm977, %v932
      %984 = vst.msk [vmem:[%s175 + $0x18] sm:$0xf] %vm977, %v933
      %985 = vst.msk [vmem:[%s175 + $0x1c] sm:$0xf] %vm977, %v934
      %986 = vst.msk [vmem:[%s175 + $0x20] sm:$0xf] %vm977, %v935
      %987 = vst.msk [vmem:[%s175 + $0x24] sm:$0xf] %vm977, %v936
      %988 = vst.msk [vmem:[%s175 + $0x28] sm:$0xf] %vm977, %v937
      %989 = vst.msk [vmem:[%s175 + $0x2c] sm:$0xf] %vm977, %v938
      %990 = vst.msk [vmem:[%s175 + $0x30] sm:$0xf] %vm977, %v939
      %991 = vst.msk [vmem:[%s175 + $0x34] sm:$0xf] %vm977, %v940
      %992 = vst.msk [vmem:[%s175 + $0x38] sm:$0xf] %vm977, %v941
      %993 = vst.msk [vmem:[%s175 + $0x3c] sm:$0xf] %vm977, %v942
      %994 = vst.msk [vmem:[%s175 + $0x40] sm:$0xf] %vm977, %v943
      %995 = vst.msk [vmem:[%s175 + $0x44] sm:$0xf] %vm977, %v944
      %996 = vst.msk [vmem:[%s175 + $0x48] sm:$0xf] %vm977, %v945
      %997 = vst.msk [vmem:[%s175 + $0x4c] sm:$0xf] %vm977, %v946
      %998 = vst.msk [vmem:[%s175 + $0x50] sm:$0xf] %vm977, %v947
      %999 = vst.msk [vmem:[%s175 + $0x54] sm:$0xf] %vm977, %v948
      %1000 = vst.msk [vmem:[%s175 + $0x58] sm:$0xf] %vm977, %v949
      %1001 = vst.msk [vmem:[%s175 + $0x5c] sm:$0xf] %vm977, %v950
      %1002 = vst.msk [vmem:[%s175 + $0x60] sm:$0xf] %vm977, %v951
      %1003 = vst.msk [vmem:[%s175 + $0x64] sm:$0xf] %vm977, %v952
      %1004 = vst.msk [vmem:[%s175 + $0x68] sm:$0xf] %vm977, %v953
      %1005 = vst.msk [vmem:[%s175 + $0x6c] sm:$0xf] %vm977, %v954
      %1006 = vst.msk [vmem:[%s175 + $0x70] sm:$0xf] %vm977, %v955
      %1007 = vst.msk [vmem:[%s175 + $0x74] sm:$0xf] %vm977, %v956
      %1008 = vst.msk [vmem:[%s175 + $0x78] sm:$0xf] %vm977, %v957
      %1009 = vst.msk [vmem:[%s175 + $0x7c] sm:$0xf] %vm977, %v958
      %1010 = vst.msk [vmem:[%s175 + $0x80] sm:$0xf] %vm977, %v959
      %1011 = vst.msk [vmem:[%s175 + $0x84] sm:$0xf] %vm977, %v960
      %1012 = vst.msk [vmem:[%s175 + $0x88] sm:$0xf] %vm977, %v961
      %1013 = vst.msk [vmem:[%s175 + $0x8c] sm:$0xf] %vm977, %v962
      %1014 = vst.msk [vmem:[%s175 + $0x90] sm:$0xf] %vm977, %v963
      %1015 = vst.msk [vmem:[%s175 + $0x94] sm:$0xf] %vm977, %v964
      %1016 = vst.msk [vmem:[%s175 + $0x98] sm:$0xf] %vm977, %v965
      %1017 = vst.msk [vmem:[%s175 + $0x9c] sm:$0xf] %vm977, %v966
      %1018 = vst.msk [vmem:[%s175 + $0xa0] sm:$0xf] %vm977, %v967
      %1019 = vst.msk [vmem:[%s175 + $0xa4] sm:$0xf] %vm977, %v968
      %1020 = vst.msk [vmem:[%s175 + $0xa8] sm:$0xf] %vm977, %v969
      %1021 = vst.msk [vmem:[%s175 + $0xac] sm:$0xf] %vm977, %v970
      %1022 = vst.msk [vmem:[%s175 + $0xb0] sm:$0xf] %vm977, %v971
      %1023 = vst.msk [vmem:[%s175 + $0xb4] sm:$0xf] %vm977, %v972
      %1024 = vst.msk [vmem:[%s175 + $0xb8] sm:$0xf] %vm977, %v973
      %1025 = vst.msk [vmem:[%s175 + $0xbc] sm:$0xf] %vm977, %v974
      %1026 = vst.msk [vmem:[%s175 + $0xc0] sm:$0xf] %vm977, %v975
      %1027 = vst.msk [vmem:[%s175 + $0xc4] sm:$0xf] %vm977, %v976
      %s1028 = smul.u32 50, %s14
      %p1029 = scmp.lt.s32.totalorder %s1028, 99
      %s1030 = scalar_select %p1029, %s1028, 99
      %s1031 = smul.addr %s1030, 4
      %s1032 = scalar_lea.vmem %s3, %s1031
      // Predicated region
      $region33: #{dqn_forward.4} parent=31 // pred_check
        %p1033 = pneg %p100
      $region34: #{dqn_forward.4} parent=31 // pred_check_branch
        %1035 = sbr.rel (%p1033) target = $region36
      $region35: #{dqn_forward.4} parent=31 // pred_region
        %s1036 = smul.u32 50, %s14
      $region36: #{dqn_forward.4} parent=31 // pred_fallthru
        _
    $region32: #{dqn_forward.4} parent=5 // pred_fallthru
      _
    %p1037 = scmp.le.s32.totalorder 2, %s9
    // Predicated region
    $region37: #{dqn_forward.4} parent=5 // pred_check
      %p1038 = pneg %p1037
    $region38: #{dqn_forward.4} parent=5 // pred_check_branch
      %1040 = sbr.rel (%p1038) target = $region40
    $region39: #{dqn_forward.4} parent=5 // pred_region
      %s1041 = ssub.s32 %s9, 2
      // Predicated region
      $region41: #{dqn_forward.4} parent=39 // pred_check
        %p1042 = pneg %p106
      $region42: #{dqn_forward.4} parent=39 // pred_check_branch
        %1044 = sbr.rel (%p1042) target = $region44
      $region43: #{dqn_forward.4} parent=39 // pred_region
        %s1045 = smul.u32 50, %s15
        %p1046 = scmp.lt.s32.totalorder %s1045, 99
        %s1047 = scalar_select %p1046, %s1045, 99
        %s1048 = smul.addr %s1047, 4
        %s1049 = scalar_lea.vmem %s3, %s1048
      $region44: #{dqn_forward.4} parent=39 // pred_fallthru
        _
    $region40: #{dqn_forward.4} parent=5 // pred_fallthru
      _
  $region6: #{dqn_forward.4} parent=0 // loop_footer
    %s13 = sadd.s32 1, %s9
  $region7: #{dqn_forward.4} parent=0 // loop_footer_branch
    %8 = sbr.rel target = $region3
  $region8: #{dqn_forward.4} parent=0 // loop_exit
    _

// kernel: dqn_forward.5
$region0: #{dqn_forward.5}
  #allocation0 [shape = 'u32[]', space=smem, size = 0x4, offset = 0x4, fixed_abs, tag = 'smem constant byte address 0x4 - core index']
  #allocation1 [shape = 'u32[72,128]{1,0:T(1,128)}', space=vmem, size = 0x9000, scoped, tag = 'internal scratch']
  %s0 = inlined_call_operand.vmem [shape: bf16[192,512], index: 0, kind: input, shape index: {}]
  %s1 = inlined_call_operand.vmem [shape: bf16[512,64], index: 1, kind: input, shape index: {}]
  %s2 = inlined_call_operand.vmem [shape: f32[1,64], index: 2, kind: input, shape index: {}]
  %s3 = inlined_call_operand.vmem [shape: bf16[192,64], index: 3, kind: output, shape index: {}]
  %s4 = sld [smem:[#allocation0]]
  $region45: #{dqn_forward.5} parent=0
    _
  %s6 = ssub.s32 1, %s4
  %s7 = scalar_select 0, %s6, %s4
  loop: start=0, step=1, limit=4
  $region2: #{dqn_forward.5} parent=0 // loop_pre_header
    _
  $region3: #{dqn_forward.5} parent=0 // loop_header
    %s9 = sphi 0, %s13
    %p10 = scmp.ge.s32.totalorder %s9, 4
    %s19 = sphi 0, %s21
    %s22 = sphi 0, %s19
    %s23 = sphi 0, %s22
    %s39 = sphi 0, %s23
    %s43 = sphi 0, %s43
    %s45 = sphi 0, %s43
    %s46 = sphi 0, %s45
    %s60 = sphi 0, %s46
    %s64 = sphi 0, %s64
    %s66 = sphi 0, %s64
    %s67 = sphi 0, %s66
    %s81 = sphi 0, %s67
    %s87 = sphi 0, %s89
    %s90 = sphi 0, %s87
    %s91 = sphi 0, %s90
    %s107 = sphi 0, %s91
  $region4: #{dqn_forward.5} parent=0 // loop_header_branch
    %12 = sbr.rel (%p10) target = $region8
  $region5: #{dqn_forward.5} parent=0 // loop_body
    %s14 = ssub.s32 %s9, 1
    %s15 = ssub.s32 %s9, 2
    %s16 = sadd.s32 %s9, 1
    %s17 = ssub.s32 %s9, %s16
    %p18 = scmp.eq.s32.totalorder %s17, 0
    %s20 = sadd.s32 %s19, 1
    %s21 = scalar_select %p18, %s19, %s20
    %p24 = pneg %p18
    %p25 = scmp.eq.s32.totalorder %s9, 1
    %p26 = por %p24, %p25
    %p27 = scmp.ne.s32.totalorder %s19, %s22
    %p28 = scmp.eq.s32.totalorder %s9, 0
    %p29 = por %p27, %p28
    %p30 = scmp.ne.s32.totalorder %s19, %s22
    %p31 = scmp.eq.s32.totalorder %s14, 1
    %p32 = por %p30, %p31
    %p33 = scmp.ne.s32.totalorder %s22, %s23
    %p34 = scmp.eq.s32.totalorder %s14, 0
    %p35 = por %p33, %p34
    %p36 = scmp.ne.s32.totalorder %s22, %s23
    %p37 = scmp.eq.s32.totalorder %s15, 1
    %p38 = por %p36, %p37
    %p40 = scmp.ne.s32.totalorder %s23, %s39
    %p41 = scmp.eq.s32.totalorder %s15, 0
    %p42 = por %p40, %p41
    %s44 = sadd.s32 %s43, 1
    %p47 = scmp.eq.s32.totalorder %s9, 1
    %p48 = scmp.ne.s32.totalorder %s43, %s45
    %p49 = scmp.eq.s32.totalorder %s9, 0
    %p50 = por %p48, %p49
    %p51 = scmp.ne.s32.totalorder %s43, %s45
    %p52 = scmp.eq.s32.totalorder %s14, 1
    %p53 = por %p51, %p52
    %p54 = scmp.ne.s32.totalorder %s45, %s46
    %p55 = scmp.eq.s32.totalorder %s14, 0
    %p56 = por %p54, %p55
    %p57 = scmp.ne.s32.totalorder %s45, %s46
    %p58 = scmp.eq.s32.totalorder %s15, 1
    %p59 = por %p57, %p58
    %p61 = scmp.ne.s32.totalorder %s46, %s60
    %p62 = scmp.eq.s32.totalorder %s15, 0
    %p63 = por %p61, %p62
    %s65 = sadd.s32 %s64, 1
    %p68 = scmp.eq.s32.totalorder %s9, 1
    %p69 = scmp.ne.s32.totalorder %s64, %s66
    %p70 = scmp.eq.s32.totalorder %s9, 0
    %p71 = por %p69, %p70
    %p72 = scmp.ne.s32.totalorder %s64, %s66
    %p73 = scmp.eq.s32.totalorder %s14, 1
    %p74 = por %p72, %p73
    %p75 = scmp.ne.s32.totalorder %s66, %s67
    %p76 = scmp.eq.s32.totalorder %s14, 0
    %p77 = por %p75, %p76
    %p78 = scmp.ne.s32.totalorder %s66, %s67
    %p79 = scmp.eq.s32.totalorder %s15, 1
    %p80 = por %p78, %p79
    %p82 = scmp.ne.s32.totalorder %s67, %s81
    %p83 = scmp.eq.s32.totalorder %s15, 0
    %p84 = por %p82, %p83
    %s85 = ssub.s32 %s9, %s16
    %p86 = scmp.eq.s32.totalorder %s85, 0
    %s88 = sadd.s32 %s87, 1
    %s89 = scalar_select %p86, %s87, %s88
    %p92 = pneg %p86
    %p93 = scmp.eq.s32.totalorder %s9, 1
    %p94 = por %p92, %p93
    %p95 = scmp.ne.s32.totalorder %s87, %s90
    %p96 = scmp.eq.s32.totalorder %s9, 0
    %p97 = por %p95, %p96
    %p98 = scmp.ne.s32.totalorder %s87, %s90
    %p99 = scmp.eq.s32.totalorder %s14, 1
    %p100 = por %p98, %p99
    %p101 = scmp.ne.s32.totalorder %s90, %s91
    %p102 = scmp.eq.s32.totalorder %s14, 0
    %p103 = por %p101, %p102
    %p104 = scmp.ne.s32.totalorder %s90, %s91
    %p105 = scmp.eq.s32.totalorder %s15, 1
    %p106 = por %p104, %p105
    %p108 = scmp.ne.s32.totalorder %s91, %s107
    %p109 = scmp.eq.s32.totalorder %s15, 0
    %p110 = por %p108, %p109
    %p111 = scmp.le.s32.totalorder 1, %s9
    %p112 = scmp.lt.s32.totalorder %s9, 3
    %p113 = pnand %p111, %p112
    %p114 = pneg %p113
    // Predicated region
    $region9: #{dqn_forward.5} parent=5 // pred_check
      _
    $region10: #{dqn_forward.5} parent=5 // pred_check_branch
      %116 = sbr.rel (%p113) target = $region12
    $region11: #{dqn_forward.5} parent=5 // pred_region
      %s117 = ssub.s32 %s9, 1
      // Predicated region
      $region13: #{dqn_forward.5} parent=11 // pred_check
        %p118 = pneg %p56
      $region14: #{dqn_forward.5} parent=11 // pred_check_branch
        %120 = sbr.rel (%p118) target = $region16
      $region15: #{dqn_forward.5} parent=11 // pred_region
        _
      $region16: #{dqn_forward.5} parent=11 // pred_fallthru
        _
      // Predicated region
      $region17: #{dqn_forward.5} parent=11 // pred_check
        %p121 = pneg %p77
      $region18: #{dqn_forward.5} parent=11 // pred_check_branch
        %123 = sbr.rel (%p121) target = $region20
      $region19: #{dqn_forward.5} parent=11 // pred_region
        _
      $region20: #{dqn_forward.5} parent=11 // pred_fallthru
        _
    $region12: #{dqn_forward.5} parent=5 // pred_fallthru
      _
    %p124 = scmp.lt.s32.totalorder %s9, 2
    // Predicated region
    $region21: #{dqn_forward.5} parent=5 // pred_check
      %p125 = pneg %p124
    $region22: #{dqn_forward.5} parent=5 // pred_check_branch
      %127 = sbr.rel (%p125) target = $region24
    $region23: #{dqn_forward.5} parent=5 // pred_region
      // Predicated region
      $region25: #{dqn_forward.5} parent=23 // pred_check
        %p128 = pneg %p29
      $region26: #{dqn_forward.5} parent=23 // pred_check_branch
        %130 = sbr.rel (%p128) target = $region28
      $region27: #{dqn_forward.5} parent=23 // pred_region
        %s131 = smul.u32 12, %s9
        %p132 = scmp.lt.s32.totalorder %s131, 23
        %s133 = scalar_select %p132, %s131, 23
        %s134 = smul.addr %s133, 4
        %s135 = smul.addr %s134, 4
        %s136 = scalar_lea.vmem %s0, %s135
        %s137 = smul.u32 12, %s9
      $region28: #{dqn_forward.5} parent=23 // pred_fallthru
        _
    $region24: #{dqn_forward.5} parent=5 // pred_fallthru
      _
    %p138 = scmp.le.s32.totalorder 1, %s9
    %p139 = scmp.lt.s32.totalorder %s9, 3
    %p140 = pnand %p138, %p139
    %p141 = pneg %p140
    // Predicated region
    $region29: #{dqn_forward.5} parent=5 // pred_check
      _
    $region30: #{dqn_forward.5} parent=5 // pred_check_branch
      %143 = sbr.rel (%p140) target = $region32
    $region31: #{dqn_forward.5} parent=5 // pred_region
      %s144 = ssub.s32 %s9, 1
      %s145 = smul.u32 12, %s14
      %p146 = scmp.lt.s32.totalorder %s145, 23
      %s147 = scalar_select %p146, %s145, 23
      %s148 = smul.addr %s147, 4
      %s149 = smul.addr %s148, 4
      %s150 = scalar_lea.vmem %s0, %s149
      %p151 = pneg %p35
      %p152 = pneg %p32
      %p153 = pneg %p56
      %p154 = pneg %p53
      %p155 = pneg %p77
      %p156 = pneg %p74
      %p157 = pneg %p103
      %p158 = pneg %p100
      %s159 = smul.u32 12, %s14
      %p160 = scmp.lt.s32.totalorder %s159, 23
      %s161 = scalar_select %p160, %s159, 23
      %s162 = smul.addr %s161, 4
      %s163 = scalar_lea.vmem %s3, %s162
      %s164 = smul.u32 12, %s14
      %p165 = scmp.lt.s32.totalorder %s164, 23
      %s166 = scalar_select %p165, %s164, 23
      %s167 = smul.addr %s166, 4
      %s168 = smul.addr %s167, 4
      %s169 = scalar_lea.vmem %s0, %s168
      %s170 = smul.u32 12, %s14
      %s171 = smul.u32 12, %s14
      %p172 = scmp.lt.s32.totalorder %s171, 23
      %s173 = scalar_select %p172, %s171, 23
      %s174 = smul.addr %s173, 4
      %s175 = scalar_lea.vmem %s3, %s174
      %s176 = smul.u32 12, %s14
      %v177 = vld [vmem:[%s169] sm:$0xff]
      %v178 = vld [vmem:[%s169 + $0x8] sm:$0xff]
      %v179 = vld [vmem:[%s169 + $0x10] sm:$0xff]
      %v180 = vld [vmem:[%s169 + $0x18] sm:$0xff]
      %v181 = vld [vmem:[%s169 + $0x20] sm:$0xff]
      %v182 = vld [vmem:[%s169 + $0x28] sm:$0xff]
      %v183 = vld [vmem:[%s169 + $0x30] sm:$0xff]
      %v184 = vld [vmem:[%s169 + $0x38] sm:$0xff]
      %v185 = vld [vmem:[%s169 + $0x40] sm:$0xff]
      %v186 = vld [vmem:[%s169 + $0x48] sm:$0xff]
      %v187 = vld [vmem:[%s169 + $0x50] sm:$0xff]
      %v188 = vld [vmem:[%s169 + $0x58] sm:$0xff]
      %v189 = vld [vmem:[%s169 + $0x60] sm:$0xff]
      %v190 = vld [vmem:[%s169 + $0x68] sm:$0xff]
      %v191 = vld [vmem:[%s169 + $0x70] sm:$0xff]
      %v192 = vld [vmem:[%s169 + $0x78] sm:$0xff]
      %v193 = vld [vmem:[%s169 + $0x80] sm:$0xff]
      %v194 = vld [vmem:[%s169 + $0x88] sm:$0xff]
      %v195 = vld [vmem:[%s169 + $0x90] sm:$0xff]
      %v196 = vld [vmem:[%s169 + $0x98] sm:$0xff]
      %v197 = vld [vmem:[%s169 + $0xa0] sm:$0xff]
      %v198 = vld [vmem:[%s169 + $0xa8] sm:$0xff]
      %v199 = vld [vmem:[%s169 + $0xb0] sm:$0xff]
      %v200 = vld [vmem:[%s169 + $0xb8] sm:$0xff]
      %v201 = vld [vmem:[%s1] sm:$0xf]
      %v202 = vld [vmem:[%s1 + $0x4] sm:$0xf]
      %v203 = vld [vmem:[%s1 + $0x8] sm:$0xf]
      %v204 = vld [vmem:[%s1 + $0xc] sm:$0xf]
      %v205 = vld [vmem:[%s1 + $0x10] sm:$0xf]
      %v206 = vld [vmem:[%s1 + $0x14] sm:$0xf]
      %v207 = vld [vmem:[%s1 + $0x18] sm:$0xf]
      %v208 = vld [vmem:[%s1 + $0x1c] sm:$0xf]
      %v209 = vld [vmem:[%s1 + $0x20] sm:$0xf]
      %v210 = vld [vmem:[%s1 + $0x24] sm:$0xf]
      %v211 = vld [vmem:[%s1 + $0x28] sm:$0xf]
      %v212 = vld [vmem:[%s1 + $0x2c] sm:$0xf]
      %v213 = vld [vmem:[%s1 + $0x30] sm:$0xf]
      %v214 = vld [vmem:[%s1 + $0x34] sm:$0xf]
      %v215 = vld [vmem:[%s1 + $0x38] sm:$0xf]
      %v216 = vld [vmem:[%s1 + $0x3c] sm:$0xf]
      %v217 = vld [vmem:[%s1 + $0x40] sm:$0xf]
      %v218 = vld [vmem:[%s1 + $0x44] sm:$0xf]
      %v219 = vld [vmem:[%s1 + $0x48] sm:$0xf]
      %v220 = vld [vmem:[%s1 + $0x4c] sm:$0xf]
      %v221 = vld [vmem:[%s1 + $0x50] sm:$0xf]
      %v222 = vld [vmem:[%s1 + $0x54] sm:$0xf]
      %v223 = vld [vmem:[%s1 + $0x58] sm:$0xf]
      %v224 = vld [vmem:[%s1 + $0x5c] sm:$0xf]
      %v225 = vld [vmem:[%s1 + $0x60] sm:$0xf]
      %v226 = vld [vmem:[%s1 + $0x64] sm:$0xf]
      %v227 = vld [vmem:[%s1 + $0x68] sm:$0xf]
      %v228 = vld [vmem:[%s1 + $0x6c] sm:$0xf]
      %v229 = vld [vmem:[%s1 + $0x70] sm:$0xf]
      %v230 = vld [vmem:[%s1 + $0x74] sm:$0xf]
      %v231 = vld [vmem:[%s1 + $0x78] sm:$0xf]
      %v232 = vld [vmem:[%s1 + $0x7c] sm:$0xf]
      %v233 = vld [vmem:[%s1 + $0x80] sm:$0xf]
      %v234 = vld [vmem:[%s1 + $0x84] sm:$0xf]
      %v235 = vld [vmem:[%s1 + $0x88] sm:$0xf]
      %v236 = vld [vmem:[%s1 + $0x8c] sm:$0xf]
      %v237 = vld [vmem:[%s1 + $0x90] sm:$0xf]
      %v238 = vld [vmem:[%s1 + $0x94] sm:$0xf]
      %v239 = vld [vmem:[%s1 + $0x98] sm:$0xf]
      %v240 = vld [vmem:[%s1 + $0x9c] sm:$0xf]
      %v241 = vld [vmem:[%s1 + $0xa0] sm:$0xf]
      %v242 = vld [vmem:[%s1 + $0xa4] sm:$0xf]
      %v243 = vld [vmem:[%s1 + $0xa8] sm:$0xf]
      %v244 = vld [vmem:[%s1 + $0xac] sm:$0xf]
      %v245 = vld [vmem:[%s1 + $0xb0] sm:$0xf]
      %v246 = vld [vmem:[%s1 + $0xb4] sm:$0xf]
      %v247 = vld [vmem:[%s1 + $0xb8] sm:$0xf]
      %v248 = vld [vmem:[%s1 + $0xbc] sm:$0xf]
      %v249 = vld [vmem:[%s1 + $0xc0] sm:$0xf]
      %v250 = vld [vmem:[%s1 + $0xc4] sm:$0xf]
      %v251 = vld [vmem:[%s1 + $0xc8] sm:$0xf]
      %v252 = vld [vmem:[%s1 + $0xcc] sm:$0xf]
      %v253 = vld [vmem:[%s1 + $0xd0] sm:$0xf]
      %v254 = vld [vmem:[%s1 + $0xd4] sm:$0xf]
      %v255 = vld [vmem:[%s1 + $0xd8] sm:$0xf]
      %v256 = vld [vmem:[%s1 + $0xdc] sm:$0xf]
      %v257 = vld [vmem:[%s1 + $0xe0] sm:$0xf]
      %v258 = vld [vmem:[%s1 + $0xe4] sm:$0xf]
      %v259 = vld [vmem:[%s1 + $0xe8] sm:$0xf]
      %v260 = vld [vmem:[%s1 + $0xec] sm:$0xf]
      %v261 = vld [vmem:[%s1 + $0xf0] sm:$0xf]
      %v262 = vld [vmem:[%s1 + $0xf4] sm:$0xf]
      %v263 = vld [vmem:[%s1 + $0xf8] sm:$0xf]
      %v264 = vld [vmem:[%s1 + $0xfc] sm:$0xf]
      %v265 = vld [vmem:[%s2] sm:$0x1]
      %v267 = vperm.slane %v265, 0
      %v293 = vunpack.c.l.b16 %v177
      %v294 = vunpack.c.h.b16 %v177
      %v295 = vunpack.c.l.b16 %v178
      %v296 = vunpack.c.h.b16 %v178
      %v297 = vunpack.c.l.b16 %v179
      %v298 = vunpack.c.h.b16 %v179
      %v299 = vunpack.c.l.b16 %v180
      %v300 = vunpack.c.h.b16 %v180
      %v301 = vunpack.c.l.b16 %v181
      %v302 = vunpack.c.h.b16 %v181
      %v303 = vunpack.c.l.b16 %v182
      %v304 = vunpack.c.h.b16 %v182
      %v305 = vunpack.c.l.b16 %v183
      %v306 = vunpack.c.h.b16 %v183
      %v307 = vunpack.c.l.b16 %v184
      %v308 = vunpack.c.h.b16 %v184
      %v309 = vunpack.c.l.b16 %v185
      %v310 = vunpack.c.h.b16 %v185
      %v311 = vunpack.c.l.b16 %v186
      %v312 = vunpack.c.h.b16 %v186
      %v313 = vunpack.c.l.b16 %v187
      %v314 = vunpack.c.h.b16 %v187
      %v315 = vunpack.c.l.b16 %v188
      %v316 = vunpack.c.h.b16 %v188
      %v317 = vunpack.c.l.b16 %v189
      %v318 = vunpack.c.h.b16 %v189
      %v319 = vunpack.c.l.b16 %v190
      %v320 = vunpack.c.h.b16 %v190
      %v321 = vunpack.c.l.b16 %v191
      %v322 = vunpack.c.h.b16 %v191
      %v323 = vunpack.c.l.b16 %v192
      %v324 = vunpack.c.h.b16 %v192
      %v325 = vunpack.c.l.b16 %v193
      %v326 = vunpack.c.h.b16 %v193
      %v327 = vunpack.c.l.b16 %v194
      %v328 = vunpack.c.h.b16 %v194
      %v329 = vunpack.c.l.b16 %v195
      %v330 = vunpack.c.h.b16 %v195
      %v331 = vunpack.c.l.b16 %v196
      %v332 = vunpack.c.h.b16 %v196
      %v333 = vunpack.c.l.b16 %v197
      %v334 = vunpack.c.h.b16 %v197
      %v335 = vunpack.c.l.b16 %v198
      %v336 = vunpack.c.h.b16 %v198
      %v337 = vunpack.c.l.b16 %v199
      %v338 = vunpack.c.h.b16 %v199
      %v339 = vunpack.c.l.b16 %v200
      %v340 = vunpack.c.h.b16 %v200
      %v341 = vpack.c.b16 %v297, %v293
      %v342 = vpack.c.b16 %v298, %v294
      %v343 = vpack.c.b16 %v299, %v295
      %v344 = vpack.c.b16 %v300, %v296
      %v345 = vpack.c.b16 %v305, %v301
      %v346 = vpack.c.b16 %v306, %v302
      %v347 = vpack.c.b16 %v307, %v303
      %v348 = vpack.c.b16 %v308, %v304
      %v349 = vpack.c.b16 %v313, %v309
      %v350 = vpack.c.b16 %v314, %v310
      %v351 = vpack.c.b16 %v315, %v311
      %v352 = vpack.c.b16 %v316, %v312
      %v353 = vpack.c.b16 %v321, %v317
      %v354 = vpack.c.b16 %v322, %v318
      %v355 = vpack.c.b16 %v323, %v319
      %v356 = vpack.c.b16 %v324, %v320
      %v357 = vpack.c.b16 %v329, %v325
      %v358 = vpack.c.b16 %v330, %v326
      %v359 = vpack.c.b16 %v331, %v327
      %v360 = vpack.c.b16 %v332, %v328
      %v361 = vpack.c.b16 %v337, %v333
      %v362 = vpack.c.b16 %v338, %v334
      %v363 = vpack.c.b16 %v339, %v335
      %v364 = vpack.c.b16 %v340, %v336
      %v453 = vunpack.c.l.b16 %v201
      %v454 = vunpack.c.l.b16 %v202
      %v455 = vunpack.c.l.b16 %v203
      %v456 = vunpack.c.l.b16 %v204
      %v457 = vunpack.c.l.b16 %v205
      %v458 = vunpack.c.l.b16 %v206
      %v459 = vunpack.c.l.b16 %v207
      %v460 = vunpack.c.l.b16 %v208
      %v461 = vunpack.c.l.b16 %v209
      %v462 = vunpack.c.l.b16 %v210
      %v463 = vunpack.c.l.b16 %v211
      %v464 = vunpack.c.l.b16 %v212
      %v465 = vunpack.c.l.b16 %v213
      %v466 = vunpack.c.l.b16 %v214
      %v467 = vunpack.c.l.b16 %v215
      %v468 = vunpack.c.l.b16 %v216
      %v469 = vunpack.c.l.b16 %v217
      %v470 = vunpack.c.l.b16 %v218
      %v471 = vunpack.c.l.b16 %v219
      %v472 = vunpack.c.l.b16 %v220
      %v473 = vunpack.c.l.b16 %v221
      %v474 = vunpack.c.l.b16 %v222
      %v475 = vunpack.c.l.b16 %v223
      %v476 = vunpack.c.l.b16 %v224
      %v477 = vunpack.c.l.b16 %v225
      %v478 = vunpack.c.l.b16 %v226
      %v479 = vunpack.c.l.b16 %v227
      %v480 = vunpack.c.l.b16 %v228
      %v481 = vunpack.c.l.b16 %v229
      %v482 = vunpack.c.l.b16 %v230
      %v483 = vunpack.c.l.b16 %v231
      %v484 = vunpack.c.l.b16 %v232
      %v485 = vunpack.c.l.b16 %v233
      %v486 = vunpack.c.l.b16 %v234
      %v487 = vunpack.c.l.b16 %v235
      %v488 = vunpack.c.l.b16 %v236
      %v489 = vunpack.c.l.b16 %v237
      %v490 = vunpack.c.l.b16 %v238
      %v491 = vunpack.c.l.b16 %v239
      %v492 = vunpack.c.l.b16 %v240
      %v493 = vunpack.c.l.b16 %v241
      %v494 = vunpack.c.l.b16 %v242
      %v495 = vunpack.c.l.b16 %v243
      %v496 = vunpack.c.l.b16 %v244
      %v497 = vunpack.c.l.b16 %v245
      %v498 = vunpack.c.l.b16 %v246
      %v499 = vunpack.c.l.b16 %v247
      %v500 = vunpack.c.l.b16 %v248
      %v501 = vunpack.c.l.b16 %v249
      %v502 = vunpack.c.l.b16 %v250
      %v503 = vunpack.c.l.b16 %v251
      %v504 = vunpack.c.l.b16 %v252
      %v505 = vunpack.c.l.b16 %v253
      %v506 = vunpack.c.l.b16 %v254
      %v507 = vunpack.c.l.b16 %v255
      %v508 = vunpack.c.l.b16 %v256
      %v509 = vunpack.c.l.b16 %v257
      %v510 = vunpack.c.l.b16 %v258
      %v511 = vunpack.c.l.b16 %v259
      %v512 = vunpack.c.l.b16 %v260
      %v513 = vunpack.c.l.b16 %v261
      %v514 = vunpack.c.l.b16 %v262
      %v515 = vunpack.c.l.b16 %v263
      %v516 = vunpack.c.l.b16 %v264
      %v517 = vpack.c.b16 %v454, %v453
      %v518 = vpack.c.b16 %v456, %v455
      %v519 = vpack.c.b16 %v458, %v457
      %v520 = vpack.c.b16 %v460, %v459
      %v521 = vpack.c.b16 %v462, %v461
      %v522 = vpack.c.b16 %v464, %v463
      %v523 = vpack.c.b16 %v466, %v465
      %v524 = vpack.c.b16 %v468, %v467
      %v525 = vpack.c.b16 %v470, %v469
      %v526 = vpack.c.b16 %v472, %v471
      %v527 = vpack.c.b16 %v474, %v473
      %v528 = vpack.c.b16 %v476, %v475
      %v529 = vpack.c.b16 %v478, %v477
      %v530 = vpack.c.b16 %v480, %v479
      %v531 = vpack.c.b16 %v482, %v481
      %v532 = vpack.c.b16 %v484, %v483
      %v533 = vpack.c.b16 %v486, %v485
      %v534 = vpack.c.b16 %v488, %v487
      %v535 = vpack.c.b16 %v490, %v489
      %v536 = vpack.c.b16 %v492, %v491
      %v537 = vpack.c.b16 %v494, %v493
      %v538 = vpack.c.b16 %v496, %v495
      %v539 = vpack.c.b16 %v498, %v497
      %v540 = vpack.c.b16 %v500, %v499
      %v541 = vpack.c.b16 %v502, %v501
      %v542 = vpack.c.b16 %v504, %v503
      %v543 = vpack.c.b16 %v506, %v505
      %v544 = vpack.c.b16 %v508, %v507
      %v545 = vpack.c.b16 %v510, %v509
      %v546 = vpack.c.b16 %v512, %v511
      %v547 = vpack.c.b16 %v514, %v513
      %v548 = vpack.c.b16 %v516, %v515
      %581 = vmatpush.bf16.msra.mxu0 %v524
      %582 = vmatpush.bf16.msra.mxu0 %v523
      %583 = vmatpush.bf16.msra.mxu0 %v522
      %584 = vmatpush.bf16.msra.mxu0 %v521
      %585 = vmatpush.bf16.msra.mxu0 %v520
      %586 = vmatpush.bf16.msra.mxu0 %v519
      %587 = vmatpush.bf16.msra.mxu0 %v518
      %588 = vmatpush.bf16.msra.mxu0 %v517
      %589 = vmatmul.bf16.gmra.mxu0 %v341
      %v590 = vpop.f32.mrf.mxu0
      %v591 = vadd.f32 %v267, %v590
      %v592 = vpop.f32.mrf.mxu0
      %v593 = vadd.f32 %v267, %v592
      %594 = vmatmul.bf16.gmra.mxu0 %v345
      %v595 = vpop.f32.mrf.mxu0
      %v596 = vadd.f32 %v267, %v595
      %v597 = vpop.f32.mrf.mxu0
      %v598 = vadd.f32 %v267, %v597
      %599 = vmatmul.bf16.gmra.mxu0 %v349
      %v600 = vpop.f32.mrf.mxu0
      %v601 = vadd.f32 %v267, %v600
      %v602 = vpop.f32.mrf.mxu0
      %v603 = vadd.f32 %v267, %v602
      %604 = vmatmul.bf16.gmra.mxu0 %v353
      %v605 = vpop.f32.mrf.mxu0
      %v606 = vadd.f32 %v267, %v605
      %v607 = vpop.f32.mrf.mxu0
      %v608 = vadd.f32 %v267, %v607
      %609 = vmatmul.bf16.gmra.mxu0 %v357
      %v610 = vpop.f32.mrf.mxu0
      %v611 = vadd.f32 %v267, %v610
      %v612 = vpop.f32.mrf.mxu0
      %v613 = vadd.f32 %v267, %v612
      %614 = vmatmul.bf16.gmra.mxu0 %v361
      %v615 = vpop.f32.mrf.mxu0
      %v616 = vadd.f32 %v267, %v615
      %v617 = vpop.f32.mrf.mxu0
      %v618 = vadd.f32 %v267, %v617
      %619 = vdwg.mxu0
      %620 = vmatpush.bf16.msra.mxu0 %v532
      %621 = vmatpush.bf16.msra.mxu0 %v531
      %622 = vmatpush.bf16.msra.mxu0 %v530
      %623 = vmatpush.bf16.msra.mxu0 %v529
      %624 = vmatpush.bf16.msra.mxu0 %v528
      %625 = vmatpush.bf16.msra.mxu0 %v527
      %626 = vmatpush.bf16.msra.mxu0 %v526
      %627 = vmatpush.bf16.msra.mxu0 %v525
      %628 = vmatmul.bf16.gmra.mxu0 %v342
      %v629 = vpop.f32.mrf.mxu0
      %v630 = vadd.f32 %v591, %v629
      %v631 = vpop.f32.mrf.mxu0
      %v632 = vadd.f32 %v593, %v631
      %633 = vmatmul.bf16.gmra.mxu0 %v346
      %v634 = vpop.f32.mrf.mxu0
      %v635 = vadd.f32 %v596, %v634
      %v636 = vpop.f32.mrf.mxu0
      %v637 = vadd.f32 %v598, %v636
      %638 = vmatmul.bf16.gmra.mxu0 %v350
      %v639 = vpop.f32.mrf.mxu0
      %v640 = vadd.f32 %v601, %v639
      %v641 = vpop.f32.mrf.mxu0
      %v642 = vadd.f32 %v603, %v641
      %643 = vmatmul.bf16.gmra.mxu0 %v354
      %v644 = vpop.f32.mrf.mxu0
      %v645 = vadd.f32 %v606, %v644
      %v646 = vpop.f32.mrf.mxu0
      %v647 = vadd.f32 %v608, %v646
      %648 = vmatmul.bf16.gmra.mxu0 %v358
      %v649 = vpop.f32.mrf.mxu0
      %v650 = vadd.f32 %v611, %v649
      %v651 = vpop.f32.mrf.mxu0
      %v652 = vadd.f32 %v613, %v651
      %653 = vmatmul.bf16.gmra.mxu0 %v362
      %v654 = vpop.f32.mrf.mxu0
      %v655 = vadd.f32 %v616, %v654
      %v656 = vpop.f32.mrf.mxu0
      %v657 = vadd.f32 %v618, %v656
      %658 = vdwg.mxu0
      %659 = vmatpush.bf16.msra.mxu0 %v540
      %660 = vmatpush.bf16.msra.mxu0 %v539
      %661 = vmatpush.bf16.msra.mxu0 %v538
      %662 = vmatpush.bf16.msra.mxu0 %v537
      %663 = vmatpush.bf16.msra.mxu0 %v536
      %664 = vmatpush.bf16.msra.mxu0 %v535
      %665 = vmatpush.bf16.msra.mxu0 %v534
      %666 = vmatpush.bf16.msra.mxu0 %v533
      %667 = vmatmul.bf16.gmra.mxu0 %v343
      %v668 = vpop.f32.mrf.mxu0
      %v669 = vadd.f32 %v630, %v668
      %v670 = vpop.f32.mrf.mxu0
      %v671 = vadd.f32 %v632, %v670
      %672 = vmatmul.bf16.gmra.mxu0 %v347
      %v673 = vpop.f32.mrf.mxu0
      %v674 = vadd.f32 %v635, %v673
      %v675 = vpop.f32.mrf.mxu0
      %v676 = vadd.f32 %v637, %v675
      %677 = vmatmul.bf16.gmra.mxu0 %v351
      %v678 = vpop.f32.mrf.mxu0
      %v679 = vadd.f32 %v640, %v678
      %v680 = vpop.f32.mrf.mxu0
      %v681 = vadd.f32 %v642, %v680
      %682 = vmatmul.bf16.gmra.mxu0 %v355
      %v683 = vpop.f32.mrf.mxu0
      %v684 = vadd.f32 %v645, %v683
      %v685 = vpop.f32.mrf.mxu0
      %v686 = vadd.f32 %v647, %v685
      %687 = vmatmul.bf16.gmra.mxu0 %v359
      %v688 = vpop.f32.mrf.mxu0
      %v689 = vadd.f32 %v650, %v688
      %v690 = vpop.f32.mrf.mxu0
      %v691 = vadd.f32 %v652, %v690
      %692 = vmatmul.bf16.gmra.mxu0 %v363
      %v693 = vpop.f32.mrf.mxu0
      %v694 = vadd.f32 %v655, %v693
      %v695 = vpop.f32.mrf.mxu0
      %v696 = vadd.f32 %v657, %v695
      %697 = vdwg.mxu0
      %698 = vmatpush.bf16.msra.mxu0 %v548
      %699 = vmatpush.bf16.msra.mxu0 %v547
      %700 = vmatpush.bf16.msra.mxu0 %v546
      %701 = vmatpush.bf16.msra.mxu0 %v545
      %702 = vmatpush.bf16.msra.mxu0 %v544
      %703 = vmatpush.bf16.msra.mxu0 %v543
      %704 = vmatpush.bf16.msra.mxu0 %v542
      %705 = vmatpush.bf16.msra.mxu0 %v541
      %706 = vmatmul.bf16.gmra.mxu0 %v344
      %v707 = vpop.f32.mrf.mxu0
      %v708 = vadd.f32 %v669, %v707
      %v709 = vpop.f32.mrf.mxu0
      %v710 = vadd.f32 %v671, %v709
      %711 = vmatmul.bf16.gmra.mxu0 %v348
      %v712 = vpop.f32.mrf.mxu0
      %v713 = vadd.f32 %v674, %v712
      %v714 = vpop.f32.mrf.mxu0
      %v715 = vadd.f32 %v676, %v714
      %716 = vmatmul.bf16.gmra.mxu0 %v352
      %v717 = vpop.f32.mrf.mxu0
      %v718 = vadd.f32 %v679, %v717
      %v719 = vpop.f32.mrf.mxu0
      %v720 = vadd.f32 %v681, %v719
      %721 = vmatmul.bf16.gmra.mxu0 %v356
      %v722 = vpop.f32.mrf.mxu0
      %v723 = vadd.f32 %v684, %v722
      %v724 = vpop.f32.mrf.mxu0
      %v725 = vadd.f32 %v686, %v724
      %726 = vmatmul.bf16.gmra.mxu0 %v360
      %v727 = vpop.f32.mrf.mxu0
      %v728 = vadd.f32 %v689, %v727
      %v729 = vpop.f32.mrf.mxu0
      %v730 = vadd.f32 %v691, %v729
      %731 = vmatmul.bf16.gmra.mxu0 %v364
      %v732 = vpop.f32.mrf.mxu0
      %v733 = vadd.f32 %v694, %v732
      %v734 = vpop.f32.mrf.mxu0
      %v735 = vadd.f32 %v696, %v734
      %736 = vdwg.mxu0
      %v737 = vmax.f32 %v708, 0.0
      %v738 = vmax.f32 %v710, 0.0
      %v739 = vmax.f32 %v713, 0.0
      %v740 = vmax.f32 %v715, 0.0
      %v741 = vmax.f32 %v718, 0.0
      %v742 = vmax.f32 %v720, 0.0
      %v743 = vmax.f32 %v723, 0.0
      %v744 = vmax.f32 %v725, 0.0
      %v745 = vmax.f32 %v728, 0.0
      %v746 = vmax.f32 %v730, 0.0
      %v747 = vmax.f32 %v733, 0.0
      %v748 = vmax.f32 %v735, 0.0
      %v749 = vpack.c.bf16 %v737, %v737
      %v750 = vpack.c.bf16 %v738, %v738
      %v751 = vpack.c.bf16 %v739, %v739
      %v752 = vpack.c.bf16 %v740, %v740
      %v753 = vpack.c.bf16 %v741, %v741
      %v754 = vpack.c.bf16 %v742, %v742
      %v755 = vpack.c.bf16 %v743, %v743
      %v756 = vpack.c.bf16 %v744, %v744
      %v757 = vpack.c.bf16 %v745, %v745
      %v758 = vpack.c.bf16 %v746, %v746
      %v759 = vpack.c.bf16 %v747, %v747
      %v760 = vpack.c.bf16 %v748, %v748
      %vm761 = vcmask 519168
      %762 = vst.msk [vmem:[%s175] sm:$0xf] %vm761, %v749
      %763 = vst.msk [vmem:[%s175 + $0x4] sm:$0xf] %vm761, %v750
      %764 = vst.msk [vmem:[%s175 + $0x8] sm:$0xf] %vm761, %v751
      %765 = vst.msk [vmem:[%s175 + $0xc] sm:$0xf] %vm761, %v752
      %766 = vst.msk [vmem:[%s175 + $0x10] sm:$0xf] %vm761, %v753
      %767 = vst.msk [vmem:[%s175 + $0x14] sm:$0xf] %vm761, %v754
      %768 = vst.msk [vmem:[%s175 + $0x18] sm:$0xf] %vm761, %v755
      %769 = vst.msk [vmem:[%s175 + $0x1c] sm:$0xf] %vm761, %v756
      %770 = vst.msk [vmem:[%s175 + $0x20] sm:$0xf] %vm761, %v757
      %771 = vst.msk [vmem:[%s175 + $0x24] sm:$0xf] %vm761, %v758
      %772 = vst.msk [vmem:[%s175 + $0x28] sm:$0xf] %vm761, %v759
      %773 = vst.msk [vmem:[%s175 + $0x2c] sm:$0xf] %vm761, %v760
      %s774 = smul.u32 12, %s14
      %p775 = scmp.lt.s32.totalorder %s774, 23
      %s776 = scalar_select %p775, %s774, 23
      %s777 = smul.addr %s776, 4
      %s778 = scalar_lea.vmem %s3, %s777
      // Predicated region
      $region33: #{dqn_forward.5} parent=31 // pred_check
        %p779 = pneg %p100
      $region34: #{dqn_forward.5} parent=31 // pred_check_branch
        %781 = sbr.rel (%p779) target = $region36
      $region35: #{dqn_forward.5} parent=31 // pred_region
        %s782 = smul.u32 12, %s14
      $region36: #{dqn_forward.5} parent=31 // pred_fallthru
        _
    $region32: #{dqn_forward.5} parent=5 // pred_fallthru
      _
    %p783 = scmp.le.s32.totalorder 2, %s9
    // Predicated region
    $region37: #{dqn_forward.5} parent=5 // pred_check
      %p784 = pneg %p783
    $region38: #{dqn_forward.5} parent=5 // pred_check_branch
      %786 = sbr.rel (%p784) target = $region40
    $region39: #{dqn_forward.5} parent=5 // pred_region
      %s787 = ssub.s32 %s9, 2
      // Predicated region
      $region41: #{dqn_forward.5} parent=39 // pred_check
        %p788 = pneg %p106
      $region42: #{dqn_forward.5} parent=39 // pred_check_branch
        %790 = sbr.rel (%p788) target = $region44
      $region43: #{dqn_forward.5} parent=39 // pred_region
        %s791 = smul.u32 12, %s15
        %p792 = scmp.lt.s32.totalorder %s791, 23
        %s793 = scalar_select %p792, %s791, 23
        %s794 = smul.addr %s793, 4
        %s795 = scalar_lea.vmem %s3, %s794
      $region44: #{dqn_forward.5} parent=39 // pred_fallthru
        _
    $region40: #{dqn_forward.5} parent=5 // pred_fallthru
      _
  $region6: #{dqn_forward.5} parent=0 // loop_footer
    %s13 = sadd.s32 1, %s9
  $region7: #{dqn_forward.5} parent=0 // loop_footer_branch
    %8 = sbr.rel target = $region3
  $region8: #{dqn_forward.5} parent=0 // loop_exit
    _

// kernel: dqn_forward.6
$region0: #{dqn_forward.6}
  #allocation0 [shape = 'u32[]', space=smem, size = 0x4, offset = 0x4, fixed_abs, tag = 'smem constant byte address 0x4 - core index']
  #allocation1 [shape = 'u32[72,128]{1,0:T(1,128)}', space=vmem, size = 0x9000, scoped, tag = 'internal scratch']
  %s0 = inlined_call_operand.vmem [shape: bf16[128,576], index: 0, kind: input, shape index: {}]
  %s1 = inlined_call_operand.vmem [shape: bf16[576,64], index: 1, kind: input, shape index: {}]
  %s2 = inlined_call_operand.vmem [shape: f32[1,64], index: 2, kind: input, shape index: {}]
  %s3 = inlined_call_operand.vmem [shape: bf16[128,64], index: 3, kind: output, shape index: {}]
  %s4 = sld [smem:[#allocation0]]
  $region45: #{dqn_forward.6} parent=0
    _
  %s6 = ssub.s32 1, %s4
  %s7 = scalar_select 0, %s6, %s4
  loop: start=0, step=1, limit=4
  $region2: #{dqn_forward.6} parent=0 // loop_pre_header
    _
  $region3: #{dqn_forward.6} parent=0 // loop_header
    %s9 = sphi 0, %s13
    %p10 = scmp.ge.s32.totalorder %s9, 4
    %s19 = sphi 0, %s21
    %s22 = sphi 0, %s19
    %s23 = sphi 0, %s22
    %s39 = sphi 0, %s23
    %s43 = sphi 0, %s43
    %s45 = sphi 0, %s43
    %s46 = sphi 0, %s45
    %s60 = sphi 0, %s46
    %s64 = sphi 0, %s64
    %s66 = sphi 0, %s64
    %s67 = sphi 0, %s66
    %s81 = sphi 0, %s67
    %s87 = sphi 0, %s89
    %s90 = sphi 0, %s87
    %s91 = sphi 0, %s90
    %s107 = sphi 0, %s91
  $region4: #{dqn_forward.6} parent=0 // loop_header_branch
    %12 = sbr.rel (%p10) target = $region8
  $region5: #{dqn_forward.6} parent=0 // loop_body
    %s14 = ssub.s32 %s9, 1
    %s15 = ssub.s32 %s9, 2
    %s16 = sadd.s32 %s9, 1
    %s17 = ssub.s32 %s9, %s16
    %p18 = scmp.eq.s32.totalorder %s17, 0
    %s20 = sadd.s32 %s19, 1
    %s21 = scalar_select %p18, %s19, %s20
    %p24 = pneg %p18
    %p25 = scmp.eq.s32.totalorder %s9, 1
    %p26 = por %p24, %p25
    %p27 = scmp.ne.s32.totalorder %s19, %s22
    %p28 = scmp.eq.s32.totalorder %s9, 0
    %p29 = por %p27, %p28
    %p30 = scmp.ne.s32.totalorder %s19, %s22
    %p31 = scmp.eq.s32.totalorder %s14, 1
    %p32 = por %p30, %p31
    %p33 = scmp.ne.s32.totalorder %s22, %s23
    %p34 = scmp.eq.s32.totalorder %s14, 0
    %p35 = por %p33, %p34
    %p36 = scmp.ne.s32.totalorder %s22, %s23
    %p37 = scmp.eq.s32.totalorder %s15, 1
    %p38 = por %p36, %p37
    %p40 = scmp.ne.s32.totalorder %s23, %s39
    %p41 = scmp.eq.s32.totalorder %s15, 0
    %p42 = por %p40, %p41
    %s44 = sadd.s32 %s43, 1
    %p47 = scmp.eq.s32.totalorder %s9, 1
    %p48 = scmp.ne.s32.totalorder %s43, %s45
    %p49 = scmp.eq.s32.totalorder %s9, 0
    %p50 = por %p48, %p49
    %p51 = scmp.ne.s32.totalorder %s43, %s45
    %p52 = scmp.eq.s32.totalorder %s14, 1
    %p53 = por %p51, %p52
    %p54 = scmp.ne.s32.totalorder %s45, %s46
    %p55 = scmp.eq.s32.totalorder %s14, 0
    %p56 = por %p54, %p55
    %p57 = scmp.ne.s32.totalorder %s45, %s46
    %p58 = scmp.eq.s32.totalorder %s15, 1
    %p59 = por %p57, %p58
    %p61 = scmp.ne.s32.totalorder %s46, %s60
    %p62 = scmp.eq.s32.totalorder %s15, 0
    %p63 = por %p61, %p62
    %s65 = sadd.s32 %s64, 1
    %p68 = scmp.eq.s32.totalorder %s9, 1
    %p69 = scmp.ne.s32.totalorder %s64, %s66
    %p70 = scmp.eq.s32.totalorder %s9, 0
    %p71 = por %p69, %p70
    %p72 = scmp.ne.s32.totalorder %s64, %s66
    %p73 = scmp.eq.s32.totalorder %s14, 1
    %p74 = por %p72, %p73
    %p75 = scmp.ne.s32.totalorder %s66, %s67
    %p76 = scmp.eq.s32.totalorder %s14, 0
    %p77 = por %p75, %p76
    %p78 = scmp.ne.s32.totalorder %s66, %s67
    %p79 = scmp.eq.s32.totalorder %s15, 1
    %p80 = por %p78, %p79
    %p82 = scmp.ne.s32.totalorder %s67, %s81
    %p83 = scmp.eq.s32.totalorder %s15, 0
    %p84 = por %p82, %p83
    %s85 = ssub.s32 %s9, %s16
    %p86 = scmp.eq.s32.totalorder %s85, 0
    %s88 = sadd.s32 %s87, 1
    %s89 = scalar_select %p86, %s87, %s88
    %p92 = pneg %p86
    %p93 = scmp.eq.s32.totalorder %s9, 1
    %p94 = por %p92, %p93
    %p95 = scmp.ne.s32.totalorder %s87, %s90
    %p96 = scmp.eq.s32.totalorder %s9, 0
    %p97 = por %p95, %p96
    %p98 = scmp.ne.s32.totalorder %s87, %s90
    %p99 = scmp.eq.s32.totalorder %s14, 1
    %p100 = por %p98, %p99
    %p101 = scmp.ne.s32.totalorder %s90, %s91
    %p102 = scmp.eq.s32.totalorder %s14, 0
    %p103 = por %p101, %p102
    %p104 = scmp.ne.s32.totalorder %s90, %s91
    %p105 = scmp.eq.s32.totalorder %s15, 1
    %p106 = por %p104, %p105
    %p108 = scmp.ne.s32.totalorder %s91, %s107
    %p109 = scmp.eq.s32.totalorder %s15, 0
    %p110 = por %p108, %p109
    %p111 = scmp.le.s32.totalorder 1, %s9
    %p112 = scmp.lt.s32.totalorder %s9, 3
    %p113 = pnand %p111, %p112
    %p114 = pneg %p113
    // Predicated region
    $region9: #{dqn_forward.6} parent=5 // pred_check
      _
    $region10: #{dqn_forward.6} parent=5 // pred_check_branch
      %116 = sbr.rel (%p113) target = $region12
    $region11: #{dqn_forward.6} parent=5 // pred_region
      %s117 = ssub.s32 %s9, 1
      // Predicated region
      $region13: #{dqn_forward.6} parent=11 // pred_check
        %p118 = pneg %p56
      $region14: #{dqn_forward.6} parent=11 // pred_check_branch
        %120 = sbr.rel (%p118) target = $region16
      $region15: #{dqn_forward.6} parent=11 // pred_region
        _
      $region16: #{dqn_forward.6} parent=11 // pred_fallthru
        _
      // Predicated region
      $region17: #{dqn_forward.6} parent=11 // pred_check
        %p121 = pneg %p77
      $region18: #{dqn_forward.6} parent=11 // pred_check_branch
        %123 = sbr.rel (%p121) target = $region20
      $region19: #{dqn_forward.6} parent=11 // pred_region
        _
      $region20: #{dqn_forward.6} parent=11 // pred_fallthru
        _
    $region12: #{dqn_forward.6} parent=5 // pred_fallthru
      _
    %p124 = scmp.lt.s32.totalorder %s9, 2
    // Predicated region
    $region21: #{dqn_forward.6} parent=5 // pred_check
      %p125 = pneg %p124
    $region22: #{dqn_forward.6} parent=5 // pred_check_branch
      %127 = sbr.rel (%p125) target = $region24
    $region23: #{dqn_forward.6} parent=5 // pred_region
      // Predicated region
      $region25: #{dqn_forward.6} parent=23 // pred_check
        %p128 = pneg %p29
      $region26: #{dqn_forward.6} parent=23 // pred_check_branch
        %130 = sbr.rel (%p128) target = $region28
      $region27: #{dqn_forward.6} parent=23 // pred_region
        %s131 = smul.u32 8, %s9
        %p132 = scmp.lt.s32.totalorder %s131, 15
        %s133 = scalar_select %p132, %s131, 15
        %s134 = smul.addr %s133, 5
        %s135 = smul.addr %s134, 4
        %s136 = scalar_lea.vmem %s0, %s135
        %s137 = smul.u32 8, %s9
      $region28: #{dqn_forward.6} parent=23 // pred_fallthru
        _
    $region24: #{dqn_forward.6} parent=5 // pred_fallthru
      _
    %p138 = scmp.le.s32.totalorder 1, %s9
    %p139 = scmp.lt.s32.totalorder %s9, 3
    %p140 = pnand %p138, %p139
    %p141 = pneg %p140
    // Predicated region
    $region29: #{dqn_forward.6} parent=5 // pred_check
      _
    $region30: #{dqn_forward.6} parent=5 // pred_check_branch
      %143 = sbr.rel (%p140) target = $region32
    $region31: #{dqn_forward.6} parent=5 // pred_region
      %s144 = ssub.s32 %s9, 1
      %s145 = smul.u32 8, %s14
      %p146 = scmp.lt.s32.totalorder %s145, 15
      %s147 = scalar_select %p146, %s145, 15
      %s148 = smul.addr %s147, 5
      %s149 = smul.addr %s148, 4
      %s150 = scalar_lea.vmem %s0, %s149
      %p151 = pneg %p35
      %p152 = pneg %p32
      %p153 = pneg %p56
      %p154 = pneg %p53
      %p155 = pneg %p77
      %p156 = pneg %p74
      %p157 = pneg %p103
      %p158 = pneg %p100
      %s159 = smul.u32 8, %s14
      %p160 = scmp.lt.s32.totalorder %s159, 15
      %s161 = scalar_select %p160, %s159, 15
      %s162 = smul.addr %s161, 4
      %s163 = scalar_lea.vmem %s3, %s162
      %s164 = smul.u32 8, %s14
      %p165 = scmp.lt.s32.totalorder %s164, 15
      %s166 = scalar_select %p165, %s164, 15
      %s167 = smul.addr %s166, 5
      %s168 = smul.addr %s167, 4
      %s169 = scalar_lea.vmem %s0, %s168
      %s170 = smul.u32 8, %s14
      %s171 = smul.u32 8, %s14
      %p172 = scmp.lt.s32.totalorder %s171, 15
      %s173 = scalar_select %p172, %s171, 15
      %s174 = smul.addr %s173, 4
      %s175 = scalar_lea.vmem %s3, %s174
      %s176 = smul.u32 8, %s14
      %v178 = vld [vmem:[%s169] sm:$0xff]
      %v179 = vld [vmem:[%s169 + $0x8] sm:$0xff]
      %v180 = vld [vmem:[%s169 + $0x10] sm:$0xf]
      %v181 = vld [vmem:[%s169 + $0x14] sm:$0xff]
      %v182 = vld [vmem:[%s169 + $0x1c] sm:$0xff]
      %v183 = vld [vmem:[%s169 + $0x24] sm:$0xf]
      %v184 = vld [vmem:[%s169 + $0x28] sm:$0xff]
      %v185 = vld [vmem:[%s169 + $0x30] sm:$0xff]
      %v186 = vld [vmem:[%s169 + $0x38] sm:$0xf]
      %v187 = vld [vmem:[%s169 + $0x3c] sm:$0xff]
      %v188 = vld [vmem:[%s169 + $0x44] sm:$0xff]
      %v189 = vld [vmem:[%s169 + $0x4c] sm:$0xf]
      %v190 = vld [vmem:[%s169 + $0x50] sm:$0xff]
      %v191 = vld [vmem:[%s169 + $0x58] sm:$0xff]
      %v192 = vld [vmem:[%s169 + $0x60] sm:$0xf]
      %v193 = vld [vmem:[%s169 + $0x64] sm:$0xff]
      %v194 = vld [vmem:[%s169 + $0x6c] sm:$0xff]
      %v195 = vld [vmem:[%s169 + $0x74] sm:$0xf]
      %v196 = vld [vmem:[%s169 + $0x78] sm:$0xff]
      %v197 = vld [vmem:[%s169 + $0x80] sm:$0xff]
      %v198 = vld [vmem:[%s169 + $0x88] sm:$0xf]
      %v199 = vld [vmem:[%s169 + $0x8c] sm:$0xff]
      %v200 = vld [vmem:[%s169 + $0x94] sm:$0xff]
      %v201 = vld [vmem:[%s169 + $0x9c] sm:$0xf]
      %v202 = vld [vmem:[%s1] sm:$0xf]
      %v203 = vld [vmem:[%s1 + $0x4] sm:$0xf]
      %v204 = vld [vmem:[%s1 + $0x8] sm:$0xf]
      %v205 = vld [vmem:[%s1 + $0xc] sm:$0xf]
      %v206 = vld [vmem:[%s1 + $0x10] sm:$0xf]
      %v207 = vld [vmem:[%s1 + $0x14] sm:$0xf]
      %v208 = vld [vmem:[%s1 + $0x18] sm:$0xf]
      %v209 = vld [vmem:[%s1 + $0x1c] sm:$0xf]
      %v210 = vld [vmem:[%s1 + $0x20] sm:$0xf]
      %v211 = vld [vmem:[%s1 + $0x24] sm:$0xf]
      %v212 = vld [vmem:[%s1 + $0x28] sm:$0xf]
      %v213 = vld [vmem:[%s1 + $0x2c] sm:$0xf]
      %v214 = vld [vmem:[%s1 + $0x30] sm:$0xf]
      %v215 = vld [vmem:[%s1 + $0x34] sm:$0xf]
      %v216 = vld [vmem:[%s1 + $0x38] sm:$0xf]
      %v217 = vld [vmem:[%s1 + $0x3c] sm:$0xf]
      %v218 = vld [vmem:[%s1 + $0x40] sm:$0xf]
      %v219 = vld [vmem:[%s1 + $0x44] sm:$0xf]
      %v220 = vld [vmem:[%s1 + $0x48] sm:$0xf]
      %v221 = vld [vmem:[%s1 + $0x4c] sm:$0xf]
      %v222 = vld [vmem:[%s1 + $0x50] sm:$0xf]
      %v223 = vld [vmem:[%s1 + $0x54] sm:$0xf]
      %v224 = vld [vmem:[%s1 + $0x58] sm:$0xf]
      %v225 = vld [vmem:[%s1 + $0x5c] sm:$0xf]
      %v226 = vld [vmem:[%s1 + $0x60] sm:$0xf]
      %v227 = vld [vmem:[%s1 + $0x64] sm:$0xf]
      %v228 = vld [vmem:[%s1 + $0x68] sm:$0xf]
      %v229 = vld [vmem:[%s1 + $0x6c] sm:$0xf]
      %v230 = vld [vmem:[%s1 + $0x70] sm:$0xf]
      %v231 = vld [vmem:[%s1 + $0x74] sm:$0xf]
      %v232 = vld [vmem:[%s1 + $0x78] sm:$0xf]
      %v233 = vld [vmem:[%s1 + $0x7c] sm:$0xf]
      %v234 = vld [vmem:[%s1 + $0x80] sm:$0xf]
      %v235 = vld [vmem:[%s1 + $0x84] sm:$0xf]
      %v236 = vld [vmem:[%s1 + $0x88] sm:$0xf]
      %v237 = vld [vmem:[%s1 + $0x8c] sm:$0xf]
      %v238 = vld [vmem:[%s1 + $0x90] sm:$0xf]
      %v239 = vld [vmem:[%s1 + $0x94] sm:$0xf]
      %v240 = vld [vmem:[%s1 + $0x98] sm:$0xf]
      %v241 = vld [vmem:[%s1 + $0x9c] sm:$0xf]
      %v242 = vld [vmem:[%s1 + $0xa0] sm:$0xf]
      %v243 = vld [vmem:[%s1 + $0xa4] sm:$0xf]
      %v244 = vld [vmem:[%s1 + $0xa8] sm:$0xf]
      %v245 = vld [vmem:[%s1 + $0xac] sm:$0xf]
      %v246 = vld [vmem:[%s1 + $0xb0] sm:$0xf]
      %v247 = vld [vmem:[%s1 + $0xb4] sm:$0xf]
      %v248 = vld [vmem:[%s1 + $0xb8] sm:$0xf]
      %v249 = vld [vmem:[%s1 + $0xbc] sm:$0xf]
      %v250 = vld [vmem:[%s1 + $0xc0] sm:$0xf]
      %v251 = vld [vmem:[%s1 + $0xc4] sm:$0xf]
      %v252 = vld [vmem:[%s1 + $0xc8] sm:$0xf]
      %v253 = vld [vmem:[%s1 + $0xcc] sm:$0xf]
      %v254 = vld [vmem:[%s1 + $0xd0] sm:$0xf]
      %v255 = vld [vmem:[%s1 + $0xd4] sm:$0xf]
      %v256 = vld [vmem:[%s1 + $0xd8] sm:$0xf]
      %v257 = vld [vmem:[%s1 + $0xdc] sm:$0xf]
      %v258 = vld [vmem:[%s1 + $0xe0] sm:$0xf]
      %v259 = vld [vmem:[%s1 + $0xe4] sm:$0xf]
      %v260 = vld [vmem:[%s1 + $0xe8] sm:$0xf]
      %v261 = vld [vmem:[%s1 + $0xec] sm:$0xf]
      %v262 = vld [vmem:[%s1 + $0xf0] sm:$0xf]
      %v263 = vld [vmem:[%s1 + $0xf4] sm:$0xf]
      %v264 = vld [vmem:[%s1 + $0xf8] sm:$0xf]
      %v265 = vld [vmem:[%s1 + $0xfc] sm:$0xf]
      %v266 = vld [vmem:[%s1 + $0x100] sm:$0xf]
      %v267 = vld [vmem:[%s1 + $0x104] sm:$0xf]
      %v268 = vld [vmem:[%s1 + $0x108] sm:$0xf]
      %v269 = vld [vmem:[%s1 + $0x10c] sm:$0xf]
      %v270 = vld [vmem:[%s1 + $0x110] sm:$0xf]
      %v271 = vld [vmem:[%s1 + $0x114] sm:$0xf]
      %v272 = vld [vmem:[%s1 + $0x118] sm:$0xf]
      %v273 = vld [vmem:[%s1 + $0x11c] sm:$0xf]
      %v274 = vld [vmem:[%s2] sm:$0x1]
      %v276 = vperm.slane %v274, 0
      %v302 = vunpack.c.l.b16 %v178
      %v303 = vunpack.c.h.b16 %v178
      %v304 = vunpack.c.l.b16 %v179
      %v305 = vunpack.c.h.b16 %v179
      %v306 = vunpack.c.l.b16 %v180
      %v307 = vunpack.c.l.b16 %v181
      %v308 = vunpack.c.h.b16 %v181
      %v309 = vunpack.c.l.b16 %v182
      %v310 = vunpack.c.h.b16 %v182
      %v311 = vunpack.c.l.b16 %v183
      %v312 = vunpack.c.l.b16 %v184
      %v313 = vunpack.c.h.b16 %v184
      %v314 = vunpack.c.l.b16 %v185
      %v315 = vunpack.c.h.b16 %v185
      %v316 = vunpack.c.l.b16 %v186
      %v317 = vunpack.c.l.b16 %v187
      %v318 = vunpack.c.h.b16 %v187
      %v319 = vunpack.c.l.b16 %v188
      %v320 = vunpack.c.h.b16 %v188
      %v321 = vunpack.c.l.b16 %v189
      %v322 = vunpack.c.l.b16 %v190
      %v323 = vunpack.c.h.b16 %v190
      %v324 = vunpack.c.l.b16 %v191
      %v325 = vunpack.c.h.b16 %v191
      %v326 = vunpack.c.l.b16 %v192
      %v327 = vunpack.c.l.b16 %v193
      %v328 = vunpack.c.h.b16 %v193
      %v329 = vunpack.c.l.b16 %v194
      %v330 = vunpack.c.h.b16 %v194
      %v331 = vunpack.c.l.b16 %v195
      %v332 = vunpack.c.l.b16 %v196
      %v333 = vunpack.c.h.b16 %v196
      %v334 = vunpack.c.l.b16 %v197
      %v335 = vunpack.c.h.b16 %v197
      %v336 = vunpack.c.l.b16 %v198
      %v337 = vunpack.c.l.b16 %v199
      %v338 = vunpack.c.h.b16 %v199
      %v339 = vunpack.c.l.b16 %v200
      %v340 = vunpack.c.h.b16 %v200
      %v341 = vunpack.c.l.b16 %v201
      %v342 = vpack.c.b16 %v307, %v302
      %v343 = vpack.c.b16 %v308, %v303
      %v344 = vpack.c.b16 %v309, %v304
      %v345 = vpack.c.b16 %v310, %v305
      %v346 = vpack.c.b16 %v311, %v306
      %v347 = vpack.c.b16 %v317, %v312
      %v348 = vpack.c.b16 %v318, %v313
      %v349 = vpack.c.b16 %v319, %v314
      %v350 = vpack.c.b16 %v320, %v315
      %v351 = vpack.c.b16 %v321, %v316
      %v352 = vpack.c.b16 %v327, %v322
      %v353 = vpack.c.b16 %v328, %v323
      %v354 = vpack.c.b16 %v329, %v324
      %v355 = vpack.c.b16 %v330, %v325
      %v356 = vpack.c.b16 %v331, %v326
      %v357 = vpack.c.b16 %v337, %v332
      %v358 = vpack.c.b16 %v338, %v333
      %v359 = vpack.c.b16 %v339, %v334
      %v360 = vpack.c.b16 %v340, %v335
      %v361 = vpack.c.b16 %v341, %v336
      %v450 = vunpack.c.l.b16 %v202
      %v451 = vunpack.c.l.b16 %v203
      %v452 = vunpack.c.l.b16 %v204
      %v453 = vunpack.c.l.b16 %v205
      %v454 = vunpack.c.l.b16 %v206
      %v455 = vunpack.c.l.b16 %v207
      %v456 = vunpack.c.l.b16 %v208
      %v457 = vunpack.c.l.b16 %v209
      %v458 = vunpack.c.l.b16 %v210
      %v459 = vunpack.c.l.b16 %v211
      %v460 = vunpack.c.l.b16 %v212
      %v461 = vunpack.c.l.b16 %v213
      %v462 = vunpack.c.l.b16 %v214
      %v463 = vunpack.c.l.b16 %v215
      %v464 = vunpack.c.l.b16 %v216
      %v465 = vunpack.c.l.b16 %v217
      %v466 = vunpack.c.l.b16 %v218
      %v467 = vunpack.c.l.b16 %v219
      %v468 = vunpack.c.l.b16 %v220
      %v469 = vunpack.c.l.b16 %v221
      %v470 = vunpack.c.l.b16 %v222
      %v471 = vunpack.c.l.b16 %v223
      %v472 = vunpack.c.l.b16 %v224
      %v473 = vunpack.c.l.b16 %v225
      %v474 = vunpack.c.l.b16 %v226
      %v475 = vunpack.c.l.b16 %v227
      %v476 = vunpack.c.l.b16 %v228
      %v477 = vunpack.c.l.b16 %v229
      %v478 = vunpack.c.l.b16 %v230
      %v479 = vunpack.c.l.b16 %v231
      %v480 = vunpack.c.l.b16 %v232
      %v481 = vunpack.c.l.b16 %v233
      %v482 = vunpack.c.l.b16 %v234
      %v483 = vunpack.c.l.b16 %v235
      %v484 = vunpack.c.l.b16 %v236
      %v485 = vunpack.c.l.b16 %v237
      %v486 = vunpack.c.l.b16 %v238
      %v487 = vunpack.c.l.b16 %v239
      %v488 = vunpack.c.l.b16 %v240
      %v489 = vunpack.c.l.b16 %v241
      %v490 = vunpack.c.l.b16 %v242
      %v491 = vunpack.c.l.b16 %v243
      %v492 = vunpack.c.l.b16 %v244
      %v493 = vunpack.c.l.b16 %v245
      %v494 = vunpack.c.l.b16 %v246
      %v495 = vunpack.c.l.b16 %v247
      %v496 = vunpack.c.l.b16 %v248
      %v497 = vunpack.c.l.b16 %v249
      %v498 = vunpack.c.l.b16 %v250
      %v499 = vunpack.c.l.b16 %v251
      %v500 = vunpack.c.l.b16 %v252
      %v501 = vunpack.c.l.b16 %v253
      %v502 = vunpack.c.l.b16 %v254
      %v503 = vunpack.c.l.b16 %v255
      %v504 = vunpack.c.l.b16 %v256
      %v505 = vunpack.c.l.b16 %v257
      %v506 = vunpack.c.l.b16 %v258
      %v507 = vunpack.c.l.b16 %v259
      %v508 = vunpack.c.l.b16 %v260
      %v509 = vunpack.c.l.b16 %v261
      %v510 = vunpack.c.l.b16 %v262
      %v511 = vunpack.c.l.b16 %v263
      %v512 = vunpack.c.l.b16 %v264
      %v513 = vunpack.c.l.b16 %v265
      %v514 = vunpack.c.l.b16 %v266
      %v515 = vunpack.c.l.b16 %v267
      %v516 = vunpack.c.l.b16 %v268
      %v517 = vunpack.c.l.b16 %v269
      %v518 = vunpack.c.l.b16 %v270
      %v519 = vunpack.c.l.b16 %v271
      %v520 = vunpack.c.l.b16 %v272
      %v521 = vunpack.c.l.b16 %v273
      %v522 = vpack.c.b16 %v451, %v450
      %v523 = vpack.c.b16 %v453, %v452
      %v524 = vpack.c.b16 %v455, %v454
      %v525 = vpack.c.b16 %v457, %v456
      %v526 = vpack.c.b16 %v459, %v458
      %v527 = vpack.c.b16 %v461, %v460
      %v528 = vpack.c.b16 %v463, %v462
      %v529 = vpack.c.b16 %v465, %v464
      %v530 = vpack.c.b16 %v467, %v466
      %v531 = vpack.c.b16 %v469, %v468
      %v532 = vpack.c.b16 %v471, %v470
      %v533 = vpack.c.b16 %v473, %v472
      %v534 = vpack.c.b16 %v475, %v474
      %v535 = vpack.c.b16 %v477, %v476
      %v536 = vpack.c.b16 %v479, %v478
      %v537 = vpack.c.b16 %v481, %v480
      %v538 = vpack.c.b16 %v483, %v482
      %v539 = vpack.c.b16 %v485, %v484
      %v540 = vpack.c.b16 %v487, %v486
      %v541 = vpack.c.b16 %v489, %v488
      %v542 = vpack.c.b16 %v491, %v490
      %v543 = vpack.c.b16 %v493, %v492
      %v544 = vpack.c.b16 %v495, %v494
      %v545 = vpack.c.b16 %v497, %v496
      %v546 = vpack.c.b16 %v499, %v498
      %v547 = vpack.c.b16 %v501, %v500
      %v548 = vpack.c.b16 %v503, %v502
      %v549 = vpack.c.b16 %v505, %v504
      %v550 = vpack.c.b16 %v507, %v506
      %v551 = vpack.c.b16 %v509, %v508
      %v552 = vpack.c.b16 %v511, %v510
      %v553 = vpack.c.b16 %v513, %v512
      %v554 = vpack.c.b16 %v515, %v514
      %v555 = vpack.c.b16 %v517, %v516
      %v556 = vpack.c.b16 %v519, %v518
      %v557 = vpack.c.b16 %v521, %v520
      %vm594 = vcmask 523264
      %v596 = vsel %vm594, %v346, 0
      %v599 = vsel %vm594, %v351, 0
      %v602 = vsel %vm594, %v356, 0
      %v605 = vsel %vm594, %v361, 0
      %607 = vmatpush.bf16.msra.mxu0 %v529
      %608 = vmatpush.bf16.msra.mxu0 %v528
      %609 = vmatpush.bf16.msra.mxu0 %v527
      %610 = vmatpush.bf16.msra.mxu0 %v526
      %611 = vmatpush.bf16.msra.mxu0 %v525
      %612 = vmatpush.bf16.msra.mxu0 %v524
      %613 = vmatpush.bf16.msra.mxu0 %v523
      %614 = vmatpush.bf16.msra.mxu0 %v522
      %615 = vmatmul.bf16.gmra.mxu0 %v342
      %v616 = vpop.f32.mrf.mxu0
      %v617 = vadd.f32 %v276, %v616
      %v618 = vpop.f32.mrf.mxu0
      %v619 = vadd.f32 %v276, %v618
      %620 = vmatmul.bf16.gmra.mxu0 %v347
      %v621 = vpop.f32.mrf.mxu0
      %v622 = vadd.f32 %v276, %v621
      %v623 = vpop.f32.mrf.mxu0
      %v624 = vadd.f32 %v276, %v623
      %625 = vmatmul.bf16.gmra.mxu0 %v352
      %v626 = vpop.f32.mrf.mxu0
      %v627 = vadd.f32 %v276, %v626
      %v628 = vpop.f32.mrf.mxu0
      %v629 = vadd.f32 %v276, %v628
      %630 = vmatmul.bf16.gmra.mxu0 %v357
      %v631 = vpop.f32.mrf.mxu0
      %v632 = vadd.f32 %v276, %v631
      %v633 = vpop.f32.mrf.mxu0
      %v634 = vadd.f32 %v276, %v633
      %635 = vdwg.mxu0
      %636 = vmatpush.bf16.msra.mxu0 %v537
      %637 = vmatpush.bf16.msra.mxu0 %v536
      %638 = vmatpush.bf16.msra.mxu0 %v535
      %639 = vmatpush.bf16.msra.mxu0 %v534
      %640 = vmatpush.bf16.msra.mxu0 %v533
      %641 = vmatpush.bf16.msra.mxu0 %v532
      %642 = vmatpush.bf16.msra.mxu0 %v531
      %643 = vmatpush.bf16.msra.mxu0 %v530
      %644 = vmatmul.bf16.gmra.mxu0 %v343
      %v645 = vpop.f32.mrf.mxu0
      %v646 = vadd.f32 %v617, %v645
      %v647 = vpop.f32.mrf.mxu0
      %v648 = vadd.f32 %v619, %v647
      %649 = vmatmul.bf16.gmra.mxu0 %v348
      %v650 = vpop.f32.mrf.mxu0
      %v651 = vadd.f32 %v622, %v650
      %v652 = vpop.f32.mrf.mxu0
      %v653 = vadd.f32 %v624, %v652
      %654 = vmatmul.bf16.gmra.mxu0 %v353
      %v655 = vpop.f32.mrf.mxu0
      %v656 = vadd.f32 %v627, %v655
      %v657 = vpop.f32.mrf.mxu0
      %v658 = vadd.f32 %v629, %v657
      %659 = vmatmul.bf16.gmra.mxu0 %v358
      %v660 = vpop.f32.mrf.mxu0
      %v661 = vadd.f32 %v632, %v660
      %v662 = vpop.f32.mrf.mxu0
      %v663 = vadd.f32 %v634, %v662
      %664 = vdwg.mxu0
      %665 = vmatpush.bf16.msra.mxu0 %v545
      %666 = vmatpush.bf16.msra.mxu0 %v544
      %667 = vmatpush.bf16.msra.mxu0 %v543
      %668 = vmatpush.bf16.msra.mxu0 %v542
      %669 = vmatpush.bf16.msra.mxu0 %v541
      %670 = vmatpush.bf16.msra.mxu0 %v540
      %671 = vmatpush.bf16.msra.mxu0 %v539
      %672 = vmatpush.bf16.msra.mxu0 %v538
      %673 = vmatmul.bf16.gmra.mxu0 %v344
      %v674 = vpop.f32.mrf.mxu0
      %v675 = vadd.f32 %v646, %v674
      %v676 = vpop.f32.mrf.mxu0
      %v677 = vadd.f32 %v648, %v676
      %678 = vmatmul.bf16.gmra.mxu0 %v349
      %v679 = vpop.f32.mrf.mxu0
      %v680 = vadd.f32 %v651, %v679
      %v681 = vpop.f32.mrf.mxu0
      %v682 = vadd.f32 %v653, %v681
      %683 = vmatmul.bf16.gmra.mxu0 %v354
      %v684 = vpop.f32.mrf.mxu0
      %v685 = vadd.f32 %v656, %v684
      %v686 = vpop.f32.mrf.mxu0
      %v687 = vadd.f32 %v658, %v686
      %688 = vmatmul.bf16.gmra.mxu0 %v359
      %v689 = vpop.f32.mrf.mxu0
      %v690 = vadd.f32 %v661, %v689
      %v691 = vpop.f32.mrf.mxu0
      %v692 = vadd.f32 %v663, %v691
      %693 = vdwg.mxu0
      %694 = vmatpush.bf16.msra.mxu0 %v553
      %695 = vmatpush.bf16.msra.mxu0 %v552
      %696 = vmatpush.bf16.msra.mxu0 %v551
      %697 = vmatpush.bf16.msra.mxu0 %v550
      %698 = vmatpush.bf16.msra.mxu0 %v549
      %699 = vmatpush.bf16.msra.mxu0 %v548
      %700 = vmatpush.bf16.msra.mxu0 %v547
      %701 = vmatpush.bf16.msra.mxu0 %v546
      %702 = vmatmul.bf16.gmra.mxu0 %v345
      %v703 = vpop.f32.mrf.mxu0
      %v704 = vadd.f32 %v675, %v703
      %v705 = vpop.f32.mrf.mxu0
      %v706 = vadd.f32 %v677, %v705
      %707 = vmatmul.bf16.gmra.mxu0 %v350
      %v708 = vpop.f32.mrf.mxu0
      %v709 = vadd.f32 %v680, %v708
      %v710 = vpop.f32.mrf.mxu0
      %v711 = vadd.f32 %v682, %v710
      %712 = vmatmul.bf16.gmra.mxu0 %v355
      %v713 = vpop.f32.mrf.mxu0
      %v714 = vadd.f32 %v685, %v713
      %v715 = vpop.f32.mrf.mxu0
      %v716 = vadd.f32 %v687, %v715
      %717 = vmatmul.bf16.gmra.mxu0 %v360
      %v718 = vpop.f32.mrf.mxu0
      %v719 = vadd.f32 %v690, %v718
      %v720 = vpop.f32.mrf.mxu0
      %v721 = vadd.f32 %v692, %v720
      %722 = vdwg.mxu0
      %723 = vmatpush.bf16.msra.mxu0 0
      %724 = vmatpush.bf16.msra.mxu0 0
      %725 = vmatpush.bf16.msra.mxu0 0
      %726 = vmatpush.bf16.msra.mxu0 0
      %727 = vmatpush.bf16.msra.mxu0 %v557
      %728 = vmatpush.bf16.msra.mxu0 %v556
      %729 = vmatpush.bf16.msra.mxu0 %v555
      %730 = vmatpush.bf16.msra.mxu0 %v554
      %731 = vmatmul.bf16.gmra.mxu0 %v596
      %v732 = vpop.f32.mrf.mxu0
      %v733 = vadd.f32 %v704, %v732
      %v734 = vpop.f32.mrf.mxu0
      %v735 = vadd.f32 %v706, %v734
      %736 = vmatmul.bf16.gmra.mxu0 %v599
      %v737 = vpop.f32.mrf.mxu0
      %v738 = vadd.f32 %v709, %v737
      %v739 = vpop.f32.mrf.mxu0
      %v740 = vadd.f32 %v711, %v739
      %741 = vmatmul.bf16.gmra.mxu0 %v602
      %v742 = vpop.f32.mrf.mxu0
      %v743 = vadd.f32 %v714, %v742
      %v744 = vpop.f32.mrf.mxu0
      %v745 = vadd.f32 %v716, %v744
      %746 = vmatmul.bf16.gmra.mxu0 %v605
      %v747 = vpop.f32.mrf.mxu0
      %v748 = vadd.f32 %v719, %v747
      %v749 = vpop.f32.mrf.mxu0
      %v750 = vadd.f32 %v721, %v749
      %751 = vdwg.mxu0
      %v752 = vmax.f32 %v733, 0.0
      %v753 = vmax.f32 %v735, 0.0
      %v754 = vmax.f32 %v738, 0.0
      %v755 = vmax.f32 %v740, 0.0
      %v756 = vmax.f32 %v743, 0.0
      %v757 = vmax.f32 %v745, 0.0
      %v758 = vmax.f32 %v748, 0.0
      %v759 = vmax.f32 %v750, 0.0
      %v760 = vpack.c.bf16 %v752, %v752
      %v761 = vpack.c.bf16 %v753, %v753
      %v762 = vpack.c.bf16 %v754, %v754
      %v763 = vpack.c.bf16 %v755, %v755
      %v764 = vpack.c.bf16 %v756, %v756
      %v765 = vpack.c.bf16 %v757, %v757
      %v766 = vpack.c.bf16 %v758, %v758
      %v767 = vpack.c.bf16 %v759, %v759
      %vm768 = vcmask 519168
      %769 = vst.msk [vmem:[%s175] sm:$0xf] %vm768, %v760
      %770 = vst.msk [vmem:[%s175 + $0x4] sm:$0xf] %vm768, %v761
      %771 = vst.msk [vmem:[%s175 + $0x8] sm:$0xf] %vm768, %v762
      %772 = vst.msk [vmem:[%s175 + $0xc] sm:$0xf] %vm768, %v763
      %773 = vst.msk [vmem:[%s175 + $0x10] sm:$0xf] %vm768, %v764
      %774 = vst.msk [vmem:[%s175 + $0x14] sm:$0xf] %vm768, %v765
      %775 = vst.msk [vmem:[%s175 + $0x18] sm:$0xf] %vm768, %v766
      %776 = vst.msk [vmem:[%s175 + $0x1c] sm:$0xf] %vm768, %v767
      %s777 = smul.u32 8, %s14
      %p778 = scmp.lt.s32.totalorder %s777, 15
      %s779 = scalar_select %p778, %s777, 15
      %s780 = smul.addr %s779, 4
      %s781 = scalar_lea.vmem %s3, %s780
      // Predicated region
      $region33: #{dqn_forward.6} parent=31 // pred_check
        %p782 = pneg %p100
      $region34: #{dqn_forward.6} parent=31 // pred_check_branch
        %784 = sbr.rel (%p782) target = $region36
      $region35: #{dqn_forward.6} parent=31 // pred_region
        %s785 = smul.u32 8, %s14
      $region36: #{dqn_forward.6} parent=31 // pred_fallthru
        _
    $region32: #{dqn_forward.6} parent=5 // pred_fallthru
      _
    %p786 = scmp.le.s32.totalorder 2, %s9
    // Predicated region
    $region37: #{dqn_forward.6} parent=5 // pred_check
      %p787 = pneg %p786
    $region38: #{dqn_forward.6} parent=5 // pred_check_branch
      %789 = sbr.rel (%p787) target = $region40
    $region39: #{dqn_forward.6} parent=5 // pred_region
      %s790 = ssub.s32 %s9, 2
      // Predicated region
      $region41: #{dqn_forward.6} parent=39 // pred_check
        %p791 = pneg %p106
      $region42: #{dqn_forward.6} parent=39 // pred_check_branch
        %793 = sbr.rel (%p791) target = $region44
      $region43: #{dqn_forward.6} parent=39 // pred_region
        %s794 = smul.u32 8, %s15
        %p795 = scmp.lt.s32.totalorder %s794, 15
        %s796 = scalar_select %p795, %s794, 15
        %s797 = smul.addr %s796, 4
        %s798 = scalar_lea.vmem %s3, %s797
      $region44: #{dqn_forward.6} parent=39 // pred_fallthru
        _
    $region40: #{dqn_forward.6} parent=5 // pred_fallthru
      _
  $region6: #{dqn_forward.6} parent=0 // loop_footer
    %s13 = sadd.s32 1, %s9
  $region7: #{dqn_forward.6} parent=0 // loop_footer_branch
    %8 = sbr.rel target = $region3
  $region8: #{dqn_forward.6} parent=0 // loop_exit
    _

// kernel: dqn_forward.7
$region0: #{dqn_forward.7}
  #allocation0 [shape = 'u32[]', space=smem, size = 0x4, offset = 0x4, fixed_abs, tag = 'smem constant byte address 0x4 - core index']
  #allocation1 [shape = 'u32[72,128]{1,0:T(1,128)}', space=vmem, size = 0x9000, scoped, tag = 'internal scratch']
  %s0 = inlined_call_operand.vmem [shape: bf16[16,3136], index: 0, kind: input, shape index: {}]
  %s1 = inlined_call_operand.vmem [shape: bf16[3136,512], index: 1, kind: input, shape index: {}]
  %s2 = inlined_call_operand.vmem [shape: f32[1,512], index: 2, kind: input, shape index: {}]
  %s3 = inlined_call_operand.vmem [shape: bf16[512,128], index: 3, kind: input, shape index: {}]
  %s4 = inlined_call_operand.vmem [shape: f32[4,16,128], index: 4, kind: output, shape index: {}]
  %s5 = sld [smem:[#allocation0]]
  $region101: #{dqn_forward.7} parent=0
    _
  %s7 = ssub.s32 1, %s5
  %s8 = scalar_select 0, %s7, %s5
  $region1: #{dqn_forward.7} parent=0
    #allocation2 [shape = 'u8[1605632]{0}', space=vmem, size = 0x188000, scoped, tag = 'input window, operand 1']
    loop: start=0, step=1, limit=6
    $region2: #{dqn_forward.7} parent=1 // loop_pre_header
      _
    $region3: #{dqn_forward.7} parent=1 // loop_header
      %s10 = sphi 0, %s14
      %p11 = scmp.ge.s32.totalorder %s10, 6
      %s18 = sphi 0, %s18
      %s20 = sphi 0, %s18
      %s21 = sphi 0, %s20
      %s35 = sphi 0, %s21
      %s41 = sphi 0, %s43
      %s44 = sphi 0, %s41
      %s45 = sphi 0, %s44
      %s61 = sphi 0, %s45
      %s67 = sphi 0, %s69
      %s70 = sphi 0, %s67
      %s71 = sphi 0, %s70
      %s87 = sphi 0, %s71
      %s93 = sphi 0, %s95
      %s96 = sphi 0, %s93
      %s97 = sphi 0, %s96
      %s113 = sphi 0, %s97
      %s119 = sphi 0, %s121
      %s122 = sphi 0, %s119
      %s123 = sphi 0, %s122
      %s139 = sphi 0, %s123
    $region4: #{dqn_forward.7} parent=1 // loop_header_branch
      %13 = sbr.rel (%p11) target = $region8
    $region5: #{dqn_forward.7} parent=1 // loop_body
      %s15 = ssub.s32 %s10, 1
      %s16 = ssub.s32 %s10, 2
      %s17 = sadd.s32 %s10, 1
      %s19 = sadd.s32 %s18, 1
      %p22 = scmp.eq.s32.totalorder %s10, 3
      %p23 = scmp.ne.s32.totalorder %s18, %s20
      %p24 = scmp.eq.s32.totalorder %s10, 0
      %p25 = por %p23, %p24
      %p26 = scmp.ne.s32.totalorder %s18, %s20
      %p27 = scmp.eq.s32.totalorder %s15, 3
      %p28 = por %p26, %p27
      %p29 = scmp.ne.s32.totalorder %s20, %s21
      %p30 = scmp.eq.s32.totalorder %s15, 0
      %p31 = por %p29, %p30
      %p32 = scmp.ne.s32.totalorder %s20, %s21
      %p33 = scmp.eq.s32.totalorder %s16, 3
      %p34 = por %p32, %p33
      %p36 = scmp.ne.s32.totalorder %s21, %s35
      %p37 = scmp.eq.s32.totalorder %s16, 0
      %p38 = por %p36, %p37
      %s39 = ssub.s32 %s10, %s17
      %p40 = scmp.eq.s32.totalorder %s39, 0
      %s42 = sadd.s32 %s41, 1
      %s43 = scalar_select %p40, %s41, %s42
      %p46 = pneg %p40
      %p47 = scmp.eq.s32.totalorder %s10, 3
      %p48 = por %p46, %p47
      %p49 = scmp.ne.s32.totalorder %s41, %s44
      %p50 = scmp.eq.s32.totalorder %s10, 0
      %p51 = por %p49, %p50
      %p52 = scmp.ne.s32.totalorder %s41, %s44
      %p53 = scmp.eq.s32.totalorder %s15, 3
      %p54 = por %p52, %p53
      %p55 = scmp.ne.s32.totalorder %s44, %s45
      %p56 = scmp.eq.s32.totalorder %s15, 0
      %p57 = por %p55, %p56
      %p58 = scmp.ne.s32.totalorder %s44, %s45
      %p59 = scmp.eq.s32.totalorder %s16, 3
      %p60 = por %p58, %p59
      %p62 = scmp.ne.s32.totalorder %s45, %s61
      %p63 = scmp.eq.s32.totalorder %s16, 0
      %p64 = por %p62, %p63
      %s65 = ssub.s32 %s10, %s17
      %p66 = scmp.eq.s32.totalorder %s65, 0
      %s68 = sadd.s32 %s67, 1
      %s69 = scalar_select %p66, %s67, %s68
      %p72 = pneg %p66
      %p73 = scmp.eq.s32.totalorder %s10, 3
      %p74 = por %p72, %p73
      %p75 = scmp.ne.s32.totalorder %s67, %s70
      %p76 = scmp.eq.s32.totalorder %s10, 0
      %p77 = por %p75, %p76
      %p78 = scmp.ne.s32.totalorder %s67, %s70
      %p79 = scmp.eq.s32.totalorder %s15, 3
      %p80 = por %p78, %p79
      %p81 = scmp.ne.s32.totalorder %s70, %s71
      %p82 = scmp.eq.s32.totalorder %s15, 0
      %p83 = por %p81, %p82
      %p84 = scmp.ne.s32.totalorder %s70, %s71
      %p85 = scmp.eq.s32.totalorder %s16, 3
      %p86 = por %p84, %p85
      %p88 = scmp.ne.s32.totalorder %s71, %s87
      %p89 = scmp.eq.s32.totalorder %s16, 0
      %p90 = por %p88, %p89
      %s91 = ssub.s32 %s10, %s17
      %p92 = scmp.eq.s32.totalorder %s91, 0
      %s94 = sadd.s32 %s93, 1
      %s95 = scalar_select %p92, %s93, %s94
      %p98 = pneg %p92
      %p99 = scmp.eq.s32.totalorder %s10, 3
      %p100 = por %p98, %p99
      %p101 = scmp.ne.s32.totalorder %s93, %s96
      %p102 = scmp.eq.s32.totalorder %s10, 0
      %p103 = por %p101, %p102
      %p104 = scmp.ne.s32.totalorder %s93, %s96
      %p105 = scmp.eq.s32.totalorder %s15, 3
      %p106 = por %p104, %p105
      %p107 = scmp.ne.s32.totalorder %s96, %s97
      %p108 = scmp.eq.s32.totalorder %s15, 0
      %p109 = por %p107, %p108
      %p110 = scmp.ne.s32.totalorder %s96, %s97
      %p111 = scmp.eq.s32.totalorder %s16, 3
      %p112 = por %p110, %p111
      %p114 = scmp.ne.s32.totalorder %s97, %s113
      %p115 = scmp.eq.s32.totalorder %s16, 0
      %p116 = por %p114, %p115
      %s117 = ssub.s32 %s10, %s17
      %p118 = scmp.eq.s32.totalorder %s117, 0
      %s120 = sadd.s32 %s119, 1
      %s121 = scalar_select %p118, %s119, %s120
      %p124 = pneg %p118
      %p125 = scmp.eq.s32.totalorder %s10, 3
      %p126 = por %p124, %p125
      %p127 = scmp.ne.s32.totalorder %s119, %s122
      %p128 = scmp.eq.s32.totalorder %s10, 0
      %p129 = por %p127, %p128
      %p130 = scmp.ne.s32.totalorder %s119, %s122
      %p131 = scmp.eq.s32.totalorder %s15, 3
      %p132 = por %p130, %p131
      %p133 = scmp.ne.s32.totalorder %s122, %s123
      %p134 = scmp.eq.s32.totalorder %s15, 0
      %p135 = por %p133, %p134
      %p136 = scmp.ne.s32.totalorder %s122, %s123
      %p137 = scmp.eq.s32.totalorder %s16, 3
      %p138 = por %p136, %p137
      %p140 = scmp.ne.s32.totalorder %s123, %s139
      %p141 = scmp.eq.s32.totalorder %s16, 0
      %p142 = por %p140, %p141
      %p143 = scmp.le.s32.totalorder 1, %s10
      %p144 = scmp.lt.s32.totalorder %s10, 5
      %p145 = pnand %p143, %p144
      %p146 = pneg %p145
      // Predicated region
      $region9: #{dqn_forward.7} parent=5 // pred_check
        _
      $region10: #{dqn_forward.7} parent=5 // pred_check_branch
        %148 = sbr.rel (%p145) target = $region12
      $region11: #{dqn_forward.7} parent=5 // pred_region
        %s149 = ssub.s32 %s10, 1
        // Predicated region
        $region13: #{dqn_forward.7} parent=11 // pred_check
          %p150 = pneg %p31
        $region14: #{dqn_forward.7} parent=11 // pred_check_branch
          %152 = sbr.rel (%p150) target = $region16
        $region15: #{dqn_forward.7} parent=11 // pred_region
          _
        $region16: #{dqn_forward.7} parent=11 // pred_fallthru
          _
      $region12: #{dqn_forward.7} parent=5 // pred_fallthru
        _
      %p153 = scmp.lt.s32.totalorder %s10, 4
      // Predicated region
      $region17: #{dqn_forward.7} parent=5 // pred_check
        %p154 = pneg %p153
      $region18: #{dqn_forward.7} parent=5 // pred_check_branch
        %156 = sbr.rel (%p154) target = $region20
      $region19: #{dqn_forward.7} parent=5 // pred_region
        // Predicated region
        $region21: #{dqn_forward.7} parent=19 // pred_check
          %p157 = pneg %p51
        $region22: #{dqn_forward.7} parent=19 // pred_check_branch
          %159 = sbr.rel (%p157) target = $region24
        $region23: #{dqn_forward.7} parent=19 // pred_region
          %s160 = sand.u32 %s41, 1
          %s161 = sand.u32 %s41, 1
          %s162 = smul.addr %s161, 1568
          %s163 = scalar_lea.vmem [#allocation2], %s162
          %s164 = smul.addr %s10, 4
          %s165 = scalar_lea.vmem %s1, %s164
          // Predicated region
          $region25: #{dqn_forward.7} parent=23 // pred_check
            _
          $region26: #{dqn_forward.7} parent=23 // pred_check_branch
            %167 = sbr.rel (0) target = $region28
          $region27: #{dqn_forward.7} parent=23 // pred_region
            // Predicated region
            $region29: #{dqn_forward.7} parent=27 // pred_check
              _
            $region30: #{dqn_forward.7} parent=27 // pred_check_branch
              %169 = sbr.rel target = $region32
            $region31: #{dqn_forward.7} parent=27 // pred_region
              // Predicated region
              $region44: #{dqn_forward.7} parent=31 // pred_check
                _
              $region45: #{dqn_forward.7} parent=31 // pred_check_branch
                %967 = sbr.rel target = $region47
              $region46: #{dqn_forward.7} parent=31 // pred_region
                loop: start=0, step=1, limit=0
                $region48: #{dqn_forward.7} parent=46 // loop_pre_header
                  _
                $region49: #{dqn_forward.7} parent=46 // loop_header
                  %s969 = sphi 0, %s973
                  %p970 = scmp.ge.s32.totalorder %s969, 0
                  %s974 = sphi 0, %s1763
                  %s975 = sphi %s165, %s1766
                  %s976 = sphi %s163, %s1767
                $region50: #{dqn_forward.7} parent=46 // loop_header_branch
                  %972 = sbr.rel (%p970) target = $region54
                $region51: #{dqn_forward.7} parent=46 // loop_body
                  %v977 = vld [vmem:[%s975] sm:$0xff]
                  %978 = vst [vmem:[%s976] sm:$0xff] %v977
                  %v979 = vld [vmem:[%s975 + $0x10] sm:$0xff]
                  %980 = vst [vmem:[%s976 + $0x4] sm:$0xff] %v979
                  %v981 = vld [vmem:[%s975 + $0x20] sm:$0xff]
                  %982 = vst [vmem:[%s976 + $0x8] sm:$0xff] %v981
                  %v983 = vld [vmem:[%s975 + $0x30] sm:$0xff]
                  %984 = vst [vmem:[%s976 + $0xc] sm:$0xff] %v983
                  %v985 = vld [vmem:[%s975 + $0x40] sm:$0xff]
                  %986 = vst [vmem:[%s976 + $0x10] sm:$0xff] %v985
                  %v987 = vld [vmem:[%s975 + $0x50] sm:$0xff]
                  %988 = vst [vmem:[%s976 + $0x14] sm:$0xff] %v987
                  %v989 = vld [vmem:[%s975 + $0x60] sm:$0xff]
                  %990 = vst [vmem:[%s976 + $0x18] sm:$0xff] %v989
                  %v991 = vld [vmem:[%s975 + $0x70] sm:$0xff]
                  %992 = vst [vmem:[%s976 + $0x1c] sm:$0xff] %v991
                  %v993 = vld [vmem:[%s975 + $0x80] sm:$0xff]
                  %994 = vst [vmem:[%s976 + $0x20] sm:$0xff] %v993
                  %v995 = vld [vmem:[%s975 + $0x90] sm:$0xff]
                  %996 = vst [vmem:[%s976 + $0x24] sm:$0xff] %v995
                  %v997 = vld [vmem:[%s975 + $0xa0] sm:$0xff]
                  %998 = vst [vmem:[%s976 + $0x28] sm:$0xff] %v997
                  %v999 = vld [vmem:[%s975 + $0xb0] sm:$0xff]
                  %1000 = vst [vmem:[%s976 + $0x2c] sm:$0xff] %v999
                  %v1001 = vld [vmem:[%s975 + $0xc0] sm:$0xff]
                  %1002 = vst [vmem:[%s976 + $0x30] sm:$0xff] %v1001
                  %v1003 = vld [vmem:[%s975 + $0xd0] sm:$0xff]
                  %1004 = vst [vmem:[%s976 + $0x34] sm:$0xff] %v1003
                  %v1005 = vld [vmem:[%s975 + $0xe0] sm:$0xff]
                  %1006 = vst [vmem:[%s976 + $0x38] sm:$0xff] %v1005
                  %v1007 = vld [vmem:[%s975 + $0xf0] sm:$0xff]
                  %1008 = vst [vmem:[%s976 + $0x3c] sm:$0xff] %v1007
                  %v1009 = vld [vmem:[%s975 + $0x100] sm:$0xff]
                  %1010 = vst [vmem:[%s976 + $0x40] sm:$0xff] %v1009
                  %v1011 = vld [vmem:[%s975 + $0x110] sm:$0xff]
                  %1012 = vst [vmem:[%s976 + $0x44] sm:$0xff] %v1011
                  %v1013 = vld [vmem:[%s975 + $0x120] sm:$0xff]
                  %1014 = vst [vmem:[%s976 + $0x48] sm:$0xff] %v1013
                  %v1015 = vld [vmem:[%s975 + $0x130] sm:$0xff]
                  %1016 = vst [vmem:[%s976 + $0x4c] sm:$0xff] %v1015
                  %v1017 = vld [vmem:[%s975 + $0x140] sm:$0xff]
                  %1018 = vst [vmem:[%s976 + $0x50] sm:$0xff] %v1017
                  %v1019 = vld [vmem:[%s975 + $0x150] sm:$0xff]
                  %1020 = vst [vmem:[%s976 + $0x54] sm:$0xff] %v1019
                  %v1021 = vld [vmem:[%s975 + $0x160] sm:$0xff]
                  %1022 = vst [vmem:[%s976 + $0x58] sm:$0xff] %v1021
                  %v1023 = vld [vmem:[%s975 + $0x170] sm:$0xff]
                  %1024 = vst [vmem:[%s976 + $0x5c] sm:$0xff] %v1023
                  %v1025 = vld [vmem:[%s975 + $0x180] sm:$0xff]
                  %1026 = vst [vmem:[%s976 + $0x60] sm:$0xff] %v1025
                  %v1027 = vld [vmem:[%s975 + $0x190] sm:$0xff]
                  %1028 = vst [vmem:[%s976 + $0x64] sm:$0xff] %v1027
                  %v1029 = vld [vmem:[%s975 + $0x1a0] sm:$0xff]
                  %1030 = vst [vmem:[%s976 + $0x68] sm:$0xff] %v1029
                  %v1031 = vld [vmem:[%s975 + $0x1b0] sm:$0xff]
                  %1032 = vst [vmem:[%s976 + $0x6c] sm:$0xff] %v1031
                  %v1033 = vld [vmem:[%s975 + $0x1c0] sm:$0xff]
                  %1034 = vst [vmem:[%s976 + $0x70] sm:$0xff] %v1033
                  %v1035 = vld [vmem:[%s975 + $0x1d0] sm:$0xff]
                  %1036 = vst [vmem:[%s976 + $0x74] sm:$0xff] %v1035
                  %v1037 = vld [vmem:[%s975 + $0x1e0] sm:$0xff]
                  %1038 = vst [vmem:[%s976 + $0x78] sm:$0xff] %v1037
                  %v1039 = vld [vmem:[%s975 + $0x1f0] sm:$0xff]
                  %1040 = vst [vmem:[%s976 + $0x7c] sm:$0xff] %v1039
                  %v1041 = vld [vmem:[%s975 + $0x200] sm:$0xff]
                  %1042 = vst [vmem:[%s976 + $0x80] sm:$0xff] %v1041
                  %v1043 = vld [vmem:[%s975 + $0x210] sm:$0xff]
                  %1044 = vst [vmem:[%s976 + $0x84] sm:$0xff] %v1043
                  %v1045 = vld [vmem:[%s975 + $0x220] sm:$0xff]
                  %1046 = vst [vmem:[%s976 + $0x88] sm:$0xff] %v1045
                  %v1047 = vld [vmem:[%s975 + $0x230] sm:$0xff]
                  %1048 = vst [vmem:[%s976 + $0x8c] sm:$0xff] %v1047
                  %v1049 = vld [vmem:[%s975 + $0x240] sm:$0xff]
                  %1050 = vst [vmem:[%s976 + $0x90] sm:$0xff] %v1049
                  %v1051 = vld [vmem:[%s975 + $0x250] sm:$0xff]
                  %1052 = vst [vmem:[%s976 + $0x94] sm:$0xff] %v1051
                  %v1053 = vld [vmem:[%s975 + $0x260] sm:$0xff]
                  %1054 = vst [vmem:[%s976 + $0x98] sm:$0xff] %v1053
                  %v1055 = vld [vmem:[%s975 + $0x270] sm:$0xff]
                  %1056 = vst [vmem:[%s976 + $0x9c] sm:$0xff] %v1055
                  %v1057 = vld [vmem:[%s975 + $0x280] sm:$0xff]
                  %1058 = vst [vmem:[%s976 + $0xa0] sm:$0xff] %v1057
                  %v1059 = vld [vmem:[%s975 + $0x290] sm:$0xff]
                  %1060 = vst [vmem:[%s976 + $0xa4] sm:$0xff] %v1059
                  %v1061 = vld [vmem:[%s975 + $0x2a0] sm:$0xff]
                  %1062 = vst [vmem:[%s976 + $0xa8] sm:$0xff] %v1061
                  %v1063 = vld [vmem:[%s975 + $0x2b0] sm:$0xff]
                  %1064 = vst [vmem:[%s976 + $0xac] sm:$0xff] %v1063
                  %v1065 = vld [vmem:[%s975 + $0x2c0] sm:$0xff]
                  %1066 = vst [vmem:[%s976 + $0xb0] sm:$0xff] %v1065
                  %v1067 = vld [vmem:[%s975 + $0x2d0] sm:$0xff]
                  %1068 = vst [vmem:[%s976 + $0xb4] sm:$0xff] %v1067
                  %v1069 = vld [vmem:[%s975 + $0x2e0] sm:$0xff]
                  %1070 = vst [vmem:[%s976 + $0xb8] sm:$0xff] %v1069
                  %v1071 = vld [vmem:[%s975 + $0x2f0] sm:$0xff]
                  %1072 = vst [vmem:[%s976 + $0xbc] sm:$0xff] %v1071
                  %v1073 = vld [vmem:[%s975 + $0x300] sm:$0xff]
                  %1074 = vst [vmem:[%s976 + $0xc0] sm:$0xff] %v1073
                  %v1075 = vld [vmem:[%s975 + $0x310] sm:$0xff]
                  %1076 = vst [vmem:[%s976 + $0xc4] sm:$0xff] %v1075
                  %v1077 = vld [vmem:[%s975 + $0x320] sm:$0xff]
                  %1078 = vst [vmem:[%s976 + $0xc8] sm:$0xff] %v1077
                  %v1079 = vld [vmem:[%s975 + $0x330] sm:$0xff]
                  %1080 = vst [vmem:[%s976 + $0xcc] sm:$0xff] %v1079
                  %v1081 = vld [vmem:[%s975 + $0x340] sm:$0xff]
                  %1082 = vst [vmem:[%s976 + $0xd0] sm:$0xff] %v1081
                  %v1083 = vld [vmem:[%s975 + $0x350] sm:$0xff]
                  %1084 = vst [vmem:[%s976 + $0xd4] sm:$0xff] %v1083
                  %v1085 = vld [vmem:[%s975 + $0x360] sm:$0xff]
                  %1086 = vst [vmem:[%s976 + $0xd8] sm:$0xff] %v1085
                  %v1087 = vld [vmem:[%s975 + $0x370] sm:$0xff]
                  %1088 = vst [vmem:[%s976 + $0xdc] sm:$0xff] %v1087
                  %v1089 = vld [vmem:[%s975 + $0x380] sm:$0xff]
                  %1090 = vst [vmem:[%s976 + $0xe0] sm:$0xff] %v1089
                  %v1091 = vld [vmem:[%s975 + $0x390] sm:$0xff]
                  %1092 = vst [vmem:[%s976 + $0xe4] sm:$0xff] %v1091
                  %v1093 = vld [vmem:[%s975 + $0x3a0] sm:$0xff]
                  %1094 = vst [vmem:[%s976 + $0xe8] sm:$0xff] %v1093
                  %v1095 = vld [vmem:[%s975 + $0x3b0] sm:$0xff]
                  %1096 = vst [vmem:[%s976 + $0xec] sm:$0xff] %v1095
                  %v1097 = vld [vmem:[%s975 + $0x3c0] sm:$0xff]
                  %1098 = vst [vmem:[%s976 + $0xf0] sm:$0xff] %v1097
                  %v1099 = vld [vmem:[%s975 + $0x3d0] sm:$0xff]
                  %1100 = vst [vmem:[%s976 + $0xf4] sm:$0xff] %v1099
                  %v1101 = vld [vmem:[%s975 + $0x3e0] sm:$0xff]
                  %1102 = vst [vmem:[%s976 + $0xf8] sm:$0xff] %v1101
                  %v1103 = vld [vmem:[%s975 + $0x3f0] sm:$0xff]
                  %1104 = vst [vmem:[%s976 + $0xfc] sm:$0xff] %v1103
                  %v1105 = vld [vmem:[%s975 + $0x400] sm:$0xff]
                  %1106 = vst [vmem:[%s976 + $0x100] sm:$0xff] %v1105
                  %v1107 = vld [vmem:[%s975 + $0x410] sm:$0xff]
                  %1108 = vst [vmem:[%s976 + $0x104] sm:$0xff] %v1107
                  %v1109 = vld [vmem:[%s975 + $0x420] sm:$0xff]
                  %1110 = vst [vmem:[%s976 + $0x108] sm:$0xff] %v1109
                  %v1111 = vld [vmem:[%s975 + $0x430] sm:$0xff]
                  %1112 = vst [vmem:[%s976 + $0x10c] sm:$0xff] %v1111
                  %v1113 = vld [vmem:[%s975 + $0x440] sm:$0xff]
                  %1114 = vst [vmem:[%s976 + $0x110] sm:$0xff] %v1113
                  %v1115 = vld [vmem:[%s975 + $0x450] sm:$0xff]
                  %1116 = vst [vmem:[%s976 + $0x114] sm:$0xff] %v1115
                  %v1117 = vld [vmem:[%s975 + $0x460] sm:$0xff]
                  %1118 = vst [vmem:[%s976 + $0x118] sm:$0xff] %v1117
                  %v1119 = vld [vmem:[%s975 + $0x470] sm:$0xff]
                  %1120 = vst [vmem:[%s976 + $0x11c] sm:$0xff] %v1119
                  %v1121 = vld [vmem:[%s975 + $0x480] sm:$0xff]
                  %1122 = vst [vmem:[%s976 + $0x120] sm:$0xff] %v1121
                  %v1123 = vld [vmem:[%s975 + $0x490] sm:$0xff]
                  %1124 = vst [vmem:[%s976 + $0x124] sm:$0xff] %v1123
                  %v1125 = vld [vmem:[%s975 + $0x4a0] sm:$0xff]
                  %1126 = vst [vmem:[%s976 + $0x128] sm:$0xff] %v1125
                  %v1127 = vld [vmem:[%s975 + $0x4b0] sm:$0xff]
                  %1128 = vst [vmem:[%s976 + $0x12c] sm:$0xff] %v1127
                  %v1129 = vld [vmem:[%s975 + $0x4c0] sm:$0xff]
                  %1130 = vst [vmem:[%s976 + $0x130] sm:$0xff] %v1129
                  %v1131 = vld [vmem:[%s975 + $0x4d0] sm:$0xff]
                  %1132 = vst [vmem:[%s976 + $0x134] sm:$0xff] %v1131
                  %v1133 = vld [vmem:[%s975 + $0x4e0] sm:$0xff]
                  %1134 = vst [vmem:[%s976 + $0x138] sm:$0xff] %v1133
                  %v1135 = vld [vmem:[%s975 + $0x4f0] sm:$0xff]
                  %1136 = vst [vmem:[%s976 + $0x13c] sm:$0xff] %v1135
                  %v1137 = vld [vmem:[%s975 + $0x500] sm:$0xff]
                  %1138 = vst [vmem:[%s976 + $0x140] sm:$0xff] %v1137
                  %v1139 = vld [vmem:[%s975 + $0x510] sm:$0xff]
                  %1140 = vst [vmem:[%s976 + $0x144] sm:$0xff] %v1139
                  %v1141 = vld [vmem:[%s975 + $0x520] sm:$0xff]
                  %1142 = vst [vmem:[%s976 + $0x148] sm:$0xff] %v1141
                  %v1143 = vld [vmem:[%s975 + $0x530] sm:$0xff]
                  %1144 = vst [vmem:[%s976 + $0x14c] sm:$0xff] %v1143
                  %v1145 = vld [vmem:[%s975 + $0x540] sm:$0xff]
                  %1146 = vst [vmem:[%s976 + $0x150] sm:$0xff] %v1145
                  %v1147 = vld [vmem:[%s975 + $0x550] sm:$0xff]
                  %1148 = vst [vmem:[%s976 + $0x154] sm:$0xff] %v1147
                  %v1149 = vld [vmem:[%s975 + $0x560] sm:$0xff]
                  %1150 = vst [vmem:[%s976 + $0x158] sm:$0xff] %v1149
                  %v1151 = vld [vmem:[%s975 + $0x570] sm:$0xff]
                  %1152 = vst [vmem:[%s976 + $0x15c] sm:$0xff] %v1151
                  %v1153 = vld [vmem:[%s975 + $0x580] sm:$0xff]
                  %1154 = vst [vmem:[%s976 + $0x160] sm:$0xff] %v1153
                  %v1155 = vld [vmem:[%s975 + $0x590] sm:$0xff]
                  %1156 = vst [vmem:[%s976 + $0x164] sm:$0xff] %v1155
                  %v1157 = vld [vmem:[%s975 + $0x5a0] sm:$0xff]
                  %1158 = vst [vmem:[%s976 + $0x168] sm:$0xff] %v1157
                  %v1159 = vld [vmem:[%s975 + $0x5b0] sm:$0xff]
                  %1160 = vst [vmem:[%s976 + $0x16c] sm:$0xff] %v1159
                  %v1161 = vld [vmem:[%s975 + $0x5c0] sm:$0xff]
                  %1162 = vst [vmem:[%s976 + $0x170] sm:$0xff] %v1161
                  %v1163 = vld [vmem:[%s975 + $0x5d0] sm:$0xff]
                  %1164 = vst [vmem:[%s976 + $0x174] sm:$0xff] %v1163
                  %v1165 = vld [vmem:[%s975 + $0x5e0] sm:$0xff]
                  %1166 = vst [vmem:[%s976 + $0x178] sm:$0xff] %v1165
                  %v1167 = vld [vmem:[%s975 + $0x5f0] sm:$0xff]
                  %1168 = vst [vmem:[%s976 + $0x17c] sm:$0xff] %v1167
                  %v1169 = vld [vmem:[%s975 + $0x600] sm:$0xff]
                  %1170 = vst [vmem:[%s976 + $0x180] sm:$0xff] %v1169
                  %v1171 = vld [vmem:[%s975 + $0x610] sm:$0xff]
                  %1172 = vst [vmem:[%s976 + $0x184] sm:$0xff] %v1171
                  %v1173 = vld [vmem:[%s975 + $0x620] sm:$0xff]
                  %1174 = vst [vmem:[%s976 + $0x188] sm:$0xff] %v1173
                  %v1175 = vld [vmem:[%s975 + $0x630] sm:$0xff]
                  %1176 = vst [vmem:[%s976 + $0x18c] sm:$0xff] %v1175
                  %v1177 = vld [vmem:[%s975 + $0x640] sm:$0xff]
                  %1178 = vst [vmem:[%s976 + $0x190] sm:$0xff] %v1177
                  %v1179 = vld [vmem:[%s975 + $0x650] sm:$0xff]
                  %1180 = vst [vmem:[%s976 + $0x194] sm:$0xff] %v1179
                  %v1181 = vld [vmem:[%s975 + $0x660] sm:$0xff]
                  %1182 = vst [vmem:[%s976 + $0x198] sm:$0xff] %v1181
                  %v1183 = vld [vmem:[%s975 + $0x670] sm:$0xff]
                  %1184 = vst [vmem:[%s976 + $0x19c] sm:$0xff] %v1183
                  %v1185 = vld [vmem:[%s975 + $0x680] sm:$0xff]
                  %1186 = vst [vmem:[%s976 + $0x1a0] sm:$0xff] %v1185
                  %v1187 = vld [vmem:[%s975 + $0x690] sm:$0xff]
                  %1188 = vst [vmem:[%s976 + $0x1a4] sm:$0xff] %v1187
                  %v1189 = vld [vmem:[%s975 + $0x6a0] sm:$0xff]
                  %1190 = vst [vmem:[%s976 + $0x1a8] sm:$0xff] %v1189
                  %v1191 = vld [vmem:[%s975 + $0x6b0] sm:$0xff]
                  %1192 = vst [vmem:[%s976 + $0x1ac] sm:$0xff] %v1191
                  %v1193 = vld [vmem:[%s975 + $0x6c0] sm:$0xff]
                  %1194 = vst [vmem:[%s976 + $0x1b0] sm:$0xff] %v1193
                  %v1195 = vld [vmem:[%s975 + $0x6d0] sm:$0xff]
                  %1196 = vst [vmem:[%s976 + $0x1b4] sm:$0xff] %v1195
                  %v1197 = vld [vmem:[%s975 + $0x6e0] sm:$0xff]
                  %1198 = vst [vmem:[%s976 + $0x1b8] sm:$0xff] %v1197
                  %v1199 = vld [vmem:[%s975 + $0x6f0] sm:$0xff]
                  %1200 = vst [vmem:[%s976 + $0x1bc] sm:$0xff] %v1199
                  %v1201 = vld [vmem:[%s975 + $0x700] sm:$0xff]
                  %1202 = vst [vmem:[%s976 + $0x1c0] sm:$0xff] %v1201
                  %v1203 = vld [vmem:[%s975 + $0x710] sm:$0xff]
                  %1204 = vst [vmem:[%s976 + $0x1c4] sm:$0xff] %v1203
                  %v1205 = vld [vmem:[%s975 + $0x720] sm:$0xff]
                  %1206 = vst [vmem:[%s976 + $0x1c8] sm:$0xff] %v1205
                  %v1207 = vld [vmem:[%s975 + $0x730] sm:$0xff]
                  %1208 = vst [vmem:[%s976 + $0x1cc] sm:$0xff] %v1207
                  %v1209 = vld [vmem:[%s975 + $0x740] sm:$0xff]
                  %1210 = vst [vmem:[%s976 + $0x1d0] sm:$0xff] %v1209
                  %v1211 = vld [vmem:[%s975 + $0x750] sm:$0xff]
                  %1212 = vst [vmem:[%s976 + $0x1d4] sm:$0xff] %v1211
                  %v1213 = vld [vmem:[%s975 + $0x760] sm:$0xff]
                  %1214 = vst [vmem:[%s976 + $0x1d8] sm:$0xff] %v1213
                  %v1215 = vld [vmem:[%s975 + $0x770] sm:$0xff]
                  %1216 = vst [vmem:[%s976 + $0x1dc] sm:$0xff] %v1215
                  %v1217 = vld [vmem:[%s975 + $0x780] sm:$0xff]
                  %1218 = vst [vmem:[%s976 + $0x1e0] sm:$0xff] %v1217
                  %v1219 = vld [vmem:[%s975 + $0x790] sm:$0xff]
                  %1220 = vst [vmem:[%s976 + $0x1e4] sm:$0xff] %v1219
                  %v1221 = vld [vmem:[%s975 + $0x7a0] sm:$0xff]
                  %1222 = vst [vmem:[%s976 + $0x1e8] sm:$0xff] %v1221
                  %v1223 = vld [vmem:[%s975 + $0x7b0] sm:$0xff]
                  %1224 = vst [vmem:[%s976 + $0x1ec] sm:$0xff] %v1223
                  %v1225 = vld [vmem:[%s975 + $0x7c0] sm:$0xff]
                  %1226 = vst [vmem:[%s976 + $0x1f0] sm:$0xff] %v1225
                  %v1227 = vld [vmem:[%s975 + $0x7d0] sm:$0xff]
                  %1228 = vst [vmem:[%s976 + $0x1f4] sm:$0xff] %v1227
                  %v1229 = vld [vmem:[%s975 + $0x7e0] sm:$0xff]
                  %1230 = vst [vmem:[%s976 + $0x1f8] sm:$0xff] %v1229
                  %v1231 = vld [vmem:[%s975 + $0x7f0] sm:$0xff]
                  %1232 = vst [vmem:[%s976 + $0x1fc] sm:$0xff] %v1231
                  %v1233 = vld [vmem:[%s975 + $0x800] sm:$0xff]
                  %1234 = vst [vmem:[%s976 + $0x200] sm:$0xff] %v1233
                  %v1235 = vld [vmem:[%s975 + $0x810] sm:$0xff]
                  %1236 = vst [vmem:[%s976 + $0x204] sm:$0xff] %v1235
                  %v1237 = vld [vmem:[%s975 + $0x820] sm:$0xff]
                  %1238 = vst [vmem:[%s976 + $0x208] sm:$0xff] %v1237
                  %v1239 = vld [vmem:[%s975 + $0x830] sm:$0xff]
                  %1240 = vst [vmem:[%s976 + $0x20c] sm:$0xff] %v1239
                  %v1241 = vld [vmem:[%s975 + $0x840] sm:$0xff]
                  %1242 = vst [vmem:[%s976 + $0x210] sm:$0xff] %v1241
                  %v1243 = vld [vmem:[%s975 + $0x850] sm:$0xff]
                  %1244 = vst [vmem:[%s976 + $0x214] sm:$0xff] %v1243
                  %v1245 = vld [vmem:[%s975 + $0x860] sm:$0xff]
                  %1246 = vst [vmem:[%s976 + $0x218] sm:$0xff] %v1245
                  %v1247 = vld [vmem:[%s975 + $0x870] sm:$0xff]
                  %1248 = vst [vmem:[%s976 + $0x21c] sm:$0xff] %v1247
                  %v1249 = vld [vmem:[%s975 + $0x880] sm:$0xff]
                  %1250 = vst [vmem:[%s976 + $0x220] sm:$0xff] %v1249
                  %v1251 = vld [vmem:[%s975 + $0x890] sm:$0xff]
                  %1252 = vst [vmem:[%s976 + $0x224] sm:$0xff] %v1251
                  %v1253 = vld [vmem:[%s975 + $0x8a0] sm:$0xff]
                  %1254 = vst [vmem:[%s976 + $0x228] sm:$0xff] %v1253
                  %v1255 = vld [vmem:[%s975 + $0x8b0] sm:$0xff]
                  %1256 = vst [vmem:[%s976 + $0x22c] sm:$0xff] %v1255
                  %v1257 = vld [vmem:[%s975 + $0x8c0] sm:$0xff]
                  %1258 = vst [vmem:[%s976 + $0x230] sm:$0xff] %v1257
                  %v1259 = vld [vmem:[%s975 + $0x8d0] sm:$0xff]
                  %1260 = vst [vmem:[%s976 + $0x234] sm:$0xff] %v1259
                  %v1261 = vld [vmem:[%s975 + $0x8e0] sm:$0xff]
                  %1262 = vst [vmem:[%s976 + $0x238] sm:$0xff] %v1261
                  %v1263 = vld [vmem:[%s975 + $0x8f0] sm:$0xff]
                  %1264 = vst [vmem:[%s976 + $0x23c] sm:$0xff] %v1263
                  %v1265 = vld [vmem:[%s975 + $0x900] sm:$0xff]
                  %1266 = vst [vmem:[%s976 + $0x240] sm:$0xff] %v1265
                  %v1267 = vld [vmem:[%s975 + $0x910] sm:$0xff]
                  %1268 = vst [vmem:[%s976 + $0x244] sm:$0xff] %v1267
                  %v1269 = vld [vmem:[%s975 + $0x920] sm:$0xff]
                  %1270 = vst [vmem:[%s976 + $0x248] sm:$0xff] %v1269
                  %v1271 = vld [vmem:[%s975 + $0x930] sm:$0xff]
                  %1272 = vst [vmem:[%s976 + $0x24c] sm:$0xff] %v1271
                  %v1273 = vld [vmem:[%s975 + $0x940] sm:$0xff]
                  %1274 = vst [vmem:[%s976 + $0x250] sm:$0xff] %v1273
                  %v1275 = vld [vmem:[%s975 + $0x950] sm:$0xff]
                  %1276 = vst [vmem:[%s976 + $0x254] sm:$0xff] %v1275
                  %v1277 = vld [vmem:[%s975 + $0x960] sm:$0xff]
                  %1278 = vst [vmem:[%s976 + $0x258] sm:$0xff] %v1277
                  %v1279 = vld [vmem:[%s975 + $0x970] sm:$0xff]
                  %1280 = vst [vmem:[%s976 + $0x25c] sm:$0xff] %v1279
                  %v1281 = vld [vmem:[%s975 + $0x980] sm:$0xff]
                  %1282 = vst [vmem:[%s976 + $0x260] sm:$0xff] %v1281
                  %v1283 = vld [vmem:[%s975 + $0x990] sm:$0xff]
                  %1284 = vst [vmem:[%s976 + $0x264] sm:$0xff] %v1283
                  %v1285 = vld [vmem:[%s975 + $0x9a0] sm:$0xff]
                  %1286 = vst [vmem:[%s976 + $0x268] sm:$0xff] %v1285
                  %v1287 = vld [vmem:[%s975 + $0x9b0] sm:$0xff]
                  %1288 = vst [vmem:[%s976 + $0x26c] sm:$0xff] %v1287
                  %v1289 = vld [vmem:[%s975 + $0x9c0] sm:$0xff]
                  %1290 = vst [vmem:[%s976 + $0x270] sm:$0xff] %v1289
                  %v1291 = vld [vmem:[%s975 + $0x9d0] sm:$0xff]
                  %1292 = vst [vmem:[%s976 + $0x274] sm:$0xff] %v1291
                  %v1293 = vld [vmem:[%s975 + $0x9e0] sm:$0xff]
                  %1294 = vst [vmem:[%s976 + $0x278] sm:$0xff] %v1293
                  %v1295 = vld [vmem:[%s975 + $0x9f0] sm:$0xff]
                  %1296 = vst [vmem:[%s976 + $0x27c] sm:$0xff] %v1295
                  %v1297 = vld [vmem:[%s975 + $0xa00] sm:$0xff]
                  %1298 = vst [vmem:[%s976 + $0x280] sm:$0xff] %v1297
                  %v1299 = vld [vmem:[%s975 + $0xa10] sm:$0xff]
                  %1300 = vst [vmem:[%s976 + $0x284] sm:$0xff] %v1299
                  %v1301 = vld [vmem:[%s975 + $0xa20] sm:$0xff]
                  %1302 = vst [vmem:[%s976 + $0x288] sm:$0xff] %v1301
                  %v1303 = vld [vmem:[%s975 + $0xa30] sm:$0xff]
                  %1304 = vst [vmem:[%s976 + $0x28c] sm:$0xff] %v1303
                  %v1305 = vld [vmem:[%s975 + $0xa40] sm:$0xff]
                  %1306 = vst [vmem:[%s976 + $0x290] sm:$0xff] %v1305
                  %v1307 = vld [vmem:[%s975 + $0xa50] sm:$0xff]
                  %1308 = vst [vmem:[%s976 + $0x294] sm:$0xff] %v1307
                  %v1309 = vld [vmem:[%s975 + $0xa60] sm:$0xff]
                  %1310 = vst [vmem:[%s976 + $0x298] sm:$0xff] %v1309
                  %v1311 = vld [vmem:[%s975 + $0xa70] sm:$0xff]
                  %1312 = vst [vmem:[%s976 + $0x29c] sm:$0xff] %v1311
                  %v1313 = vld [vmem:[%s975 + $0xa80] sm:$0xff]
                  %1314 = vst [vmem:[%s976 + $0x2a0] sm:$0xff] %v1313
                  %v1315 = vld [vmem:[%s975 + $0xa90] sm:$0xff]
                  %1316 = vst [vmem:[%s976 + $0x2a4] sm:$0xff] %v1315
                  %v1317 = vld [vmem:[%s975 + $0xaa0] sm:$0xff]
                  %1318 = vst [vmem:[%s976 + $0x2a8] sm:$0xff] %v1317
                  %v1319 = vld [vmem:[%s975 + $0xab0] sm:$0xff]
                  %1320 = vst [vmem:[%s976 + $0x2ac] sm:$0xff] %v1319
                  %v1321 = vld [vmem:[%s975 + $0xac0] sm:$0xff]
                  %1322 = vst [vmem:[%s976 + $0x2b0] sm:$0xff] %v1321
                  %v1323 = vld [vmem:[%s975 + $0xad0] sm:$0xff]
                  %1324 = vst [vmem:[%s976 + $0x2b4] sm:$0xff] %v1323
                  %v1325 = vld [vmem:[%s975 + $0xae0] sm:$0xff]
                  %1326 = vst [vmem:[%s976 + $0x2b8] sm:$0xff] %v1325
                  %v1327 = vld [vmem:[%s975 + $0xaf0] sm:$0xff]
                  %1328 = vst [vmem:[%s976 + $0x2bc] sm:$0xff] %v1327
                  %v1329 = vld [vmem:[%s975 + $0xb00] sm:$0xff]
                  %1330 = vst [vmem:[%s976 + $0x2c0] sm:$0xff] %v1329
                  %v1331 = vld [vmem:[%s975 + $0xb10] sm:$0xff]
                  %1332 = vst [vmem:[%s976 + $0x2c4] sm:$0xff] %v1331
                  %v1333 = vld [vmem:[%s975 + $0xb20] sm:$0xff]
                  %1334 = vst [vmem:[%s976 + $0x2c8] sm:$0xff] %v1333
                  %v1335 = vld [vmem:[%s975 + $0xb30] sm:$0xff]
                  %1336 = vst [vmem:[%s976 + $0x2cc] sm:$0xff] %v1335
                  %v1337 = vld [vmem:[%s975 + $0xb40] sm:$0xff]
                  %1338 = vst [vmem:[%s976 + $0x2d0] sm:$0xff] %v1337
                  %v1339 = vld [vmem:[%s975 + $0xb50] sm:$0xff]
                  %1340 = vst [vmem:[%s976 + $0x2d4] sm:$0xff] %v1339
                  %v1341 = vld [vmem:[%s975 + $0xb60] sm:$0xff]
                  %1342 = vst [vmem:[%s976 + $0x2d8] sm:$0xff] %v1341
                  %v1343 = vld [vmem:[%s975 + $0xb70] sm:$0xff]
                  %1344 = vst [vmem:[%s976 + $0x2dc] sm:$0xff] %v1343
                  %v1345 = vld [vmem:[%s975 + $0xb80] sm:$0xff]
                  %1346 = vst [vmem:[%s976 + $0x2e0] sm:$0xff] %v1345
                  %v1347 = vld [vmem:[%s975 + $0xb90] sm:$0xff]
                  %1348 = vst [vmem:[%s976 + $0x2e4] sm:$0xff] %v1347
                  %v1349 = vld [vmem:[%s975 + $0xba0] sm:$0xff]
                  %1350 = vst [vmem:[%s976 + $0x2e8] sm:$0xff] %v1349
                  %v1351 = vld [vmem:[%s975 + $0xbb0] sm:$0xff]
                  %1352 = vst [vmem:[%s976 + $0x2ec] sm:$0xff] %v1351
                  %v1353 = vld [vmem:[%s975 + $0xbc0] sm:$0xff]
                  %1354 = vst [vmem:[%s976 + $0x2f0] sm:$0xff] %v1353
                  %v1355 = vld [vmem:[%s975 + $0xbd0] sm:$0xff]
                  %1356 = vst [vmem:[%s976 + $0x2f4] sm:$0xff] %v1355
                  %v1357 = vld [vmem:[%s975 + $0xbe0] sm:$0xff]
                  %1358 = vst [vmem:[%s976 + $0x2f8] sm:$0xff] %v1357
                  %v1359 = vld [vmem:[%s975 + $0xbf0] sm:$0xff]
                  %1360 = vst [vmem:[%s976 + $0x2fc] sm:$0xff] %v1359
                  %v1361 = vld [vmem:[%s975 + $0xc00] sm:$0xff]
                  %1362 = vst [vmem:[%s976 + $0x300] sm:$0xff] %v1361
                  %v1363 = vld [vmem:[%s975 + $0xc10] sm:$0xff]
                  %1364 = vst [vmem:[%s976 + $0x304] sm:$0xff] %v1363
                  %v1365 = vld [vmem:[%s975 + $0xc20] sm:$0xff]
                  %1366 = vst [vmem:[%s976 + $0x308] sm:$0xff] %v1365
                  %v1367 = vld [vmem:[%s975 + $0xc30] sm:$0xff]
                  %1368 = vst [vmem:[%s976 + $0x30c] sm:$0xff] %v1367
                  %v1369 = vld [vmem:[%s975 + $0xc40] sm:$0xff]
                  %1370 = vst [vmem:[%s976 + $0x310] sm:$0xff] %v1369
                  %v1371 = vld [vmem:[%s975 + $0xc50] sm:$0xff]
                  %1372 = vst [vmem:[%s976 + $0x314] sm:$0xff] %v1371
                  %v1373 = vld [vmem:[%s975 + $0xc60] sm:$0xff]
                  %1374 = vst [vmem:[%s976 + $0x318] sm:$0xff] %v1373
                  %v1375 = vld [vmem:[%s975 + $0xc70] sm:$0xff]
                  %1376 = vst [vmem:[%s976 + $0x31c] sm:$0xff] %v1375
                  %v1377 = vld [vmem:[%s975 + $0xc80] sm:$0xff]
                  %1378 = vst [vmem:[%s976 + $0x320] sm:$0xff] %v1377
                  %v1379 = vld [vmem:[%s975 + $0xc90] sm:$0xff]
                  %1380 = vst [vmem:[%s976 + $0x324] sm:$0xff] %v1379
                  %v1381 = vld [vmem:[%s975 + $0xca0] sm:$0xff]
                  %1382 = vst [vmem:[%s976 + $0x328] sm:$0xff] %v1381
                  %v1383 = vld [vmem:[%s975 + $0xcb0] sm:$0xff]
                  %1384 = vst [vmem:[%s976 + $0x32c] sm:$0xff] %v1383
                  %v1385 = vld [vmem:[%s975 + $0xcc0] sm:$0xff]
                  %1386 = vst [vmem:[%s976 + $0x330] sm:$0xff] %v1385
                  %v1387 = vld [vmem:[%s975 + $0xcd0] sm:$0xff]
                  %1388 = vst [vmem:[%s976 + $0x334] sm:$0xff] %v1387
                  %v1389 = vld [vmem:[%s975 + $0xce0] sm:$0xff]
                  %1390 = vst [vmem:[%s976 + $0x338] sm:$0xff] %v1389
                  %v1391 = vld [vmem:[%s975 + $0xcf0] sm:$0xff]
                  %1392 = vst [vmem:[%s976 + $0x33c] sm:$0xff] %v1391
                  %v1393 = vld [vmem:[%s975 + $0xd00] sm:$0xff]
                  %1394 = vst [vmem:[%s976 + $0x340] sm:$0xff] %v1393
                  %v1395 = vld [vmem:[%s975 + $0xd10] sm:$0xff]
                  %1396 = vst [vmem:[%s976 + $0x344] sm:$0xff] %v1395
                  %v1397 = vld [vmem:[%s975 + $0xd20] sm:$0xff]
                  %1398 = vst [vmem:[%s976 + $0x348] sm:$0xff] %v1397
                  %v1399 = vld [vmem:[%s975 + $0xd30] sm:$0xff]
                  %1400 = vst [vmem:[%s976 + $0x34c] sm:$0xff] %v1399
                  %v1401 = vld [vmem:[%s975 + $0xd40] sm:$0xff]
                  %1402 = vst [vmem:[%s976 + $0x350] sm:$0xff] %v1401
                  %v1403 = vld [vmem:[%s975 + $0xd50] sm:$0xff]
                  %1404 = vst [vmem:[%s976 + $0x354] sm:$0xff] %v1403
                  %v1405 = vld [vmem:[%s975 + $0xd60] sm:$0xff]
                  %1406 = vst [vmem:[%s976 + $0x358] sm:$0xff] %v1405
                  %v1407 = vld [vmem:[%s975 + $0xd70] sm:$0xff]
                  %1408 = vst [vmem:[%s976 + $0x35c] sm:$0xff] %v1407
                  %v1409 = vld [vmem:[%s975 + $0xd80] sm:$0xff]
                  %1410 = vst [vmem:[%s976 + $0x360] sm:$0xff] %v1409
                  %v1411 = vld [vmem:[%s975 + $0xd90] sm:$0xff]
                  %1412 = vst [vmem:[%s976 + $0x364] sm:$0xff] %v1411
                  %v1413 = vld [vmem:[%s975 + $0xda0] sm:$0xff]
                  %1414 = vst [vmem:[%s976 + $0x368] sm:$0xff] %v1413
                  %v1415 = vld [vmem:[%s975 + $0xdb0] sm:$0xff]
                  %1416 = vst [vmem:[%s976 + $0x36c] sm:$0xff] %v1415
                  %v1417 = vld [vmem:[%s975 + $0xdc0] sm:$0xff]
                  %1418 = vst [vmem:[%s976 + $0x370] sm:$0xff] %v1417
                  %v1419 = vld [vmem:[%s975 + $0xdd0] sm:$0xff]
                  %1420 = vst [vmem:[%s976 + $0x374] sm:$0xff] %v1419
                  %v1421 = vld [vmem:[%s975 + $0xde0] sm:$0xff]
                  %1422 = vst [vmem:[%s976 + $0x378] sm:$0xff] %v1421
                  %v1423 = vld [vmem:[%s975 + $0xdf0] sm:$0xff]
                  %1424 = vst [vmem:[%s976 + $0x37c] sm:$0xff] %v1423
                  %v1425 = vld [vmem:[%s975 + $0xe00] sm:$0xff]
                  %1426 = vst [vmem:[%s976 + $0x380] sm:$0xff] %v1425
                  %v1427 = vld [vmem:[%s975 + $0xe10] sm:$0xff]
                  %1428 = vst [vmem:[%s976 + $0x384] sm:$0xff] %v1427
                  %v1429 = vld [vmem:[%s975 + $0xe20] sm:$0xff]
                  %1430 = vst [vmem:[%s976 + $0x388] sm:$0xff] %v1429
                  %v1431 = vld [vmem:[%s975 + $0xe30] sm:$0xff]
                  %1432 = vst [vmem:[%s976 + $0x38c] sm:$0xff] %v1431
                  %v1433 = vld [vmem:[%s975 + $0xe40] sm:$0xff]
                  %1434 = vst [vmem:[%s976 + $0x390] sm:$0xff] %v1433
                  %v1435 = vld [vmem:[%s975 + $0xe50] sm:$0xff]
                  %1436 = vst [vmem:[%s976 + $0x394] sm:$0xff] %v1435
                  %v1437 = vld [vmem:[%s975 + $0xe60] sm:$0xff]
                  %1438 = vst [vmem:[%s976 + $0x398] sm:$0xff] %v1437
                  %v1439 = vld [vmem:[%s975 + $0xe70] sm:$0xff]
                  %1440 = vst [vmem:[%s976 + $0x39c] sm:$0xff] %v1439
                  %v1441 = vld [vmem:[%s975 + $0xe80] sm:$0xff]
                  %1442 = vst [vmem:[%s976 + $0x3a0] sm:$0xff] %v1441
                  %v1443 = vld [vmem:[%s975 + $0xe90] sm:$0xff]
                  %1444 = vst [vmem:[%s976 + $0x3a4] sm:$0xff] %v1443
                  %v1445 = vld [vmem:[%s975 + $0xea0] sm:$0xff]
                  %1446 = vst [vmem:[%s976 + $0x3a8] sm:$0xff] %v1445
                  %v1447 = vld [vmem:[%s975 + $0xeb0] sm:$0xff]
                  %1448 = vst [vmem:[%s976 + $0x3ac] sm:$0xff] %v1447
                  %v1449 = vld [vmem:[%s975 + $0xec0] sm:$0xff]
                  %1450 = vst [vmem:[%s976 + $0x3b0] sm:$0xff] %v1449
                  %v1451 = vld [vmem:[%s975 + $0xed0] sm:$0xff]
                  %1452 = vst [vmem:[%s976 + $0x3b4] sm:$0xff] %v1451
                  %v1453 = vld [vmem:[%s975 + $0xee0] sm:$0xff]
                  %1454 = vst [vmem:[%s976 + $0x3b8] sm:$0xff] %v1453
                  %v1455 = vld [vmem:[%s975 + $0xef0] sm:$0xff]
                  %1456 = vst [vmem:[%s976 + $0x3bc] sm:$0xff] %v1455
                  %v1457 = vld [vmem:[%s975 + $0xf00] sm:$0xff]
                  %1458 = vst [vmem:[%s976 + $0x3c0] sm:$0xff] %v1457
                  %v1459 = vld [vmem:[%s975 + $0xf10] sm:$0xff]
                  %1460 = vst [vmem:[%s976 + $0x3c4] sm:$0xff] %v1459
                  %v1461 = vld [vmem:[%s975 + $0xf20] sm:$0xff]
                  %1462 = vst [vmem:[%s976 + $0x3c8] sm:$0xff] %v1461
                  %v1463 = vld [vmem:[%s975 + $0xf30] sm:$0xff]
                  %1464 = vst [vmem:[%s976 + $0x3cc] sm:$0xff] %v1463
                  %v1465 = vld [vmem:[%s975 + $0xf40] sm:$0xff]
                  %1466 = vst [vmem:[%s976 + $0x3d0] sm:$0xff] %v1465
                  %v1467 = vld [vmem:[%s975 + $0xf50] sm:$0xff]
                  %1468 = vst [vmem:[%s976 + $0x3d4] sm:$0xff] %v1467
                  %v1469 = vld [vmem:[%s975 + $0xf60] sm:$0xff]
                  %1470 = vst [vmem:[%s976 + $0x3d8] sm:$0xff] %v1469
                  %v1471 = vld [vmem:[%s975 + $0xf70] sm:$0xff]
                  %1472 = vst [vmem:[%s976 + $0x3dc] sm:$0xff] %v1471
                  %v1473 = vld [vmem:[%s975 + $0xf80] sm:$0xff]
                  %1474 = vst [vmem:[%s976 + $0x3e0] sm:$0xff] %v1473
                  %v1475 = vld [vmem:[%s975 + $0xf90] sm:$0xff]
                  %1476 = vst [vmem:[%s976 + $0x3e4] sm:$0xff] %v1475
                  %v1477 = vld [vmem:[%s975 + $0xfa0] sm:$0xff]
                  %1478 = vst [vmem:[%s976 + $0x3e8] sm:$0xff] %v1477
                  %v1479 = vld [vmem:[%s975 + $0xfb0] sm:$0xff]
                  %1480 = vst [vmem:[%s976 + $0x3ec] sm:$0xff] %v1479
                  %v1481 = vld [vmem:[%s975 + $0xfc0] sm:$0xff]
                  %1482 = vst [vmem:[%s976 + $0x3f0] sm:$0xff] %v1481
                  %v1483 = vld [vmem:[%s975 + $0xfd0] sm:$0xff]
                  %1484 = vst [vmem:[%s976 + $0x3f4] sm:$0xff] %v1483
                  %v1485 = vld [vmem:[%s975 + $0xfe0] sm:$0xff]
                  %1486 = vst [vmem:[%s976 + $0x3f8] sm:$0xff] %v1485
                  %v1487 = vld [vmem:[%s975 + $0xff0] sm:$0xff]
                  %1488 = vst [vmem:[%s976 + $0x3fc] sm:$0xff] %v1487
                  %v1489 = vld [vmem:[%s975 + $0x1000] sm:$0xff]
                  %1490 = vst [vmem:[%s976 + $0x400] sm:$0xff] %v1489
                  %v1491 = vld [vmem:[%s975 + $0x1010] sm:$0xff]
                  %1492 = vst [vmem:[%s976 + $0x404] sm:$0xff] %v1491
                  %v1493 = vld [vmem:[%s975 + $0x1020] sm:$0xff]
                  %1494 = vst [vmem:[%s976 + $0x408] sm:$0xff] %v1493
                  %v1495 = vld [vmem:[%s975 + $0x1030] sm:$0xff]
                  %1496 = vst [vmem:[%s976 + $0x40c] sm:$0xff] %v1495
                  %v1497 = vld [vmem:[%s975 + $0x1040] sm:$0xff]
                  %1498 = vst [vmem:[%s976 + $0x410] sm:$0xff] %v1497
                  %v1499 = vld [vmem:[%s975 + $0x1050] sm:$0xff]
                  %1500 = vst [vmem:[%s976 + $0x414] sm:$0xff] %v1499
                  %v1501 = vld [vmem:[%s975 + $0x1060] sm:$0xff]
                  %1502 = vst [vmem:[%s976 + $0x418] sm:$0xff] %v1501
                  %v1503 = vld [vmem:[%s975 + $0x1070] sm:$0xff]
                  %1504 = vst [vmem:[%s976 + $0x41c] sm:$0xff] %v1503
                  %v1505 = vld [vmem:[%s975 + $0x1080] sm:$0xff]
                  %1506 = vst [vmem:[%s976 + $0x420] sm:$0xff] %v1505
                  %v1507 = vld [vmem:[%s975 + $0x1090] sm:$0xff]
                  %1508 = vst [vmem:[%s976 + $0x424] sm:$0xff] %v1507
                  %v1509 = vld [vmem:[%s975 + $0x10a0] sm:$0xff]
                  %1510 = vst [vmem:[%s976 + $0x428] sm:$0xff] %v1509
                  %v1511 = vld [vmem:[%s975 + $0x10b0] sm:$0xff]
                  %1512 = vst [vmem:[%s976 + $0x42c] sm:$0xff] %v1511
                  %v1513 = vld [vmem:[%s975 + $0x10c0] sm:$0xff]
                  %1514 = vst [vmem:[%s976 + $0x430] sm:$0xff] %v1513
                  %v1515 = vld [vmem:[%s975 + $0x10d0] sm:$0xff]
                  %1516 = vst [vmem:[%s976 + $0x434] sm:$0xff] %v1515
                  %v1517 = vld [vmem:[%s975 + $0x10e0] sm:$0xff]
                  %1518 = vst [vmem:[%s976 + $0x438] sm:$0xff] %v1517
                  %v1519 = vld [vmem:[%s975 + $0x10f0] sm:$0xff]
                  %1520 = vst [vmem:[%s976 + $0x43c] sm:$0xff] %v1519
                  %v1521 = vld [vmem:[%s975 + $0x1100] sm:$0xff]
                  %1522 = vst [vmem:[%s976 + $0x440] sm:$0xff] %v1521
                  %v1523 = vld [vmem:[%s975 + $0x1110] sm:$0xff]
                  %1524 = vst [vmem:[%s976 + $0x444] sm:$0xff] %v1523
                  %v1525 = vld [vmem:[%s975 + $0x1120] sm:$0xff]
                  %1526 = vst [vmem:[%s976 + $0x448] sm:$0xff] %v1525
                  %v1527 = vld [vmem:[%s975 + $0x1130] sm:$0xff]
                  %1528 = vst [vmem:[%s976 + $0x44c] sm:$0xff] %v1527
                  %v1529 = vld [vmem:[%s975 + $0x1140] sm:$0xff]
                  %1530 = vst [vmem:[%s976 + $0x450] sm:$0xff] %v1529
                  %v1531 = vld [vmem:[%s975 + $0x1150] sm:$0xff]
                  %1532 = vst [vmem:[%s976 + $0x454] sm:$0xff] %v1531
                  %v1533 = vld [vmem:[%s975 + $0x1160] sm:$0xff]
                  %1534 = vst [vmem:[%s976 + $0x458] sm:$0xff] %v1533
                  %v1535 = vld [vmem:[%s975 + $0x1170] sm:$0xff]
                  %1536 = vst [vmem:[%s976 + $0x45c] sm:$0xff] %v1535
                  %v1537 = vld [vmem:[%s975 + $0x1180] sm:$0xff]
                  %1538 = vst [vmem:[%s976 + $0x460] sm:$0xff] %v1537
                  %v1539 = vld [vmem:[%s975 + $0x1190] sm:$0xff]
                  %1540 = vst [vmem:[%s976 + $0x464] sm:$0xff] %v1539
                  %v1541 = vld [vmem:[%s975 + $0x11a0] sm:$0xff]
                  %1542 = vst [vmem:[%s976 + $0x468] sm:$0xff] %v1541
                  %v1543 = vld [vmem:[%s975 + $0x11b0] sm:$0xff]
                  %1544 = vst [vmem:[%s976 + $0x46c] sm:$0xff] %v1543
                  %v1545 = vld [vmem:[%s975 + $0x11c0] sm:$0xff]
                  %1546 = vst [vmem:[%s976 + $0x470] sm:$0xff] %v1545
                  %v1547 = vld [vmem:[%s975 + $0x11d0] sm:$0xff]
                  %1548 = vst [vmem:[%s976 + $0x474] sm:$0xff] %v1547
                  %v1549 = vld [vmem:[%s975 + $0x11e0] sm:$0xff]
                  %1550 = vst [vmem:[%s976 + $0x478] sm:$0xff] %v1549
                  %v1551 = vld [vmem:[%s975 + $0x11f0] sm:$0xff]
                  %1552 = vst [vmem:[%s976 + $0x47c] sm:$0xff] %v1551
                  %v1553 = vld [vmem:[%s975 + $0x1200] sm:$0xff]
                  %1554 = vst [vmem:[%s976 + $0x480] sm:$0xff] %v1553
                  %v1555 = vld [vmem:[%s975 + $0x1210] sm:$0xff]
                  %1556 = vst [vmem:[%s976 + $0x484] sm:$0xff] %v1555
                  %v1557 = vld [vmem:[%s975 + $0x1220] sm:$0xff]
                  %1558 = vst [vmem:[%s976 + $0x488] sm:$0xff] %v1557
                  %v1559 = vld [vmem:[%s975 + $0x1230] sm:$0xff]
                  %1560 = vst [vmem:[%s976 + $0x48c] sm:$0xff] %v1559
                  %v1561 = vld [vmem:[%s975 + $0x1240] sm:$0xff]
                  %1562 = vst [vmem:[%s976 + $0x490] sm:$0xff] %v1561
                  %v1563 = vld [vmem:[%s975 + $0x1250] sm:$0xff]
                  %1564 = vst [vmem:[%s976 + $0x494] sm:$0xff] %v1563
                  %v1565 = vld [vmem:[%s975 + $0x1260] sm:$0xff]
                  %1566 = vst [vmem:[%s976 + $0x498] sm:$0xff] %v1565
                  %v1567 = vld [vmem:[%s975 + $0x1270] sm:$0xff]
                  %1568 = vst [vmem:[%s976 + $0x49c] sm:$0xff] %v1567
                  %v1569 = vld [vmem:[%s975 + $0x1280] sm:$0xff]
                  %1570 = vst [vmem:[%s976 + $0x4a0] sm:$0xff] %v1569
                  %v1571 = vld [vmem:[%s975 + $0x1290] sm:$0xff]
                  %1572 = vst [vmem:[%s976 + $0x4a4] sm:$0xff] %v1571
                  %v1573 = vld [vmem:[%s975 + $0x12a0] sm:$0xff]
                  %1574 = vst [vmem:[%s976 + $0x4a8] sm:$0xff] %v1573
                  %v1575 = vld [vmem:[%s975 + $0x12b0] sm:$0xff]
                  %1576 = vst [vmem:[%s976 + $0x4ac] sm:$0xff] %v1575
                  %v1577 = vld [vmem:[%s975 + $0x12c0] sm:$0xff]
                  %1578 = vst [vmem:[%s976 + $0x4b0] sm:$0xff] %v1577
                  %v1579 = vld [vmem:[%s975 + $0x12d0] sm:$0xff]
                  %1580 = vst [vmem:[%s976 + $0x4b4] sm:$0xff] %v1579
                  %v1581 = vld [vmem:[%s975 + $0x12e0] sm:$0xff]
                  %1582 = vst [vmem:[%s976 + $0x4b8] sm:$0xff] %v1581
                  %v1583 = vld [vmem:[%s975 + $0x12f0] sm:$0xff]
                  %1584 = vst [vmem:[%s976 + $0x4bc] sm:$0xff] %v1583
                  %v1585 = vld [vmem:[%s975 + $0x1300] sm:$0xff]
                  %1586 = vst [vmem:[%s976 + $0x4c0] sm:$0xff] %v1585
                  %v1587 = vld [vmem:[%s975 + $0x1310] sm:$0xff]
                  %1588 = vst [vmem:[%s976 + $0x4c4] sm:$0xff] %v1587
                  %v1589 = vld [vmem:[%s975 + $0x1320] sm:$0xff]
                  %1590 = vst [vmem:[%s976 + $0x4c8] sm:$0xff] %v1589
                  %v1591 = vld [vmem:[%s975 + $0x1330] sm:$0xff]
                  %1592 = vst [vmem:[%s976 + $0x4cc] sm:$0xff] %v1591
                  %v1593 = vld [vmem:[%s975 + $0x1340] sm:$0xff]
                  %1594 = vst [vmem:[%s976 + $0x4d0] sm:$0xff] %v1593
                  %v1595 = vld [vmem:[%s975 + $0x1350] sm:$0xff]
                  %1596 = vst [vmem:[%s976 + $0x4d4] sm:$0xff] %v1595
                  %v1597 = vld [vmem:[%s975 + $0x1360] sm:$0xff]
                  %1598 = vst [vmem:[%s976 + $0x4d8] sm:$0xff] %v1597
                  %v1599 = vld [vmem:[%s975 + $0x1370] sm:$0xff]
                  %1600 = vst [vmem:[%s976 + $0x4dc] sm:$0xff] %v1599
                  %v1601 = vld [vmem:[%s975 + $0x1380] sm:$0xff]
                  %1602 = vst [vmem:[%s976 + $0x4e0] sm:$0xff] %v1601
                  %v1603 = vld [vmem:[%s975 + $0x1390] sm:$0xff]
                  %1604 = vst [vmem:[%s976 + $0x4e4] sm:$0xff] %v1603
                  %v1605 = vld [vmem:[%s975 + $0x13a0] sm:$0xff]
                  %1606 = vst [vmem:[%s976 + $0x4e8] sm:$0xff] %v1605
                  %v1607 = vld [vmem:[%s975 + $0x13b0] sm:$0xff]
                  %1608 = vst [vmem:[%s976 + $0x4ec] sm:$0xff] %v1607
                  %v1609 = vld [vmem:[%s975 + $0x13c0] sm:$0xff]
                  %1610 = vst [vmem:[%s976 + $0x4f0] sm:$0xff] %v1609
                  %v1611 = vld [vmem:[%s975 + $0x13d0] sm:$0xff]
                  %1612 = vst [vmem:[%s976 + $0x4f4] sm:$0xff] %v1611
                  %v1613 = vld [vmem:[%s975 + $0x13e0] sm:$0xff]
                  %1614 = vst [vmem:[%s976 + $0x4f8] sm:$0xff] %v1613
                  %v1615 = vld [vmem:[%s975 + $0x13f0] sm:$0xff]
                  %1616 = vst [vmem:[%s976 + $0x4fc] sm:$0xff] %v1615
                  %v1617 = vld [vmem:[%s975 + $0x1400] sm:$0xff]
                  %1618 = vst [vmem:[%s976 + $0x500] sm:$0xff] %v1617
                  %v1619 = vld [vmem:[%s975 + $0x1410] sm:$0xff]
                  %1620 = vst [vmem:[%s976 + $0x504] sm:$0xff] %v1619
                  %v1621 = vld [vmem:[%s975 + $0x1420] sm:$0xff]
                  %1622 = vst [vmem:[%s976 + $0x508] sm:$0xff] %v1621
                  %v1623 = vld [vmem:[%s975 + $0x1430] sm:$0xff]
                  %1624 = vst [vmem:[%s976 + $0x50c] sm:$0xff] %v1623
                  %v1625 = vld [vmem:[%s975 + $0x1440] sm:$0xff]
                  %1626 = vst [vmem:[%s976 + $0x510] sm:$0xff] %v1625
                  %v1627 = vld [vmem:[%s975 + $0x1450] sm:$0xff]
                  %1628 = vst [vmem:[%s976 + $0x514] sm:$0xff] %v1627
                  %v1629 = vld [vmem:[%s975 + $0x1460] sm:$0xff]
                  %1630 = vst [vmem:[%s976 + $0x518] sm:$0xff] %v1629
                  %v1631 = vld [vmem:[%s975 + $0x1470] sm:$0xff]
                  %1632 = vst [vmem:[%s976 + $0x51c] sm:$0xff] %v1631
                  %v1633 = vld [vmem:[%s975 + $0x1480] sm:$0xff]
                  %1634 = vst [vmem:[%s976 + $0x520] sm:$0xff] %v1633
                  %v1635 = vld [vmem:[%s975 + $0x1490] sm:$0xff]
                  %1636 = vst [vmem:[%s976 + $0x524] sm:$0xff] %v1635
                  %v1637 = vld [vmem:[%s975 + $0x14a0] sm:$0xff]
                  %1638 = vst [vmem:[%s976 + $0x528] sm:$0xff] %v1637
                  %v1639 = vld [vmem:[%s975 + $0x14b0] sm:$0xff]
                  %1640 = vst [vmem:[%s976 + $0x52c] sm:$0xff] %v1639
                  %v1641 = vld [vmem:[%s975 + $0x14c0] sm:$0xff]
                  %1642 = vst [vmem:[%s976 + $0x530] sm:$0xff] %v1641
                  %v1643 = vld [vmem:[%s975 + $0x14d0] sm:$0xff]
                  %1644 = vst [vmem:[%s976 + $0x534] sm:$0xff] %v1643
                  %v1645 = vld [vmem:[%s975 + $0x14e0] sm:$0xff]
                  %1646 = vst [vmem:[%s976 + $0x538] sm:$0xff] %v1645
                  %v1647 = vld [vmem:[%s975 + $0x14f0] sm:$0xff]
                  %1648 = vst [vmem:[%s976 + $0x53c] sm:$0xff] %v1647
                  %v1649 = vld [vmem:[%s975 + $0x1500] sm:$0xff]
                  %1650 = vst [vmem:[%s976 + $0x540] sm:$0xff] %v1649
                  %v1651 = vld [vmem:[%s975 + $0x1510] sm:$0xff]
                  %1652 = vst [vmem:[%s976 + $0x544] sm:$0xff] %v1651
                  %v1653 = vld [vmem:[%s975 + $0x1520] sm:$0xff]
                  %1654 = vst [vmem:[%s976 + $0x548] sm:$0xff] %v1653
                  %v1655 = vld [vmem:[%s975 + $0x1530] sm:$0xff]
                  %1656 = vst [vmem:[%s976 + $0x54c] sm:$0xff] %v1655
                  %v1657 = vld [vmem:[%s975 + $0x1540] sm:$0xff]
                  %1658 = vst [vmem:[%s976 + $0x550] sm:$0xff] %v1657
                  %v1659 = vld [vmem:[%s975 + $0x1550] sm:$0xff]
                  %1660 = vst [vmem:[%s976 + $0x554] sm:$0xff] %v1659
                  %v1661 = vld [vmem:[%s975 + $0x1560] sm:$0xff]
                  %1662 = vst [vmem:[%s976 + $0x558] sm:$0xff] %v1661
                  %v1663 = vld [vmem:[%s975 + $0x1570] sm:$0xff]
                  %1664 = vst [vmem:[%s976 + $0x55c] sm:$0xff] %v1663
                  %v1665 = vld [vmem:[%s975 + $0x1580] sm:$0xff]
                  %1666 = vst [vmem:[%s976 + $0x560] sm:$0xff] %v1665
                  %v1667 = vld [vmem:[%s975 + $0x1590] sm:$0xff]
                  %1668 = vst [vmem:[%s976 + $0x564] sm:$0xff] %v1667
                  %v1669 = vld [vmem:[%s975 + $0x15a0] sm:$0xff]
                  %1670 = vst [vmem:[%s976 + $0x568] sm:$0xff] %v1669
                  %v1671 = vld [vmem:[%s975 + $0x15b0] sm:$0xff]
                  %1672 = vst [vmem:[%s976 + $0x56c] sm:$0xff] %v1671
                  %v1673 = vld [vmem:[%s975 + $0x15c0] sm:$0xff]
                  %1674 = vst [vmem:[%s976 + $0x570] sm:$0xff] %v1673
                  %v1675 = vld [vmem:[%s975 + $0x15d0] sm:$0xff]
                  %1676 = vst [vmem:[%s976 + $0x574] sm:$0xff] %v1675
                  %v1677 = vld [vmem:[%s975 + $0x15e0] sm:$0xff]
                  %1678 = vst [vmem:[%s976 + $0x578] sm:$0xff] %v1677
                  %v1679 = vld [vmem:[%s975 + $0x15f0] sm:$0xff]
                  %1680 = vst [vmem:[%s976 + $0x57c] sm:$0xff] %v1679
                  %v1681 = vld [vmem:[%s975 + $0x1600] sm:$0xff]
                  %1682 = vst [vmem:[%s976 + $0x580] sm:$0xff] %v1681
                  %v1683 = vld [vmem:[%s975 + $0x1610] sm:$0xff]
                  %1684 = vst [vmem:[%s976 + $0x584] sm:$0xff] %v1683
                  %v1685 = vld [vmem:[%s975 + $0x1620] sm:$0xff]
                  %1686 = vst [vmem:[%s976 + $0x588] sm:$0xff] %v1685
                  %v1687 = vld [vmem:[%s975 + $0x1630] sm:$0xff]
                  %1688 = vst [vmem:[%s976 + $0x58c] sm:$0xff] %v1687
                  %v1689 = vld [vmem:[%s975 + $0x1640] sm:$0xff]
                  %1690 = vst [vmem:[%s976 + $0x590] sm:$0xff] %v1689
                  %v1691 = vld [vmem:[%s975 + $0x1650] sm:$0xff]
                  %1692 = vst [vmem:[%s976 + $0x594] sm:$0xff] %v1691
                  %v1693 = vld [vmem:[%s975 + $0x1660] sm:$0xff]
                  %1694 = vst [vmem:[%s976 + $0x598] sm:$0xff] %v1693
                  %v1695 = vld [vmem:[%s975 + $0x1670] sm:$0xff]
                  %1696 = vst [vmem:[%s976 + $0x59c] sm:$0xff] %v1695
                  %v1697 = vld [vmem:[%s975 + $0x1680] sm:$0xff]
                  %1698 = vst [vmem:[%s976 + $0x5a0] sm:$0xff] %v1697
                  %v1699 = vld [vmem:[%s975 + $0x1690] sm:$0xff]
                  %1700 = vst [vmem:[%s976 + $0x5a4] sm:$0xff] %v1699
                  %v1701 = vld [vmem:[%s975 + $0x16a0] sm:$0xff]
                  %1702 = vst [vmem:[%s976 + $0x5a8] sm:$0xff] %v1701
                  %v1703 = vld [vmem:[%s975 + $0x16b0] sm:$0xff]
                  %1704 = vst [vmem:[%s976 + $0x5ac] sm:$0xff] %v1703
                  %v1705 = vld [vmem:[%s975 + $0x16c0] sm:$0xff]
                  %1706 = vst [vmem:[%s976 + $0x5b0] sm:$0xff] %v1705
                  %v1707 = vld [vmem:[%s975 + $0x16d0] sm:$0xff]
                  %1708 = vst [vmem:[%s976 + $0x5b4] sm:$0xff] %v1707
                  %v1709 = vld [vmem:[%s975 + $0x16e0] sm:$0xff]
                  %1710 = vst [vmem:[%s976 + $0x5b8] sm:$0xff] %v1709
                  %v1711 = vld [vmem:[%s975 + $0x16f0] sm:$0xff]
                  %1712 = vst [vmem:[%s976 + $0x5bc] sm:$0xff] %v1711
                  %v1713 = vld [vmem:[%s975 + $0x1700] sm:$0xff]
                  %1714 = vst [vmem:[%s976 + $0x5c0] sm:$0xff] %v1713
                  %v1715 = vld [vmem:[%s975 + $0x1710] sm:$0xff]
                  %1716 = vst [vmem:[%s976 + $0x5c4] sm:$0xff] %v1715
                  %v1717 = vld [vmem:[%s975 + $0x1720] sm:$0xff]
                  %1718 = vst [vmem:[%s976 + $0x5c8] sm:$0xff] %v1717
                  %v1719 = vld [vmem:[%s975 + $0x1730] sm:$0xff]
                  %1720 = vst [vmem:[%s976 + $0x5cc] sm:$0xff] %v1719
                  %v1721 = vld [vmem:[%s975 + $0x1740] sm:$0xff]
                  %1722 = vst [vmem:[%s976 + $0x5d0] sm:$0xff] %v1721
                  %v1723 = vld [vmem:[%s975 + $0x1750] sm:$0xff]
                  %1724 = vst [vmem:[%s976 + $0x5d4] sm:$0xff] %v1723
                  %v1725 = vld [vmem:[%s975 + $0x1760] sm:$0xff]
                  %1726 = vst [vmem:[%s976 + $0x5d8] sm:$0xff] %v1725
                  %v1727 = vld [vmem:[%s975 + $0x1770] sm:$0xff]
                  %1728 = vst [vmem:[%s976 + $0x5dc] sm:$0xff] %v1727
                  %v1729 = vld [vmem:[%s975 + $0x1780] sm:$0xff]
                  %1730 = vst [vmem:[%s976 + $0x5e0] sm:$0xff] %v1729
                  %v1731 = vld [vmem:[%s975 + $0x1790] sm:$0xff]
                  %1732 = vst [vmem:[%s976 + $0x5e4] sm:$0xff] %v1731
                  %v1733 = vld [vmem:[%s975 + $0x17a0] sm:$0xff]
                  %1734 = vst [vmem:[%s976 + $0x5e8] sm:$0xff] %v1733
                  %v1735 = vld [vmem:[%s975 + $0x17b0] sm:$0xff]
                  %1736 = vst [vmem:[%s976 + $0x5ec] sm:$0xff] %v1735
                  %v1737 = vld [vmem:[%s975 + $0x17c0] sm:$0xff]
                  %1738 = vst [vmem:[%s976 + $0x5f0] sm:$0xff] %v1737
                  %v1739 = vld [vmem:[%s975 + $0x17d0] sm:$0xff]
                  %1740 = vst [vmem:[%s976 + $0x5f4] sm:$0xff] %v1739
                  %v1741 = vld [vmem:[%s975 + $0x17e0] sm:$0xff]
                  %1742 = vst [vmem:[%s976 + $0x5f8] sm:$0xff] %v1741
                  %v1743 = vld [vmem:[%s975 + $0x17f0] sm:$0xff]
                  %1744 = vst [vmem:[%s976 + $0x5fc] sm:$0xff] %v1743
                  %v1745 = vld [vmem:[%s975 + $0x1800] sm:$0xff]
                  %1746 = vst [vmem:[%s976 + $0x600] sm:$0xff] %v1745
                  %v1747 = vld [vmem:[%s975 + $0x1810] sm:$0xff]
                  %1748 = vst [vmem:[%s976 + $0x604] sm:$0xff] %v1747
                  %v1749 = vld [vmem:[%s975 + $0x1820] sm:$0xff]
                  %1750 = vst [vmem:[%s976 + $0x608] sm:$0xff] %v1749
                  %v1751 = vld [vmem:[%s975 + $0x1830] sm:$0xff]
                  %1752 = vst [vmem:[%s976 + $0x60c] sm:$0xff] %v1751
                  %v1753 = vld [vmem:[%s975 + $0x1840] sm:$0xff]
                  %1754 = vst [vmem:[%s976 + $0x610] sm:$0xff] %v1753
                  %v1755 = vld [vmem:[%s975 + $0x1850] sm:$0xff]
                  %1756 = vst [vmem:[%s976 + $0x614] sm:$0xff] %v1755
                  %v1757 = vld [vmem:[%s975 + $0x1860] sm:$0xff]
                  %1758 = vst [vmem:[%s976 + $0x618] sm:$0xff] %v1757
                  %v1759 = vld [vmem:[%s975 + $0x1870] sm:$0xff]
                  %1760 = vst [vmem:[%s976 + $0x61c] sm:$0xff] %v1759
                  %s1761 = sadd.s32 1, %s974
                  %p1762 = scmp.ge.s32.totalorder %s1761, 0
                  %s1763 = scalar_select %p1762, 0, %s1761
                  %s1764 = smul.u32 %s1763, 8
                  %s1765 = smul.u32 %s1763, 8
                  %s1766 = scalar_lea.vmem %s165, %s1764
                  %s1767 = scalar_lea.vmem %s163, %s1765 [#allocation2]
                $region52: #{dqn_forward.7} parent=46 // loop_footer
                  %s973 = sadd.s32 1, %s969
                $region53: #{dqn_forward.7} parent=46 // loop_footer_branch
                  %968 = sbr.rel target = $region49
                $region54: #{dqn_forward.7} parent=46 // loop_exit
                  _
              $region47: #{dqn_forward.7} parent=31 // pred_fallthru
                _
              // Predicated region
              $region55: #{dqn_forward.7} parent=31 // pred_check
                _
              $region56: #{dqn_forward.7} parent=31 // pred_check_branch
                %1769 = sbr.rel (0) target = $region58
              $region57: #{dqn_forward.7} parent=31 // pred_region
                loop: start=0, step=1, limit=0
                $region59: #{dqn_forward.7} parent=57 // loop_pre_header
                  _
                $region60: #{dqn_forward.7} parent=57 // loop_header
                  %s1771 = sphi 0, %s1775
                  %p1772 = scmp.ge.s32.totalorder %s1771, 0
                  %s1776 = sphi 0, %s2565
                  %s1777 = sphi %s165, %s2568
                  %s1778 = sphi %s163, %s2569
                $region61: #{dqn_forward.7} parent=57 // loop_header_branch
                  %1774 = sbr.rel (%p1772) target = $region65
                $region62: #{dqn_forward.7} parent=57 // loop_body
                  %v1779 = vld [vmem:[%s1777] sm:$0xff]
                  %1780 = vst [vmem:[%s1778] sm:$0xff] %v1779
                  %v1781 = vld [vmem:[%s1777 + $0x10] sm:$0xff]
                  %1782 = vst [vmem:[%s1778 + $0x4] sm:$0xff] %v1781
                  %v1783 = vld [vmem:[%s1777 + $0x20] sm:$0xff]
                  %1784 = vst [vmem:[%s1778 + $0x8] sm:$0xff] %v1783
                  %v1785 = vld [vmem:[%s1777 + $0x30] sm:$0xff]
                  %1786 = vst [vmem:[%s1778 + $0xc] sm:$0xff] %v1785
                  %v1787 = vld [vmem:[%s1777 + $0x40] sm:$0xff]
                  %1788 = vst [vmem:[%s1778 + $0x10] sm:$0xff] %v1787
                  %v1789 = vld [vmem:[%s1777 + $0x50] sm:$0xff]
                  %1790 = vst [vmem:[%s1778 + $0x14] sm:$0xff] %v1789
                  %v1791 = vld [vmem:[%s1777 + $0x60] sm:$0xff]
                  %1792 = vst [vmem:[%s1778 + $0x18] sm:$0xff] %v1791
                  %v1793 = vld [vmem:[%s1777 + $0x70] sm:$0xff]
                  %1794 = vst [vmem:[%s1778 + $0x1c] sm:$0xff] %v1793
                  %v1795 = vld [vmem:[%s1777 + $0x80] sm:$0xff]
                  %1796 = vst [vmem:[%s1778 + $0x20] sm:$0xff] %v1795
                  %v1797 = vld [vmem:[%s1777 + $0x90] sm:$0xff]
                  %1798 = vst [vmem:[%s1778 + $0x24] sm:$0xff] %v1797
                  %v1799 = vld [vmem:[%s1777 + $0xa0] sm:$0xff]
                  %1800 = vst [vmem:[%s1778 + $0x28] sm:$0xff] %v1799
                  %v1801 = vld [vmem:[%s1777 + $0xb0] sm:$0xff]
                  %1802 = vst [vmem:[%s1778 + $0x2c] sm:$0xff] %v1801
                  %v1803 = vld [vmem:[%s1777 + $0xc0] sm:$0xff]
                  %1804 = vst [vmem:[%s1778 + $0x30] sm:$0xff] %v1803
                  %v1805 = vld [vmem:[%s1777 + $0xd0] sm:$0xff]
                  %1806 = vst [vmem:[%s1778 + $0x34] sm:$0xff] %v1805
                  %v1807 = vld [vmem:[%s1777 + $0xe0] sm:$0xff]
                  %1808 = vst [vmem:[%s1778 + $0x38] sm:$0xff] %v1807
                  %v1809 = vld [vmem:[%s1777 + $0xf0] sm:$0xff]
                  %1810 = vst [vmem:[%s1778 + $0x3c] sm:$0xff] %v1809
                  %v1811 = vld [vmem:[%s1777 + $0x100] sm:$0xff]
                  %1812 = vst [vmem:[%s1778 + $0x40] sm:$0xff] %v1811
                  %v1813 = vld [vmem:[%s1777 + $0x110] sm:$0xff]
                  %1814 = vst [vmem:[%s1778 + $0x44] sm:$0xff] %v1813
                  %v1815 = vld [vmem:[%s1777 + $0x120] sm:$0xff]
                  %1816 = vst [vmem:[%s1778 + $0x48] sm:$0xff] %v1815
                  %v1817 = vld [vmem:[%s1777 + $0x130] sm:$0xff]
                  %1818 = vst [vmem:[%s1778 + $0x4c] sm:$0xff] %v1817
                  %v1819 = vld [vmem:[%s1777 + $0x140] sm:$0xff]
                  %1820 = vst [vmem:[%s1778 + $0x50] sm:$0xff] %v1819
                  %v1821 = vld [vmem:[%s1777 + $0x150] sm:$0xff]
                  %1822 = vst [vmem:[%s1778 + $0x54] sm:$0xff] %v1821
                  %v1823 = vld [vmem:[%s1777 + $0x160] sm:$0xff]
                  %1824 = vst [vmem:[%s1778 + $0x58] sm:$0xff] %v1823
                  %v1825 = vld [vmem:[%s1777 + $0x170] sm:$0xff]
                  %1826 = vst [vmem:[%s1778 + $0x5c] sm:$0xff] %v1825
                  %v1827 = vld [vmem:[%s1777 + $0x180] sm:$0xff]
                  %1828 = vst [vmem:[%s1778 + $0x60] sm:$0xff] %v1827
                  %v1829 = vld [vmem:[%s1777 + $0x190] sm:$0xff]
                  %1830 = vst [vmem:[%s1778 + $0x64] sm:$0xff] %v1829
                  %v1831 = vld [vmem:[%s1777 + $0x1a0] sm:$0xff]
                  %1832 = vst [vmem:[%s1778 + $0x68] sm:$0xff] %v1831
                  %v1833 = vld [vmem:[%s1777 + $0x1b0] sm:$0xff]
                  %1834 = vst [vmem:[%s1778 + $0x6c] sm:$0xff] %v1833
                  %v1835 = vld [vmem:[%s1777 + $0x1c0] sm:$0xff]
                  %1836 = vst [vmem:[%s1778 + $0x70] sm:$0xff] %v1835
                  %v1837 = vld [vmem:[%s1777 + $0x1d0] sm:$0xff]
                  %1838 = vst [vmem:[%s1778 + $0x74] sm:$0xff] %v1837
                  %v1839 = vld [vmem:[%s1777 + $0x1e0] sm:$0xff]
                  %1840 = vst [vmem:[%s1778 + $0x78] sm:$0xff] %v1839
                  %v1841 = vld [vmem:[%s1777 + $0x1f0] sm:$0xff]
                  %1842 = vst [vmem:[%s1778 + $0x7c] sm:$0xff] %v1841
                  %v1843 = vld [vmem:[%s1777 + $0x200] sm:$0xff]
                  %1844 = vst [vmem:[%s1778 + $0x80] sm:$0xff] %v1843
                  %v1845 = vld [vmem:[%s1777 + $0x210] sm:$0xff]
                  %1846 = vst [vmem:[%s1778 + $0x84] sm:$0xff] %v1845
                  %v1847 = vld [vmem:[%s1777 + $0x220] sm:$0xff]
                  %1848 = vst [vmem:[%s1778 + $0x88] sm:$0xff] %v1847
                  %v1849 = vld [vmem:[%s1777 + $0x230] sm:$0xff]
                  %1850 = vst [vmem:[%s1778 + $0x8c] sm:$0xff] %v1849
                  %v1851 = vld [vmem:[%s1777 + $0x240] sm:$0xff]
                  %1852 = vst [vmem:[%s1778 + $0x90] sm:$0xff] %v1851
                  %v1853 = vld [vmem:[%s1777 + $0x250] sm:$0xff]
                  %1854 = vst [vmem:[%s1778 + $0x94] sm:$0xff] %v1853
                  %v1855 = vld [vmem:[%s1777 + $0x260] sm:$0xff]
                  %1856 = vst [vmem:[%s1778 + $0x98] sm:$0xff] %v1855
                  %v1857 = vld [vmem:[%s1777 + $0x270] sm:$0xff]
                  %1858 = vst [vmem:[%s1778 + $0x9c] sm:$0xff] %v1857
                  %v1859 = vld [vmem:[%s1777 + $0x280] sm:$0xff]
                  %1860 = vst [vmem:[%s1778 + $0xa0] sm:$0xff] %v1859
                  %v1861 = vld [vmem:[%s1777 + $0x290] sm:$0xff]
                  %1862 = vst [vmem:[%s1778 + $0xa4] sm:$0xff] %v1861
                  %v1863 = vld [vmem:[%s1777 + $0x2a0] sm:$0xff]
                  %1864 = vst [vmem:[%s1778 + $0xa8] sm:$0xff] %v1863
                  %v1865 = vld [vmem:[%s1777 + $0x2b0] sm:$0xff]
                  %1866 = vst [vmem:[%s1778 + $0xac] sm:$0xff] %v1865
                  %v1867 = vld [vmem:[%s1777 + $0x2c0] sm:$0xff]
                  %1868 = vst [vmem:[%s1778 + $0xb0] sm:$0xff] %v1867
                  %v1869 = vld [vmem:[%s1777 + $0x2d0] sm:$0xff]
                  %1870 = vst [vmem:[%s1778 + $0xb4] sm:$0xff] %v1869
                  %v1871 = vld [vmem:[%s1777 + $0x2e0] sm:$0xff]
                  %1872 = vst [vmem:[%s1778 + $0xb8] sm:$0xff] %v1871
                  %v1873 = vld [vmem:[%s1777 + $0x2f0] sm:$0xff]
                  %1874 = vst [vmem:[%s1778 + $0xbc] sm:$0xff] %v1873
                  %v1875 = vld [vmem:[%s1777 + $0x300] sm:$0xff]
                  %1876 = vst [vmem:[%s1778 + $0xc0] sm:$0xff] %v1875
                  %v1877 = vld [vmem:[%s1777 + $0x310] sm:$0xff]
                  %1878 = vst [vmem:[%s1778 + $0xc4] sm:$0xff] %v1877
                  %v1879 = vld [vmem:[%s1777 + $0x320] sm:$0xff]
                  %1880 = vst [vmem:[%s1778 + $0xc8] sm:$0xff] %v1879
                  %v1881 = vld [vmem:[%s1777 + $0x330] sm:$0xff]
                  %1882 = vst [vmem:[%s1778 + $0xcc] sm:$0xff] %v1881
                  %v1883 = vld [vmem:[%s1777 + $0x340] sm:$0xff]
                  %1884 = vst [vmem:[%s1778 + $0xd0] sm:$0xff] %v1883
                  %v1885 = vld [vmem:[%s1777 + $0x350] sm:$0xff]
                  %1886 = vst [vmem:[%s1778 + $0xd4] sm:$0xff] %v1885
                  %v1887 = vld [vmem:[%s1777 + $0x360] sm:$0xff]
                  %1888 = vst [vmem:[%s1778 + $0xd8] sm:$0xff] %v1887
                  %v1889 = vld [vmem:[%s1777 + $0x370] sm:$0xff]
                  %1890 = vst [vmem:[%s1778 + $0xdc] sm:$0xff] %v1889
                  %v1891 = vld [vmem:[%s1777 + $0x380] sm:$0xff]
                  %1892 = vst [vmem:[%s1778 + $0xe0] sm:$0xff] %v1891
                  %v1893 = vld [vmem:[%s1777 + $0x390] sm:$0xff]
                  %1894 = vst [vmem:[%s1778 + $0xe4] sm:$0xff] %v1893
                  %v1895 = vld [vmem:[%s1777 + $0x3a0] sm:$0xff]
                  %1896 = vst [vmem:[%s1778 + $0xe8] sm:$0xff] %v1895
                  %v1897 = vld [vmem:[%s1777 + $0x3b0] sm:$0xff]
                  %1898 = vst [vmem:[%s1778 + $0xec] sm:$0xff] %v1897
                  %v1899 = vld [vmem:[%s1777 + $0x3c0] sm:$0xff]
                  %1900 = vst [vmem:[%s1778 + $0xf0] sm:$0xff] %v1899
                  %v1901 = vld [vmem:[%s1777 + $0x3d0] sm:$0xff]
                  %1902 = vst [vmem:[%s1778 + $0xf4] sm:$0xff] %v1901
                  %v1903 = vld [vmem:[%s1777 + $0x3e0] sm:$0xff]
                  %1904 = vst [vmem:[%s1778 + $0xf8] sm:$0xff] %v1903
                  %v1905 = vld [vmem:[%s1777 + $0x3f0] sm:$0xff]
                  %1906 = vst [vmem:[%s1778 + $0xfc] sm:$0xff] %v1905
                  %v1907 = vld [vmem:[%s1777 + $0x400] sm:$0xff]
                  %1908 = vst [vmem:[%s1778 + $0x100] sm:$0xff] %v1907
                  %v1909 = vld [vmem:[%s1777 + $0x410] sm:$0xff]
                  %1910 = vst [vmem:[%s1778 + $0x104] sm:$0xff] %v1909
                  %v1911 = vld [vmem:[%s1777 + $0x420] sm:$0xff]
                  %1912 = vst [vmem:[%s1778 + $0x108] sm:$0xff] %v1911
                  %v1913 = vld [vmem:[%s1777 + $0x430] sm:$0xff]
                  %1914 = vst [vmem:[%s1778 + $0x10c] sm:$0xff] %v1913
                  %v1915 = vld [vmem:[%s1777 + $0x440] sm:$0xff]
                  %1916 = vst [vmem:[%s1778 + $0x110] sm:$0xff] %v1915
                  %v1917 = vld [vmem:[%s1777 + $0x450] sm:$0xff]
                  %1918 = vst [vmem:[%s1778 + $0x114] sm:$0xff] %v1917
                  %v1919 = vld [vmem:[%s1777 + $0x460] sm:$0xff]
                  %1920 = vst [vmem:[%s1778 + $0x118] sm:$0xff] %v1919
                  %v1921 = vld [vmem:[%s1777 + $0x470] sm:$0xff]
                  %1922 = vst [vmem:[%s1778 + $0x11c] sm:$0xff] %v1921
                  %v1923 = vld [vmem:[%s1777 + $0x480] sm:$0xff]
                  %1924 = vst [vmem:[%s1778 + $0x120] sm:$0xff] %v1923
                  %v1925 = vld [vmem:[%s1777 + $0x490] sm:$0xff]
                  %1926 = vst [vmem:[%s1778 + $0x124] sm:$0xff] %v1925
                  %v1927 = vld [vmem:[%s1777 + $0x4a0] sm:$0xff]
                  %1928 = vst [vmem:[%s1778 + $0x128] sm:$0xff] %v1927
                  %v1929 = vld [vmem:[%s1777 + $0x4b0] sm:$0xff]
                  %1930 = vst [vmem:[%s1778 + $0x12c] sm:$0xff] %v1929
                  %v1931 = vld [vmem:[%s1777 + $0x4c0] sm:$0xff]
                  %1932 = vst [vmem:[%s1778 + $0x130] sm:$0xff] %v1931
                  %v1933 = vld [vmem:[%s1777 + $0x4d0] sm:$0xff]
                  %1934 = vst [vmem:[%s1778 + $0x134] sm:$0xff] %v1933
                  %v1935 = vld [vmem:[%s1777 + $0x4e0] sm:$0xff]
                  %1936 = vst [vmem:[%s1778 + $0x138] sm:$0xff] %v1935
                  %v1937 = vld [vmem:[%s1777 + $0x4f0] sm:$0xff]
                  %1938 = vst [vmem:[%s1778 + $0x13c] sm:$0xff] %v1937
                  %v1939 = vld [vmem:[%s1777 + $0x500] sm:$0xff]
                  %1940 = vst [vmem:[%s1778 + $0x140] sm:$0xff] %v1939
                  %v1941 = vld [vmem:[%s1777 + $0x510] sm:$0xff]
                  %1942 = vst [vmem:[%s1778 + $0x144] sm:$0xff] %v1941
                  %v1943 = vld [vmem:[%s1777 + $0x520] sm:$0xff]
                  %1944 = vst [vmem:[%s1778 + $0x148] sm:$0xff] %v1943
                  %v1945 = vld [vmem:[%s1777 + $0x530] sm:$0xff]
                  %1946 = vst [vmem:[%s1778 + $0x14c] sm:$0xff] %v1945
                  %v1947 = vld [vmem:[%s1777 + $0x540] sm:$0xff]
                  %1948 = vst [vmem:[%s1778 + $0x150] sm:$0xff] %v1947
                  %v1949 = vld [vmem:[%s1777 + $0x550] sm:$0xff]
                  %1950 = vst [vmem:[%s1778 + $0x154] sm:$0xff] %v1949
                  %v1951 = vld [vmem:[%s1777 + $0x560] sm:$0xff]
                  %1952 = vst [vmem:[%s1778 + $0x158] sm:$0xff] %v1951
                  %v1953 = vld [vmem:[%s1777 + $0x570] sm:$0xff]
                  %1954 = vst [vmem:[%s1778 + $0x15c] sm:$0xff] %v1953
                  %v1955 = vld [vmem:[%s1777 + $0x580] sm:$0xff]
                  %1956 = vst [vmem:[%s1778 + $0x160] sm:$0xff] %v1955
                  %v1957 = vld [vmem:[%s1777 + $0x590] sm:$0xff]
                  %1958 = vst [vmem:[%s1778 + $0x164] sm:$0xff] %v1957
                  %v1959 = vld [vmem:[%s1777 + $0x5a0] sm:$0xff]
                  %1960 = vst [vmem:[%s1778 + $0x168] sm:$0xff] %v1959
                  %v1961 = vld [vmem:[%s1777 + $0x5b0] sm:$0xff]
                  %1962 = vst [vmem:[%s1778 + $0x16c] sm:$0xff] %v1961
                  %v1963 = vld [vmem:[%s1777 + $0x5c0] sm:$0xff]
                  %1964 = vst [vmem:[%s1778 + $0x170] sm:$0xff] %v1963
                  %v1965 = vld [vmem:[%s1777 + $0x5d0] sm:$0xff]
                  %1966 = vst [vmem:[%s1778 + $0x174] sm:$0xff] %v1965
                  %v1967 = vld [vmem:[%s1777 + $0x5e0] sm:$0xff]
                  %1968 = vst [vmem:[%s1778 + $0x178] sm:$0xff] %v1967
                  %v1969 = vld [vmem:[%s1777 + $0x5f0] sm:$0xff]
                  %1970 = vst [vmem:[%s1778 + $0x17c] sm:$0xff] %v1969
                  %v1971 = vld [vmem:[%s1777 + $0x600] sm:$0xff]
                  %1972 = vst [vmem:[%s1778 + $0x180] sm:$0xff] %v1971
                  %v1973 = vld [vmem:[%s1777 + $0x610] sm:$0xff]
                  %1974 = vst [vmem:[%s1778 + $0x184] sm:$0xff] %v1973
                  %v1975 = vld [vmem:[%s1777 + $0x620] sm:$0xff]
                  %1976 = vst [vmem:[%s1778 + $0x188] sm:$0xff] %v1975
                  %v1977 = vld [vmem:[%s1777 + $0x630] sm:$0xff]
                  %1978 = vst [vmem:[%s1778 + $0x18c] sm:$0xff] %v1977
                  %v1979 = vld [vmem:[%s1777 + $0x640] sm:$0xff]
                  %1980 = vst [vmem:[%s1778 + $0x190] sm:$0xff] %v1979
                  %v1981 = vld [vmem:[%s1777 + $0x650] sm:$0xff]
                  %1982 = vst [vmem:[%s1778 + $0x194] sm:$0xff] %v1981
                  %v1983 = vld [vmem:[%s1777 + $0x660] sm:$0xff]
                  %1984 = vst [vmem:[%s1778 + $0x198] sm:$0xff] %v1983
                  %v1985 = vld [vmem:[%s1777 + $0x670] sm:$0xff]
                  %1986 = vst [vmem:[%s1778 + $0x19c] sm:$0xff] %v1985
                  %v1987 = vld [vmem:[%s1777 + $0x680] sm:$0xff]
                  %1988 = vst [vmem:[%s1778 + $0x1a0] sm:$0xff] %v1987
                  %v1989 = vld [vmem:[%s1777 + $0x690] sm:$0xff]
                  %1990 = vst [vmem:[%s1778 + $0x1a4] sm:$0xff] %v1989
                  %v1991 = vld [vmem:[%s1777 + $0x6a0] sm:$0xff]
                  %1992 = vst [vmem:[%s1778 + $0x1a8] sm:$0xff] %v1991
                  %v1993 = vld [vmem:[%s1777 + $0x6b0] sm:$0xff]
                  %1994 = vst [vmem:[%s1778 + $0x1ac] sm:$0xff] %v1993
                  %v1995 = vld [vmem:[%s1777 + $0x6c0] sm:$0xff]
                  %1996 = vst [vmem:[%s1778 + $0x1b0] sm:$0xff] %v1995
                  %v1997 = vld [vmem:[%s1777 + $0x6d0] sm:$0xff]
                  %1998 = vst [vmem:[%s1778 + $0x1b4] sm:$0xff] %v1997
                  %v1999 = vld [vmem:[%s1777 + $0x6e0] sm:$0xff]
                  %2000 = vst [vmem:[%s1778 + $0x1b8] sm:$0xff] %v1999
                  %v2001 = vld [vmem:[%s1777 + $0x6f0] sm:$0xff]
                  %2002 = vst [vmem:[%s1778 + $0x1bc] sm:$0xff] %v2001
                  %v2003 = vld [vmem:[%s1777 + $0x700] sm:$0xff]
                  %2004 = vst [vmem:[%s1778 + $0x1c0] sm:$0xff] %v2003
                  %v2005 = vld [vmem:[%s1777 + $0x710] sm:$0xff]
                  %2006 = vst [vmem:[%s1778 + $0x1c4] sm:$0xff] %v2005
                  %v2007 = vld [vmem:[%s1777 + $0x720] sm:$0xff]
                  %2008 = vst [vmem:[%s1778 + $0x1c8] sm:$0xff] %v2007
                  %v2009 = vld [vmem:[%s1777 + $0x730] sm:$0xff]
                  %2010 = vst [vmem:[%s1778 + $0x1cc] sm:$0xff] %v2009
                  %v2011 = vld [vmem:[%s1777 + $0x740] sm:$0xff]
                  %2012 = vst [vmem:[%s1778 + $0x1d0] sm:$0xff] %v2011
                  %v2013 = vld [vmem:[%s1777 + $0x750] sm:$0xff]
                  %2014 = vst [vmem:[%s1778 + $0x1d4] sm:$0xff] %v2013
                  %v2015 = vld [vmem:[%s1777 + $0x760] sm:$0xff]
                  %2016 = vst [vmem:[%s1778 + $0x1d8] sm:$0xff] %v2015
                  %v2017 = vld [vmem:[%s1777 + $0x770] sm:$0xff]
                  %2018 = vst [vmem:[%s1778 + $0x1dc] sm:$0xff] %v2017
                  %v2019 = vld [vmem:[%s1777 + $0x780] sm:$0xff]
                  %2020 = vst [vmem:[%s1778 + $0x1e0] sm:$0xff] %v2019
                  %v2021 = vld [vmem:[%s1777 + $0x790] sm:$0xff]
                  %2022 = vst [vmem:[%s1778 + $0x1e4] sm:$0xff] %v2021
                  %v2023 = vld [vmem:[%s1777 + $0x7a0] sm:$0xff]
                  %2024 = vst [vmem:[%s1778 + $0x1e8] sm:$0xff] %v2023
                  %v2025 = vld [vmem:[%s1777 + $0x7b0] sm:$0xff]
                  %2026 = vst [vmem:[%s1778 + $0x1ec] sm:$0xff] %v2025
                  %v2027 = vld [vmem:[%s1777 + $0x7c0] sm:$0xff]
                  %2028 = vst [vmem:[%s1778 + $0x1f0] sm:$0xff] %v2027
                  %v2029 = vld [vmem:[%s1777 + $0x7d0] sm:$0xff]
                  %2030 = vst [vmem:[%s1778 + $0x1f4] sm:$0xff] %v2029
                  %v2031 = vld [vmem:[%s1777 + $0x7e0] sm:$0xff]
                  %2032 = vst [vmem:[%s1778 + $0x1f8] sm:$0xff] %v2031
                  %v2033 = vld [vmem:[%s1777 + $0x7f0] sm:$0xff]
                  %2034 = vst [vmem:[%s1778 + $0x1fc] sm:$0xff] %v2033
                  %v2035 = vld [vmem:[%s1777 + $0x800] sm:$0xff]
                  %2036 = vst [vmem:[%s1778 + $0x200] sm:$0xff] %v2035
                  %v2037 = vld [vmem:[%s1777 + $0x810] sm:$0xff]
                  %2038 = vst [vmem:[%s1778 + $0x204] sm:$0xff] %v2037
                  %v2039 = vld [vmem:[%s1777 + $0x820] sm:$0xff]
                  %2040 = vst [vmem:[%s1778 + $0x208] sm:$0xff] %v2039
                  %v2041 = vld [vmem:[%s1777 + $0x830] sm:$0xff]
                  %2042 = vst [vmem:[%s1778 + $0x20c] sm:$0xff] %v2041
                  %v2043 = vld [vmem:[%s1777 + $0x840] sm:$0xff]
                  %2044 = vst [vmem:[%s1778 + $0x210] sm:$0xff] %v2043
                  %v2045 = vld [vmem:[%s1777 + $0x850] sm:$0xff]
                  %2046 = vst [vmem:[%s1778 + $0x214] sm:$0xff] %v2045
                  %v2047 = vld [vmem:[%s1777 + $0x860] sm:$0xff]
                  %2048 = vst [vmem:[%s1778 + $0x218] sm:$0xff] %v2047
                  %v2049 = vld [vmem:[%s1777 + $0x870] sm:$0xff]
                  %2050 = vst [vmem:[%s1778 + $0x21c] sm:$0xff] %v2049
                  %v2051 = vld [vmem:[%s1777 + $0x880] sm:$0xff]
                  %2052 = vst [vmem:[%s1778 + $0x220] sm:$0xff] %v2051
                  %v2053 = vld [vmem:[%s1777 + $0x890] sm:$0xff]
                  %2054 = vst [vmem:[%s1778 + $0x224] sm:$0xff] %v2053
                  %v2055 = vld [vmem:[%s1777 + $0x8a0] sm:$0xff]
                  %2056 = vst [vmem:[%s1778 + $0x228] sm:$0xff] %v2055
                  %v2057 = vld [vmem:[%s1777 + $0x8b0] sm:$0xff]
                  %2058 = vst [vmem:[%s1778 + $0x22c] sm:$0xff] %v2057
                  %v2059 = vld [vmem:[%s1777 + $0x8c0] sm:$0xff]
                  %2060 = vst [vmem:[%s1778 + $0x230] sm:$0xff] %v2059
                  %v2061 = vld [vmem:[%s1777 + $0x8d0] sm:$0xff]
                  %2062 = vst [vmem:[%s1778 + $0x234] sm:$0xff] %v2061
                  %v2063 = vld [vmem:[%s1777 + $0x8e0] sm:$0xff]
                  %2064 = vst [vmem:[%s1778 + $0x238] sm:$0xff] %v2063
                  %v2065 = vld [vmem:[%s1777 + $0x8f0] sm:$0xff]
                  %2066 = vst [vmem:[%s1778 + $0x23c] sm:$0xff] %v2065
                  %v2067 = vld [vmem:[%s1777 + $0x900] sm:$0xff]
                  %2068 = vst [vmem:[%s1778 + $0x240] sm:$0xff] %v2067
                  %v2069 = vld [vmem:[%s1777 + $0x910] sm:$0xff]
                  %2070 = vst [vmem:[%s1778 + $0x244] sm:$0xff] %v2069
                  %v2071 = vld [vmem:[%s1777 + $0x920] sm:$0xff]
                  %2072 = vst [vmem:[%s1778 + $0x248] sm:$0xff] %v2071
                  %v2073 = vld [vmem:[%s1777 + $0x930] sm:$0xff]
                  %2074 = vst [vmem:[%s1778 + $0x24c] sm:$0xff] %v2073
                  %v2075 = vld [vmem:[%s1777 + $0x940] sm:$0xff]
                  %2076 = vst [vmem:[%s1778 + $0x250] sm:$0xff] %v2075
                  %v2077 = vld [vmem:[%s1777 + $0x950] sm:$0xff]
                  %2078 = vst [vmem:[%s1778 + $0x254] sm:$0xff] %v2077
                  %v2079 = vld [vmem:[%s1777 + $0x960] sm:$0xff]
                  %2080 = vst [vmem:[%s1778 + $0x258] sm:$0xff] %v2079
                  %v2081 = vld [vmem:[%s1777 + $0x970] sm:$0xff]
                  %2082 = vst [vmem:[%s1778 + $0x25c] sm:$0xff] %v2081
                  %v2083 = vld [vmem:[%s1777 + $0x980] sm:$0xff]
                  %2084 = vst [vmem:[%s1778 + $0x260] sm:$0xff] %v2083
                  %v2085 = vld [vmem:[%s1777 + $0x990] sm:$0xff]
                  %2086 = vst [vmem:[%s1778 + $0x264] sm:$0xff] %v2085
                  %v2087 = vld [vmem:[%s1777 + $0x9a0] sm:$0xff]
                  %2088 = vst [vmem:[%s1778 + $0x268] sm:$0xff] %v2087
                  %v2089 = vld [vmem:[%s1777 + $0x9b0] sm:$0xff]
                  %2090 = vst [vmem:[%s1778 + $0x26c] sm:$0xff] %v2089
                  %v2091 = vld [vmem:[%s1777 + $0x9c0] sm:$0xff]
                  %2092 = vst [vmem:[%s1778 + $0x270] sm:$0xff] %v2091
                  %v2093 = vld [vmem:[%s1777 + $0x9d0] sm:$0xff]
                  %2094 = vst [vmem:[%s1778 + $0x274] sm:$0xff] %v2093
                  %v2095 = vld [vmem:[%s1777 + $0x9e0] sm:$0xff]
                  %2096 = vst [vmem:[%s1778 + $0x278] sm:$0xff] %v2095
                  %v2097 = vld [vmem:[%s1777 + $0x9f0] sm:$0xff]
                  %2098 = vst [vmem:[%s1778 + $0x27c] sm:$0xff] %v2097
                  %v2099 = vld [vmem:[%s1777 + $0xa00] sm:$0xff]
                  %2100 = vst [vmem:[%s1778 + $0x280] sm:$0xff] %v2099
                  %v2101 = vld [vmem:[%s1777 + $0xa10] sm:$0xff]
                  %2102 = vst [vmem:[%s1778 + $0x284] sm:$0xff] %v2101
                  %v2103 = vld [vmem:[%s1777 + $0xa20] sm:$0xff]
                  %2104 = vst [vmem:[%s1778 + $0x288] sm:$0xff] %v2103
                  %v2105 = vld [vmem:[%s1777 + $0xa30] sm:$0xff]
                  %2106 = vst [vmem:[%s1778 + $0x28c] sm:$0xff] %v2105
                  %v2107 = vld [vmem:[%s1777 + $0xa40] sm:$0xff]
                  %2108 = vst [vmem:[%s1778 + $0x290] sm:$0xff] %v2107
                  %v2109 = vld [vmem:[%s1777 + $0xa50] sm:$0xff]
                  %2110 = vst [vmem:[%s1778 + $0x294] sm:$0xff] %v2109
                  %v2111 = vld [vmem:[%s1777 + $0xa60] sm:$0xff]
                  %2112 = vst [vmem:[%s1778 + $0x298] sm:$0xff] %v2111
                  %v2113 = vld [vmem:[%s1777 + $0xa70] sm:$0xff]
                  %2114 = vst [vmem:[%s1778 + $0x29c] sm:$0xff] %v2113
                  %v2115 = vld [vmem:[%s1777 + $0xa80] sm:$0xff]
                  %2116 = vst [vmem:[%s1778 + $0x2a0] sm:$0xff] %v2115
                  %v2117 = vld [vmem:[%s1777 + $0xa90] sm:$0xff]
                  %2118 = vst [vmem:[%s1778 + $0x2a4] sm:$0xff] %v2117
                  %v2119 = vld [vmem:[%s1777 + $0xaa0] sm:$0xff]
                  %2120 = vst [vmem:[%s1778 + $0x2a8] sm:$0xff] %v2119
                  %v2121 = vld [vmem:[%s1777 + $0xab0] sm:$0xff]
                  %2122 = vst [vmem:[%s1778 + $0x2ac] sm:$0xff] %v2121
                  %v2123 = vld [vmem:[%s1777 + $0xac0] sm:$0xff]
                  %2124 = vst [vmem:[%s1778 + $0x2b0] sm:$0xff] %v2123
                  %v2125 = vld [vmem:[%s1777 + $0xad0] sm:$0xff]
                  %2126 = vst [vmem:[%s1778 + $0x2b4] sm:$0xff] %v2125
                  %v2127 = vld [vmem:[%s1777 + $0xae0] sm:$0xff]
                  %2128 = vst [vmem:[%s1778 + $0x2b8] sm:$0xff] %v2127
                  %v2129 = vld [vmem:[%s1777 + $0xaf0] sm:$0xff]
                  %2130 = vst [vmem:[%s1778 + $0x2bc] sm:$0xff] %v2129
                  %v2131 = vld [vmem:[%s1777 + $0xb00] sm:$0xff]
                  %2132 = vst [vmem:[%s1778 + $0x2c0] sm:$0xff] %v2131
                  %v2133 = vld [vmem:[%s1777 + $0xb10] sm:$0xff]
                  %2134 = vst [vmem:[%s1778 + $0x2c4] sm:$0xff] %v2133
                  %v2135 = vld [vmem:[%s1777 + $0xb20] sm:$0xff]
                  %2136 = vst [vmem:[%s1778 + $0x2c8] sm:$0xff] %v2135
                  %v2137 = vld [vmem:[%s1777 + $0xb30] sm:$0xff]
                  %2138 = vst [vmem:[%s1778 + $0x2cc] sm:$0xff] %v2137
                  %v2139 = vld [vmem:[%s1777 + $0xb40] sm:$0xff]
                  %2140 = vst [vmem:[%s1778 + $0x2d0] sm:$0xff] %v2139
                  %v2141 = vld [vmem:[%s1777 + $0xb50] sm:$0xff]
                  %2142 = vst [vmem:[%s1778 + $0x2d4] sm:$0xff] %v2141
                  %v2143 = vld [vmem:[%s1777 + $0xb60] sm:$0xff]
                  %2144 = vst [vmem:[%s1778 + $0x2d8] sm:$0xff] %v2143
                  %v2145 = vld [vmem:[%s1777 + $0xb70] sm:$0xff]
                  %2146 = vst [vmem:[%s1778 + $0x2dc] sm:$0xff] %v2145
                  %v2147 = vld [vmem:[%s1777 + $0xb80] sm:$0xff]
                  %2148 = vst [vmem:[%s1778 + $0x2e0] sm:$0xff] %v2147
                  %v2149 = vld [vmem:[%s1777 + $0xb90] sm:$0xff]
                  %2150 = vst [vmem:[%s1778 + $0x2e4] sm:$0xff] %v2149
                  %v2151 = vld [vmem:[%s1777 + $0xba0] sm:$0xff]
                  %2152 = vst [vmem:[%s1778 + $0x2e8] sm:$0xff] %v2151
                  %v2153 = vld [vmem:[%s1777 + $0xbb0] sm:$0xff]
                  %2154 = vst [vmem:[%s1778 + $0x2ec] sm:$0xff] %v2153
                  %v2155 = vld [vmem:[%s1777 + $0xbc0] sm:$0xff]
                  %2156 = vst [vmem:[%s1778 + $0x2f0] sm:$0xff] %v2155
                  %v2157 = vld [vmem:[%s1777 + $0xbd0] sm:$0xff]
                  %2158 = vst [vmem:[%s1778 + $0x2f4] sm:$0xff] %v2157
                  %v2159 = vld [vmem:[%s1777 + $0xbe0] sm:$0xff]
                  %2160 = vst [vmem:[%s1778 + $0x2f8] sm:$0xff] %v2159
                  %v2161 = vld [vmem:[%s1777 + $0xbf0] sm:$0xff]
                  %2162 = vst [vmem:[%s1778 + $0x2fc] sm:$0xff] %v2161
                  %v2163 = vld [vmem:[%s1777 + $0xc00] sm:$0xff]
                  %2164 = vst [vmem:[%s1778 + $0x300] sm:$0xff] %v2163
                  %v2165 = vld [vmem:[%s1777 + $0xc10] sm:$0xff]
                  %2166 = vst [vmem:[%s1778 + $0x304] sm:$0xff] %v2165
                  %v2167 = vld [vmem:[%s1777 + $0xc20] sm:$0xff]
                  %2168 = vst [vmem:[%s1778 + $0x308] sm:$0xff] %v2167
                  %v2169 = vld [vmem:[%s1777 + $0xc30] sm:$0xff]
                  %2170 = vst [vmem:[%s1778 + $0x30c] sm:$0xff] %v2169
                  %v2171 = vld [vmem:[%s1777 + $0xc40] sm:$0xff]
                  %2172 = vst [vmem:[%s1778 + $0x310] sm:$0xff] %v2171
                  %v2173 = vld [vmem:[%s1777 + $0xc50] sm:$0xff]
                  %2174 = vst [vmem:[%s1778 + $0x314] sm:$0xff] %v2173
                  %v2175 = vld [vmem:[%s1777 + $0xc60] sm:$0xff]
                  %2176 = vst [vmem:[%s1778 + $0x318] sm:$0xff] %v2175
                  %v2177 = vld [vmem:[%s1777 + $0xc70] sm:$0xff]
                  %2178 = vst [vmem:[%s1778 + $0x31c] sm:$0xff] %v2177
                  %v2179 = vld [vmem:[%s1777 + $0xc80] sm:$0xff]
                  %2180 = vst [vmem:[%s1778 + $0x320] sm:$0xff] %v2179
                  %v2181 = vld [vmem:[%s1777 + $0xc90] sm:$0xff]
                  %2182 = vst [vmem:[%s1778 + $0x324] sm:$0xff] %v2181
                  %v2183 = vld [vmem:[%s1777 + $0xca0] sm:$0xff]
                  %2184 = vst [vmem:[%s1778 + $0x328] sm:$0xff] %v2183
                  %v2185 = vld [vmem:[%s1777 + $0xcb0] sm:$0xff]
                  %2186 = vst [vmem:[%s1778 + $0x32c] sm:$0xff] %v2185
                  %v2187 = vld [vmem:[%s1777 + $0xcc0] sm:$0xff]
                  %2188 = vst [vmem:[%s1778 + $0x330] sm:$0xff] %v2187
                  %v2189 = vld [vmem:[%s1777 + $0xcd0] sm:$0xff]
                  %2190 = vst [vmem:[%s1778 + $0x334] sm:$0xff] %v2189
                  %v2191 = vld [vmem:[%s1777 + $0xce0] sm:$0xff]
                  %2192 = vst [vmem:[%s1778 + $0x338] sm:$0xff] %v2191
                  %v2193 = vld [vmem:[%s1777 + $0xcf0] sm:$0xff]
                  %2194 = vst [vmem:[%s1778 + $0x33c] sm:$0xff] %v2193
                  %v2195 = vld [vmem:[%s1777 + $0xd00] sm:$0xff]
                  %2196 = vst [vmem:[%s1778 + $0x340] sm:$0xff] %v2195
                  %v2197 = vld [vmem:[%s1777 + $0xd10] sm:$0xff]
                  %2198 = vst [vmem:[%s1778 + $0x344] sm:$0xff] %v2197
                  %v2199 = vld [vmem:[%s1777 + $0xd20] sm:$0xff]
                  %2200 = vst [vmem:[%s1778 + $0x348] sm:$0xff] %v2199
                  %v2201 = vld [vmem:[%s1777 + $0xd30] sm:$0xff]
                  %2202 = vst [vmem:[%s1778 + $0x34c] sm:$0xff] %v2201
                  %v2203 = vld [vmem:[%s1777 + $0xd40] sm:$0xff]
                  %2204 = vst [vmem:[%s1778 + $0x350] sm:$0xff] %v2203
                  %v2205 = vld [vmem:[%s1777 + $0xd50] sm:$0xff]
                  %2206 = vst [vmem:[%s1778 + $0x354] sm:$0xff] %v2205
                  %v2207 = vld [vmem:[%s1777 + $0xd60] sm:$0xff]
                  %2208 = vst [vmem:[%s1778 + $0x358] sm:$0xff] %v2207
                  %v2209 = vld [vmem:[%s1777 + $0xd70] sm:$0xff]
                  %2210 = vst [vmem:[%s1778 + $0x35c] sm:$0xff] %v2209
                  %v2211 = vld [vmem:[%s1777 + $0xd80] sm:$0xff]
                  %2212 = vst [vmem:[%s1778 + $0x360] sm:$0xff] %v2211
                  %v2213 = vld [vmem:[%s1777 + $0xd90] sm:$0xff]
                  %2214 = vst [vmem:[%s1778 + $0x364] sm:$0xff] %v2213
                  %v2215 = vld [vmem:[%s1777 + $0xda0] sm:$0xff]
                  %2216 = vst [vmem:[%s1778 + $0x368] sm:$0xff] %v2215
                  %v2217 = vld [vmem:[%s1777 + $0xdb0] sm:$0xff]
                  %2218 = vst [vmem:[%s1778 + $0x36c] sm:$0xff] %v2217
                  %v2219 = vld [vmem:[%s1777 + $0xdc0] sm:$0xff]
                  %2220 = vst [vmem:[%s1778 + $0x370] sm:$0xff] %v2219
                  %v2221 = vld [vmem:[%s1777 + $0xdd0] sm:$0xff]
                  %2222 = vst [vmem:[%s1778 + $0x374] sm:$0xff] %v2221
                  %v2223 = vld [vmem:[%s1777 + $0xde0] sm:$0xff]
                  %2224 = vst [vmem:[%s1778 + $0x378] sm:$0xff] %v2223
                  %v2225 = vld [vmem:[%s1777 + $0xdf0] sm:$0xff]
                  %2226 = vst [vmem:[%s1778 + $0x37c] sm:$0xff] %v2225
                  %v2227 = vld [vmem:[%s1777 + $0xe00] sm:$0xff]
                  %2228 = vst [vmem:[%s1778 + $0x380] sm:$0xff] %v2227
                  %v2229 = vld [vmem:[%s1777 + $0xe10] sm:$0xff]
                  %2230 = vst [vmem:[%s1778 + $0x384] sm:$0xff] %v2229
                  %v2231 = vld [vmem:[%s1777 + $0xe20] sm:$0xff]
                  %2232 = vst [vmem:[%s1778 + $0x388] sm:$0xff] %v2231
                  %v2233 = vld [vmem:[%s1777 + $0xe30] sm:$0xff]
                  %2234 = vst [vmem:[%s1778 + $0x38c] sm:$0xff] %v2233
                  %v2235 = vld [vmem:[%s1777 + $0xe40] sm:$0xff]
                  %2236 = vst [vmem:[%s1778 + $0x390] sm:$0xff] %v2235
                  %v2237 = vld [vmem:[%s1777 + $0xe50] sm:$0xff]
                  %2238 = vst [vmem:[%s1778 + $0x394] sm:$0xff] %v2237
                  %v2239 = vld [vmem:[%s1777 + $0xe60] sm:$0xff]
                  %2240 = vst [vmem:[%s1778 + $0x398] sm:$0xff] %v2239
                  %v2241 = vld [vmem:[%s1777 + $0xe70] sm:$0xff]
                  %2242 = vst [vmem:[%s1778 + $0x39c] sm:$0xff] %v2241
                  %v2243 = vld [vmem:[%s1777 + $0xe80] sm:$0xff]
                  %2244 = vst [vmem:[%s1778 + $0x3a0] sm:$0xff] %v2243
                  %v2245 = vld [vmem:[%s1777 + $0xe90] sm:$0xff]
                  %2246 = vst [vmem:[%s1778 + $0x3a4] sm:$0xff] %v2245
                  %v2247 = vld [vmem:[%s1777 + $0xea0] sm:$0xff]
                  %2248 = vst [vmem:[%s1778 + $0x3a8] sm:$0xff] %v2247
                  %v2249 = vld [vmem:[%s1777 + $0xeb0] sm:$0xff]
                  %2250 = vst [vmem:[%s1778 + $0x3ac] sm:$0xff] %v2249
                  %v2251 = vld [vmem:[%s1777 + $0xec0] sm:$0xff]
                  %2252 = vst [vmem:[%s1778 + $0x3b0] sm:$0xff] %v2251
                  %v2253 = vld [vmem:[%s1777 + $0xed0] sm:$0xff]
                  %2254 = vst [vmem:[%s1778 + $0x3b4] sm:$0xff] %v2253
                  %v2255 = vld [vmem:[%s1777 + $0xee0] sm:$0xff]
                  %2256 = vst [vmem:[%s1778 + $0x3b8] sm:$0xff] %v2255
                  %v2257 = vld [vmem:[%s1777 + $0xef0] sm:$0xff]
                  %2258 = vst [vmem:[%s1778 + $0x3bc] sm:$0xff] %v2257
                  %v2259 = vld [vmem:[%s1777 + $0xf00] sm:$0xff]
                  %2260 = vst [vmem:[%s1778 + $0x3c0] sm:$0xff] %v2259
                  %v2261 = vld [vmem:[%s1777 + $0xf10] sm:$0xff]
                  %2262 = vst [vmem:[%s1778 + $0x3c4] sm:$0xff] %v2261
                  %v2263 = vld [vmem:[%s1777 + $0xf20] sm:$0xff]
                  %2264 = vst [vmem:[%s1778 + $0x3c8] sm:$0xff] %v2263
                  %v2265 = vld [vmem:[%s1777 + $0xf30] sm:$0xff]
                  %2266 = vst [vmem:[%s1778 + $0x3cc] sm:$0xff] %v2265
                  %v2267 = vld [vmem:[%s1777 + $0xf40] sm:$0xff]
                  %2268 = vst [vmem:[%s1778 + $0x3d0] sm:$0xff] %v2267
                  %v2269 = vld [vmem:[%s1777 + $0xf50] sm:$0xff]
                  %2270 = vst [vmem:[%s1778 + $0x3d4] sm:$0xff] %v2269
                  %v2271 = vld [vmem:[%s1777 + $0xf60] sm:$0xff]
                  %2272 = vst [vmem:[%s1778 + $0x3d8] sm:$0xff] %v2271
                  %v2273 = vld [vmem:[%s1777 + $0xf70] sm:$0xff]
                  %2274 = vst [vmem:[%s1778 + $0x3dc] sm:$0xff] %v2273
                  %v2275 = vld [vmem:[%s1777 + $0xf80] sm:$0xff]
                  %2276 = vst [vmem:[%s1778 + $0x3e0] sm:$0xff] %v2275
                  %v2277 = vld [vmem:[%s1777 + $0xf90] sm:$0xff]
                  %2278 = vst [vmem:[%s1778 + $0x3e4] sm:$0xff] %v2277
                  %v2279 = vld [vmem:[%s1777 + $0xfa0] sm:$0xff]
                  %2280 = vst [vmem:[%s1778 + $0x3e8] sm:$0xff] %v2279
                  %v2281 = vld [vmem:[%s1777 + $0xfb0] sm:$0xff]
                  %2282 = vst [vmem:[%s1778 + $0x3ec] sm:$0xff] %v2281
                  %v2283 = vld [vmem:[%s1777 + $0xfc0] sm:$0xff]
                  %2284 = vst [vmem:[%s1778 + $0x3f0] sm:$0xff] %v2283
                  %v2285 = vld [vmem:[%s1777 + $0xfd0] sm:$0xff]
                  %2286 = vst [vmem:[%s1778 + $0x3f4] sm:$0xff] %v2285
                  %v2287 = vld [vmem:[%s1777 + $0xfe0] sm:$0xff]
                  %2288 = vst [vmem:[%s1778 + $0x3f8] sm:$0xff] %v2287
                  %v2289 = vld [vmem:[%s1777 + $0xff0] sm:$0xff]
                  %2290 = vst [vmem:[%s1778 + $0x3fc] sm:$0xff] %v2289
                  %v2291 = vld [vmem:[%s1777 + $0x1000] sm:$0xff]
                  %2292 = vst [vmem:[%s1778 + $0x400] sm:$0xff] %v2291
                  %v2293 = vld [vmem:[%s1777 + $0x1010] sm:$0xff]
                  %2294 = vst [vmem:[%s1778 + $0x404] sm:$0xff] %v2293
                  %v2295 = vld [vmem:[%s1777 + $0x1020] sm:$0xff]
                  %2296 = vst [vmem:[%s1778 + $0x408] sm:$0xff] %v2295
                  %v2297 = vld [vmem:[%s1777 + $0x1030] sm:$0xff]
                  %2298 = vst [vmem:[%s1778 + $0x40c] sm:$0xff] %v2297
                  %v2299 = vld [vmem:[%s1777 + $0x1040] sm:$0xff]
                  %2300 = vst [vmem:[%s1778 + $0x410] sm:$0xff] %v2299
                  %v2301 = vld [vmem:[%s1777 + $0x1050] sm:$0xff]
                  %2302 = vst [vmem:[%s1778 + $0x414] sm:$0xff] %v2301
                  %v2303 = vld [vmem:[%s1777 + $0x1060] sm:$0xff]
                  %2304 = vst [vmem:[%s1778 + $0x418] sm:$0xff] %v2303
                  %v2305 = vld [vmem:[%s1777 + $0x1070] sm:$0xff]
                  %2306 = vst [vmem:[%s1778 + $0x41c] sm:$0xff] %v2305
                  %v2307 = vld [vmem:[%s1777 + $0x1080] sm:$0xff]
                  %2308 = vst [vmem:[%s1778 + $0x420] sm:$0xff] %v2307
                  %v2309 = vld [vmem:[%s1777 + $0x1090] sm:$0xff]
                  %2310 = vst [vmem:[%s1778 + $0x424] sm:$0xff] %v2309
                  %v2311 = vld [vmem:[%s1777 + $0x10a0] sm:$0xff]
                  %2312 = vst [vmem:[%s1778 + $0x428] sm:$0xff] %v2311
                  %v2313 = vld [vmem:[%s1777 + $0x10b0] sm:$0xff]
                  %2314 = vst [vmem:[%s1778 + $0x42c] sm:$0xff] %v2313
                  %v2315 = vld [vmem:[%s1777 + $0x10c0] sm:$0xff]
                  %2316 = vst [vmem:[%s1778 + $0x430] sm:$0xff] %v2315
                  %v2317 = vld [vmem:[%s1777 + $0x10d0] sm:$0xff]
                  %2318 = vst [vmem:[%s1778 + $0x434] sm:$0xff] %v2317
                  %v2319 = vld [vmem:[%s1777 + $0x10e0] sm:$0xff]
                  %2320 = vst [vmem:[%s1778 + $0x438] sm:$0xff] %v2319
                  %v2321 = vld [vmem:[%s1777 + $0x10f0] sm:$0xff]
                  %2322 = vst [vmem:[%s1778 + $0x43c] sm:$0xff] %v2321
                  %v2323 = vld [vmem:[%s1777 + $0x1100] sm:$0xff]
                  %2324 = vst [vmem:[%s1778 + $0x440] sm:$0xff] %v2323
                  %v2325 = vld [vmem:[%s1777 + $0x1110] sm:$0xff]
                  %2326 = vst [vmem:[%s1778 + $0x444] sm:$0xff] %v2325
                  %v2327 = vld [vmem:[%s1777 + $0x1120] sm:$0xff]
                  %2328 = vst [vmem:[%s1778 + $0x448] sm:$0xff] %v2327
                  %v2329 = vld [vmem:[%s1777 + $0x1130] sm:$0xff]
                  %2330 = vst [vmem:[%s1778 + $0x44c] sm:$0xff] %v2329
                  %v2331 = vld [vmem:[%s1777 + $0x1140] sm:$0xff]
                  %2332 = vst [vmem:[%s1778 + $0x450] sm:$0xff] %v2331
                  %v2333 = vld [vmem:[%s1777 + $0x1150] sm:$0xff]
                  %2334 = vst [vmem:[%s1778 + $0x454] sm:$0xff] %v2333
                  %v2335 = vld [vmem:[%s1777 + $0x1160] sm:$0xff]
                  %2336 = vst [vmem:[%s1778 + $0x458] sm:$0xff] %v2335
                  %v2337 = vld [vmem:[%s1777 + $0x1170] sm:$0xff]
                  %2338 = vst [vmem:[%s1778 + $0x45c] sm:$0xff] %v2337
                  %v2339 = vld [vmem:[%s1777 + $0x1180] sm:$0xff]
                  %2340 = vst [vmem:[%s1778 + $0x460] sm:$0xff] %v2339
                  %v2341 = vld [vmem:[%s1777 + $0x1190] sm:$0xff]
                  %2342 = vst [vmem:[%s1778 + $0x464] sm:$0xff] %v2341
                  %v2343 = vld [vmem:[%s1777 + $0x11a0] sm:$0xff]
                  %2344 = vst [vmem:[%s1778 + $0x468] sm:$0xff] %v2343
                  %v2345 = vld [vmem:[%s1777 + $0x11b0] sm:$0xff]
                  %2346 = vst [vmem:[%s1778 + $0x46c] sm:$0xff] %v2345
                  %v2347 = vld [vmem:[%s1777 + $0x11c0] sm:$0xff]
                  %2348 = vst [vmem:[%s1778 + $0x470] sm:$0xff] %v2347
                  %v2349 = vld [vmem:[%s1777 + $0x11d0] sm:$0xff]
                  %2350 = vst [vmem:[%s1778 + $0x474] sm:$0xff] %v2349
                  %v2351 = vld [vmem:[%s1777 + $0x11e0] sm:$0xff]
                  %2352 = vst [vmem:[%s1778 + $0x478] sm:$0xff] %v2351
                  %v2353 = vld [vmem:[%s1777 + $0x11f0] sm:$0xff]
                  %2354 = vst [vmem:[%s1778 + $0x47c] sm:$0xff] %v2353
                  %v2355 = vld [vmem:[%s1777 + $0x1200] sm:$0xff]
                  %2356 = vst [vmem:[%s1778 + $0x480] sm:$0xff] %v2355
                  %v2357 = vld [vmem:[%s1777 + $0x1210] sm:$0xff]
                  %2358 = vst [vmem:[%s1778 + $0x484] sm:$0xff] %v2357
                  %v2359 = vld [vmem:[%s1777 + $0x1220] sm:$0xff]
                  %2360 = vst [vmem:[%s1778 + $0x488] sm:$0xff] %v2359
                  %v2361 = vld [vmem:[%s1777 + $0x1230] sm:$0xff]
                  %2362 = vst [vmem:[%s1778 + $0x48c] sm:$0xff] %v2361
                  %v2363 = vld [vmem:[%s1777 + $0x1240] sm:$0xff]
                  %2364 = vst [vmem:[%s1778 + $0x490] sm:$0xff] %v2363
                  %v2365 = vld [vmem:[%s1777 + $0x1250] sm:$0xff]
                  %2366 = vst [vmem:[%s1778 + $0x494] sm:$0xff] %v2365
                  %v2367 = vld [vmem:[%s1777 + $0x1260] sm:$0xff]
                  %2368 = vst [vmem:[%s1778 + $0x498] sm:$0xff] %v2367
                  %v2369 = vld [vmem:[%s1777 + $0x1270] sm:$0xff]
                  %2370 = vst [vmem:[%s1778 + $0x49c] sm:$0xff] %v2369
                  %v2371 = vld [vmem:[%s1777 + $0x1280] sm:$0xff]
                  %2372 = vst [vmem:[%s1778 + $0x4a0] sm:$0xff] %v2371
                  %v2373 = vld [vmem:[%s1777 + $0x1290] sm:$0xff]
                  %2374 = vst [vmem:[%s1778 + $0x4a4] sm:$0xff] %v2373
                  %v2375 = vld [vmem:[%s1777 + $0x12a0] sm:$0xff]
                  %2376 = vst [vmem:[%s1778 + $0x4a8] sm:$0xff] %v2375
                  %v2377 = vld [vmem:[%s1777 + $0x12b0] sm:$0xff]
                  %2378 = vst [vmem:[%s1778 + $0x4ac] sm:$0xff] %v2377
                  %v2379 = vld [vmem:[%s1777 + $0x12c0] sm:$0xff]
                  %2380 = vst [vmem:[%s1778 + $0x4b0] sm:$0xff] %v2379
                  %v2381 = vld [vmem:[%s1777 + $0x12d0] sm:$0xff]
                  %2382 = vst [vmem:[%s1778 + $0x4b4] sm:$0xff] %v2381
                  %v2383 = vld [vmem:[%s1777 + $0x12e0] sm:$0xff]
                  %2384 = vst [vmem:[%s1778 + $0x4b8] sm:$0xff] %v2383
                  %v2385 = vld [vmem:[%s1777 + $0x12f0] sm:$0xff]
                  %2386 = vst [vmem:[%s1778 + $0x4bc] sm:$0xff] %v2385
                  %v2387 = vld [vmem:[%s1777 + $0x1300] sm:$0xff]
                  %2388 = vst [vmem:[%s1778 + $0x4c0] sm:$0xff] %v2387
                  %v2389 = vld [vmem:[%s1777 + $0x1310] sm:$0xff]
                  %2390 = vst [vmem:[%s1778 + $0x4c4] sm:$0xff] %v2389
                  %v2391 = vld [vmem:[%s1777 + $0x1320] sm:$0xff]
                  %2392 = vst [vmem:[%s1778 + $0x4c8] sm:$0xff] %v2391
                  %v2393 = vld [vmem:[%s1777 + $0x1330] sm:$0xff]
                  %2394 = vst [vmem:[%s1778 + $0x4cc] sm:$0xff] %v2393
                  %v2395 = vld [vmem:[%s1777 + $0x1340] sm:$0xff]
                  %2396 = vst [vmem:[%s1778 + $0x4d0] sm:$0xff] %v2395
                  %v2397 = vld [vmem:[%s1777 + $0x1350] sm:$0xff]
                  %2398 = vst [vmem:[%s1778 + $0x4d4] sm:$0xff] %v2397
                  %v2399 = vld [vmem:[%s1777 + $0x1360] sm:$0xff]
                  %2400 = vst [vmem:[%s1778 + $0x4d8] sm:$0xff] %v2399
                  %v2401 = vld [vmem:[%s1777 + $0x1370] sm:$0xff]
                  %2402 = vst [vmem:[%s1778 + $0x4dc] sm:$0xff] %v2401
                  %v2403 = vld [vmem:[%s1777 + $0x1380] sm:$0xff]
                  %2404 = vst [vmem:[%s1778 + $0x4e0] sm:$0xff] %v2403
                  %v2405 = vld [vmem:[%s1777 + $0x1390] sm:$0xff]
                  %2406 = vst [vmem:[%s1778 + $0x4e4] sm:$0xff] %v2405
                  %v2407 = vld [vmem:[%s1777 + $0x13a0] sm:$0xff]
                  %2408 = vst [vmem:[%s1778 + $0x4e8] sm:$0xff] %v2407
                  %v2409 = vld [vmem:[%s1777 + $0x13b0] sm:$0xff]
                  %2410 = vst [vmem:[%s1778 + $0x4ec] sm:$0xff] %v2409
                  %v2411 = vld [vmem:[%s1777 + $0x13c0] sm:$0xff]
                  %2412 = vst [vmem:[%s1778 + $0x4f0] sm:$0xff] %v2411
                  %v2413 = vld [vmem:[%s1777 + $0x13d0] sm:$0xff]
                  %2414 = vst [vmem:[%s1778 + $0x4f4] sm:$0xff] %v2413
                  %v2415 = vld [vmem:[%s1777 + $0x13e0] sm:$0xff]
                  %2416 = vst [vmem:[%s1778 + $0x4f8] sm:$0xff] %v2415
                  %v2417 = vld [vmem:[%s1777 + $0x13f0] sm:$0xff]
                  %2418 = vst [vmem:[%s1778 + $0x4fc] sm:$0xff] %v2417
                  %v2419 = vld [vmem:[%s1777 + $0x1400] sm:$0xff]
                  %2420 = vst [vmem:[%s1778 + $0x500] sm:$0xff] %v2419
                  %v2421 = vld [vmem:[%s1777 + $0x1410] sm:$0xff]
                  %2422 = vst [vmem:[%s1778 + $0x504] sm:$0xff] %v2421
                  %v2423 = vld [vmem:[%s1777 + $0x1420] sm:$0xff]
                  %2424 = vst [vmem:[%s1778 + $0x508] sm:$0xff] %v2423
                  %v2425 = vld [vmem:[%s1777 + $0x1430] sm:$0xff]
                  %2426 = vst [vmem:[%s1778 + $0x50c] sm:$0xff] %v2425
                  %v2427 = vld [vmem:[%s1777 + $0x1440] sm:$0xff]
                  %2428 = vst [vmem:[%s1778 + $0x510] sm:$0xff] %v2427
                  %v2429 = vld [vmem:[%s1777 + $0x1450] sm:$0xff]
                  %2430 = vst [vmem:[%s1778 + $0x514] sm:$0xff] %v2429
                  %v2431 = vld [vmem:[%s1777 + $0x1460] sm:$0xff]
                  %2432 = vst [vmem:[%s1778 + $0x518] sm:$0xff] %v2431
                  %v2433 = vld [vmem:[%s1777 + $0x1470] sm:$0xff]
                  %2434 = vst [vmem:[%s1778 + $0x51c] sm:$0xff] %v2433
                  %v2435 = vld [vmem:[%s1777 + $0x1480] sm:$0xff]
                  %2436 = vst [vmem:[%s1778 + $0x520] sm:$0xff] %v2435
                  %v2437 = vld [vmem:[%s1777 + $0x1490] sm:$0xff]
                  %2438 = vst [vmem:[%s1778 + $0x524] sm:$0xff] %v2437
                  %v2439 = vld [vmem:[%s1777 + $0x14a0] sm:$0xff]
                  %2440 = vst [vmem:[%s1778 + $0x528] sm:$0xff] %v2439
                  %v2441 = vld [vmem:[%s1777 + $0x14b0] sm:$0xff]
                  %2442 = vst [vmem:[%s1778 + $0x52c] sm:$0xff] %v2441
                  %v2443 = vld [vmem:[%s1777 + $0x14c0] sm:$0xff]
                  %2444 = vst [vmem:[%s1778 + $0x530] sm:$0xff] %v2443
                  %v2445 = vld [vmem:[%s1777 + $0x14d0] sm:$0xff]
                  %2446 = vst [vmem:[%s1778 + $0x534] sm:$0xff] %v2445
                  %v2447 = vld [vmem:[%s1777 + $0x14e0] sm:$0xff]
                  %2448 = vst [vmem:[%s1778 + $0x538] sm:$0xff] %v2447
                  %v2449 = vld [vmem:[%s1777 + $0x14f0] sm:$0xff]
                  %2450 = vst [vmem:[%s1778 + $0x53c] sm:$0xff] %v2449
                  %v2451 = vld [vmem:[%s1777 + $0x1500] sm:$0xff]
                  %2452 = vst [vmem:[%s1778 + $0x540] sm:$0xff] %v2451
                  %v2453 = vld [vmem:[%s1777 + $0x1510] sm:$0xff]
                  %2454 = vst [vmem:[%s1778 + $0x544] sm:$0xff] %v2453
                  %v2455 = vld [vmem:[%s1777 + $0x1520] sm:$0xff]
                  %2456 = vst [vmem:[%s1778 + $0x548] sm:$0xff] %v2455
                  %v2457 = vld [vmem:[%s1777 + $0x1530] sm:$0xff]
                  %2458 = vst [vmem:[%s1778 + $0x54c] sm:$0xff] %v2457
                  %v2459 = vld [vmem:[%s1777 + $0x1540] sm:$0xff]
                  %2460 = vst [vmem:[%s1778 + $0x550] sm:$0xff] %v2459
                  %v2461 = vld [vmem:[%s1777 + $0x1550] sm:$0xff]
                  %2462 = vst [vmem:[%s1778 + $0x554] sm:$0xff] %v2461
                  %v2463 = vld [vmem:[%s1777 + $0x1560] sm:$0xff]
                  %2464 = vst [vmem:[%s1778 + $0x558] sm:$0xff] %v2463
                  %v2465 = vld [vmem:[%s1777 + $0x1570] sm:$0xff]
                  %2466 = vst [vmem:[%s1778 + $0x55c] sm:$0xff] %v2465
                  %v2467 = vld [vmem:[%s1777 + $0x1580] sm:$0xff]
                  %2468 = vst [vmem:[%s1778 + $0x560] sm:$0xff] %v2467
                  %v2469 = vld [vmem:[%s1777 + $0x1590] sm:$0xff]
                  %2470 = vst [vmem:[%s1778 + $0x564] sm:$0xff] %v2469
                  %v2471 = vld [vmem:[%s1777 + $0x15a0] sm:$0xff]
                  %2472 = vst [vmem:[%s1778 + $0x568] sm:$0xff] %v2471
                  %v2473 = vld [vmem:[%s1777 + $0x15b0] sm:$0xff]
                  %2474 = vst [vmem:[%s1778 + $0x56c] sm:$0xff] %v2473
                  %v2475 = vld [vmem:[%s1777 + $0x15c0] sm:$0xff]
                  %2476 = vst [vmem:[%s1778 + $0x570] sm:$0xff] %v2475
                  %v2477 = vld [vmem:[%s1777 + $0x15d0] sm:$0xff]
                  %2478 = vst [vmem:[%s1778 + $0x574] sm:$0xff] %v2477
                  %v2479 = vld [vmem:[%s1777 + $0x15e0] sm:$0xff]
                  %2480 = vst [vmem:[%s1778 + $0x578] sm:$0xff] %v2479
                  %v2481 = vld [vmem:[%s1777 + $0x15f0] sm:$0xff]
                  %2482 = vst [vmem:[%s1778 + $0x57c] sm:$0xff] %v2481
                  %v2483 = vld [vmem:[%s1777 + $0x1600] sm:$0xff]
                  %2484 = vst [vmem:[%s1778 + $0x580] sm:$0xff] %v2483
                  %v2485 = vld [vmem:[%s1777 + $0x1610] sm:$0xff]
                  %2486 = vst [vmem:[%s1778 + $0x584] sm:$0xff] %v2485
                  %v2487 = vld [vmem:[%s1777 + $0x1620] sm:$0xff]
                  %2488 = vst [vmem:[%s1778 + $0x588] sm:$0xff] %v2487
                  %v2489 = vld [vmem:[%s1777 + $0x1630] sm:$0xff]
                  %2490 = vst [vmem:[%s1778 + $0x58c] sm:$0xff] %v2489
                  %v2491 = vld [vmem:[%s1777 + $0x1640] sm:$0xff]
                  %2492 = vst [vmem:[%s1778 + $0x590] sm:$0xff] %v2491
                  %v2493 = vld [vmem:[%s1777 + $0x1650] sm:$0xff]
                  %2494 = vst [vmem:[%s1778 + $0x594] sm:$0xff] %v2493
                  %v2495 = vld [vmem:[%s1777 + $0x1660] sm:$0xff]
                  %2496 = vst [vmem:[%s1778 + $0x598] sm:$0xff] %v2495
                  %v2497 = vld [vmem:[%s1777 + $0x1670] sm:$0xff]
                  %2498 = vst [vmem:[%s1778 + $0x59c] sm:$0xff] %v2497
                  %v2499 = vld [vmem:[%s1777 + $0x1680] sm:$0xff]
                  %2500 = vst [vmem:[%s1778 + $0x5a0] sm:$0xff] %v2499
                  %v2501 = vld [vmem:[%s1777 + $0x1690] sm:$0xff]
                  %2502 = vst [vmem:[%s1778 + $0x5a4] sm:$0xff] %v2501
                  %v2503 = vld [vmem:[%s1777 + $0x16a0] sm:$0xff]
                  %2504 = vst [vmem:[%s1778 + $0x5a8] sm:$0xff] %v2503
                  %v2505 = vld [vmem:[%s1777 + $0x16b0] sm:$0xff]
                  %2506 = vst [vmem:[%s1778 + $0x5ac] sm:$0xff] %v2505
                  %v2507 = vld [vmem:[%s1777 + $0x16c0] sm:$0xff]
                  %2508 = vst [vmem:[%s1778 + $0x5b0] sm:$0xff] %v2507
                  %v2509 = vld [vmem:[%s1777 + $0x16d0] sm:$0xff]
                  %2510 = vst [vmem:[%s1778 + $0x5b4] sm:$0xff] %v2509
                  %v2511 = vld [vmem:[%s1777 + $0x16e0] sm:$0xff]
                  %2512 = vst [vmem:[%s1778 + $0x5b8] sm:$0xff] %v2511
                  %v2513 = vld [vmem:[%s1777 + $0x16f0] sm:$0xff]
                  %2514 = vst [vmem:[%s1778 + $0x5bc] sm:$0xff] %v2513
                  %v2515 = vld [vmem:[%s1777 + $0x1700] sm:$0xff]
                  %2516 = vst [vmem:[%s1778 + $0x5c0] sm:$0xff] %v2515
                  %v2517 = vld [vmem:[%s1777 + $0x1710] sm:$0xff]
                  %2518 = vst [vmem:[%s1778 + $0x5c4] sm:$0xff] %v2517
                  %v2519 = vld [vmem:[%s1777 + $0x1720] sm:$0xff]
                  %2520 = vst [vmem:[%s1778 + $0x5c8] sm:$0xff] %v2519
                  %v2521 = vld [vmem:[%s1777 + $0x1730] sm:$0xff]
                  %2522 = vst [vmem:[%s1778 + $0x5cc] sm:$0xff] %v2521
                  %v2523 = vld [vmem:[%s1777 + $0x1740] sm:$0xff]
                  %2524 = vst [vmem:[%s1778 + $0x5d0] sm:$0xff] %v2523
                  %v2525 = vld [vmem:[%s1777 + $0x1750] sm:$0xff]
                  %2526 = vst [vmem:[%s1778 + $0x5d4] sm:$0xff] %v2525
                  %v2527 = vld [vmem:[%s1777 + $0x1760] sm:$0xff]
                  %2528 = vst [vmem:[%s1778 + $0x5d8] sm:$0xff] %v2527
                  %v2529 = vld [vmem:[%s1777 + $0x1770] sm:$0xff]
                  %2530 = vst [vmem:[%s1778 + $0x5dc] sm:$0xff] %v2529
                  %v2531 = vld [vmem:[%s1777 + $0x1780] sm:$0xff]
                  %2532 = vst [vmem:[%s1778 + $0x5e0] sm:$0xff] %v2531
                  %v2533 = vld [vmem:[%s1777 + $0x1790] sm:$0xff]
                  %2534 = vst [vmem:[%s1778 + $0x5e4] sm:$0xff] %v2533
                  %v2535 = vld [vmem:[%s1777 + $0x17a0] sm:$0xff]
                  %2536 = vst [vmem:[%s1778 + $0x5e8] sm:$0xff] %v2535
                  %v2537 = vld [vmem:[%s1777 + $0x17b0] sm:$0xff]
                  %2538 = vst [vmem:[%s1778 + $0x5ec] sm:$0xff] %v2537
                  %v2539 = vld [vmem:[%s1777 + $0x17c0] sm:$0xff]
                  %2540 = vst [vmem:[%s1778 + $0x5f0] sm:$0xff] %v2539
                  %v2541 = vld [vmem:[%s1777 + $0x17d0] sm:$0xff]
                  %2542 = vst [vmem:[%s1778 + $0x5f4] sm:$0xff] %v2541
                  %v2543 = vld [vmem:[%s1777 + $0x17e0] sm:$0xff]
                  %2544 = vst [vmem:[%s1778 + $0x5f8] sm:$0xff] %v2543
                  %v2545 = vld [vmem:[%s1777 + $0x17f0] sm:$0xff]
                  %2546 = vst [vmem:[%s1778 + $0x5fc] sm:$0xff] %v2545
                  %v2547 = vld [vmem:[%s1777 + $0x1800] sm:$0xff]
                  %2548 = vst [vmem:[%s1778 + $0x600] sm:$0xff] %v2547
                  %v2549 = vld [vmem:[%s1777 + $0x1810] sm:$0xff]
                  %2550 = vst [vmem:[%s1778 + $0x604] sm:$0xff] %v2549
                  %v2551 = vld [vmem:[%s1777 + $0x1820] sm:$0xff]
                  %2552 = vst [vmem:[%s1778 + $0x608] sm:$0xff] %v2551
                  %v2553 = vld [vmem:[%s1777 + $0x1830] sm:$0xff]
                  %2554 = vst [vmem:[%s1778 + $0x60c] sm:$0xff] %v2553
                  %v2555 = vld [vmem:[%s1777 + $0x1840] sm:$0xff]
                  %2556 = vst [vmem:[%s1778 + $0x610] sm:$0xff] %v2555
                  %v2557 = vld [vmem:[%s1777 + $0x1850] sm:$0xff]
                  %2558 = vst [vmem:[%s1778 + $0x614] sm:$0xff] %v2557
                  %v2559 = vld [vmem:[%s1777 + $0x1860] sm:$0xff]
                  %2560 = vst [vmem:[%s1778 + $0x618] sm:$0xff] %v2559
                  %v2561 = vld [vmem:[%s1777 + $0x1870] sm:$0xff]
                  %2562 = vst [vmem:[%s1778 + $0x61c] sm:$0xff] %v2561
                  %s2563 = sadd.s32 1, %s1776
                  %p2564 = scmp.ge.s32.totalorder %s2563, 0
                  %s2565 = scalar_select %p2564, 0, %s2563
                  %s2566 = smul.u32 %s2565, 8
                  %s2567 = smul.u32 %s2565, 8
                  %s2568 = scalar_lea.vmem %s165, %s2566
                  %s2569 = scalar_lea.vmem %s163, %s2567 [#allocation2]
                $region63: #{dqn_forward.7} parent=57 // loop_footer
                  %s1775 = sadd.s32 1, %s1771
                $region64: #{dqn_forward.7} parent=57 // loop_footer_branch
                  %1770 = sbr.rel target = $region60
                $region65: #{dqn_forward.7} parent=57 // loop_exit
                  _
                %s2571 = ssub.s32 16, 1
                loop: start=0, step=1, limit=1
                $region66: #{dqn_forward.7} parent=57 // loop_pre_header
                  _
                $region67: #{dqn_forward.7} parent=57 // loop_header
                  %s2573 = sphi 0, %s2577
                  %p2574 = scmp.ge.s32.totalorder %s2573, 1
                  %s2578 = sphi %s165, %s165
                  %s2579 = sphi %s163, %s163
                $region68: #{dqn_forward.7} parent=57 // loop_header_branch
                  %2576 = sbr.rel (%p2574) target = $region72
                $region69: #{dqn_forward.7} parent=57 // loop_body
                  %v2580 = vld [vmem:[%s2578] sm:%s2571]
                  %2581 = vst [vmem:[%s2579] sm:%s2571] %v2580
                  %v2582 = vld [vmem:[%s2578 + $0x10] sm:%s2571]
                  %2583 = vst [vmem:[%s2579 + $0x4] sm:%s2571] %v2582
                  %v2584 = vld [vmem:[%s2578 + $0x20] sm:%s2571]
                  %2585 = vst [vmem:[%s2579 + $0x8] sm:%s2571] %v2584
                  %v2586 = vld [vmem:[%s2578 + $0x30] sm:%s2571]
                  %2587 = vst [vmem:[%s2579 + $0xc] sm:%s2571] %v2586
                  %v2588 = vld [vmem:[%s2578 + $0x40] sm:%s2571]
                  %2589 = vst [vmem:[%s2579 + $0x10] sm:%s2571] %v2588
                  %v2590 = vld [vmem:[%s2578 + $0x50] sm:%s2571]
                  %2591 = vst [vmem:[%s2579 + $0x14] sm:%s2571] %v2590
                  %v2592 = vld [vmem:[%s2578 + $0x60] sm:%s2571]
                  %2593 = vst [vmem:[%s2579 + $0x18] sm:%s2571] %v2592
                  %v2594 = vld [vmem:[%s2578 + $0x70] sm:%s2571]
                  %2595 = vst [vmem:[%s2579 + $0x1c] sm:%s2571] %v2594
                  %v2596 = vld [vmem:[%s2578 + $0x80] sm:%s2571]
                  %2597 = vst [vmem:[%s2579 + $0x20] sm:%s2571] %v2596
                  %v2598 = vld [vmem:[%s2578 + $0x90] sm:%s2571]
                  %2599 = vst [vmem:[%s2579 + $0x24] sm:%s2571] %v2598
                  %v2600 = vld [vmem:[%s2578 + $0xa0] sm:%s2571]
                  %2601 = vst [vmem:[%s2579 + $0x28] sm:%s2571] %v2600
                  %v2602 = vld [vmem:[%s2578 + $0xb0] sm:%s2571]
                  %2603 = vst [vmem:[%s2579 + $0x2c] sm:%s2571] %v2602
                  %v2604 = vld [vmem:[%s2578 + $0xc0] sm:%s2571]
                  %2605 = vst [vmem:[%s2579 + $0x30] sm:%s2571] %v2604
                  %v2606 = vld [vmem:[%s2578 + $0xd0] sm:%s2571]
                  %2607 = vst [vmem:[%s2579 + $0x34] sm:%s2571] %v2606
                  %v2608 = vld [vmem:[%s2578 + $0xe0] sm:%s2571]
                  %2609 = vst [vmem:[%s2579 + $0x38] sm:%s2571] %v2608
                  %v2610 = vld [vmem:[%s2578 + $0xf0] sm:%s2571]
                  %2611 = vst [vmem:[%s2579 + $0x3c] sm:%s2571] %v2610
                  %v2612 = vld [vmem:[%s2578 + $0x100] sm:%s2571]
                  %2613 = vst [vmem:[%s2579 + $0x40] sm:%s2571] %v2612
                  %v2614 = vld [vmem:[%s2578 + $0x110] sm:%s2571]
                  %2615 = vst [vmem:[%s2579 + $0x44] sm:%s2571] %v2614
                  %v2616 = vld [vmem:[%s2578 + $0x120] sm:%s2571]
                  %2617 = vst [vmem:[%s2579 + $0x48] sm:%s2571] %v2616
                  %v2618 = vld [vmem:[%s2578 + $0x130] sm:%s2571]
                  %2619 = vst [vmem:[%s2579 + $0x4c] sm:%s2571] %v2618
                  %v2620 = vld [vmem:[%s2578 + $0x140] sm:%s2571]
                  %2621 = vst [vmem:[%s2579 + $0x50] sm:%s2571] %v2620
                  %v2622 = vld [vmem:[%s2578 + $0x150] sm:%s2571]
                  %2623 = vst [vmem:[%s2579 + $0x54] sm:%s2571] %v2622
                  %v2624 = vld [vmem:[%s2578 + $0x160] sm:%s2571]
                  %2625 = vst [vmem:[%s2579 + $0x58] sm:%s2571] %v2624
                  %v2626 = vld [vmem:[%s2578 + $0x170] sm:%s2571]
                  %2627 = vst [vmem:[%s2579 + $0x5c] sm:%s2571] %v2626
                  %v2628 = vld [vmem:[%s2578 + $0x180] sm:%s2571]
                  %2629 = vst [vmem:[%s2579 + $0x60] sm:%s2571] %v2628
                  %v2630 = vld [vmem:[%s2578 + $0x190] sm:%s2571]
                  %2631 = vst [vmem:[%s2579 + $0x64] sm:%s2571] %v2630
                  %v2632 = vld [vmem:[%s2578 + $0x1a0] sm:%s2571]
                  %2633 = vst [vmem:[%s2579 + $0x68] sm:%s2571] %v2632
                  %v2634 = vld [vmem:[%s2578 + $0x1b0] sm:%s2571]
                  %2635 = vst [vmem:[%s2579 + $0x6c] sm:%s2571] %v2634
                  %v2636 = vld [vmem:[%s2578 + $0x1c0] sm:%s2571]
                  %2637 = vst [vmem:[%s2579 + $0x70] sm:%s2571] %v2636
                  %v2638 = vld [vmem:[%s2578 + $0x1d0] sm:%s2571]
                  %2639 = vst [vmem:[%s2579 + $0x74] sm:%s2571] %v2638
                  %v2640 = vld [vmem:[%s2578 + $0x1e0] sm:%s2571]
                  %2641 = vst [vmem:[%s2579 + $0x78] sm:%s2571] %v2640
                  %v2642 = vld [vmem:[%s2578 + $0x1f0] sm:%s2571]
                  %2643 = vst [vmem:[%s2579 + $0x7c] sm:%s2571] %v2642
                  %v2644 = vld [vmem:[%s2578 + $0x200] sm:%s2571]
                  %2645 = vst [vmem:[%s2579 + $0x80] sm:%s2571] %v2644
                  %v2646 = vld [vmem:[%s2578 + $0x210] sm:%s2571]
                  %2647 = vst [vmem:[%s2579 + $0x84] sm:%s2571] %v2646
                  %v2648 = vld [vmem:[%s2578 + $0x220] sm:%s2571]
                  %2649 = vst [vmem:[%s2579 + $0x88] sm:%s2571] %v2648
                  %v2650 = vld [vmem:[%s2578 + $0x230] sm:%s2571]
                  %2651 = vst [vmem:[%s2579 + $0x8c] sm:%s2571] %v2650
                  %v2652 = vld [vmem:[%s2578 + $0x240] sm:%s2571]
                  %2653 = vst [vmem:[%s2579 + $0x90] sm:%s2571] %v2652
                  %v2654 = vld [vmem:[%s2578 + $0x250] sm:%s2571]
                  %2655 = vst [vmem:[%s2579 + $0x94] sm:%s2571] %v2654
                  %v2656 = vld [vmem:[%s2578 + $0x260] sm:%s2571]
                  %2657 = vst [vmem:[%s2579 + $0x98] sm:%s2571] %v2656
                  %v2658 = vld [vmem:[%s2578 + $0x270] sm:%s2571]
                  %2659 = vst [vmem:[%s2579 + $0x9c] sm:%s2571] %v2658
                  %v2660 = vld [vmem:[%s2578 + $0x280] sm:%s2571]
                  %2661 = vst [vmem:[%s2579 + $0xa0] sm:%s2571] %v2660
                  %v2662 = vld [vmem:[%s2578 + $0x290] sm:%s2571]
                  %2663 = vst [vmem:[%s2579 + $0xa4] sm:%s2571] %v2662
                  %v2664 = vld [vmem:[%s2578 + $0x2a0] sm:%s2571]
                  %2665 = vst [vmem:[%s2579 + $0xa8] sm:%s2571] %v2664
                  %v2666 = vld [vmem:[%s2578 + $0x2b0] sm:%s2571]
                  %2667 = vst [vmem:[%s2579 + $0xac] sm:%s2571] %v2666
                  %v2668 = vld [vmem:[%s2578 + $0x2c0] sm:%s2571]
                  %2669 = vst [vmem:[%s2579 + $0xb0] sm:%s2571] %v2668
                  %v2670 = vld [vmem:[%s2578 + $0x2d0] sm:%s2571]
                  %2671 = vst [vmem:[%s2579 + $0xb4] sm:%s2571] %v2670
                  %v2672 = vld [vmem:[%s2578 + $0x2e0] sm:%s2571]
                  %2673 = vst [vmem:[%s2579 + $0xb8] sm:%s2571] %v2672
                  %v2674 = vld [vmem:[%s2578 + $0x2f0] sm:%s2571]
                  %2675 = vst [vmem:[%s2579 + $0xbc] sm:%s2571] %v2674
                  %v2676 = vld [vmem:[%s2578 + $0x300] sm:%s2571]
                  %2677 = vst [vmem:[%s2579 + $0xc0] sm:%s2571] %v2676
                  %v2678 = vld [vmem:[%s2578 + $0x310] sm:%s2571]
                  %2679 = vst [vmem:[%s2579 + $0xc4] sm:%s2571] %v2678
                  %v2680 = vld [vmem:[%s2578 + $0x320] sm:%s2571]
                  %2681 = vst [vmem:[%s2579 + $0xc8] sm:%s2571] %v2680
                  %v2682 = vld [vmem:[%s2578 + $0x330] sm:%s2571]
                  %2683 = vst [vmem:[%s2579 + $0xcc] sm:%s2571] %v2682
                  %v2684 = vld [vmem:[%s2578 + $0x340] sm:%s2571]
                  %2685 = vst [vmem:[%s2579 + $0xd0] sm:%s2571] %v2684
                  %v2686 = vld [vmem:[%s2578 + $0x350] sm:%s2571]
                  %2687 = vst [vmem:[%s2579 + $0xd4] sm:%s2571] %v2686
                  %v2688 = vld [vmem:[%s2578 + $0x360] sm:%s2571]
                  %2689 = vst [vmem:[%s2579 + $0xd8] sm:%s2571] %v2688
                  %v2690 = vld [vmem:[%s2578 + $0x370] sm:%s2571]
                  %2691 = vst [vmem:[%s2579 + $0xdc] sm:%s2571] %v2690
                  %v2692 = vld [vmem:[%s2578 + $0x380] sm:%s2571]
                  %2693 = vst [vmem:[%s2579 + $0xe0] sm:%s2571] %v2692
                  %v2694 = vld [vmem:[%s2578 + $0x390] sm:%s2571]
                  %2695 = vst [vmem:[%s2579 + $0xe4] sm:%s2571] %v2694
                  %v2696 = vld [vmem:[%s2578 + $0x3a0] sm:%s2571]
                  %2697 = vst [vmem:[%s2579 + $0xe8] sm:%s2571] %v2696
                  %v2698 = vld [vmem:[%s2578 + $0x3b0] sm:%s2571]
                  %2699 = vst [vmem:[%s2579 + $0xec] sm:%s2571] %v2698
                  %v2700 = vld [vmem:[%s2578 + $0x3c0] sm:%s2571]
                  %2701 = vst [vmem:[%s2579 + $0xf0] sm:%s2571] %v2700
                  %v2702 = vld [vmem:[%s2578 + $0x3d0] sm:%s2571]
                  %2703 = vst [vmem:[%s2579 + $0xf4] sm:%s2571] %v2702
                  %v2704 = vld [vmem:[%s2578 + $0x3e0] sm:%s2571]
                  %2705 = vst [vmem:[%s2579 + $0xf8] sm:%s2571] %v2704
                  %v2706 = vld [vmem:[%s2578 + $0x3f0] sm:%s2571]
                  %2707 = vst [vmem:[%s2579 + $0xfc] sm:%s2571] %v2706
                  %v2708 = vld [vmem:[%s2578 + $0x400] sm:%s2571]
                  %2709 = vst [vmem:[%s2579 + $0x100] sm:%s2571] %v2708
                  %v2710 = vld [vmem:[%s2578 + $0x410] sm:%s2571]
                  %2711 = vst [vmem:[%s2579 + $0x104] sm:%s2571] %v2710
                  %v2712 = vld [vmem:[%s2578 + $0x420] sm:%s2571]
                  %2713 = vst [vmem:[%s2579 + $0x108] sm:%s2571] %v2712
                  %v2714 = vld [vmem:[%s2578 + $0x430] sm:%s2571]
                  %2715 = vst [vmem:[%s2579 + $0x10c] sm:%s2571] %v2714
                  %v2716 = vld [vmem:[%s2578 + $0x440] sm:%s2571]
                  %2717 = vst [vmem:[%s2579 + $0x110] sm:%s2571] %v2716
                  %v2718 = vld [vmem:[%s2578 + $0x450] sm:%s2571]
                  %2719 = vst [vmem:[%s2579 + $0x114] sm:%s2571] %v2718
                  %v2720 = vld [vmem:[%s2578 + $0x460] sm:%s2571]
                  %2721 = vst [vmem:[%s2579 + $0x118] sm:%s2571] %v2720
                  %v2722 = vld [vmem:[%s2578 + $0x470] sm:%s2571]
                  %2723 = vst [vmem:[%s2579 + $0x11c] sm:%s2571] %v2722
                  %v2724 = vld [vmem:[%s2578 + $0x480] sm:%s2571]
                  %2725 = vst [vmem:[%s2579 + $0x120] sm:%s2571] %v2724
                  %v2726 = vld [vmem:[%s2578 + $0x490] sm:%s2571]
                  %2727 = vst [vmem:[%s2579 + $0x124] sm:%s2571] %v2726
                  %v2728 = vld [vmem:[%s2578 + $0x4a0] sm:%s2571]
                  %2729 = vst [vmem:[%s2579 + $0x128] sm:%s2571] %v2728
                  %v2730 = vld [vmem:[%s2578 + $0x4b0] sm:%s2571]
                  %2731 = vst [vmem:[%s2579 + $0x12c] sm:%s2571] %v2730
                  %v2732 = vld [vmem:[%s2578 + $0x4c0] sm:%s2571]
                  %2733 = vst [vmem:[%s2579 + $0x130] sm:%s2571] %v2732
                  %v2734 = vld [vmem:[%s2578 + $0x4d0] sm:%s2571]
                  %2735 = vst [vmem:[%s2579 + $0x134] sm:%s2571] %v2734
                  %v2736 = vld [vmem:[%s2578 + $0x4e0] sm:%s2571]
                  %2737 = vst [vmem:[%s2579 + $0x138] sm:%s2571] %v2736
                  %v2738 = vld [vmem:[%s2578 + $0x4f0] sm:%s2571]
                  %2739 = vst [vmem:[%s2579 + $0x13c] sm:%s2571] %v2738
                  %v2740 = vld [vmem:[%s2578 + $0x500] sm:%s2571]
                  %2741 = vst [vmem:[%s2579 + $0x140] sm:%s2571] %v2740
                  %v2742 = vld [vmem:[%s2578 + $0x510] sm:%s2571]
                  %2743 = vst [vmem:[%s2579 + $0x144] sm:%s2571] %v2742
                  %v2744 = vld [vmem:[%s2578 + $0x520] sm:%s2571]
                  %2745 = vst [vmem:[%s2579 + $0x148] sm:%s2571] %v2744
                  %v2746 = vld [vmem:[%s2578 + $0x530] sm:%s2571]
                  %2747 = vst [vmem:[%s2579 + $0x14c] sm:%s2571] %v2746
                  %v2748 = vld [vmem:[%s2578 + $0x540] sm:%s2571]
                  %2749 = vst [vmem:[%s2579 + $0x150] sm:%s2571] %v2748
                  %v2750 = vld [vmem:[%s2578 + $0x550] sm:%s2571]
                  %2751 = vst [vmem:[%s2579 + $0x154] sm:%s2571] %v2750
                  %v2752 = vld [vmem:[%s2578 + $0x560] sm:%s2571]
                  %2753 = vst [vmem:[%s2579 + $0x158] sm:%s2571] %v2752
                  %v2754 = vld [vmem:[%s2578 + $0x570] sm:%s2571]
                  %2755 = vst [vmem:[%s2579 + $0x15c] sm:%s2571] %v2754
                  %v2756 = vld [vmem:[%s2578 + $0x580] sm:%s2571]
                  %2757 = vst [vmem:[%s2579 + $0x160] sm:%s2571] %v2756
                  %v2758 = vld [vmem:[%s2578 + $0x590] sm:%s2571]
                  %2759 = vst [vmem:[%s2579 + $0x164] sm:%s2571] %v2758
                  %v2760 = vld [vmem:[%s2578 + $0x5a0] sm:%s2571]
                  %2761 = vst [vmem:[%s2579 + $0x168] sm:%s2571] %v2760
                  %v2762 = vld [vmem:[%s2578 + $0x5b0] sm:%s2571]
                  %2763 = vst [vmem:[%s2579 + $0x16c] sm:%s2571] %v2762
                  %v2764 = vld [vmem:[%s2578 + $0x5c0] sm:%s2571]
                  %2765 = vst [vmem:[%s2579 + $0x170] sm:%s2571] %v2764
                  %v2766 = vld [vmem:[%s2578 + $0x5d0] sm:%s2571]
                  %2767 = vst [vmem:[%s2579 + $0x174] sm:%s2571] %v2766
                  %v2768 = vld [vmem:[%s2578 + $0x5e0] sm:%s2571]
                  %2769 = vst [vmem:[%s2579 + $0x178] sm:%s2571] %v2768
                  %v2770 = vld [vmem:[%s2578 + $0x5f0] sm:%s2571]
                  %2771 = vst [vmem:[%s2579 + $0x17c] sm:%s2571] %v2770
                  %v2772 = vld [vmem:[%s2578 + $0x600] sm:%s2571]
                  %2773 = vst [vmem:[%s2579 + $0x180] sm:%s2571] %v2772
                  %v2774 = vld [vmem:[%s2578 + $0x610] sm:%s2571]
                  %2775 = vst [vmem:[%s2579 + $0x184] sm:%s2571] %v2774
                  %v2776 = vld [vmem:[%s2578 + $0x620] sm:%s2571]
                  %2777 = vst [vmem:[%s2579 + $0x188] sm:%s2571] %v2776
                  %v2778 = vld [vmem:[%s2578 + $0x630] sm:%s2571]
                  %2779 = vst [vmem:[%s2579 + $0x18c] sm:%s2571] %v2778
                  %v2780 = vld [vmem:[%s2578 + $0x640] sm:%s2571]
                  %2781 = vst [vmem:[%s2579 + $0x190] sm:%s2571] %v2780
                  %v2782 = vld [vmem:[%s2578 + $0x650] sm:%s2571]
                  %2783 = vst [vmem:[%s2579 + $0x194] sm:%s2571] %v2782
                  %v2784 = vld [vmem:[%s2578 + $0x660] sm:%s2571]
                  %2785 = vst [vmem:[%s2579 + $0x198] sm:%s2571] %v2784
                  %v2786 = vld [vmem:[%s2578 + $0x670] sm:%s2571]
                  %2787 = vst [vmem:[%s2579 + $0x19c] sm:%s2571] %v2786
                  %v2788 = vld [vmem:[%s2578 + $0x680] sm:%s2571]
                  %2789 = vst [vmem:[%s2579 + $0x1a0] sm:%s2571] %v2788
                  %v2790 = vld [vmem:[%s2578 + $0x690] sm:%s2571]
                  %2791 = vst [vmem:[%s2579 + $0x1a4] sm:%s2571] %v2790
                  %v2792 = vld [vmem:[%s2578 + $0x6a0] sm:%s2571]
                  %2793 = vst [vmem:[%s2579 + $0x1a8] sm:%s2571] %v2792
                  %v2794 = vld [vmem:[%s2578 + $0x6b0] sm:%s2571]
                  %2795 = vst [vmem:[%s2579 + $0x1ac] sm:%s2571] %v2794
                  %v2796 = vld [vmem:[%s2578 + $0x6c0] sm:%s2571]
                  %2797 = vst [vmem:[%s2579 + $0x1b0] sm:%s2571] %v2796
                  %v2798 = vld [vmem:[%s2578 + $0x6d0] sm:%s2571]
                  %2799 = vst [vmem:[%s2579 + $0x1b4] sm:%s2571] %v2798
                  %v2800 = vld [vmem:[%s2578 + $0x6e0] sm:%s2571]
                  %2801 = vst [vmem:[%s2579 + $0x1b8] sm:%s2571] %v2800
                  %v2802 = vld [vmem:[%s2578 + $0x6f0] sm:%s2571]
                  %2803 = vst [vmem:[%s2579 + $0x1bc] sm:%s2571] %v2802
                  %v2804 = vld [vmem:[%s2578 + $0x700] sm:%s2571]
                  %2805 = vst [vmem:[%s2579 + $0x1c0] sm:%s2571] %v2804
                  %v2806 = vld [vmem:[%s2578 + $0x710] sm:%s2571]
                  %2807 = vst [vmem:[%s2579 + $0x1c4] sm:%s2571] %v2806
                  %v2808 = vld [vmem:[%s2578 + $0x720] sm:%s2571]
                  %2809 = vst [vmem:[%s2579 + $0x1c8] sm:%s2571] %v2808
                  %v2810 = vld [vmem:[%s2578 + $0x730] sm:%s2571]
                  %2811 = vst [vmem:[%s2579 + $0x1cc] sm:%s2571] %v2810
                  %v2812 = vld [vmem:[%s2578 + $0x740] sm:%s2571]
                  %2813 = vst [vmem:[%s2579 + $0x1d0] sm:%s2571] %v2812
                  %v2814 = vld [vmem:[%s2578 + $0x750] sm:%s2571]
                  %2815 = vst [vmem:[%s2579 + $0x1d4] sm:%s2571] %v2814
                  %v2816 = vld [vmem:[%s2578 + $0x760] sm:%s2571]
                  %2817 = vst [vmem:[%s2579 + $0x1d8] sm:%s2571] %v2816
                  %v2818 = vld [vmem:[%s2578 + $0x770] sm:%s2571]
                  %2819 = vst [vmem:[%s2579 + $0x1dc] sm:%s2571] %v2818
                  %v2820 = vld [vmem:[%s2578 + $0x780] sm:%s2571]
                  %2821 = vst [vmem:[%s2579 + $0x1e0] sm:%s2571] %v2820
                  %v2822 = vld [vmem:[%s2578 + $0x790] sm:%s2571]
                  %2823 = vst [vmem:[%s2579 + $0x1e4] sm:%s2571] %v2822
                  %v2824 = vld [vmem:[%s2578 + $0x7a0] sm:%s2571]
                  %2825 = vst [vmem:[%s2579 + $0x1e8] sm:%s2571] %v2824
                  %v2826 = vld [vmem:[%s2578 + $0x7b0] sm:%s2571]
                  %2827 = vst [vmem:[%s2579 + $0x1ec] sm:%s2571] %v2826
                  %v2828 = vld [vmem:[%s2578 + $0x7c0] sm:%s2571]
                  %2829 = vst [vmem:[%s2579 + $0x1f0] sm:%s2571] %v2828
                  %v2830 = vld [vmem:[%s2578 + $0x7d0] sm:%s2571]
                  %2831 = vst [vmem:[%s2579 + $0x1f4] sm:%s2571] %v2830
                  %v2832 = vld [vmem:[%s2578 + $0x7e0] sm:%s2571]
                  %2833 = vst [vmem:[%s2579 + $0x1f8] sm:%s2571] %v2832
                  %v2834 = vld [vmem:[%s2578 + $0x7f0] sm:%s2571]
                  %2835 = vst [vmem:[%s2579 + $0x1fc] sm:%s2571] %v2834
                  %v2836 = vld [vmem:[%s2578 + $0x800] sm:%s2571]
                  %2837 = vst [vmem:[%s2579 + $0x200] sm:%s2571] %v2836
                  %v2838 = vld [vmem:[%s2578 + $0x810] sm:%s2571]
                  %2839 = vst [vmem:[%s2579 + $0x204] sm:%s2571] %v2838
                  %v2840 = vld [vmem:[%s2578 + $0x820] sm:%s2571]
                  %2841 = vst [vmem:[%s2579 + $0x208] sm:%s2571] %v2840
                  %v2842 = vld [vmem:[%s2578 + $0x830] sm:%s2571]
                  %2843 = vst [vmem:[%s2579 + $0x20c] sm:%s2571] %v2842
                  %v2844 = vld [vmem:[%s2578 + $0x840] sm:%s2571]
                  %2845 = vst [vmem:[%s2579 + $0x210] sm:%s2571] %v2844
                  %v2846 = vld [vmem:[%s2578 + $0x850] sm:%s2571]
                  %2847 = vst [vmem:[%s2579 + $0x214] sm:%s2571] %v2846
                  %v2848 = vld [vmem:[%s2578 + $0x860] sm:%s2571]
                  %2849 = vst [vmem:[%s2579 + $0x218] sm:%s2571] %v2848
                  %v2850 = vld [vmem:[%s2578 + $0x870] sm:%s2571]
                  %2851 = vst [vmem:[%s2579 + $0x21c] sm:%s2571] %v2850
                  %v2852 = vld [vmem:[%s2578 + $0x880] sm:%s2571]
                  %2853 = vst [vmem:[%s2579 + $0x220] sm:%s2571] %v2852
                  %v2854 = vld [vmem:[%s2578 + $0x890] sm:%s2571]
                  %2855 = vst [vmem:[%s2579 + $0x224] sm:%s2571] %v2854
                  %v2856 = vld [vmem:[%s2578 + $0x8a0] sm:%s2571]
                  %2857 = vst [vmem:[%s2579 + $0x228] sm:%s2571] %v2856
                  %v2858 = vld [vmem:[%s2578 + $0x8b0] sm:%s2571]
                  %2859 = vst [vmem:[%s2579 + $0x22c] sm:%s2571] %v2858
                  %v2860 = vld [vmem:[%s2578 + $0x8c0] sm:%s2571]
                  %2861 = vst [vmem:[%s2579 + $0x230] sm:%s2571] %v2860
                  %v2862 = vld [vmem:[%s2578 + $0x8d0] sm:%s2571]
                  %2863 = vst [vmem:[%s2579 + $0x234] sm:%s2571] %v2862
                  %v2864 = vld [vmem:[%s2578 + $0x8e0] sm:%s2571]
                  %2865 = vst [vmem:[%s2579 + $0x238] sm:%s2571] %v2864
                  %v2866 = vld [vmem:[%s2578 + $0x8f0] sm:%s2571]
                  %2867 = vst [vmem:[%s2579 + $0x23c] sm:%s2571] %v2866
                  %v2868 = vld [vmem:[%s2578 + $0x900] sm:%s2571]
                  %2869 = vst [vmem:[%s2579 + $0x240] sm:%s2571] %v2868
                  %v2870 = vld [vmem:[%s2578 + $0x910] sm:%s2571]
                  %2871 = vst [vmem:[%s2579 + $0x244] sm:%s2571] %v2870
                  %v2872 = vld [vmem:[%s2578 + $0x920] sm:%s2571]
                  %2873 = vst [vmem:[%s2579 + $0x248] sm:%s2571] %v2872
                  %v2874 = vld [vmem:[%s2578 + $0x930] sm:%s2571]
                  %2875 = vst [vmem:[%s2579 + $0x24c] sm:%s2571] %v2874
                  %v2876 = vld [vmem:[%s2578 + $0x940] sm:%s2571]
                  %2877 = vst [vmem:[%s2579 + $0x250] sm:%s2571] %v2876
                  %v2878 = vld [vmem:[%s2578 + $0x950] sm:%s2571]
                  %2879 = vst [vmem:[%s2579 + $0x254] sm:%s2571] %v2878
                  %v2880 = vld [vmem:[%s2578 + $0x960] sm:%s2571]
                  %2881 = vst [vmem:[%s2579 + $0x258] sm:%s2571] %v2880
                  %v2882 = vld [vmem:[%s2578 + $0x970] sm:%s2571]
                  %2883 = vst [vmem:[%s2579 + $0x25c] sm:%s2571] %v2882
                  %v2884 = vld [vmem:[%s2578 + $0x980] sm:%s2571]
                  %2885 = vst [vmem:[%s2579 + $0x260] sm:%s2571] %v2884
                  %v2886 = vld [vmem:[%s2578 + $0x990] sm:%s2571]
                  %2887 = vst [vmem:[%s2579 + $0x264] sm:%s2571] %v2886
                  %v2888 = vld [vmem:[%s2578 + $0x9a0] sm:%s2571]
                  %2889 = vst [vmem:[%s2579 + $0x268] sm:%s2571] %v2888
                  %v2890 = vld [vmem:[%s2578 + $0x9b0] sm:%s2571]
                  %2891 = vst [vmem:[%s2579 + $0x26c] sm:%s2571] %v2890
                  %v2892 = vld [vmem:[%s2578 + $0x9c0] sm:%s2571]
                  %2893 = vst [vmem:[%s2579 + $0x270] sm:%s2571] %v2892
                  %v2894 = vld [vmem:[%s2578 + $0x9d0] sm:%s2571]
                  %2895 = vst [vmem:[%s2579 + $0x274] sm:%s2571] %v2894
                  %v2896 = vld [vmem:[%s2578 + $0x9e0] sm:%s2571]
                  %2897 = vst [vmem:[%s2579 + $0x278] sm:%s2571] %v2896
                  %v2898 = vld [vmem:[%s2578 + $0x9f0] sm:%s2571]
                  %2899 = vst [vmem:[%s2579 + $0x27c] sm:%s2571] %v2898
                  %v2900 = vld [vmem:[%s2578 + $0xa00] sm:%s2571]
                  %2901 = vst [vmem:[%s2579 + $0x280] sm:%s2571] %v2900
                  %v2902 = vld [vmem:[%s2578 + $0xa10] sm:%s2571]
                  %2903 = vst [vmem:[%s2579 + $0x284] sm:%s2571] %v2902
                  %v2904 = vld [vmem:[%s2578 + $0xa20] sm:%s2571]
                  %2905 = vst [vmem:[%s2579 + $0x288] sm:%s2571] %v2904
                  %v2906 = vld [vmem:[%s2578 + $0xa30] sm:%s2571]
                  %2907 = vst [vmem:[%s2579 + $0x28c] sm:%s2571] %v2906
                  %v2908 = vld [vmem:[%s2578 + $0xa40] sm:%s2571]
                  %2909 = vst [vmem:[%s2579 + $0x290] sm:%s2571] %v2908
                  %v2910 = vld [vmem:[%s2578 + $0xa50] sm:%s2571]
                  %2911 = vst [vmem:[%s2579 + $0x294] sm:%s2571] %v2910
                  %v2912 = vld [vmem:[%s2578 + $0xa60] sm:%s2571]
                  %2913 = vst [vmem:[%s2579 + $0x298] sm:%s2571] %v2912
                  %v2914 = vld [vmem:[%s2578 + $0xa70] sm:%s2571]
                  %2915 = vst [vmem:[%s2579 + $0x29c] sm:%s2571] %v2914
                  %v2916 = vld [vmem:[%s2578 + $0xa80] sm:%s2571]
                  %2917 = vst [vmem:[%s2579 + $0x2a0] sm:%s2571] %v2916
                  %v2918 = vld [vmem:[%s2578 + $0xa90] sm:%s2571]
                  %2919 = vst [vmem:[%s2579 + $0x2a4] sm:%s2571] %v2918
                  %v2920 = vld [vmem:[%s2578 + $0xaa0] sm:%s2571]
                  %2921 = vst [vmem:[%s2579 + $0x2a8] sm:%s2571] %v2920
                  %v2922 = vld [vmem:[%s2578 + $0xab0] sm:%s2571]
                  %2923 = vst [vmem:[%s2579 + $0x2ac] sm:%s2571] %v2922
                  %v2924 = vld [vmem:[%s2578 + $0xac0] sm:%s2571]
                  %2925 = vst [vmem:[%s2579 + $0x2b0] sm:%s2571] %v2924
                  %v2926 = vld [vmem:[%s2578 + $0xad0] sm:%s2571]
                  %2927 = vst [vmem:[%s2579 + $0x2b4] sm:%s2571] %v2926
                  %v2928 = vld [vmem:[%s2578 + $0xae0] sm:%s2571]
                  %2929 = vst [vmem:[%s2579 + $0x2b8] sm:%s2571] %v2928
                  %v2930 = vld [vmem:[%s2578 + $0xaf0] sm:%s2571]
                  %2931 = vst [vmem:[%s2579 + $0x2bc] sm:%s2571] %v2930
                  %v2932 = vld [vmem:[%s2578 + $0xb00] sm:%s2571]
                  %2933 = vst [vmem:[%s2579 + $0x2c0] sm:%s2571] %v2932
                  %v2934 = vld [vmem:[%s2578 + $0xb10] sm:%s2571]
                  %2935 = vst [vmem:[%s2579 + $0x2c4] sm:%s2571] %v2934
                  %v2936 = vld [vmem:[%s2578 + $0xb20] sm:%s2571]
                  %2937 = vst [vmem:[%s2579 + $0x2c8] sm:%s2571] %v2936
                  %v2938 = vld [vmem:[%s2578 + $0xb30] sm:%s2571]
                  %2939 = vst [vmem:[%s2579 + $0x2cc] sm:%s2571] %v2938
                  %v2940 = vld [vmem:[%s2578 + $0xb40] sm:%s2571]
                  %2941 = vst [vmem:[%s2579 + $0x2d0] sm:%s2571] %v2940
                  %v2942 = vld [vmem:[%s2578 + $0xb50] sm:%s2571]
                  %2943 = vst [vmem:[%s2579 + $0x2d4] sm:%s2571] %v2942
                  %v2944 = vld [vmem:[%s2578 + $0xb60] sm:%s2571]
                  %2945 = vst [vmem:[%s2579 + $0x2d8] sm:%s2571] %v2944
                  %v2946 = vld [vmem:[%s2578 + $0xb70] sm:%s2571]
                  %2947 = vst [vmem:[%s2579 + $0x2dc] sm:%s2571] %v2946
                  %v2948 = vld [vmem:[%s2578 + $0xb80] sm:%s2571]
                  %2949 = vst [vmem:[%s2579 + $0x2e0] sm:%s2571] %v2948
                  %v2950 = vld [vmem:[%s2578 + $0xb90] sm:%s2571]
                  %2951 = vst [vmem:[%s2579 + $0x2e4] sm:%s2571] %v2950
                  %v2952 = vld [vmem:[%s2578 + $0xba0] sm:%s2571]
                  %2953 = vst [vmem:[%s2579 + $0x2e8] sm:%s2571] %v2952
                  %v2954 = vld [vmem:[%s2578 + $0xbb0] sm:%s2571]
                  %2955 = vst [vmem:[%s2579 + $0x2ec] sm:%s2571] %v2954
                  %v2956 = vld [vmem:[%s2578 + $0xbc0] sm:%s2571]
                  %2957 = vst [vmem:[%s2579 + $0x2f0] sm:%s2571] %v2956
                  %v2958 = vld [vmem:[%s2578 + $0xbd0] sm:%s2571]
                  %2959 = vst [vmem:[%s2579 + $0x2f4] sm:%s2571] %v2958
                  %v2960 = vld [vmem:[%s2578 + $0xbe0] sm:%s2571]
                  %2961 = vst [vmem:[%s2579 + $0x2f8] sm:%s2571] %v2960
                  %v2962 = vld [vmem:[%s2578 + $0xbf0] sm:%s2571]
                  %2963 = vst [vmem:[%s2579 + $0x2fc] sm:%s2571] %v2962
                  %v2964 = vld [vmem:[%s2578 + $0xc00] sm:%s2571]
                  %2965 = vst [vmem:[%s2579 + $0x300] sm:%s2571] %v2964
                  %v2966 = vld [vmem:[%s2578 + $0xc10] sm:%s2571]
                  %2967 = vst [vmem:[%s2579 + $0x304] sm:%s2571] %v2966
                  %v2968 = vld [vmem:[%s2578 + $0xc20] sm:%s2571]
                  %2969 = vst [vmem:[%s2579 + $0x308] sm:%s2571] %v2968
                  %v2970 = vld [vmem:[%s2578 + $0xc30] sm:%s2571]
                  %2971 = vst [vmem:[%s2579 + $0x30c] sm:%s2571] %v2970
                  %v2972 = vld [vmem:[%s2578 + $0xc40] sm:%s2571]
                  %2973 = vst [vmem:[%s2579 + $0x310] sm:%s2571] %v2972
                  %v2974 = vld [vmem:[%s2578 + $0xc50] sm:%s2571]
                  %2975 = vst [vmem:[%s2579 + $0x314] sm:%s2571] %v2974
                  %v2976 = vld [vmem:[%s2578 + $0xc60] sm:%s2571]
                  %2977 = vst [vmem:[%s2579 + $0x318] sm:%s2571] %v2976
                  %v2978 = vld [vmem:[%s2578 + $0xc70] sm:%s2571]
                  %2979 = vst [vmem:[%s2579 + $0x31c] sm:%s2571] %v2978
                  %v2980 = vld [vmem:[%s2578 + $0xc80] sm:%s2571]
                  %2981 = vst [vmem:[%s2579 + $0x320] sm:%s2571] %v2980
                  %v2982 = vld [vmem:[%s2578 + $0xc90] sm:%s2571]
                  %2983 = vst [vmem:[%s2579 + $0x324] sm:%s2571] %v2982
                  %v2984 = vld [vmem:[%s2578 + $0xca0] sm:%s2571]
                  %2985 = vst [vmem:[%s2579 + $0x328] sm:%s2571] %v2984
                  %v2986 = vld [vmem:[%s2578 + $0xcb0] sm:%s2571]
                  %2987 = vst [vmem:[%s2579 + $0x32c] sm:%s2571] %v2986
                  %v2988 = vld [vmem:[%s2578 + $0xcc0] sm:%s2571]
                  %2989 = vst [vmem:[%s2579 + $0x330] sm:%s2571] %v2988
                  %v2990 = vld [vmem:[%s2578 + $0xcd0] sm:%s2571]
                  %2991 = vst [vmem:[%s2579 + $0x334] sm:%s2571] %v2990
                  %v2992 = vld [vmem:[%s2578 + $0xce0] sm:%s2571]
                  %2993 = vst [vmem:[%s2579 + $0x338] sm:%s2571] %v2992
                  %v2994 = vld [vmem:[%s2578 + $0xcf0] sm:%s2571]
                  %2995 = vst [vmem:[%s2579 + $0x33c] sm:%s2571] %v2994
                  %v2996 = vld [vmem:[%s2578 + $0xd00] sm:%s2571]
                  %2997 = vst [vmem:[%s2579 + $0x340] sm:%s2571] %v2996
                  %v2998 = vld [vmem:[%s2578 + $0xd10] sm:%s2571]
                  %2999 = vst [vmem:[%s2579 + $0x344] sm:%s2571] %v2998
                  %v3000 = vld [vmem:[%s2578 + $0xd20] sm:%s2571]
                  %3001 = vst [vmem:[%s2579 + $0x348] sm:%s2571] %v3000
                  %v3002 = vld [vmem:[%s2578 + $0xd30] sm:%s2571]
                  %3003 = vst [vmem:[%s2579 + $0x34c] sm:%s2571] %v3002
                  %v3004 = vld [vmem:[%s2578 + $0xd40] sm:%s2571]
                  %3005 = vst [vmem:[%s2579 + $0x350] sm:%s2571] %v3004
                  %v3006 = vld [vmem:[%s2578 + $0xd50] sm:%s2571]
                  %3007 = vst [vmem:[%s2579 + $0x354] sm:%s2571] %v3006
                  %v3008 = vld [vmem:[%s2578 + $0xd60] sm:%s2571]
                  %3009 = vst [vmem:[%s2579 + $0x358] sm:%s2571] %v3008
                  %v3010 = vld [vmem:[%s2578 + $0xd70] sm:%s2571]
                  %3011 = vst [vmem:[%s2579 + $0x35c] sm:%s2571] %v3010
                  %v3012 = vld [vmem:[%s2578 + $0xd80] sm:%s2571]
                  %3013 = vst [vmem:[%s2579 + $0x360] sm:%s2571] %v3012
                  %v3014 = vld [vmem:[%s2578 + $0xd90] sm:%s2571]
                  %3015 = vst [vmem:[%s2579 + $0x364] sm:%s2571] %v3014
                  %v3016 = vld [vmem:[%s2578 + $0xda0] sm:%s2571]
                  %3017 = vst [vmem:[%s2579 + $0x368] sm:%s2571] %v3016
                  %v3018 = vld [vmem:[%s2578 + $0xdb0] sm:%s2571]
                  %3019 = vst [vmem:[%s2579 + $0x36c] sm:%s2571] %v3018
                  %v3020 = vld [vmem:[%s2578 + $0xdc0] sm:%s2571]
                  %3021 = vst [vmem:[%s2579 + $0x370] sm:%s2571] %v3020
                  %v3022 = vld [vmem:[%s2578 + $0xdd0] sm:%s2571]
                  %3023 = vst [vmem:[%s2579 + $0x374] sm:%s2571] %v3022
                  %v3024 = vld [vmem:[%s2578 + $0xde0] sm:%s2571]
                  %3025 = vst [vmem:[%s2579 + $0x378] sm:%s2571] %v3024
                  %v3026 = vld [vmem:[%s2578 + $0xdf0] sm:%s2571]
                  %3027 = vst [vmem:[%s2579 + $0x37c] sm:%s2571] %v3026
                  %v3028 = vld [vmem:[%s2578 + $0xe00] sm:%s2571]
                  %3029 = vst [vmem:[%s2579 + $0x380] sm:%s2571] %v3028
                  %v3030 = vld [vmem:[%s2578 + $0xe10] sm:%s2571]
                  %3031 = vst [vmem:[%s2579 + $0x384] sm:%s2571] %v3030
                  %v3032 = vld [vmem:[%s2578 + $0xe20] sm:%s2571]
                  %3033 = vst [vmem:[%s2579 + $0x388] sm:%s2571] %v3032
                  %v3034 = vld [vmem:[%s2578 + $0xe30] sm:%s2571]
                  %3035 = vst [vmem:[%s2579 + $0x38c] sm:%s2571] %v3034
                  %v3036 = vld [vmem:[%s2578 + $0xe40] sm:%s2571]
                  %3037 = vst [vmem:[%s2579 + $0x390] sm:%s2571] %v3036
                  %v3038 = vld [vmem:[%s2578 + $0xe50] sm:%s2571]
                  %3039 = vst [vmem:[%s2579 + $0x394] sm:%s2571] %v3038
                  %v3040 = vld [vmem:[%s2578 + $0xe60] sm:%s2571]
                  %3041 = vst [vmem:[%s2579 + $0x398] sm:%s2571] %v3040
                  %v3042 = vld [vmem:[%s2578 + $0xe70] sm:%s2571]
                  %3043 = vst [vmem:[%s2579 + $0x39c] sm:%s2571] %v3042
                  %v3044 = vld [vmem:[%s2578 + $0xe80] sm:%s2571]
                  %3045 = vst [vmem:[%s2579 + $0x3a0] sm:%s2571] %v3044
                  %v3046 = vld [vmem:[%s2578 + $0xe90] sm:%s2571]
                  %3047 = vst [vmem:[%s2579 + $0x3a4] sm:%s2571] %v3046
                  %v3048 = vld [vmem:[%s2578 + $0xea0] sm:%s2571]
                  %3049 = vst [vmem:[%s2579 + $0x3a8] sm:%s2571] %v3048
                  %v3050 = vld [vmem:[%s2578 + $0xeb0] sm:%s2571]
                  %3051 = vst [vmem:[%s2579 + $0x3ac] sm:%s2571] %v3050
                  %v3052 = vld [vmem:[%s2578 + $0xec0] sm:%s2571]
                  %3053 = vst [vmem:[%s2579 + $0x3b0] sm:%s2571] %v3052
                  %v3054 = vld [vmem:[%s2578 + $0xed0] sm:%s2571]
                  %3055 = vst [vmem:[%s2579 + $0x3b4] sm:%s2571] %v3054
                  %v3056 = vld [vmem:[%s2578 + $0xee0] sm:%s2571]
                  %3057 = vst [vmem:[%s2579 + $0x3b8] sm:%s2571] %v3056
                  %v3058 = vld [vmem:[%s2578 + $0xef0] sm:%s2571]
                  %3059 = vst [vmem:[%s2579 + $0x3bc] sm:%s2571] %v3058
                  %v3060 = vld [vmem:[%s2578 + $0xf00] sm:%s2571]
                  %3061 = vst [vmem:[%s2579 + $0x3c0] sm:%s2571] %v3060
                  %v3062 = vld [vmem:[%s2578 + $0xf10] sm:%s2571]
                  %3063 = vst [vmem:[%s2579 + $0x3c4] sm:%s2571] %v3062
                  %v3064 = vld [vmem:[%s2578 + $0xf20] sm:%s2571]
                  %3065 = vst [vmem:[%s2579 + $0x3c8] sm:%s2571] %v3064
                  %v3066 = vld [vmem:[%s2578 + $0xf30] sm:%s2571]
                  %3067 = vst [vmem:[%s2579 + $0x3cc] sm:%s2571] %v3066
                  %v3068 = vld [vmem:[%s2578 + $0xf40] sm:%s2571]
                  %3069 = vst [vmem:[%s2579 + $0x3d0] sm:%s2571] %v3068
                  %v3070 = vld [vmem:[%s2578 + $0xf50] sm:%s2571]
                  %3071 = vst [vmem:[%s2579 + $0x3d4] sm:%s2571] %v3070
                  %v3072 = vld [vmem:[%s2578 + $0xf60] sm:%s2571]
                  %3073 = vst [vmem:[%s2579 + $0x3d8] sm:%s2571] %v3072
                  %v3074 = vld [vmem:[%s2578 + $0xf70] sm:%s2571]
                  %3075 = vst [vmem:[%s2579 + $0x3dc] sm:%s2571] %v3074
                  %v3076 = vld [vmem:[%s2578 + $0xf80] sm:%s2571]
                  %3077 = vst [vmem:[%s2579 + $0x3e0] sm:%s2571] %v3076
                  %v3078 = vld [vmem:[%s2578 + $0xf90] sm:%s2571]
                  %3079 = vst [vmem:[%s2579 + $0x3e4] sm:%s2571] %v3078
                  %v3080 = vld [vmem:[%s2578 + $0xfa0] sm:%s2571]
                  %3081 = vst [vmem:[%s2579 + $0x3e8] sm:%s2571] %v3080
                  %v3082 = vld [vmem:[%s2578 + $0xfb0] sm:%s2571]
                  %3083 = vst [vmem:[%s2579 + $0x3ec] sm:%s2571] %v3082
                  %v3084 = vld [vmem:[%s2578 + $0xfc0] sm:%s2571]
                  %3085 = vst [vmem:[%s2579 + $0x3f0] sm:%s2571] %v3084
                  %v3086 = vld [vmem:[%s2578 + $0xfd0] sm:%s2571]
                  %3087 = vst [vmem:[%s2579 + $0x3f4] sm:%s2571] %v3086
                  %v3088 = vld [vmem:[%s2578 + $0xfe0] sm:%s2571]
                  %3089 = vst [vmem:[%s2579 + $0x3f8] sm:%s2571] %v3088
                  %v3090 = vld [vmem:[%s2578 + $0xff0] sm:%s2571]
                  %3091 = vst [vmem:[%s2579 + $0x3fc] sm:%s2571] %v3090
                  %v3092 = vld [vmem:[%s2578 + $0x1000] sm:%s2571]
                  %3093 = vst [vmem:[%s2579 + $0x400] sm:%s2571] %v3092
                  %v3094 = vld [vmem:[%s2578 + $0x1010] sm:%s2571]
                  %3095 = vst [vmem:[%s2579 + $0x404] sm:%s2571] %v3094
                  %v3096 = vld [vmem:[%s2578 + $0x1020] sm:%s2571]
                  %3097 = vst [vmem:[%s2579 + $0x408] sm:%s2571] %v3096
                  %v3098 = vld [vmem:[%s2578 + $0x1030] sm:%s2571]
                  %3099 = vst [vmem:[%s2579 + $0x40c] sm:%s2571] %v3098
                  %v3100 = vld [vmem:[%s2578 + $0x1040] sm:%s2571]
                  %3101 = vst [vmem:[%s2579 + $0x410] sm:%s2571] %v3100
                  %v3102 = vld [vmem:[%s2578 + $0x1050] sm:%s2571]
                  %3103 = vst [vmem:[%s2579 + $0x414] sm:%s2571] %v3102
                  %v3104 = vld [vmem:[%s2578 + $0x1060] sm:%s2571]
                  %3105 = vst [vmem:[%s2579 + $0x418] sm:%s2571] %v3104
                  %v3106 = vld [vmem:[%s2578 + $0x1070] sm:%s2571]
                  %3107 = vst [vmem:[%s2579 + $0x41c] sm:%s2571] %v3106
                  %v3108 = vld [vmem:[%s2578 + $0x1080] sm:%s2571]
                  %3109 = vst [vmem:[%s2579 + $0x420] sm:%s2571] %v3108
                  %v3110 = vld [vmem:[%s2578 + $0x1090] sm:%s2571]
                  %3111 = vst [vmem:[%s2579 + $0x424] sm:%s2571] %v3110
                  %v3112 = vld [vmem:[%s2578 + $0x10a0] sm:%s2571]
                  %3113 = vst [vmem:[%s2579 + $0x428] sm:%s2571] %v3112
                  %v3114 = vld [vmem:[%s2578 + $0x10b0] sm:%s2571]
                  %3115 = vst [vmem:[%s2579 + $0x42c] sm:%s2571] %v3114
                  %v3116 = vld [vmem:[%s2578 + $0x10c0] sm:%s2571]
                  %3117 = vst [vmem:[%s2579 + $0x430] sm:%s2571] %v3116
                  %v3118 = vld [vmem:[%s2578 + $0x10d0] sm:%s2571]
                  %3119 = vst [vmem:[%s2579 + $0x434] sm:%s2571] %v3118
                  %v3120 = vld [vmem:[%s2578 + $0x10e0] sm:%s2571]
                  %3121 = vst [vmem:[%s2579 + $0x438] sm:%s2571] %v3120
                  %v3122 = vld [vmem:[%s2578 + $0x10f0] sm:%s2571]
                  %3123 = vst [vmem:[%s2579 + $0x43c] sm:%s2571] %v3122
                  %v3124 = vld [vmem:[%s2578 + $0x1100] sm:%s2571]
                  %3125 = vst [vmem:[%s2579 + $0x440] sm:%s2571] %v3124
                  %v3126 = vld [vmem:[%s2578 + $0x1110] sm:%s2571]
                  %3127 = vst [vmem:[%s2579 + $0x444] sm:%s2571] %v3126
                  %v3128 = vld [vmem:[%s2578 + $0x1120] sm:%s2571]
                  %3129 = vst [vmem:[%s2579 + $0x448] sm:%s2571] %v3128
                  %v3130 = vld [vmem:[%s2578 + $0x1130] sm:%s2571]
                  %3131 = vst [vmem:[%s2579 + $0x44c] sm:%s2571] %v3130
                  %v3132 = vld [vmem:[%s2578 + $0x1140] sm:%s2571]
                  %3133 = vst [vmem:[%s2579 + $0x450] sm:%s2571] %v3132
                  %v3134 = vld [vmem:[%s2578 + $0x1150] sm:%s2571]
                  %3135 = vst [vmem:[%s2579 + $0x454] sm:%s2571] %v3134
                  %v3136 = vld [vmem:[%s2578 + $0x1160] sm:%s2571]
                  %3137 = vst [vmem:[%s2579 + $0x458] sm:%s2571] %v3136
                  %v3138 = vld [vmem:[%s2578 + $0x1170] sm:%s2571]
                  %3139 = vst [vmem:[%s2579 + $0x45c] sm:%s2571] %v3138
                  %v3140 = vld [vmem:[%s2578 + $0x1180] sm:%s2571]
                  %3141 = vst [vmem:[%s2579 + $0x460] sm:%s2571] %v3140
                  %v3142 = vld [vmem:[%s2578 + $0x1190] sm:%s2571]
                  %3143 = vst [vmem:[%s2579 + $0x464] sm:%s2571] %v3142
                  %v3144 = vld [vmem:[%s2578 + $0x11a0] sm:%s2571]
                  %3145 = vst [vmem:[%s2579 + $0x468] sm:%s2571] %v3144
                  %v3146 = vld [vmem:[%s2578 + $0x11b0] sm:%s2571]
                  %3147 = vst [vmem:[%s2579 + $0x46c] sm:%s2571] %v3146
                  %v3148 = vld [vmem:[%s2578 + $0x11c0] sm:%s2571]
                  %3149 = vst [vmem:[%s2579 + $0x470] sm:%s2571] %v3148
                  %v3150 = vld [vmem:[%s2578 + $0x11d0] sm:%s2571]
                  %3151 = vst [vmem:[%s2579 + $0x474] sm:%s2571] %v3150
                  %v3152 = vld [vmem:[%s2578 + $0x11e0] sm:%s2571]
                  %3153 = vst [vmem:[%s2579 + $0x478] sm:%s2571] %v3152
                  %v3154 = vld [vmem:[%s2578 + $0x11f0] sm:%s2571]
                  %3155 = vst [vmem:[%s2579 + $0x47c] sm:%s2571] %v3154
                  %v3156 = vld [vmem:[%s2578 + $0x1200] sm:%s2571]
                  %3157 = vst [vmem:[%s2579 + $0x480] sm:%s2571] %v3156
                  %v3158 = vld [vmem:[%s2578 + $0x1210] sm:%s2571]
                  %3159 = vst [vmem:[%s2579 + $0x484] sm:%s2571] %v3158
                  %v3160 = vld [vmem:[%s2578 + $0x1220] sm:%s2571]
                  %3161 = vst [vmem:[%s2579 + $0x488] sm:%s2571] %v3160
                  %v3162 = vld [vmem:[%s2578 + $0x1230] sm:%s2571]
                  %3163 = vst [vmem:[%s2579 + $0x48c] sm:%s2571] %v3162
                  %v3164 = vld [vmem:[%s2578 + $0x1240] sm:%s2571]
                  %3165 = vst [vmem:[%s2579 + $0x490] sm:%s2571] %v3164
                  %v3166 = vld [vmem:[%s2578 + $0x1250] sm:%s2571]
                  %3167 = vst [vmem:[%s2579 + $0x494] sm:%s2571] %v3166
                  %v3168 = vld [vmem:[%s2578 + $0x1260] sm:%s2571]
                  %3169 = vst [vmem:[%s2579 + $0x498] sm:%s2571] %v3168
                  %v3170 = vld [vmem:[%s2578 + $0x1270] sm:%s2571]
                  %3171 = vst [vmem:[%s2579 + $0x49c] sm:%s2571] %v3170
                  %v3172 = vld [vmem:[%s2578 + $0x1280] sm:%s2571]
                  %3173 = vst [vmem:[%s2579 + $0x4a0] sm:%s2571] %v3172
                  %v3174 = vld [vmem:[%s2578 + $0x1290] sm:%s2571]
                  %3175 = vst [vmem:[%s2579 + $0x4a4] sm:%s2571] %v3174
                  %v3176 = vld [vmem:[%s2578 + $0x12a0] sm:%s2571]
                  %3177 = vst [vmem:[%s2579 + $0x4a8] sm:%s2571] %v3176
                  %v3178 = vld [vmem:[%s2578 + $0x12b0] sm:%s2571]
                  %3179 = vst [vmem:[%s2579 + $0x4ac] sm:%s2571] %v3178
                  %v3180 = vld [vmem:[%s2578 + $0x12c0] sm:%s2571]
                  %3181 = vst [vmem:[%s2579 + $0x4b0] sm:%s2571] %v3180
                  %v3182 = vld [vmem:[%s2578 + $0x12d0] sm:%s2571]
                  %3183 = vst [vmem:[%s2579 + $0x4b4] sm:%s2571] %v3182
                  %v3184 = vld [vmem:[%s2578 + $0x12e0] sm:%s2571]
                  %3185 = vst [vmem:[%s2579 + $0x4b8] sm:%s2571] %v3184
                  %v3186 = vld [vmem:[%s2578 + $0x12f0] sm:%s2571]
                  %3187 = vst [vmem:[%s2579 + $0x4bc] sm:%s2571] %v3186
                  %v3188 = vld [vmem:[%s2578 + $0x1300] sm:%s2571]
                  %3189 = vst [vmem:[%s2579 + $0x4c0] sm:%s2571] %v3188
                  %v3190 = vld [vmem:[%s2578 + $0x1310] sm:%s2571]
                  %3191 = vst [vmem:[%s2579 + $0x4c4] sm:%s2571] %v3190
                  %v3192 = vld [vmem:[%s2578 + $0x1320] sm:%s2571]
                  %3193 = vst [vmem:[%s2579 + $0x4c8] sm:%s2571] %v3192
                  %v3194 = vld [vmem:[%s2578 + $0x1330] sm:%s2571]
                  %3195 = vst [vmem:[%s2579 + $0x4cc] sm:%s2571] %v3194
                  %v3196 = vld [vmem:[%s2578 + $0x1340] sm:%s2571]
                  %3197 = vst [vmem:[%s2579 + $0x4d0] sm:%s2571] %v3196
                  %v3198 = vld [vmem:[%s2578 + $0x1350] sm:%s2571]
                  %3199 = vst [vmem:[%s2579 + $0x4d4] sm:%s2571] %v3198
                  %v3200 = vld [vmem:[%s2578 + $0x1360] sm:%s2571]
                  %3201 = vst [vmem:[%s2579 + $0x4d8] sm:%s2571] %v3200
                  %v3202 = vld [vmem:[%s2578 + $0x1370] sm:%s2571]
                  %3203 = vst [vmem:[%s2579 + $0x4dc] sm:%s2571] %v3202
                  %v3204 = vld [vmem:[%s2578 + $0x1380] sm:%s2571]
                  %3205 = vst [vmem:[%s2579 + $0x4e0] sm:%s2571] %v3204
                  %v3206 = vld [vmem:[%s2578 + $0x1390] sm:%s2571]
                  %3207 = vst [vmem:[%s2579 + $0x4e4] sm:%s2571] %v3206
                  %v3208 = vld [vmem:[%s2578 + $0x13a0] sm:%s2571]
                  %3209 = vst [vmem:[%s2579 + $0x4e8] sm:%s2571] %v3208
                  %v3210 = vld [vmem:[%s2578 + $0x13b0] sm:%s2571]
                  %3211 = vst [vmem:[%s2579 + $0x4ec] sm:%s2571] %v3210
                  %v3212 = vld [vmem:[%s2578 + $0x13c0] sm:%s2571]
                  %3213 = vst [vmem:[%s2579 + $0x4f0] sm:%s2571] %v3212
                  %v3214 = vld [vmem:[%s2578 + $0x13d0] sm:%s2571]
                  %3215 = vst [vmem:[%s2579 + $0x4f4] sm:%s2571] %v3214
                  %v3216 = vld [vmem:[%s2578 + $0x13e0] sm:%s2571]
                  %3217 = vst [vmem:[%s2579 + $0x4f8] sm:%s2571] %v3216
                  %v3218 = vld [vmem:[%s2578 + $0x13f0] sm:%s2571]
                  %3219 = vst [vmem:[%s2579 + $0x4fc] sm:%s2571] %v3218
                  %v3220 = vld [vmem:[%s2578 + $0x1400] sm:%s2571]
                  %3221 = vst [vmem:[%s2579 + $0x500] sm:%s2571] %v3220
                  %v3222 = vld [vmem:[%s2578 + $0x1410] sm:%s2571]
                  %3223 = vst [vmem:[%s2579 + $0x504] sm:%s2571] %v3222
                  %v3224 = vld [vmem:[%s2578 + $0x1420] sm:%s2571]
                  %3225 = vst [vmem:[%s2579 + $0x508] sm:%s2571] %v3224
                  %v3226 = vld [vmem:[%s2578 + $0x1430] sm:%s2571]
                  %3227 = vst [vmem:[%s2579 + $0x50c] sm:%s2571] %v3226
                  %v3228 = vld [vmem:[%s2578 + $0x1440] sm:%s2571]
                  %3229 = vst [vmem:[%s2579 + $0x510] sm:%s2571] %v3228
                  %v3230 = vld [vmem:[%s2578 + $0x1450] sm:%s2571]
                  %3231 = vst [vmem:[%s2579 + $0x514] sm:%s2571] %v3230
                  %v3232 = vld [vmem:[%s2578 + $0x1460] sm:%s2571]
                  %3233 = vst [vmem:[%s2579 + $0x518] sm:%s2571] %v3232
                  %v3234 = vld [vmem:[%s2578 + $0x1470] sm:%s2571]
                  %3235 = vst [vmem:[%s2579 + $0x51c] sm:%s2571] %v3234
                  %v3236 = vld [vmem:[%s2578 + $0x1480] sm:%s2571]
                  %3237 = vst [vmem:[%s2579 + $0x520] sm:%s2571] %v3236
                  %v3238 = vld [vmem:[%s2578 + $0x1490] sm:%s2571]
                  %3239 = vst [vmem:[%s2579 + $0x524] sm:%s2571] %v3238
                  %v3240 = vld [vmem:[%s2578 + $0x14a0] sm:%s2571]
                  %3241 = vst [vmem:[%s2579 + $0x528] sm:%s2571] %v3240
                  %v3242 = vld [vmem:[%s2578 + $0x14b0] sm:%s2571]
                  %3243 = vst [vmem:[%s2579 + $0x52c] sm:%s2571] %v3242
                  %v3244 = vld [vmem:[%s2578 + $0x14c0] sm:%s2571]
                  %3245 = vst [vmem:[%s2579 + $0x530] sm:%s2571] %v3244
                  %v3246 = vld [vmem:[%s2578 + $0x14d0] sm:%s2571]
                  %3247 = vst [vmem:[%s2579 + $0x534] sm:%s2571] %v3246
                  %v3248 = vld [vmem:[%s2578 + $0x14e0] sm:%s2571]
                  %3249 = vst [vmem:[%s2579 + $0x538] sm:%s2571] %v3248
                  %v3250 = vld [vmem:[%s2578 + $0x14f0] sm:%s2571]
                  %3251 = vst [vmem:[%s2579 + $0x53c] sm:%s2571] %v3250
                  %v3252 = vld [vmem:[%s2578 + $0x1500] sm:%s2571]
                  %3253 = vst [vmem:[%s2579 + $0x540] sm:%s2571] %v3252
                  %v3254 = vld [vmem:[%s2578 + $0x1510] sm:%s2571]
                  %3255 = vst [vmem:[%s2579 + $0x544] sm:%s2571] %v3254
                  %v3256 = vld [vmem:[%s2578 + $0x1520] sm:%s2571]
                  %3257 = vst [vmem:[%s2579 + $0x548] sm:%s2571] %v3256
                  %v3258 = vld [vmem:[%s2578 + $0x1530] sm:%s2571]
                  %3259 = vst [vmem:[%s2579 + $0x54c] sm:%s2571] %v3258
                  %v3260 = vld [vmem:[%s2578 + $0x1540] sm:%s2571]
                  %3261 = vst [vmem:[%s2579 + $0x550] sm:%s2571] %v3260
                  %v3262 = vld [vmem:[%s2578 + $0x1550] sm:%s2571]
                  %3263 = vst [vmem:[%s2579 + $0x554] sm:%s2571] %v3262
                  %v3264 = vld [vmem:[%s2578 + $0x1560] sm:%s2571]
                  %3265 = vst [vmem:[%s2579 + $0x558] sm:%s2571] %v3264
                  %v3266 = vld [vmem:[%s2578 + $0x1570] sm:%s2571]
                  %3267 = vst [vmem:[%s2579 + $0x55c] sm:%s2571] %v3266
                  %v3268 = vld [vmem:[%s2578 + $0x1580] sm:%s2571]
                  %3269 = vst [vmem:[%s2579 + $0x560] sm:%s2571] %v3268
                  %v3270 = vld [vmem:[%s2578 + $0x1590] sm:%s2571]
                  %3271 = vst [vmem:[%s2579 + $0x564] sm:%s2571] %v3270
                  %v3272 = vld [vmem:[%s2578 + $0x15a0] sm:%s2571]
                  %3273 = vst [vmem:[%s2579 + $0x568] sm:%s2571] %v3272
                  %v3274 = vld [vmem:[%s2578 + $0x15b0] sm:%s2571]
                  %3275 = vst [vmem:[%s2579 + $0x56c] sm:%s2571] %v3274
                  %v3276 = vld [vmem:[%s2578 + $0x15c0] sm:%s2571]
                  %3277 = vst [vmem:[%s2579 + $0x570] sm:%s2571] %v3276
                  %v3278 = vld [vmem:[%s2578 + $0x15d0] sm:%s2571]
                  %3279 = vst [vmem:[%s2579 + $0x574] sm:%s2571] %v3278
                  %v3280 = vld [vmem:[%s2578 + $0x15e0] sm:%s2571]
                  %3281 = vst [vmem:[%s2579 + $0x578] sm:%s2571] %v3280
                  %v3282 = vld [vmem:[%s2578 + $0x15f0] sm:%s2571]
                  %3283 = vst [vmem:[%s2579 + $0x57c] sm:%s2571] %v3282
                  %v3284 = vld [vmem:[%s2578 + $0x1600] sm:%s2571]
                  %3285 = vst [vmem:[%s2579 + $0x580] sm:%s2571] %v3284
                  %v3286 = vld [vmem:[%s2578 + $0x1610] sm:%s2571]
                  %3287 = vst [vmem:[%s2579 + $0x584] sm:%s2571] %v3286
                  %v3288 = vld [vmem:[%s2578 + $0x1620] sm:%s2571]
                  %3289 = vst [vmem:[%s2579 + $0x588] sm:%s2571] %v3288
                  %v3290 = vld [vmem:[%s2578 + $0x1630] sm:%s2571]
                  %3291 = vst [vmem:[%s2579 + $0x58c] sm:%s2571] %v3290
                  %v3292 = vld [vmem:[%s2578 + $0x1640] sm:%s2571]
                  %3293 = vst [vmem:[%s2579 + $0x590] sm:%s2571] %v3292
                  %v3294 = vld [vmem:[%s2578 + $0x1650] sm:%s2571]
                  %3295 = vst [vmem:[%s2579 + $0x594] sm:%s2571] %v3294
                  %v3296 = vld [vmem:[%s2578 + $0x1660] sm:%s2571]
                  %3297 = vst [vmem:[%s2579 + $0x598] sm:%s2571] %v3296
                  %v3298 = vld [vmem:[%s2578 + $0x1670] sm:%s2571]
                  %3299 = vst [vmem:[%s2579 + $0x59c] sm:%s2571] %v3298
                  %v3300 = vld [vmem:[%s2578 + $0x1680] sm:%s2571]
                  %3301 = vst [vmem:[%s2579 + $0x5a0] sm:%s2571] %v3300
                  %v3302 = vld [vmem:[%s2578 + $0x1690] sm:%s2571]
                  %3303 = vst [vmem:[%s2579 + $0x5a4] sm:%s2571] %v3302
                  %v3304 = vld [vmem:[%s2578 + $0x16a0] sm:%s2571]
                  %3305 = vst [vmem:[%s2579 + $0x5a8] sm:%s2571] %v3304
                  %v3306 = vld [vmem:[%s2578 + $0x16b0] sm:%s2571]
                  %3307 = vst [vmem:[%s2579 + $0x5ac] sm:%s2571] %v3306
                  %v3308 = vld [vmem:[%s2578 + $0x16c0] sm:%s2571]
                  %3309 = vst [vmem:[%s2579 + $0x5b0] sm:%s2571] %v3308
                  %v3310 = vld [vmem:[%s2578 + $0x16d0] sm:%s2571]
                  %3311 = vst [vmem:[%s2579 + $0x5b4] sm:%s2571] %v3310
                  %v3312 = vld [vmem:[%s2578 + $0x16e0] sm:%s2571]
                  %3313 = vst [vmem:[%s2579 + $0x5b8] sm:%s2571] %v3312
                  %v3314 = vld [vmem:[%s2578 + $0x16f0] sm:%s2571]
                  %3315 = vst [vmem:[%s2579 + $0x5bc] sm:%s2571] %v3314
                  %v3316 = vld [vmem:[%s2578 + $0x1700] sm:%s2571]
                  %3317 = vst [vmem:[%s2579 + $0x5c0] sm:%s2571] %v3316
                  %v3318 = vld [vmem:[%s2578 + $0x1710] sm:%s2571]
                  %3319 = vst [vmem:[%s2579 + $0x5c4] sm:%s2571] %v3318
                  %v3320 = vld [vmem:[%s2578 + $0x1720] sm:%s2571]
                  %3321 = vst [vmem:[%s2579 + $0x5c8] sm:%s2571] %v3320
                  %v3322 = vld [vmem:[%s2578 + $0x1730] sm:%s2571]
                  %3323 = vst [vmem:[%s2579 + $0x5cc] sm:%s2571] %v3322
                  %v3324 = vld [vmem:[%s2578 + $0x1740] sm:%s2571]
                  %3325 = vst [vmem:[%s2579 + $0x5d0] sm:%s2571] %v3324
                  %v3326 = vld [vmem:[%s2578 + $0x1750] sm:%s2571]
                  %3327 = vst [vmem:[%s2579 + $0x5d4] sm:%s2571] %v3326
                  %v3328 = vld [vmem:[%s2578 + $0x1760] sm:%s2571]
                  %3329 = vst [vmem:[%s2579 + $0x5d8] sm:%s2571] %v3328
                  %v3330 = vld [vmem:[%s2578 + $0x1770] sm:%s2571]
                  %3331 = vst [vmem:[%s2579 + $0x5dc] sm:%s2571] %v3330
                  %v3332 = vld [vmem:[%s2578 + $0x1780] sm:%s2571]
                  %3333 = vst [vmem:[%s2579 + $0x5e0] sm:%s2571] %v3332
                  %v3334 = vld [vmem:[%s2578 + $0x1790] sm:%s2571]
                  %3335 = vst [vmem:[%s2579 + $0x5e4] sm:%s2571] %v3334
                  %v3336 = vld [vmem:[%s2578 + $0x17a0] sm:%s2571]
                  %3337 = vst [vmem:[%s2579 + $0x5e8] sm:%s2571] %v3336
                  %v3338 = vld [vmem:[%s2578 + $0x17b0] sm:%s2571]
                  %3339 = vst [vmem:[%s2579 + $0x5ec] sm:%s2571] %v3338
                  %v3340 = vld [vmem:[%s2578 + $0x17c0] sm:%s2571]
                  %3341 = vst [vmem:[%s2579 + $0x5f0] sm:%s2571] %v3340
                  %v3342 = vld [vmem:[%s2578 + $0x17d0] sm:%s2571]
                  %3343 = vst [vmem:[%s2579 + $0x5f4] sm:%s2571] %v3342
                  %v3344 = vld [vmem:[%s2578 + $0x17e0] sm:%s2571]
                  %3345 = vst [vmem:[%s2579 + $0x5f8] sm:%s2571] %v3344
                  %v3346 = vld [vmem:[%s2578 + $0x17f0] sm:%s2571]
                  %3347 = vst [vmem:[%s2579 + $0x5fc] sm:%s2571] %v3346
                  %v3348 = vld [vmem:[%s2578 + $0x1800] sm:%s2571]
                  %3349 = vst [vmem:[%s2579 + $0x600] sm:%s2571] %v3348
                  %v3350 = vld [vmem:[%s2578 + $0x1810] sm:%s2571]
                  %3351 = vst [vmem:[%s2579 + $0x604] sm:%s2571] %v3350
                  %v3352 = vld [vmem:[%s2578 + $0x1820] sm:%s2571]
                  %3353 = vst [vmem:[%s2579 + $0x608] sm:%s2571] %v3352
                  %v3354 = vld [vmem:[%s2578 + $0x1830] sm:%s2571]
                  %3355 = vst [vmem:[%s2579 + $0x60c] sm:%s2571] %v3354
                  %v3356 = vld [vmem:[%s2578 + $0x1840] sm:%s2571]
                  %3357 = vst [vmem:[%s2579 + $0x610] sm:%s2571] %v3356
                  %v3358 = vld [vmem:[%s2578 + $0x1850] sm:%s2571]
                  %3359 = vst [vmem:[%s2579 + $0x614] sm:%s2571] %v3358
                  %v3360 = vld [vmem:[%s2578 + $0x1860] sm:%s2571]
                  %3361 = vst [vmem:[%s2579 + $0x618] sm:%s2571] %v3360
                  %v3362 = vld [vmem:[%s2578 + $0x1870] sm:%s2571]
                  %3363 = vst [vmem:[%s2579 + $0x61c] sm:%s2571] %v3362
                $region70: #{dqn_forward.7} parent=57 // loop_footer
                  %s2577 = sadd.s32 1, %s2573
                $region71: #{dqn_forward.7} parent=57 // loop_footer_branch
                  %2572 = sbr.rel target = $region67
                $region72: #{dqn_forward.7} parent=57 // loop_exit
                  _
              $region58: #{dqn_forward.7} parent=31 // pred_fallthru
                _
            $region32: #{dqn_forward.7} parent=27 // pred_fallthru
              _
            // Predicated region
            $region33: #{dqn_forward.7} parent=27 // pred_check
              _
            $region34: #{dqn_forward.7} parent=27 // pred_check_branch
              %171 = sbr.rel (0) target = $region36
            $region35: #{dqn_forward.7} parent=27 // pred_region
              %s173 = ssub.s32 16, 1
              loop: start=0, step=1, limit=1
              $region37: #{dqn_forward.7} parent=35 // loop_pre_header
                _
              $region38: #{dqn_forward.7} parent=35 // loop_header
                %s175 = sphi 0, %s179
                %p176 = scmp.ge.s32.totalorder %s175, 1
                %s180 = sphi %s165, %s165
                %s181 = sphi %s163, %s163
              $region39: #{dqn_forward.7} parent=35 // loop_header_branch
                %178 = sbr.rel (%p176) target = $region43
              $region40: #{dqn_forward.7} parent=35 // loop_body
                %v182 = vld [vmem:[%s180] sm:%s173]
                %183 = vst [vmem:[%s181] sm:%s173] %v182
                %v184 = vld [vmem:[%s180 + $0x10] sm:%s173]
                %185 = vst [vmem:[%s181 + $0x4] sm:%s173] %v184
                %v186 = vld [vmem:[%s180 + $0x20] sm:%s173]
                %187 = vst [vmem:[%s181 + $0x8] sm:%s173] %v186
                %v188 = vld [vmem:[%s180 + $0x30] sm:%s173]
                %189 = vst [vmem:[%s181 + $0xc] sm:%s173] %v188
                %v190 = vld [vmem:[%s180 + $0x40] sm:%s173]
                %191 = vst [vmem:[%s181 + $0x10] sm:%s173] %v190
                %v192 = vld [vmem:[%s180 + $0x50] sm:%s173]
                %193 = vst [vmem:[%s181 + $0x14] sm:%s173] %v192
                %v194 = vld [vmem:[%s180 + $0x60] sm:%s173]
                %195 = vst [vmem:[%s181 + $0x18] sm:%s173] %v194
                %v196 = vld [vmem:[%s180 + $0x70] sm:%s173]
                %197 = vst [vmem:[%s181 + $0x1c] sm:%s173] %v196
                %v198 = vld [vmem:[%s180 + $0x80] sm:%s173]
                %199 = vst [vmem:[%s181 + $0x20] sm:%s173] %v198
                %v200 = vld [vmem:[%s180 + $0x90] sm:%s173]
                %201 = vst [vmem:[%s181 + $0x24] sm:%s173] %v200
                %v202 = vld [vmem:[%s180 + $0xa0] sm:%s173]
                %203 = vst [vmem:[%s181 + $0x28] sm:%s173] %v202
                %v204 = vld [vmem:[%s180 + $0xb0] sm:%s173]
                %205 = vst [vmem:[%s181 + $0x2c] sm:%s173] %v204
                %v206 = vld [vmem:[%s180 + $0xc0] sm:%s173]
                %207 = vst [vmem:[%s181 + $0x30] sm:%s173] %v206
                %v208 = vld [vmem:[%s180 + $0xd0] sm:%s173]
                %209 = vst [vmem:[%s181 + $0x34] sm:%s173] %v208
                %v210 = vld [vmem:[%s180 + $0xe0] sm:%s173]
                %211 = vst [vmem:[%s181 + $0x38] sm:%s173] %v210
                %v212 = vld [vmem:[%s180 + $0xf0] sm:%s173]
                %213 = vst [vmem:[%s181 + $0x3c] sm:%s173] %v212
                %v214 = vld [vmem:[%s180 + $0x100] sm:%s173]
                %215 = vst [vmem:[%s181 + $0x40] sm:%s173] %v214
                %v216 = vld [vmem:[%s180 + $0x110] sm:%s173]
                %217 = vst [vmem:[%s181 + $0x44] sm:%s173] %v216
                %v218 = vld [vmem:[%s180 + $0x120] sm:%s173]
                %219 = vst [vmem:[%s181 + $0x48] sm:%s173] %v218
                %v220 = vld [vmem:[%s180 + $0x130] sm:%s173]
                %221 = vst [vmem:[%s181 + $0x4c] sm:%s173] %v220
                %v222 = vld [vmem:[%s180 + $0x140] sm:%s173]
                %223 = vst [vmem:[%s181 + $0x50] sm:%s173] %v222
                %v224 = vld [vmem:[%s180 + $0x150] sm:%s173]
                %225 = vst [vmem:[%s181 + $0x54] sm:%s173] %v224
                %v226 = vld [vmem:[%s180 + $0x160] sm:%s173]
                %227 = vst [vmem:[%s181 + $0x58] sm:%s173] %v226
                %v228 = vld [vmem:[%s180 + $0x170] sm:%s173]
                %229 = vst [vmem:[%s181 + $0x5c] sm:%s173] %v228
                %v230 = vld [vmem:[%s180 + $0x180] sm:%s173]
                %231 = vst [vmem:[%s181 + $0x60] sm:%s173] %v230
                %v232 = vld [vmem:[%s180 + $0x190] sm:%s173]
                %233 = vst [vmem:[%s181 + $0x64] sm:%s173] %v232
                %v234 = vld [vmem:[%s180 + $0x1a0] sm:%s173]
                %235 = vst [vmem:[%s181 + $0x68] sm:%s173] %v234
                %v236 = vld [vmem:[%s180 + $0x1b0] sm:%s173]
                %237 = vst [vmem:[%s181 + $0x6c] sm:%s173] %v236
                %v238 = vld [vmem:[%s180 + $0x1c0] sm:%s173]
                %239 = vst [vmem:[%s181 + $0x70] sm:%s173] %v238
                %v240 = vld [vmem:[%s180 + $0x1d0] sm:%s173]
                %241 = vst [vmem:[%s181 + $0x74] sm:%s173] %v240
                %v242 = vld [vmem:[%s180 + $0x1e0] sm:%s173]
                %243 = vst [vmem:[%s181 + $0x78] sm:%s173] %v242
                %v244 = vld [vmem:[%s180 + $0x1f0] sm:%s173]
                %245 = vst [vmem:[%s181 + $0x7c] sm:%s173] %v244
                %v246 = vld [vmem:[%s180 + $0x200] sm:%s173]
                %247 = vst [vmem:[%s181 + $0x80] sm:%s173] %v246
                %v248 = vld [vmem:[%s180 + $0x210] sm:%s173]
                %249 = vst [vmem:[%s181 + $0x84] sm:%s173] %v248
                %v250 = vld [vmem:[%s180 + $0x220] sm:%s173]
                %251 = vst [vmem:[%s181 + $0x88] sm:%s173] %v250
                %v252 = vld [vmem:[%s180 + $0x230] sm:%s173]
                %253 = vst [vmem:[%s181 + $0x8c] sm:%s173] %v252
                %v254 = vld [vmem:[%s180 + $0x240] sm:%s173]
                %255 = vst [vmem:[%s181 + $0x90] sm:%s173] %v254
                %v256 = vld [vmem:[%s180 + $0x250] sm:%s173]
                %257 = vst [vmem:[%s181 + $0x94] sm:%s173] %v256
                %v258 = vld [vmem:[%s180 + $0x260] sm:%s173]
                %259 = vst [vmem:[%s181 + $0x98] sm:%s173] %v258
                %v260 = vld [vmem:[%s180 + $0x270] sm:%s173]
                %261 = vst [vmem:[%s181 + $0x9c] sm:%s173] %v260
                %v262 = vld [vmem:[%s180 + $0x280] sm:%s173]
                %263 = vst [vmem:[%s181 + $0xa0] sm:%s173] %v262
                %v264 = vld [vmem:[%s180 + $0x290] sm:%s173]
                %265 = vst [vmem:[%s181 + $0xa4] sm:%s173] %v264
                %v266 = vld [vmem:[%s180 + $0x2a0] sm:%s173]
                %267 = vst [vmem:[%s181 + $0xa8] sm:%s173] %v266
                %v268 = vld [vmem:[%s180 + $0x2b0] sm:%s173]
                %269 = vst [vmem:[%s181 + $0xac] sm:%s173] %v268
                %v270 = vld [vmem:[%s180 + $0x2c0] sm:%s173]
                %271 = vst [vmem:[%s181 + $0xb0] sm:%s173] %v270
                %v272 = vld [vmem:[%s180 + $0x2d0] sm:%s173]
                %273 = vst [vmem:[%s181 + $0xb4] sm:%s173] %v272
                %v274 = vld [vmem:[%s180 + $0x2e0] sm:%s173]
                %275 = vst [vmem:[%s181 + $0xb8] sm:%s173] %v274
                %v276 = vld [vmem:[%s180 + $0x2f0] sm:%s173]
                %277 = vst [vmem:[%s181 + $0xbc] sm:%s173] %v276
                %v278 = vld [vmem:[%s180 + $0x300] sm:%s173]
                %279 = vst [vmem:[%s181 + $0xc0] sm:%s173] %v278
                %v280 = vld [vmem:[%s180 + $0x310] sm:%s173]
                %281 = vst [vmem:[%s181 + $0xc4] sm:%s173] %v280
                %v282 = vld [vmem:[%s180 + $0x320] sm:%s173]
                %283 = vst [vmem:[%s181 + $0xc8] sm:%s173] %v282
                %v284 = vld [vmem:[%s180 + $0x330] sm:%s173]
                %285 = vst [vmem:[%s181 + $0xcc] sm:%s173] %v284
                %v286 = vld [vmem:[%s180 + $0x340] sm:%s173]
                %287 = vst [vmem:[%s181 + $0xd0] sm:%s173] %v286
                %v288 = vld [vmem:[%s180 + $0x350] sm:%s173]
                %289 = vst [vmem:[%s181 + $0xd4] sm:%s173] %v288
                %v290 = vld [vmem:[%s180 + $0x360] sm:%s173]
                %291 = vst [vmem:[%s181 + $0xd8] sm:%s173] %v290
                %v292 = vld [vmem:[%s180 + $0x370] sm:%s173]
                %293 = vst [vmem:[%s181 + $0xdc] sm:%s173] %v292
                %v294 = vld [vmem:[%s180 + $0x380] sm:%s173]
                %295 = vst [vmem:[%s181 + $0xe0] sm:%s173] %v294
                %v296 = vld [vmem:[%s180 + $0x390] sm:%s173]
                %297 = vst [vmem:[%s181 + $0xe4] sm:%s173] %v296
                %v298 = vld [vmem:[%s180 + $0x3a0] sm:%s173]
                %299 = vst [vmem:[%s181 + $0xe8] sm:%s173] %v298
                %v300 = vld [vmem:[%s180 + $0x3b0] sm:%s173]
                %301 = vst [vmem:[%s181 + $0xec] sm:%s173] %v300
                %v302 = vld [vmem:[%s180 + $0x3c0] sm:%s173]
                %303 = vst [vmem:[%s181 + $0xf0] sm:%s173] %v302
                %v304 = vld [vmem:[%s180 + $0x3d0] sm:%s173]
                %305 = vst [vmem:[%s181 + $0xf4] sm:%s173] %v304
                %v306 = vld [vmem:[%s180 + $0x3e0] sm:%s173]
                %307 = vst [vmem:[%s181 + $0xf8] sm:%s173] %v306
                %v308 = vld [vmem:[%s180 + $0x3f0] sm:%s173]
                %309 = vst [vmem:[%s181 + $0xfc] sm:%s173] %v308
                %v310 = vld [vmem:[%s180 + $0x400] sm:%s173]
                %311 = vst [vmem:[%s181 + $0x100] sm:%s173] %v310
                %v312 = vld [vmem:[%s180 + $0x410] sm:%s173]
                %313 = vst [vmem:[%s181 + $0x104] sm:%s173] %v312
                %v314 = vld [vmem:[%s180 + $0x420] sm:%s173]
                %315 = vst [vmem:[%s181 + $0x108] sm:%s173] %v314
                %v316 = vld [vmem:[%s180 + $0x430] sm:%s173]
                %317 = vst [vmem:[%s181 + $0x10c] sm:%s173] %v316
                %v318 = vld [vmem:[%s180 + $0x440] sm:%s173]
                %319 = vst [vmem:[%s181 + $0x110] sm:%s173] %v318
                %v320 = vld [vmem:[%s180 + $0x450] sm:%s173]
                %321 = vst [vmem:[%s181 + $0x114] sm:%s173] %v320
                %v322 = vld [vmem:[%s180 + $0x460] sm:%s173]
                %323 = vst [vmem:[%s181 + $0x118] sm:%s173] %v322
                %v324 = vld [vmem:[%s180 + $0x470] sm:%s173]
                %325 = vst [vmem:[%s181 + $0x11c] sm:%s173] %v324
                %v326 = vld [vmem:[%s180 + $0x480] sm:%s173]
                %327 = vst [vmem:[%s181 + $0x120] sm:%s173] %v326
                %v328 = vld [vmem:[%s180 + $0x490] sm:%s173]
                %329 = vst [vmem:[%s181 + $0x124] sm:%s173] %v328
                %v330 = vld [vmem:[%s180 + $0x4a0] sm:%s173]
                %331 = vst [vmem:[%s181 + $0x128] sm:%s173] %v330
                %v332 = vld [vmem:[%s180 + $0x4b0] sm:%s173]
                %333 = vst [vmem:[%s181 + $0x12c] sm:%s173] %v332
                %v334 = vld [vmem:[%s180 + $0x4c0] sm:%s173]
                %335 = vst [vmem:[%s181 + $0x130] sm:%s173] %v334
                %v336 = vld [vmem:[%s180 + $0x4d0] sm:%s173]
                %337 = vst [vmem:[%s181 + $0x134] sm:%s173] %v336
                %v338 = vld [vmem:[%s180 + $0x4e0] sm:%s173]
                %339 = vst [vmem:[%s181 + $0x138] sm:%s173] %v338
                %v340 = vld [vmem:[%s180 + $0x4f0] sm:%s173]
                %341 = vst [vmem:[%s181 + $0x13c] sm:%s173] %v340
                %v342 = vld [vmem:[%s180 + $0x500] sm:%s173]
                %343 = vst [vmem:[%s181 + $0x140] sm:%s173] %v342
                %v344 = vld [vmem:[%s180 + $0x510] sm:%s173]
                %345 = vst [vmem:[%s181 + $0x144] sm:%s173] %v344
                %v346 = vld [vmem:[%s180 + $0x520] sm:%s173]
                %347 = vst [vmem:[%s181 + $0x148] sm:%s173] %v346
                %v348 = vld [vmem:[%s180 + $0x530] sm:%s173]
                %349 = vst [vmem:[%s181 + $0x14c] sm:%s173] %v348
                %v350 = vld [vmem:[%s180 + $0x540] sm:%s173]
                %351 = vst [vmem:[%s181 + $0x150] sm:%s173] %v350
                %v352 = vld [vmem:[%s180 + $0x550] sm:%s173]
                %353 = vst [vmem:[%s181 + $0x154] sm:%s173] %v352
                %v354 = vld [vmem:[%s180 + $0x560] sm:%s173]
                %355 = vst [vmem:[%s181 + $0x158] sm:%s173] %v354
                %v356 = vld [vmem:[%s180 + $0x570] sm:%s173]
                %357 = vst [vmem:[%s181 + $0x15c] sm:%s173] %v356
                %v358 = vld [vmem:[%s180 + $0x580] sm:%s173]
                %359 = vst [vmem:[%s181 + $0x160] sm:%s173] %v358
                %v360 = vld [vmem:[%s180 + $0x590] sm:%s173]
                %361 = vst [vmem:[%s181 + $0x164] sm:%s173] %v360
                %v362 = vld [vmem:[%s180 + $0x5a0] sm:%s173]
                %363 = vst [vmem:[%s181 + $0x168] sm:%s173] %v362
                %v364 = vld [vmem:[%s180 + $0x5b0] sm:%s173]
                %365 = vst [vmem:[%s181 + $0x16c] sm:%s173] %v364
                %v366 = vld [vmem:[%s180 + $0x5c0] sm:%s173]
                %367 = vst [vmem:[%s181 + $0x170] sm:%s173] %v366
                %v368 = vld [vmem:[%s180 + $0x5d0] sm:%s173]
                %369 = vst [vmem:[%s181 + $0x174] sm:%s173] %v368
                %v370 = vld [vmem:[%s180 + $0x5e0] sm:%s173]
                %371 = vst [vmem:[%s181 + $0x178] sm:%s173] %v370
                %v372 = vld [vmem:[%s180 + $0x5f0] sm:%s173]
                %373 = vst [vmem:[%s181 + $0x17c] sm:%s173] %v372
                %v374 = vld [vmem:[%s180 + $0x600] sm:%s173]
                %375 = vst [vmem:[%s181 + $0x180] sm:%s173] %v374
                %v376 = vld [vmem:[%s180 + $0x610] sm:%s173]
                %377 = vst [vmem:[%s181 + $0x184] sm:%s173] %v376
                %v378 = vld [vmem:[%s180 + $0x620] sm:%s173]
                %379 = vst [vmem:[%s181 + $0x188] sm:%s173] %v378
                %v380 = vld [vmem:[%s180 + $0x630] sm:%s173]
                %381 = vst [vmem:[%s181 + $0x18c] sm:%s173] %v380
                %v382 = vld [vmem:[%s180 + $0x640] sm:%s173]
                %383 = vst [vmem:[%s181 + $0x190] sm:%s173] %v382
                %v384 = vld [vmem:[%s180 + $0x650] sm:%s173]
                %385 = vst [vmem:[%s181 + $0x194] sm:%s173] %v384
                %v386 = vld [vmem:[%s180 + $0x660] sm:%s173]
                %387 = vst [vmem:[%s181 + $0x198] sm:%s173] %v386
                %v388 = vld [vmem:[%s180 + $0x670] sm:%s173]
                %389 = vst [vmem:[%s181 + $0x19c] sm:%s173] %v388
                %v390 = vld [vmem:[%s180 + $0x680] sm:%s173]
                %391 = vst [vmem:[%s181 + $0x1a0] sm:%s173] %v390
                %v392 = vld [vmem:[%s180 + $0x690] sm:%s173]
                %393 = vst [vmem:[%s181 + $0x1a4] sm:%s173] %v392
                %v394 = vld [vmem:[%s180 + $0x6a0] sm:%s173]
                %395 = vst [vmem:[%s181 + $0x1a8] sm:%s173] %v394
                %v396 = vld [vmem:[%s180 + $0x6b0] sm:%s173]
                %397 = vst [vmem:[%s181 + $0x1ac] sm:%s173] %v396
                %v398 = vld [vmem:[%s180 + $0x6c0] sm:%s173]
                %399 = vst [vmem:[%s181 + $0x1b0] sm:%s173] %v398
                %v400 = vld [vmem:[%s180 + $0x6d0] sm:%s173]
                %401 = vst [vmem:[%s181 + $0x1b4] sm:%s173] %v400
                %v402 = vld [vmem:[%s180 + $0x6e0] sm:%s173]
                %403 = vst [vmem:[%s181 + $0x1b8] sm:%s173] %v402
                %v404 = vld [vmem:[%s180 + $0x6f0] sm:%s173]
                %405 = vst [vmem:[%s181 + $0x1bc] sm:%s173] %v404
                %v406 = vld [vmem:[%s180 + $0x700] sm:%s173]
                %407 = vst [vmem:[%s181 + $0x1c0] sm:%s173] %v406
                %v408 = vld [vmem:[%s180 + $0x710] sm:%s173]
                %409 = vst [vmem:[%s181 + $0x1c4] sm:%s173] %v408
                %v410 = vld [vmem:[%s180 + $0x720] sm:%s173]
                %411 = vst [vmem:[%s181 + $0x1c8] sm:%s173] %v410
                %v412 = vld [vmem:[%s180 + $0x730] sm:%s173]
                %413 = vst [vmem:[%s181 + $0x1cc] sm:%s173] %v412
                %v414 = vld [vmem:[%s180 + $0x740] sm:%s173]
                %415 = vst [vmem:[%s181 + $0x1d0] sm:%s173] %v414
                %v416 = vld [vmem:[%s180 + $0x750] sm:%s173]
                %417 = vst [vmem:[%s181 + $0x1d4] sm:%s173] %v416
                %v418 = vld [vmem:[%s180 + $0x760] sm:%s173]
                %419 = vst [vmem:[%s181 + $0x1d8] sm:%s173] %v418
                %v420 = vld [vmem:[%s180 + $0x770] sm:%s173]
                %421 = vst [vmem:[%s181 + $0x1dc] sm:%s173] %v420
                %v422 = vld [vmem:[%s180 + $0x780] sm:%s173]
                %423 = vst [vmem:[%s181 + $0x1e0] sm:%s173] %v422
                %v424 = vld [vmem:[%s180 + $0x790] sm:%s173]
                %425 = vst [vmem:[%s181 + $0x1e4] sm:%s173] %v424
                %v426 = vld [vmem:[%s180 + $0x7a0] sm:%s173]
                %427 = vst [vmem:[%s181 + $0x1e8] sm:%s173] %v426
                %v428 = vld [vmem:[%s180 + $0x7b0] sm:%s173]
                %429 = vst [vmem:[%s181 + $0x1ec] sm:%s173] %v428
                %v430 = vld [vmem:[%s180 + $0x7c0] sm:%s173]
                %431 = vst [vmem:[%s181 + $0x1f0] sm:%s173] %v430
                %v432 = vld [vmem:[%s180 + $0x7d0] sm:%s173]
                %433 = vst [vmem:[%s181 + $0x1f4] sm:%s173] %v432
                %v434 = vld [vmem:[%s180 + $0x7e0] sm:%s173]
                %435 = vst [vmem:[%s181 + $0x1f8] sm:%s173] %v434
                %v436 = vld [vmem:[%s180 + $0x7f0] sm:%s173]
                %437 = vst [vmem:[%s181 + $0x1fc] sm:%s173] %v436
                %v438 = vld [vmem:[%s180 + $0x800] sm:%s173]
                %439 = vst [vmem:[%s181 + $0x200] sm:%s173] %v438
                %v440 = vld [vmem:[%s180 + $0x810] sm:%s173]
                %441 = vst [vmem:[%s181 + $0x204] sm:%s173] %v440
                %v442 = vld [vmem:[%s180 + $0x820] sm:%s173]
                %443 = vst [vmem:[%s181 + $0x208] sm:%s173] %v442
                %v444 = vld [vmem:[%s180 + $0x830] sm:%s173]
                %445 = vst [vmem:[%s181 + $0x20c] sm:%s173] %v444
                %v446 = vld [vmem:[%s180 + $0x840] sm:%s173]
                %447 = vst [vmem:[%s181 + $0x210] sm:%s173] %v446
                %v448 = vld [vmem:[%s180 + $0x850] sm:%s173]
                %449 = vst [vmem:[%s181 + $0x214] sm:%s173] %v448
                %v450 = vld [vmem:[%s180 + $0x860] sm:%s173]
                %451 = vst [vmem:[%s181 + $0x218] sm:%s173] %v450
                %v452 = vld [vmem:[%s180 + $0x870] sm:%s173]
                %453 = vst [vmem:[%s181 + $0x21c] sm:%s173] %v452
                %v454 = vld [vmem:[%s180 + $0x880] sm:%s173]
                %455 = vst [vmem:[%s181 + $0x220] sm:%s173] %v454
                %v456 = vld [vmem:[%s180 + $0x890] sm:%s173]
                %457 = vst [vmem:[%s181 + $0x224] sm:%s173] %v456
                %v458 = vld [vmem:[%s180 + $0x8a0] sm:%s173]
                %459 = vst [vmem:[%s181 + $0x228] sm:%s173] %v458
                %v460 = vld [vmem:[%s180 + $0x8b0] sm:%s173]
                %461 = vst [vmem:[%s181 + $0x22c] sm:%s173] %v460
                %v462 = vld [vmem:[%s180 + $0x8c0] sm:%s173]
                %463 = vst [vmem:[%s181 + $0x230] sm:%s173] %v462
                %v464 = vld [vmem:[%s180 + $0x8d0] sm:%s173]
                %465 = vst [vmem:[%s181 + $0x234] sm:%s173] %v464
                %v466 = vld [vmem:[%s180 + $0x8e0] sm:%s173]
                %467 = vst [vmem:[%s181 + $0x238] sm:%s173] %v466
                %v468 = vld [vmem:[%s180 + $0x8f0] sm:%s173]
                %469 = vst [vmem:[%s181 + $0x23c] sm:%s173] %v468
                %v470 = vld [vmem:[%s180 + $0x900] sm:%s173]
                %471 = vst [vmem:[%s181 + $0x240] sm:%s173] %v470
                %v472 = vld [vmem:[%s180 + $0x910] sm:%s173]
                %473 = vst [vmem:[%s181 + $0x244] sm:%s173] %v472
                %v474 = vld [vmem:[%s180 + $0x920] sm:%s173]
                %475 = vst [vmem:[%s181 + $0x248] sm:%s173] %v474
                %v476 = vld [vmem:[%s180 + $0x930] sm:%s173]
                %477 = vst [vmem:[%s181 + $0x24c] sm:%s173] %v476
                %v478 = vld [vmem:[%s180 + $0x940] sm:%s173]
                %479 = vst [vmem:[%s181 + $0x250] sm:%s173] %v478
                %v480 = vld [vmem:[%s180 + $0x950] sm:%s173]
                %481 = vst [vmem:[%s181 + $0x254] sm:%s173] %v480
                %v482 = vld [vmem:[%s180 + $0x960] sm:%s173]
                %483 = vst [vmem:[%s181 + $0x258] sm:%s173] %v482
                %v484 = vld [vmem:[%s180 + $0x970] sm:%s173]
                %485 = vst [vmem:[%s181 + $0x25c] sm:%s173] %v484
                %v486 = vld [vmem:[%s180 + $0x980] sm:%s173]
                %487 = vst [vmem:[%s181 + $0x260] sm:%s173] %v486
                %v488 = vld [vmem:[%s180 + $0x990] sm:%s173]
                %489 = vst [vmem:[%s181 + $0x264] sm:%s173] %v488
                %v490 = vld [vmem:[%s180 + $0x9a0] sm:%s173]
                %491 = vst [vmem:[%s181 + $0x268] sm:%s173] %v490
                %v492 = vld [vmem:[%s180 + $0x9b0] sm:%s173]
                %493 = vst [vmem:[%s181 + $0x26c] sm:%s173] %v492
                %v494 = vld [vmem:[%s180 + $0x9c0] sm:%s173]
                %495 = vst [vmem:[%s181 + $0x270] sm:%s173] %v494
                %v496 = vld [vmem:[%s180 + $0x9d0] sm:%s173]
                %497 = vst [vmem:[%s181 + $0x274] sm:%s173] %v496
                %v498 = vld [vmem:[%s180 + $0x9e0] sm:%s173]
                %499 = vst [vmem:[%s181 + $0x278] sm:%s173] %v498
                %v500 = vld [vmem:[%s180 + $0x9f0] sm:%s173]
                %501 = vst [vmem:[%s181 + $0x27c] sm:%s173] %v500
                %v502 = vld [vmem:[%s180 + $0xa00] sm:%s173]
                %503 = vst [vmem:[%s181 + $0x280] sm:%s173] %v502
                %v504 = vld [vmem:[%s180 + $0xa10] sm:%s173]
                %505 = vst [vmem:[%s181 + $0x284] sm:%s173] %v504
                %v506 = vld [vmem:[%s180 + $0xa20] sm:%s173]
                %507 = vst [vmem:[%s181 + $0x288] sm:%s173] %v506
                %v508 = vld [vmem:[%s180 + $0xa30] sm:%s173]
                %509 = vst [vmem:[%s181 + $0x28c] sm:%s173] %v508
                %v510 = vld [vmem:[%s180 + $0xa40] sm:%s173]
                %511 = vst [vmem:[%s181 + $0x290] sm:%s173] %v510
                %v512 = vld [vmem:[%s180 + $0xa50] sm:%s173]
                %513 = vst [vmem:[%s181 + $0x294] sm:%s173] %v512
                %v514 = vld [vmem:[%s180 + $0xa60] sm:%s173]
                %515 = vst [vmem:[%s181 + $0x298] sm:%s173] %v514
                %v516 = vld [vmem:[%s180 + $0xa70] sm:%s173]
                %517 = vst [vmem:[%s181 + $0x29c] sm:%s173] %v516
                %v518 = vld [vmem:[%s180 + $0xa80] sm:%s173]
                %519 = vst [vmem:[%s181 + $0x2a0] sm:%s173] %v518
                %v520 = vld [vmem:[%s180 + $0xa90] sm:%s173]
                %521 = vst [vmem:[%s181 + $0x2a4] sm:%s173] %v520
                %v522 = vld [vmem:[%s180 + $0xaa0] sm:%s173]
                %523 = vst [vmem:[%s181 + $0x2a8] sm:%s173] %v522
                %v524 = vld [vmem:[%s180 + $0xab0] sm:%s173]
                %525 = vst [vmem:[%s181 + $0x2ac] sm:%s173] %v524
                %v526 = vld [vmem:[%s180 + $0xac0] sm:%s173]
                %527 = vst [vmem:[%s181 + $0x2b0] sm:%s173] %v526
                %v528 = vld [vmem:[%s180 + $0xad0] sm:%s173]
                %529 = vst [vmem:[%s181 + $0x2b4] sm:%s173] %v528
                %v530 = vld [vmem:[%s180 + $0xae0] sm:%s173]
                %531 = vst [vmem:[%s181 + $0x2b8] sm:%s173] %v530
                %v532 = vld [vmem:[%s180 + $0xaf0] sm:%s173]
                %533 = vst [vmem:[%s181 + $0x2bc] sm:%s173] %v532
                %v534 = vld [vmem:[%s180 + $0xb00] sm:%s173]
                %535 = vst [vmem:[%s181 + $0x2c0] sm:%s173] %v534
                %v536 = vld [vmem:[%s180 + $0xb10] sm:%s173]
                %537 = vst [vmem:[%s181 + $0x2c4] sm:%s173] %v536
                %v538 = vld [vmem:[%s180 + $0xb20] sm:%s173]
                %539 = vst [vmem:[%s181 + $0x2c8] sm:%s173] %v538
                %v540 = vld [vmem:[%s180 + $0xb30] sm:%s173]
                %541 = vst [vmem:[%s181 + $0x2cc] sm:%s173] %v540
                %v542 = vld [vmem:[%s180 + $0xb40] sm:%s173]
                %543 = vst [vmem:[%s181 + $0x2d0] sm:%s173] %v542
                %v544 = vld [vmem:[%s180 + $0xb50] sm:%s173]
                %545 = vst [vmem:[%s181 + $0x2d4] sm:%s173] %v544
                %v546 = vld [vmem:[%s180 + $0xb60] sm:%s173]
                %547 = vst [vmem:[%s181 + $0x2d8] sm:%s173] %v546
                %v548 = vld [vmem:[%s180 + $0xb70] sm:%s173]
                %549 = vst [vmem:[%s181 + $0x2dc] sm:%s173] %v548
                %v550 = vld [vmem:[%s180 + $0xb80] sm:%s173]
                %551 = vst [vmem:[%s181 + $0x2e0] sm:%s173] %v550
                %v552 = vld [vmem:[%s180 + $0xb90] sm:%s173]
                %553 = vst [vmem:[%s181 + $0x2e4] sm:%s173] %v552
                %v554 = vld [vmem:[%s180 + $0xba0] sm:%s173]
                %555 = vst [vmem:[%s181 + $0x2e8] sm:%s173] %v554
                %v556 = vld [vmem:[%s180 + $0xbb0] sm:%s173]
                %557 = vst [vmem:[%s181 + $0x2ec] sm:%s173] %v556
                %v558 = vld [vmem:[%s180 + $0xbc0] sm:%s173]
                %559 = vst [vmem:[%s181 + $0x2f0] sm:%s173] %v558
                %v560 = vld [vmem:[%s180 + $0xbd0] sm:%s173]
                %561 = vst [vmem:[%s181 + $0x2f4] sm:%s173] %v560
                %v562 = vld [vmem:[%s180 + $0xbe0] sm:%s173]
                %563 = vst [vmem:[%s181 + $0x2f8] sm:%s173] %v562
                %v564 = vld [vmem:[%s180 + $0xbf0] sm:%s173]
                %565 = vst [vmem:[%s181 + $0x2fc] sm:%s173] %v564
                %v566 = vld [vmem:[%s180 + $0xc00] sm:%s173]
                %567 = vst [vmem:[%s181 + $0x300] sm:%s173] %v566
                %v568 = vld [vmem:[%s180 + $0xc10] sm:%s173]
                %569 = vst [vmem:[%s181 + $0x304] sm:%s173] %v568
                %v570 = vld [vmem:[%s180 + $0xc20] sm:%s173]
                %571 = vst [vmem:[%s181 + $0x308] sm:%s173] %v570
                %v572 = vld [vmem:[%s180 + $0xc30] sm:%s173]
                %573 = vst [vmem:[%s181 + $0x30c] sm:%s173] %v572
                %v574 = vld [vmem:[%s180 + $0xc40] sm:%s173]
                %575 = vst [vmem:[%s181 + $0x310] sm:%s173] %v574
                %v576 = vld [vmem:[%s180 + $0xc50] sm:%s173]
                %577 = vst [vmem:[%s181 + $0x314] sm:%s173] %v576
                %v578 = vld [vmem:[%s180 + $0xc60] sm:%s173]
                %579 = vst [vmem:[%s181 + $0x318] sm:%s173] %v578
                %v580 = vld [vmem:[%s180 + $0xc70] sm:%s173]
                %581 = vst [vmem:[%s181 + $0x31c] sm:%s173] %v580
                %v582 = vld [vmem:[%s180 + $0xc80] sm:%s173]
                %583 = vst [vmem:[%s181 + $0x320] sm:%s173] %v582
                %v584 = vld [vmem:[%s180 + $0xc90] sm:%s173]
                %585 = vst [vmem:[%s181 + $0x324] sm:%s173] %v584
                %v586 = vld [vmem:[%s180 + $0xca0] sm:%s173]
                %587 = vst [vmem:[%s181 + $0x328] sm:%s173] %v586
                %v588 = vld [vmem:[%s180 + $0xcb0] sm:%s173]
                %589 = vst [vmem:[%s181 + $0x32c] sm:%s173] %v588
                %v590 = vld [vmem:[%s180 + $0xcc0] sm:%s173]
                %591 = vst [vmem:[%s181 + $0x330] sm:%s173] %v590
                %v592 = vld [vmem:[%s180 + $0xcd0] sm:%s173]
                %593 = vst [vmem:[%s181 + $0x334] sm:%s173] %v592
                %v594 = vld [vmem:[%s180 + $0xce0] sm:%s173]
                %595 = vst [vmem:[%s181 + $0x338] sm:%s173] %v594
                %v596 = vld [vmem:[%s180 + $0xcf0] sm:%s173]
                %597 = vst [vmem:[%s181 + $0x33c] sm:%s173] %v596
                %v598 = vld [vmem:[%s180 + $0xd00] sm:%s173]
                %599 = vst [vmem:[%s181 + $0x340] sm:%s173] %v598
                %v600 = vld [vmem:[%s180 + $0xd10] sm:%s173]
                %601 = vst [vmem:[%s181 + $0x344] sm:%s173] %v600
                %v602 = vld [vmem:[%s180 + $0xd20] sm:%s173]
                %603 = vst [vmem:[%s181 + $0x348] sm:%s173] %v602
                %v604 = vld [vmem:[%s180 + $0xd30] sm:%s173]
                %605 = vst [vmem:[%s181 + $0x34c] sm:%s173] %v604
                %v606 = vld [vmem:[%s180 + $0xd40] sm:%s173]
                %607 = vst [vmem:[%s181 + $0x350] sm:%s173] %v606
                %v608 = vld [vmem:[%s180 + $0xd50] sm:%s173]
                %609 = vst [vmem:[%s181 + $0x354] sm:%s173] %v608
                %v610 = vld [vmem:[%s180 + $0xd60] sm:%s173]
                %611 = vst [vmem:[%s181 + $0x358] sm:%s173] %v610
                %v612 = vld [vmem:[%s180 + $0xd70] sm:%s173]
                %613 = vst [vmem:[%s181 + $0x35c] sm:%s173] %v612
                %v614 = vld [vmem:[%s180 + $0xd80] sm:%s173]
                %615 = vst [vmem:[%s181 + $0x360] sm:%s173] %v614
                %v616 = vld [vmem:[%s180 + $0xd90] sm:%s173]
                %617 = vst [vmem:[%s181 + $0x364] sm:%s173] %v616
                %v618 = vld [vmem:[%s180 + $0xda0] sm:%s173]
                %619 = vst [vmem:[%s181 + $0x368] sm:%s173] %v618
                %v620 = vld [vmem:[%s180 + $0xdb0] sm:%s173]
                %621 = vst [vmem:[%s181 + $0x36c] sm:%s173] %v620
                %v622 = vld [vmem:[%s180 + $0xdc0] sm:%s173]
                %623 = vst [vmem:[%s181 + $0x370] sm:%s173] %v622
                %v624 = vld [vmem:[%s180 + $0xdd0] sm:%s173]
                %625 = vst [vmem:[%s181 + $0x374] sm:%s173] %v624
                %v626 = vld [vmem:[%s180 + $0xde0] sm:%s173]
                %627 = vst [vmem:[%s181 + $0x378] sm:%s173] %v626
                %v628 = vld [vmem:[%s180 + $0xdf0] sm:%s173]
                %629 = vst [vmem:[%s181 + $0x37c] sm:%s173] %v628
                %v630 = vld [vmem:[%s180 + $0xe00] sm:%s173]
                %631 = vst [vmem:[%s181 + $0x380] sm:%s173] %v630
                %v632 = vld [vmem:[%s180 + $0xe10] sm:%s173]
                %633 = vst [vmem:[%s181 + $0x384] sm:%s173] %v632
                %v634 = vld [vmem:[%s180 + $0xe20] sm:%s173]
                %635 = vst [vmem:[%s181 + $0x388] sm:%s173] %v634
                %v636 = vld [vmem:[%s180 + $0xe30] sm:%s173]
                %637 = vst [vmem:[%s181 + $0x38c] sm:%s173] %v636
                %v638 = vld [vmem:[%s180 + $0xe40] sm:%s173]
                %639 = vst [vmem:[%s181 + $0x390] sm:%s173] %v638
                %v640 = vld [vmem:[%s180 + $0xe50] sm:%s173]
                %641 = vst [vmem:[%s181 + $0x394] sm:%s173] %v640
                %v642 = vld [vmem:[%s180 + $0xe60] sm:%s173]
                %643 = vst [vmem:[%s181 + $0x398] sm:%s173] %v642
                %v644 = vld [vmem:[%s180 + $0xe70] sm:%s173]
                %645 = vst [vmem:[%s181 + $0x39c] sm:%s173] %v644
                %v646 = vld [vmem:[%s180 + $0xe80] sm:%s173]
                %647 = vst [vmem:[%s181 + $0x3a0] sm:%s173] %v646
                %v648 = vld [vmem:[%s180 + $0xe90] sm:%s173]
                %649 = vst [vmem:[%s181 + $0x3a4] sm:%s173] %v648
                %v650 = vld [vmem:[%s180 + $0xea0] sm:%s173]
                %651 = vst [vmem:[%s181 + $0x3a8] sm:%s173] %v650
                %v652 = vld [vmem:[%s180 + $0xeb0] sm:%s173]
                %653 = vst [vmem:[%s181 + $0x3ac] sm:%s173] %v652
                %v654 = vld [vmem:[%s180 + $0xec0] sm:%s173]
                %655 = vst [vmem:[%s181 + $0x3b0] sm:%s173] %v654
                %v656 = vld [vmem:[%s180 + $0xed0] sm:%s173]
                %657 = vst [vmem:[%s181 + $0x3b4] sm:%s173] %v656
                %v658 = vld [vmem:[%s180 + $0xee0] sm:%s173]
                %659 = vst [vmem:[%s181 + $0x3b8] sm:%s173] %v658
                %v660 = vld [vmem:[%s180 + $0xef0] sm:%s173]
                %661 = vst [vmem:[%s181 + $0x3bc] sm:%s173] %v660
                %v662 = vld [vmem:[%s180 + $0xf00] sm:%s173]
                %663 = vst [vmem:[%s181 + $0x3c0] sm:%s173] %v662
                %v664 = vld [vmem:[%s180 + $0xf10] sm:%s173]
                %665 = vst [vmem:[%s181 + $0x3c4] sm:%s173] %v664
                %v666 = vld [vmem:[%s180 + $0xf20] sm:%s173]
                %667 = vst [vmem:[%s181 + $0x3c8] sm:%s173] %v666
                %v668 = vld [vmem:[%s180 + $0xf30] sm:%s173]
                %669 = vst [vmem:[%s181 + $0x3cc] sm:%s173] %v668
                %v670 = vld [vmem:[%s180 + $0xf40] sm:%s173]
                %671 = vst [vmem:[%s181 + $0x3d0] sm:%s173] %v670
                %v672 = vld [vmem:[%s180 + $0xf50] sm:%s173]
                %673 = vst [vmem:[%s181 + $0x3d4] sm:%s173] %v672
                %v674 = vld [vmem:[%s180 + $0xf60] sm:%s173]
                %675 = vst [vmem:[%s181 + $0x3d8] sm:%s173] %v674
                %v676 = vld [vmem:[%s180 + $0xf70] sm:%s173]
                %677 = vst [vmem:[%s181 + $0x3dc] sm:%s173] %v676
                %v678 = vld [vmem:[%s180 + $0xf80] sm:%s173]
                %679 = vst [vmem:[%s181 + $0x3e0] sm:%s173] %v678
                %v680 = vld [vmem:[%s180 + $0xf90] sm:%s173]
                %681 = vst [vmem:[%s181 + $0x3e4] sm:%s173] %v680
                %v682 = vld [vmem:[%s180 + $0xfa0] sm:%s173]
                %683 = vst [vmem:[%s181 + $0x3e8] sm:%s173] %v682
                %v684 = vld [vmem:[%s180 + $0xfb0] sm:%s173]
                %685 = vst [vmem:[%s181 + $0x3ec] sm:%s173] %v684
                %v686 = vld [vmem:[%s180 + $0xfc0] sm:%s173]
                %687 = vst [vmem:[%s181 + $0x3f0] sm:%s173] %v686
                %v688 = vld [vmem:[%s180 + $0xfd0] sm:%s173]
                %689 = vst [vmem:[%s181 + $0x3f4] sm:%s173] %v688
                %v690 = vld [vmem:[%s180 + $0xfe0] sm:%s173]
                %691 = vst [vmem:[%s181 + $0x3f8] sm:%s173] %v690
                %v692 = vld [vmem:[%s180 + $0xff0] sm:%s173]
                %693 = vst [vmem:[%s181 + $0x3fc] sm:%s173] %v692
                %v694 = vld [vmem:[%s180 + $0x1000] sm:%s173]
                %695 = vst [vmem:[%s181 + $0x400] sm:%s173] %v694
                %v696 = vld [vmem:[%s180 + $0x1010] sm:%s173]
                %697 = vst [vmem:[%s181 + $0x404] sm:%s173] %v696
                %v698 = vld [vmem:[%s180 + $0x1020] sm:%s173]
                %699 = vst [vmem:[%s181 + $0x408] sm:%s173] %v698
                %v700 = vld [vmem:[%s180 + $0x1030] sm:%s173]
                %701 = vst [vmem:[%s181 + $0x40c] sm:%s173] %v700
                %v702 = vld [vmem:[%s180 + $0x1040] sm:%s173]
                %703 = vst [vmem:[%s181 + $0x410] sm:%s173] %v702
                %v704 = vld [vmem:[%s180 + $0x1050] sm:%s173]
                %705 = vst [vmem:[%s181 + $0x414] sm:%s173] %v704
                %v706 = vld [vmem:[%s180 + $0x1060] sm:%s173]
                %707 = vst [vmem:[%s181 + $0x418] sm:%s173] %v706
                %v708 = vld [vmem:[%s180 + $0x1070] sm:%s173]
                %709 = vst [vmem:[%s181 + $0x41c] sm:%s173] %v708
                %v710 = vld [vmem:[%s180 + $0x1080] sm:%s173]
                %711 = vst [vmem:[%s181 + $0x420] sm:%s173] %v710
                %v712 = vld [vmem:[%s180 + $0x1090] sm:%s173]
                %713 = vst [vmem:[%s181 + $0x424] sm:%s173] %v712
                %v714 = vld [vmem:[%s180 + $0x10a0] sm:%s173]
                %715 = vst [vmem:[%s181 + $0x428] sm:%s173] %v714
                %v716 = vld [vmem:[%s180 + $0x10b0] sm:%s173]
                %717 = vst [vmem:[%s181 + $0x42c] sm:%s173] %v716
                %v718 = vld [vmem:[%s180 + $0x10c0] sm:%s173]
                %719 = vst [vmem:[%s181 + $0x430] sm:%s173] %v718
                %v720 = vld [vmem:[%s180 + $0x10d0] sm:%s173]
                %721 = vst [vmem:[%s181 + $0x434] sm:%s173] %v720
                %v722 = vld [vmem:[%s180 + $0x10e0] sm:%s173]
                %723 = vst [vmem:[%s181 + $0x438] sm:%s173] %v722
                %v724 = vld [vmem:[%s180 + $0x10f0] sm:%s173]
                %725 = vst [vmem:[%s181 + $0x43c] sm:%s173] %v724
                %v726 = vld [vmem:[%s180 + $0x1100] sm:%s173]
                %727 = vst [vmem:[%s181 + $0x440] sm:%s173] %v726
                %v728 = vld [vmem:[%s180 + $0x1110] sm:%s173]
                %729 = vst [vmem:[%s181 + $0x444] sm:%s173] %v728
                %v730 = vld [vmem:[%s180 + $0x1120] sm:%s173]
                %731 = vst [vmem:[%s181 + $0x448] sm:%s173] %v730
                %v732 = vld [vmem:[%s180 + $0x1130] sm:%s173]
                %733 = vst [vmem:[%s181 + $0x44c] sm:%s173] %v732
                %v734 = vld [vmem:[%s180 + $0x1140] sm:%s173]
                %735 = vst [vmem:[%s181 + $0x450] sm:%s173] %v734
                %v736 = vld [vmem:[%s180 + $0x1150] sm:%s173]
                %737 = vst [vmem:[%s181 + $0x454] sm:%s173] %v736
                %v738 = vld [vmem:[%s180 + $0x1160] sm:%s173]
                %739 = vst [vmem:[%s181 + $0x458] sm:%s173] %v738
                %v740 = vld [vmem:[%s180 + $0x1170] sm:%s173]
                %741 = vst [vmem:[%s181 + $0x45c] sm:%s173] %v740
                %v742 = vld [vmem:[%s180 + $0x1180] sm:%s173]
                %743 = vst [vmem:[%s181 + $0x460] sm:%s173] %v742
                %v744 = vld [vmem:[%s180 + $0x1190] sm:%s173]
                %745 = vst [vmem:[%s181 + $0x464] sm:%s173] %v744
                %v746 = vld [vmem:[%s180 + $0x11a0] sm:%s173]
                %747 = vst [vmem:[%s181 + $0x468] sm:%s173] %v746
                %v748 = vld [vmem:[%s180 + $0x11b0] sm:%s173]
                %749 = vst [vmem:[%s181 + $0x46c] sm:%s173] %v748
                %v750 = vld [vmem:[%s180 + $0x11c0] sm:%s173]
                %751 = vst [vmem:[%s181 + $0x470] sm:%s173] %v750
                %v752 = vld [vmem:[%s180 + $0x11d0] sm:%s173]
                %753 = vst [vmem:[%s181 + $0x474] sm:%s173] %v752
                %v754 = vld [vmem:[%s180 + $0x11e0] sm:%s173]
                %755 = vst [vmem:[%s181 + $0x478] sm:%s173] %v754
                %v756 = vld [vmem:[%s180 + $0x11f0] sm:%s173]
                %757 = vst [vmem:[%s181 + $0x47c] sm:%s173] %v756
                %v758 = vld [vmem:[%s180 + $0x1200] sm:%s173]
                %759 = vst [vmem:[%s181 + $0x480] sm:%s173] %v758
                %v760 = vld [vmem:[%s180 + $0x1210] sm:%s173]
                %761 = vst [vmem:[%s181 + $0x484] sm:%s173] %v760
                %v762 = vld [vmem:[%s180 + $0x1220] sm:%s173]
                %763 = vst [vmem:[%s181 + $0x488] sm:%s173] %v762
                %v764 = vld [vmem:[%s180 + $0x1230] sm:%s173]
                %765 = vst [vmem:[%s181 + $0x48c] sm:%s173] %v764
                %v766 = vld [vmem:[%s180 + $0x1240] sm:%s173]
                %767 = vst [vmem:[%s181 + $0x490] sm:%s173] %v766
                %v768 = vld [vmem:[%s180 + $0x1250] sm:%s173]
                %769 = vst [vmem:[%s181 + $0x494] sm:%s173] %v768
                %v770 = vld [vmem:[%s180 + $0x1260] sm:%s173]
                %771 = vst [vmem:[%s181 + $0x498] sm:%s173] %v770
                %v772 = vld [vmem:[%s180 + $0x1270] sm:%s173]
                %773 = vst [vmem:[%s181 + $0x49c] sm:%s173] %v772
                %v774 = vld [vmem:[%s180 + $0x1280] sm:%s173]
                %775 = vst [vmem:[%s181 + $0x4a0] sm:%s173] %v774
                %v776 = vld [vmem:[%s180 + $0x1290] sm:%s173]
                %777 = vst [vmem:[%s181 + $0x4a4] sm:%s173] %v776
                %v778 = vld [vmem:[%s180 + $0x12a0] sm:%s173]
                %779 = vst [vmem:[%s181 + $0x4a8] sm:%s173] %v778
                %v780 = vld [vmem:[%s180 + $0x12b0] sm:%s173]
                %781 = vst [vmem:[%s181 + $0x4ac] sm:%s173] %v780
                %v782 = vld [vmem:[%s180 + $0x12c0] sm:%s173]
                %783 = vst [vmem:[%s181 + $0x4b0] sm:%s173] %v782
                %v784 = vld [vmem:[%s180 + $0x12d0] sm:%s173]
                %785 = vst [vmem:[%s181 + $0x4b4] sm:%s173] %v784
                %v786 = vld [vmem:[%s180 + $0x12e0] sm:%s173]
                %787 = vst [vmem:[%s181 + $0x4b8] sm:%s173] %v786
                %v788 = vld [vmem:[%s180 + $0x12f0] sm:%s173]
                %789 = vst [vmem:[%s181 + $0x4bc] sm:%s173] %v788
                %v790 = vld [vmem:[%s180 + $0x1300] sm:%s173]
                %791 = vst [vmem:[%s181 + $0x4c0] sm:%s173] %v790
                %v792 = vld [vmem:[%s180 + $0x1310] sm:%s173]
                %793 = vst [vmem:[%s181 + $0x4c4] sm:%s173] %v792
                %v794 = vld [vmem:[%s180 + $0x1320] sm:%s173]
                %795 = vst [vmem:[%s181 + $0x4c8] sm:%s173] %v794
                %v796 = vld [vmem:[%s180 + $0x1330] sm:%s173]
                %797 = vst [vmem:[%s181 + $0x4cc] sm:%s173] %v796
                %v798 = vld [vmem:[%s180 + $0x1340] sm:%s173]
                %799 = vst [vmem:[%s181 + $0x4d0] sm:%s173] %v798
                %v800 = vld [vmem:[%s180 + $0x1350] sm:%s173]
                %801 = vst [vmem:[%s181 + $0x4d4] sm:%s173] %v800
                %v802 = vld [vmem:[%s180 + $0x1360] sm:%s173]
                %803 = vst [vmem:[%s181 + $0x4d8] sm:%s173] %v802
                %v804 = vld [vmem:[%s180 + $0x1370] sm:%s173]
                %805 = vst [vmem:[%s181 + $0x4dc] sm:%s173] %v804
                %v806 = vld [vmem:[%s180 + $0x1380] sm:%s173]
                %807 = vst [vmem:[%s181 + $0x4e0] sm:%s173] %v806
                %v808 = vld [vmem:[%s180 + $0x1390] sm:%s173]
                %809 = vst [vmem:[%s181 + $0x4e4] sm:%s173] %v808
                %v810 = vld [vmem:[%s180 + $0x13a0] sm:%s173]
                %811 = vst [vmem:[%s181 + $0x4e8] sm:%s173] %v810
                %v812 = vld [vmem:[%s180 + $0x13b0] sm:%s173]
                %813 = vst [vmem:[%s181 + $0x4ec] sm:%s173] %v812
                %v814 = vld [vmem:[%s180 + $0x13c0] sm:%s173]
                %815 = vst [vmem:[%s181 + $0x4f0] sm:%s173] %v814
                %v816 = vld [vmem:[%s180 + $0x13d0] sm:%s173]
                %817 = vst [vmem:[%s181 + $0x4f4] sm:%s173] %v816
                %v818 = vld [vmem:[%s180 + $0x13e0] sm:%s173]
                %819 = vst [vmem:[%s181 + $0x4f8] sm:%s173] %v818
                %v820 = vld [vmem:[%s180 + $0x13f0] sm:%s173]
                %821 = vst [vmem:[%s181 + $0x4fc] sm:%s173] %v820
                %v822 = vld [vmem:[%s180 + $0x1400] sm:%s173]
                %823 = vst [vmem:[%s181 + $0x500] sm:%s173] %v822
                %v824 = vld [vmem:[%s180 + $0x1410] sm:%s173]
                %825 = vst [vmem:[%s181 + $0x504] sm:%s173] %v824
                %v826 = vld [vmem:[%s180 + $0x1420] sm:%s173]
                %827 = vst [vmem:[%s181 + $0x508] sm:%s173] %v826
                %v828 = vld [vmem:[%s180 + $0x1430] sm:%s173]
                %829 = vst [vmem:[%s181 + $0x50c] sm:%s173] %v828
                %v830 = vld [vmem:[%s180 + $0x1440] sm:%s173]
                %831 = vst [vmem:[%s181 + $0x510] sm:%s173] %v830
                %v832 = vld [vmem:[%s180 + $0x1450] sm:%s173]
                %833 = vst [vmem:[%s181 + $0x514] sm:%s173] %v832
                %v834 = vld [vmem:[%s180 + $0x1460] sm:%s173]
                %835 = vst [vmem:[%s181 + $0x518] sm:%s173] %v834
                %v836 = vld [vmem:[%s180 + $0x1470] sm:%s173]
                %837 = vst [vmem:[%s181 + $0x51c] sm:%s173] %v836
                %v838 = vld [vmem:[%s180 + $0x1480] sm:%s173]
                %839 = vst [vmem:[%s181 + $0x520] sm:%s173] %v838
                %v840 = vld [vmem:[%s180 + $0x1490] sm:%s173]
                %841 = vst [vmem:[%s181 + $0x524] sm:%s173] %v840
                %v842 = vld [vmem:[%s180 + $0x14a0] sm:%s173]
                %843 = vst [vmem:[%s181 + $0x528] sm:%s173] %v842
                %v844 = vld [vmem:[%s180 + $0x14b0] sm:%s173]
                %845 = vst [vmem:[%s181 + $0x52c] sm:%s173] %v844
                %v846 = vld [vmem:[%s180 + $0x14c0] sm:%s173]
                %847 = vst [vmem:[%s181 + $0x530] sm:%s173] %v846
                %v848 = vld [vmem:[%s180 + $0x14d0] sm:%s173]
                %849 = vst [vmem:[%s181 + $0x534] sm:%s173] %v848
                %v850 = vld [vmem:[%s180 + $0x14e0] sm:%s173]
                %851 = vst [vmem:[%s181 + $0x538] sm:%s173] %v850
                %v852 = vld [vmem:[%s180 + $0x14f0] sm:%s173]
                %853 = vst [vmem:[%s181 + $0x53c] sm:%s173] %v852
                %v854 = vld [vmem:[%s180 + $0x1500] sm:%s173]
                %855 = vst [vmem:[%s181 + $0x540] sm:%s173] %v854
                %v856 = vld [vmem:[%s180 + $0x1510] sm:%s173]
                %857 = vst [vmem:[%s181 + $0x544] sm:%s173] %v856
                %v858 = vld [vmem:[%s180 + $0x1520] sm:%s173]
                %859 = vst [vmem:[%s181 + $0x548] sm:%s173] %v858
                %v860 = vld [vmem:[%s180 + $0x1530] sm:%s173]
                %861 = vst [vmem:[%s181 + $0x54c] sm:%s173] %v860
                %v862 = vld [vmem:[%s180 + $0x1540] sm:%s173]
                %863 = vst [vmem:[%s181 + $0x550] sm:%s173] %v862
                %v864 = vld [vmem:[%s180 + $0x1550] sm:%s173]
                %865 = vst [vmem:[%s181 + $0x554] sm:%s173] %v864
                %v866 = vld [vmem:[%s180 + $0x1560] sm:%s173]
                %867 = vst [vmem:[%s181 + $0x558] sm:%s173] %v866
                %v868 = vld [vmem:[%s180 + $0x1570] sm:%s173]
                %869 = vst [vmem:[%s181 + $0x55c] sm:%s173] %v868
                %v870 = vld [vmem:[%s180 + $0x1580] sm:%s173]
                %871 = vst [vmem:[%s181 + $0x560] sm:%s173] %v870
                %v872 = vld [vmem:[%s180 + $0x1590] sm:%s173]
                %873 = vst [vmem:[%s181 + $0x564] sm:%s173] %v872
                %v874 = vld [vmem:[%s180 + $0x15a0] sm:%s173]
                %875 = vst [vmem:[%s181 + $0x568] sm:%s173] %v874
                %v876 = vld [vmem:[%s180 + $0x15b0] sm:%s173]
                %877 = vst [vmem:[%s181 + $0x56c] sm:%s173] %v876
                %v878 = vld [vmem:[%s180 + $0x15c0] sm:%s173]
                %879 = vst [vmem:[%s181 + $0x570] sm:%s173] %v878
                %v880 = vld [vmem:[%s180 + $0x15d0] sm:%s173]
                %881 = vst [vmem:[%s181 + $0x574] sm:%s173] %v880
                %v882 = vld [vmem:[%s180 + $0x15e0] sm:%s173]
                %883 = vst [vmem:[%s181 + $0x578] sm:%s173] %v882
                %v884 = vld [vmem:[%s180 + $0x15f0] sm:%s173]
                %885 = vst [vmem:[%s181 + $0x57c] sm:%s173] %v884
                %v886 = vld [vmem:[%s180 + $0x1600] sm:%s173]
                %887 = vst [vmem:[%s181 + $0x580] sm:%s173] %v886
                %v888 = vld [vmem:[%s180 + $0x1610] sm:%s173]
                %889 = vst [vmem:[%s181 + $0x584] sm:%s173] %v888
                %v890 = vld [vmem:[%s180 + $0x1620] sm:%s173]
                %891 = vst [vmem:[%s181 + $0x588] sm:%s173] %v890
                %v892 = vld [vmem:[%s180 + $0x1630] sm:%s173]
                %893 = vst [vmem:[%s181 + $0x58c] sm:%s173] %v892
                %v894 = vld [vmem:[%s180 + $0x1640] sm:%s173]
                %895 = vst [vmem:[%s181 + $0x590] sm:%s173] %v894
                %v896 = vld [vmem:[%s180 + $0x1650] sm:%s173]
                %897 = vst [vmem:[%s181 + $0x594] sm:%s173] %v896
                %v898 = vld [vmem:[%s180 + $0x1660] sm:%s173]
                %899 = vst [vmem:[%s181 + $0x598] sm:%s173] %v898
                %v900 = vld [vmem:[%s180 + $0x1670] sm:%s173]
                %901 = vst [vmem:[%s181 + $0x59c] sm:%s173] %v900
                %v902 = vld [vmem:[%s180 + $0x1680] sm:%s173]
                %903 = vst [vmem:[%s181 + $0x5a0] sm:%s173] %v902
                %v904 = vld [vmem:[%s180 + $0x1690] sm:%s173]
                %905 = vst [vmem:[%s181 + $0x5a4] sm:%s173] %v904
                %v906 = vld [vmem:[%s180 + $0x16a0] sm:%s173]
                %907 = vst [vmem:[%s181 + $0x5a8] sm:%s173] %v906
                %v908 = vld [vmem:[%s180 + $0x16b0] sm:%s173]
                %909 = vst [vmem:[%s181 + $0x5ac] sm:%s173] %v908
                %v910 = vld [vmem:[%s180 + $0x16c0] sm:%s173]
                %911 = vst [vmem:[%s181 + $0x5b0] sm:%s173] %v910
                %v912 = vld [vmem:[%s180 + $0x16d0] sm:%s173]
                %913 = vst [vmem:[%s181 + $0x5b4] sm:%s173] %v912
                %v914 = vld [vmem:[%s180 + $0x16e0] sm:%s173]
                %915 = vst [vmem:[%s181 + $0x5b8] sm:%s173] %v914
                %v916 = vld [vmem:[%s180 + $0x16f0] sm:%s173]
                %917 = vst [vmem:[%s181 + $0x5bc] sm:%s173] %v916
                %v918 = vld [vmem:[%s180 + $0x1700] sm:%s173]
                %919 = vst [vmem:[%s181 + $0x5c0] sm:%s173] %v918
                %v920 = vld [vmem:[%s180 + $0x1710] sm:%s173]
                %921 = vst [vmem:[%s181 + $0x5c4] sm:%s173] %v920
                %v922 = vld [vmem:[%s180 + $0x1720] sm:%s173]
                %923 = vst [vmem:[%s181 + $0x5c8] sm:%s173] %v922
                %v924 = vld [vmem:[%s180 + $0x1730] sm:%s173]
                %925 = vst [vmem:[%s181 + $0x5cc] sm:%s173] %v924
                %v926 = vld [vmem:[%s180 + $0x1740] sm:%s173]
                %927 = vst [vmem:[%s181 + $0x5d0] sm:%s173] %v926
                %v928 = vld [vmem:[%s180 + $0x1750] sm:%s173]
                %929 = vst [vmem:[%s181 + $0x5d4] sm:%s173] %v928
                %v930 = vld [vmem:[%s180 + $0x1760] sm:%s173]
                %931 = vst [vmem:[%s181 + $0x5d8] sm:%s173] %v930
                %v932 = vld [vmem:[%s180 + $0x1770] sm:%s173]
                %933 = vst [vmem:[%s181 + $0x5dc] sm:%s173] %v932
                %v934 = vld [vmem:[%s180 + $0x1780] sm:%s173]
                %935 = vst [vmem:[%s181 + $0x5e0] sm:%s173] %v934
                %v936 = vld [vmem:[%s180 + $0x1790] sm:%s173]
                %937 = vst [vmem:[%s181 + $0x5e4] sm:%s173] %v936
                %v938 = vld [vmem:[%s180 + $0x17a0] sm:%s173]
                %939 = vst [vmem:[%s181 + $0x5e8] sm:%s173] %v938
                %v940 = vld [vmem:[%s180 + $0x17b0] sm:%s173]
                %941 = vst [vmem:[%s181 + $0x5ec] sm:%s173] %v940
                %v942 = vld [vmem:[%s180 + $0x17c0] sm:%s173]
                %943 = vst [vmem:[%s181 + $0x5f0] sm:%s173] %v942
                %v944 = vld [vmem:[%s180 + $0x17d0] sm:%s173]
                %945 = vst [vmem:[%s181 + $0x5f4] sm:%s173] %v944
                %v946 = vld [vmem:[%s180 + $0x17e0] sm:%s173]
                %947 = vst [vmem:[%s181 + $0x5f8] sm:%s173] %v946
                %v948 = vld [vmem:[%s180 + $0x17f0] sm:%s173]
                %949 = vst [vmem:[%s181 + $0x5fc] sm:%s173] %v948
                %v950 = vld [vmem:[%s180 + $0x1800] sm:%s173]
                %951 = vst [vmem:[%s181 + $0x600] sm:%s173] %v950
                %v952 = vld [vmem:[%s180 + $0x1810] sm:%s173]
                %953 = vst [vmem:[%s181 + $0x604] sm:%s173] %v952
                %v954 = vld [vmem:[%s180 + $0x1820] sm:%s173]
                %955 = vst [vmem:[%s181 + $0x608] sm:%s173] %v954
                %v956 = vld [vmem:[%s180 + $0x1830] sm:%s173]
                %957 = vst [vmem:[%s181 + $0x60c] sm:%s173] %v956
                %v958 = vld [vmem:[%s180 + $0x1840] sm:%s173]
                %959 = vst [vmem:[%s181 + $0x610] sm:%s173] %v958
                %v960 = vld [vmem:[%s180 + $0x1850] sm:%s173]
                %961 = vst [vmem:[%s181 + $0x614] sm:%s173] %v960
                %v962 = vld [vmem:[%s180 + $0x1860] sm:%s173]
                %963 = vst [vmem:[%s181 + $0x618] sm:%s173] %v962
                %v964 = vld [vmem:[%s180 + $0x1870] sm:%s173]
                %965 = vst [vmem:[%s181 + $0x61c] sm:%s173] %v964
              $region41: #{dqn_forward.7} parent=35 // loop_footer
                %s179 = sadd.s32 1, %s175
              $region42: #{dqn_forward.7} parent=35 // loop_footer_branch
                %174 = sbr.rel target = $region38
              $region43: #{dqn_forward.7} parent=35 // loop_exit
                _
            $region36: #{dqn_forward.7} parent=27 // pred_fallthru
              _
          $region28: #{dqn_forward.7} parent=23 // pred_fallthru
            _
          %3364 = vnop
        $region24: #{dqn_forward.7} parent=19 // pred_fallthru
          _
        // Predicated region
        $region73: #{dqn_forward.7} parent=19 // pred_check
          %p3365 = pneg %p77
        $region74: #{dqn_forward.7} parent=19 // pred_check_branch
          %3367 = sbr.rel (%p3365) target = $region76
        $region75: #{dqn_forward.7} parent=19 // pred_region
          %p3368 = scmp.lt.s32.totalorder %s10, 3
          %s3369 = scalar_select %p3368, %s10, 3
          %s3370 = scalar_lea.vmem %s2, %s3369
        $region76: #{dqn_forward.7} parent=19 // pred_fallthru
          _
        // Predicated region
        $region77: #{dqn_forward.7} parent=19 // pred_check
          %p3371 = pneg %p103
        $region78: #{dqn_forward.7} parent=19 // pred_check_branch
          %3373 = sbr.rel (%p3371) target = $region80
        $region79: #{dqn_forward.7} parent=19 // pred_region
          %s3374 = smul.u32 16, %s10
          %p3375 = scmp.lt.s32.totalorder %s3374, 63
          %s3376 = scalar_select %p3375, %s3374, 63
          %s3377 = smul.addr %s3376, 4
          %s3378 = scalar_lea.vmem %s3, %s3377
          %s3379 = smul.u32 16, %s10
        $region80: #{dqn_forward.7} parent=19 // pred_fallthru
          _
      $region20: #{dqn_forward.7} parent=5 // pred_fallthru
        _
      %p3380 = scmp.le.s32.totalorder 1, %s10
      %p3381 = scmp.lt.s32.totalorder %s10, 5
      %p3382 = pnand %p3380, %p3381
      %p3383 = pneg %p3382
      // Predicated region
      $region81: #{dqn_forward.7} parent=5 // pred_check
        _
      $region82: #{dqn_forward.7} parent=5 // pred_check_branch
        %3385 = sbr.rel (%p3382) target = $region84
      $region83: #{dqn_forward.7} parent=5 // pred_region
        %s3386 = ssub.s32 %s10, 1
        %s3387 = sand.u32 %s44, 1
        %s3388 = sand.u32 %s44, 1
        %s3389 = smul.addr %s3388, 1568
        %s3390 = scalar_lea.vmem [#allocation2], %s3389
        // Predicated region
        $region85: #{dqn_forward.7} parent=83 // pred_check
          %p3391 = pneg %p57
        $region86: #{dqn_forward.7} parent=83 // pred_check_branch
          %3393 = sbr.rel (%p3391) target = $region88
        $region87: #{dqn_forward.7} parent=83 // pred_region
          _
        $region88: #{dqn_forward.7} parent=83 // pred_fallthru
          _
        %p3394 = pneg %p31
        %p3395 = pneg %p28
        %s3396 = sand.u32 %s44, 1
        %s3397 = sand.u32 %s44, 1
        %s3398 = smul.addr %s3397, 1568
        %s3399 = scalar_lea.vmem [#allocation2], %s3398
        %p3400 = pneg %p57
        %p3401 = pneg %p54
        %p3402 = scmp.lt.s32.totalorder %s15, 3
        %s3403 = scalar_select %p3402, %s15, 3
        %s3404 = scalar_lea.vmem %s2, %s3403
        %p3405 = pneg %p83
        %p3406 = pneg %p80
        %s3407 = smul.u32 16, %s15
        %p3408 = scmp.lt.s32.totalorder %s3407, 63
        %s3409 = scalar_select %p3408, %s3407, 63
        %s3410 = smul.addr %s3409, 4
        %s3411 = scalar_lea.vmem %s3, %s3410
        %p3412 = pneg %p109
        %p3413 = pneg %p106
        %p3414 = pneg %p135
        %p3415 = pneg %p132
        %p3416 = scmp.lt.s32.totalorder %s15, 3
        %s3417 = scalar_select %p3416, %s15, 3
        %s3418 = smul.addr %s3417, 2
        %s3419 = smul.addr %s3418, 8
        %s3420 = scalar_lea.vmem %s4, %s3419
        %p3421 = scmp.lt.s32.totalorder %s15, 3
        %s3422 = scalar_select %p3421, %s15, 3
        %s3423 = scalar_lea.vmem %s2, %s3422
        %s3424 = smul.u32 16, %s15
        %p3425 = scmp.lt.s32.totalorder %s3424, 63
        %s3426 = scalar_select %p3425, %s3424, 63
        %s3427 = smul.addr %s3426, 4
        %s3428 = scalar_lea.vmem %s3, %s3427
        %s3429 = smul.u32 16, %s15
        %p3430 = scmp.lt.s32.totalorder %s15, 3
        %s3431 = scalar_select %p3430, %s15, 3
        %s3432 = smul.addr %s3431, 2
        %s3433 = smul.addr %s3432, 8
        %s3434 = scalar_lea.vmem %s4, %s3433
        %v3436 = vld [vmem:[%s0] sm:$0xff]
        %v3437 = vld [vmem:[%s0 + $0x8] sm:$0xff]
        %v3438 = vld [vmem:[%s0 + $0x10] sm:$0xff]
        %v3439 = vld [vmem:[%s0 + $0x18] sm:$0xff]
        %v3440 = vld [vmem:[%s0 + $0x20] sm:$0xff]
        %v3441 = vld [vmem:[%s0 + $0x28] sm:$0xff]
        %v3442 = vld [vmem:[%s0 + $0x30] sm:$0xff]
        %v3443 = vld [vmem:[%s0 + $0x38] sm:$0xff]
        %v3444 = vld [vmem:[%s0 + $0x40] sm:$0xff]
        %v3445 = vld [vmem:[%s0 + $0x48] sm:$0xff]
        %v3446 = vld [vmem:[%s0 + $0x50] sm:$0xff]
        %v3447 = vld [vmem:[%s0 + $0x58] sm:$0xff]
        %v3448 = vld [vmem:[%s0 + $0x60] sm:$0xf]
        %v3449 = vld [vmem:[%s0 + $0x64] sm:$0xff]
        %v3450 = vld [vmem:[%s0 + $0x6c] sm:$0xff]
        %v3451 = vld [vmem:[%s0 + $0x74] sm:$0xff]
        %v3452 = vld [vmem:[%s0 + $0x7c] sm:$0xff]
        %v3453 = vld [vmem:[%s0 + $0x84] sm:$0xff]
        %v3454 = vld [vmem:[%s0 + $0x8c] sm:$0xff]
        %v3455 = vld [vmem:[%s0 + $0x94] sm:$0xff]
        %v3456 = vld [vmem:[%s0 + $0x9c] sm:$0xff]
        %v3457 = vld [vmem:[%s0 + $0xa4] sm:$0xff]
        %v3458 = vld [vmem:[%s0 + $0xac] sm:$0xff]
        %v3459 = vld [vmem:[%s0 + $0xb4] sm:$0xff]
        %v3460 = vld [vmem:[%s0 + $0xbc] sm:$0xff]
        %v3461 = vld [vmem:[%s0 + $0xc4] sm:$0xf]
        %v3462 = vld [vmem:[%s3390] sm:$0xf]
        %v3463 = vld [vmem:[%s3390 + $0x4] sm:$0xf]
        %v3464 = vld [vmem:[%s3390 + $0x8] sm:$0xf]
        %v3465 = vld [vmem:[%s3390 + $0xc] sm:$0xf]
        %v3466 = vld [vmem:[%s3390 + $0x10] sm:$0xf]
        %v3467 = vld [vmem:[%s3390 + $0x14] sm:$0xf]
        %v3468 = vld [vmem:[%s3390 + $0x18] sm:$0xf]
        %v3469 = vld [vmem:[%s3390 + $0x1c] sm:$0xf]
        %v3470 = vld [vmem:[%s3390 + $0x20] sm:$0xf]
        %v3471 = vld [vmem:[%s3390 + $0x24] sm:$0xf]
        %v3472 = vld [vmem:[%s3390 + $0x28] sm:$0xf]
        %v3473 = vld [vmem:[%s3390 + $0x2c] sm:$0xf]
        %v3474 = vld [vmem:[%s3390 + $0x30] sm:$0xf]
        %v3475 = vld [vmem:[%s3390 + $0x34] sm:$0xf]
        %v3476 = vld [vmem:[%s3390 + $0x38] sm:$0xf]
        %v3477 = vld [vmem:[%s3390 + $0x3c] sm:$0xf]
        %v3478 = vld [vmem:[%s3390 + $0x40] sm:$0xf]
        %v3479 = vld [vmem:[%s3390 + $0x44] sm:$0xf]
        %v3480 = vld [vmem:[%s3390 + $0x48] sm:$0xf]
        %v3481 = vld [vmem:[%s3390 + $0x4c] sm:$0xf]
        %v3482 = vld [vmem:[%s3390 + $0x50] sm:$0xf]
        %v3483 = vld [vmem:[%s3390 + $0x54] sm:$0xf]
        %v3484 = vld [vmem:[%s3390 + $0x58] sm:$0xf]
        %v3485 = vld [vmem:[%s3390 + $0x5c] sm:$0xf]
        %v3486 = vld [vmem:[%s3390 + $0x60] sm:$0xf]
        %v3487 = vld [vmem:[%s3390 + $0x64] sm:$0xf]
        %v3488 = vld [vmem:[%s3390 + $0x68] sm:$0xf]
        %v3489 = vld [vmem:[%s3390 + $0x6c] sm:$0xf]
        %v3490 = vld [vmem:[%s3390 + $0x70] sm:$0xf]
        %v3491 = vld [vmem:[%s3390 + $0x74] sm:$0xf]
        %v3492 = vld [vmem:[%s3390 + $0x78] sm:$0xf]
        %v3493 = vld [vmem:[%s3390 + $0x7c] sm:$0xf]
        %v3494 = vld [vmem:[%s3390 + $0x80] sm:$0xf]
        %v3495 = vld [vmem:[%s3390 + $0x84] sm:$0xf]
        %v3496 = vld [vmem:[%s3390 + $0x88] sm:$0xf]
        %v3497 = vld [vmem:[%s3390 + $0x8c] sm:$0xf]
        %v3498 = vld [vmem:[%s3390 + $0x90] sm:$0xf]
        %v3499 = vld [vmem:[%s3390 + $0x94] sm:$0xf]
        %v3500 = vld [vmem:[%s3390 + $0x98] sm:$0xf]
        %v3501 = vld [vmem:[%s3390 + $0x9c] sm:$0xf]
        %v3502 = vld [vmem:[%s3390 + $0xa0] sm:$0xf]
        %v3503 = vld [vmem:[%s3390 + $0xa4] sm:$0xf]
        %v3504 = vld [vmem:[%s3390 + $0xa8] sm:$0xf]
        %v3505 = vld [vmem:[%s3390 + $0xac] sm:$0xf]
        %v3506 = vld [vmem:[%s3390 + $0xb0] sm:$0xf]
        %v3507 = vld [vmem:[%s3390 + $0xb4] sm:$0xf]
        %v3508 = vld [vmem:[%s3390 + $0xb8] sm:$0xf]
        %v3509 = vld [vmem:[%s3390 + $0xbc] sm:$0xf]
        %v3510 = vld [vmem:[%s3390 + $0xc0] sm:$0xf]
        %v3511 = vld [vmem:[%s3390 + $0xc4] sm:$0xf]
        %v3512 = vld [vmem:[%s3390 + $0xc8] sm:$0xf]
        %v3513 = vld [vmem:[%s3390 + $0xcc] sm:$0xf]
        %v3514 = vld [vmem:[%s3390 + $0xd0] sm:$0xf]
        %v3515 = vld [vmem:[%s3390 + $0xd4] sm:$0xf]
        %v3516 = vld [vmem:[%s3390 + $0xd8] sm:$0xf]
        %v3517 = vld [vmem:[%s3390 + $0xdc] sm:$0xf]
        %v3518 = vld [vmem:[%s3390 + $0xe0] sm:$0xf]
        %v3519 = vld [vmem:[%s3390 + $0xe4] sm:$0xf]
        %v3520 = vld [vmem:[%s3390 + $0xe8] sm:$0xf]
        %v3521 = vld [vmem:[%s3390 + $0xec] sm:$0xf]
        %v3522 = vld [vmem:[%s3390 + $0xf0] sm:$0xf]
        %v3523 = vld [vmem:[%s3390 + $0xf4] sm:$0xf]
        %v3524 = vld [vmem:[%s3390 + $0xf8] sm:$0xf]
        %v3525 = vld [vmem:[%s3390 + $0xfc] sm:$0xf]
        %v3526 = vld [vmem:[%s3390 + $0x100] sm:$0xf]
        %v3527 = vld [vmem:[%s3390 + $0x104] sm:$0xf]
        %v3528 = vld [vmem:[%s3390 + $0x108] sm:$0xf]
        %v3529 = vld [vmem:[%s3390 + $0x10c] sm:$0xf]
        %v3530 = vld [vmem:[%s3390 + $0x110] sm:$0xf]
        %v3531 = vld [vmem:[%s3390 + $0x114] sm:$0xf]
        %v3532 = vld [vmem:[%s3390 + $0x118] sm:$0xf]
        %v3533 = vld [vmem:[%s3390 + $0x11c] sm:$0xf]
        %v3534 = vld [vmem:[%s3390 + $0x120] sm:$0xf]
        %v3535 = vld [vmem:[%s3390 + $0x124] sm:$0xf]
        %v3536 = vld [vmem:[%s3390 + $0x128] sm:$0xf]
        %v3537 = vld [vmem:[%s3390 + $0x12c] sm:$0xf]
        %v3538 = vld [vmem:[%s3390 + $0x130] sm:$0xf]
        %v3539 = vld [vmem:[%s3390 + $0x134] sm:$0xf]
        %v3540 = vld [vmem:[%s3390 + $0x138] sm:$0xf]
        %v3541 = vld [vmem:[%s3390 + $0x13c] sm:$0xf]
        %v3542 = vld [vmem:[%s3390 + $0x140] sm:$0xf]
        %v3543 = vld [vmem:[%s3390 + $0x144] sm:$0xf]
        %v3544 = vld [vmem:[%s3390 + $0x148] sm:$0xf]
        %v3545 = vld [vmem:[%s3390 + $0x14c] sm:$0xf]
        %v3546 = vld [vmem:[%s3390 + $0x150] sm:$0xf]
        %v3547 = vld [vmem:[%s3390 + $0x154] sm:$0xf]
        %v3548 = vld [vmem:[%s3390 + $0x158] sm:$0xf]
        %v3549 = vld [vmem:[%s3390 + $0x15c] sm:$0xf]
        %v3550 = vld [vmem:[%s3390 + $0x160] sm:$0xf]
        %v3551 = vld [vmem:[%s3390 + $0x164] sm:$0xf]
        %v3552 = vld [vmem:[%s3390 + $0x168] sm:$0xf]
        %v3553 = vld [vmem:[%s3390 + $0x16c] sm:$0xf]
        %v3554 = vld [vmem:[%s3390 + $0x170] sm:$0xf]
        %v3555 = vld [vmem:[%s3390 + $0x174] sm:$0xf]
        %v3556 = vld [vmem:[%s3390 + $0x178] sm:$0xf]
        %v3557 = vld [vmem:[%s3390 + $0x17c] sm:$0xf]
        %v3558 = vld [vmem:[%s3390 + $0x180] sm:$0xf]
        %v3559 = vld [vmem:[%s3390 + $0x184] sm:$0xf]
        %v3560 = vld [vmem:[%s3390 + $0x188] sm:$0xf]
        %v3561 = vld [vmem:[%s3390 + $0x18c] sm:$0xf]
        %v3562 = vld [vmem:[%s3390 + $0x190] sm:$0xf]
        %v3563 = vld [vmem:[%s3390 + $0x194] sm:$0xf]
        %v3564 = vld [vmem:[%s3390 + $0x198] sm:$0xf]
        %v3565 = vld [vmem:[%s3390 + $0x19c] sm:$0xf]
        %v3566 = vld [vmem:[%s3390 + $0x1a0] sm:$0xf]
        %v3567 = vld [vmem:[%s3390 + $0x1a4] sm:$0xf]
        %v3568 = vld [vmem:[%s3390 + $0x1a8] sm:$0xf]
        %v3569 = vld [vmem:[%s3390 + $0x1ac] sm:$0xf]
        %v3570 = vld [vmem:[%s3390 + $0x1b0] sm:$0xf]
        %v3571 = vld [vmem:[%s3390 + $0x1b4] sm:$0xf]
        %v3572 = vld [vmem:[%s3390 + $0x1b8] sm:$0xf]
        %v3573 = vld [vmem:[%s3390 + $0x1bc] sm:$0xf]
        %v3574 = vld [vmem:[%s3390 + $0x1c0] sm:$0xf]
        %v3575 = vld [vmem:[%s3390 + $0x1c4] sm:$0xf]
        %v3576 = vld [vmem:[%s3390 + $0x1c8] sm:$0xf]
        %v3577 = vld [vmem:[%s3390 + $0x1cc] sm:$0xf]
        %v3578 = vld [vmem:[%s3390 + $0x1d0] sm:$0xf]
        %v3579 = vld [vmem:[%s3390 + $0x1d4] sm:$0xf]
        %v3580 = vld [vmem:[%s3390 + $0x1d8] sm:$0xf]
        %v3581 = vld [vmem:[%s3390 + $0x1dc] sm:$0xf]
        %v3582 = vld [vmem:[%s3390 + $0x1e0] sm:$0xf]
        %v3583 = vld [vmem:[%s3390 + $0x1e4] sm:$0xf]
        %v3584 = vld [vmem:[%s3390 + $0x1e8] sm:$0xf]
        %v3585 = vld [vmem:[%s3390 + $0x1ec] sm:$0xf]
        %v3586 = vld [vmem:[%s3390 + $0x1f0] sm:$0xf]
        %v3587 = vld [vmem:[%s3390 + $0x1f4] sm:$0xf]
        %v3588 = vld [vmem:[%s3390 + $0x1f8] sm:$0xf]
        %v3589 = vld [vmem:[%s3390 + $0x1fc] sm:$0xf]
        %v3590 = vld [vmem:[%s3390 + $0x200] sm:$0xf]
        %v3591 = vld [vmem:[%s3390 + $0x204] sm:$0xf]
        %v3592 = vld [vmem:[%s3390 + $0x208] sm:$0xf]
        %v3593 = vld [vmem:[%s3390 + $0x20c] sm:$0xf]
        %v3594 = vld [vmem:[%s3390 + $0x210] sm:$0xf]
        %v3595 = vld [vmem:[%s3390 + $0x214] sm:$0xf]
        %v3596 = vld [vmem:[%s3390 + $0x218] sm:$0xf]
        %v3597 = vld [vmem:[%s3390 + $0x21c] sm:$0xf]
        %v3598 = vld [vmem:[%s3390 + $0x220] sm:$0xf]
        %v3599 = vld [vmem:[%s3390 + $0x224] sm:$0xf]
        %v3600 = vld [vmem:[%s3390 + $0x228] sm:$0xf]
        %v3601 = vld [vmem:[%s3390 + $0x22c] sm:$0xf]
        %v3602 = vld [vmem:[%s3390 + $0x230] sm:$0xf]
        %v3603 = vld [vmem:[%s3390 + $0x234] sm:$0xf]
        %v3604 = vld [vmem:[%s3390 + $0x238] sm:$0xf]
        %v3605 = vld [vmem:[%s3390 + $0x23c] sm:$0xf]
        %v3606 = vld [vmem:[%s3390 + $0x240] sm:$0xf]
        %v3607 = vld [vmem:[%s3390 + $0x244] sm:$0xf]
        %v3608 = vld [vmem:[%s3390 + $0x248] sm:$0xf]
        %v3609 = vld [vmem:[%s3390 + $0x24c] sm:$0xf]
        %v3610 = vld [vmem:[%s3390 + $0x250] sm:$0xf]
        %v3611 = vld [vmem:[%s3390 + $0x254] sm:$0xf]
        %v3612 = vld [vmem:[%s3390 + $0x258] sm:$0xf]
        %v3613 = vld [vmem:[%s3390 + $0x25c] sm:$0xf]
        %v3614 = vld [vmem:[%s3390 + $0x260] sm:$0xf]
        %v3615 = vld [vmem:[%s3390 + $0x264] sm:$0xf]
        %v3616 = vld [vmem:[%s3390 + $0x268] sm:$0xf]
        %v3617 = vld [vmem:[%s3390 + $0x26c] sm:$0xf]
        %v3618 = vld [vmem:[%s3390 + $0x270] sm:$0xf]
        %v3619 = vld [vmem:[%s3390 + $0x274] sm:$0xf]
        %v3620 = vld [vmem:[%s3390 + $0x278] sm:$0xf]
        %v3621 = vld [vmem:[%s3390 + $0x27c] sm:$0xf]
        %v3622 = vld [vmem:[%s3390 + $0x280] sm:$0xf]
        %v3623 = vld [vmem:[%s3390 + $0x284] sm:$0xf]
        %v3624 = vld [vmem:[%s3390 + $0x288] sm:$0xf]
        %v3625 = vld [vmem:[%s3390 + $0x28c] sm:$0xf]
        %v3626 = vld [vmem:[%s3390 + $0x290] sm:$0xf]
        %v3627 = vld [vmem:[%s3390 + $0x294] sm:$0xf]
        %v3628 = vld [vmem:[%s3390 + $0x298] sm:$0xf]
        %v3629 = vld [vmem:[%s3390 + $0x29c] sm:$0xf]
        %v3630 = vld [vmem:[%s3390 + $0x2a0] sm:$0xf]
        %v3631 = vld [vmem:[%s3390 + $0x2a4] sm:$0xf]
        %v3632 = vld [vmem:[%s3390 + $0x2a8] sm:$0xf]
        %v3633 = vld [vmem:[%s3390 + $0x2ac] sm:$0xf]
        %v3634 = vld [vmem:[%s3390 + $0x2b0] sm:$0xf]
        %v3635 = vld [vmem:[%s3390 + $0x2b4] sm:$0xf]
        %v3636 = vld [vmem:[%s3390 + $0x2b8] sm:$0xf]
        %v3637 = vld [vmem:[%s3390 + $0x2bc] sm:$0xf]
        %v3638 = vld [vmem:[%s3390 + $0x2c0] sm:$0xf]
        %v3639 = vld [vmem:[%s3390 + $0x2c4] sm:$0xf]
        %v3640 = vld [vmem:[%s3390 + $0x2c8] sm:$0xf]
        %v3641 = vld [vmem:[%s3390 + $0x2cc] sm:$0xf]
        %v3642 = vld [vmem:[%s3390 + $0x2d0] sm:$0xf]
        %v3643 = vld [vmem:[%s3390 + $0x2d4] sm:$0xf]
        %v3644 = vld [vmem:[%s3390 + $0x2d8] sm:$0xf]
        %v3645 = vld [vmem:[%s3390 + $0x2dc] sm:$0xf]
        %v3646 = vld [vmem:[%s3390 + $0x2e0] sm:$0xf]
        %v3647 = vld [vmem:[%s3390 + $0x2e4] sm:$0xf]
        %v3648 = vld [vmem:[%s3390 + $0x2e8] sm:$0xf]
        %v3649 = vld [vmem:[%s3390 + $0x2ec] sm:$0xf]
        %v3650 = vld [vmem:[%s3390 + $0x2f0] sm:$0xf]
        %v3651 = vld [vmem:[%s3390 + $0x2f4] sm:$0xf]
        %v3652 = vld [vmem:[%s3390 + $0x2f8] sm:$0xf]
        %v3653 = vld [vmem:[%s3390 + $0x2fc] sm:$0xf]
        %v3654 = vld [vmem:[%s3390 + $0x300] sm:$0xf]
        %v3655 = vld [vmem:[%s3390 + $0x304] sm:$0xf]
        %v3656 = vld [vmem:[%s3390 + $0x308] sm:$0xf]
        %v3657 = vld [vmem:[%s3390 + $0x30c] sm:$0xf]
        %v3658 = vld [vmem:[%s3390 + $0x310] sm:$0xf]
        %v3659 = vld [vmem:[%s3390 + $0x314] sm:$0xf]
        %v3660 = vld [vmem:[%s3390 + $0x318] sm:$0xf]
        %v3661 = vld [vmem:[%s3390 + $0x31c] sm:$0xf]
        %v3662 = vld [vmem:[%s3390 + $0x320] sm:$0xf]
        %v3663 = vld [vmem:[%s3390 + $0x324] sm:$0xf]
        %v3664 = vld [vmem:[%s3390 + $0x328] sm:$0xf]
        %v3665 = vld [vmem:[%s3390 + $0x32c] sm:$0xf]
        %v3666 = vld [vmem:[%s3390 + $0x330] sm:$0xf]
        %v3667 = vld [vmem:[%s3390 + $0x334] sm:$0xf]
        %v3668 = vld [vmem:[%s3390 + $0x338] sm:$0xf]
        %v3669 = vld [vmem:[%s3390 + $0x33c] sm:$0xf]
        %v3670 = vld [vmem:[%s3390 + $0x340] sm:$0xf]
        %v3671 = vld [vmem:[%s3390 + $0x344] sm:$0xf]
        %v3672 = vld [vmem:[%s3390 + $0x348] sm:$0xf]
        %v3673 = vld [vmem:[%s3390 + $0x34c] sm:$0xf]
        %v3674 = vld [vmem:[%s3390 + $0x350] sm:$0xf]
        %v3675 = vld [vmem:[%s3390 + $0x354] sm:$0xf]
        %v3676 = vld [vmem:[%s3390 + $0x358] sm:$0xf]
        %v3677 = vld [vmem:[%s3390 + $0x35c] sm:$0xf]
        %v3678 = vld [vmem:[%s3390 + $0x360] sm:$0xf]
        %v3679 = vld [vmem:[%s3390 + $0x364] sm:$0xf]
        %v3680 = vld [vmem:[%s3390 + $0x368] sm:$0xf]
        %v3681 = vld [vmem:[%s3390 + $0x36c] sm:$0xf]
        %v3682 = vld [vmem:[%s3390 + $0x370] sm:$0xf]
        %v3683 = vld [vmem:[%s3390 + $0x374] sm:$0xf]
        %v3684 = vld [vmem:[%s3390 + $0x378] sm:$0xf]
        %v3685 = vld [vmem:[%s3390 + $0x37c] sm:$0xf]
        %v3686 = vld [vmem:[%s3390 + $0x380] sm:$0xf]
        %v3687 = vld [vmem:[%s3390 + $0x384] sm:$0xf]
        %v3688 = vld [vmem:[%s3390 + $0x388] sm:$0xf]
        %v3689 = vld [vmem:[%s3390 + $0x38c] sm:$0xf]
        %v3690 = vld [vmem:[%s3390 + $0x390] sm:$0xf]
        %v3691 = vld [vmem:[%s3390 + $0x394] sm:$0xf]
        %v3692 = vld [vmem:[%s3390 + $0x398] sm:$0xf]
        %v3693 = vld [vmem:[%s3390 + $0x39c] sm:$0xf]
        %v3694 = vld [vmem:[%s3390 + $0x3a0] sm:$0xf]
        %v3695 = vld [vmem:[%s3390 + $0x3a4] sm:$0xf]
        %v3696 = vld [vmem:[%s3390 + $0x3a8] sm:$0xf]
        %v3697 = vld [vmem:[%s3390 + $0x3ac] sm:$0xf]
        %v3698 = vld [vmem:[%s3390 + $0x3b0] sm:$0xf]
        %v3699 = vld [vmem:[%s3390 + $0x3b4] sm:$0xf]
        %v3700 = vld [vmem:[%s3390 + $0x3b8] sm:$0xf]
        %v3701 = vld [vmem:[%s3390 + $0x3bc] sm:$0xf]
        %v3702 = vld [vmem:[%s3390 + $0x3c0] sm:$0xf]
        %v3703 = vld [vmem:[%s3390 + $0x3c4] sm:$0xf]
        %v3704 = vld [vmem:[%s3390 + $0x3c8] sm:$0xf]
        %v3705 = vld [vmem:[%s3390 + $0x3cc] sm:$0xf]
        %v3706 = vld [vmem:[%s3390 + $0x3d0] sm:$0xf]
        %v3707 = vld [vmem:[%s3390 + $0x3d4] sm:$0xf]
        %v3708 = vld [vmem:[%s3390 + $0x3d8] sm:$0xf]
        %v3709 = vld [vmem:[%s3390 + $0x3dc] sm:$0xf]
        %v3710 = vld [vmem:[%s3390 + $0x3e0] sm:$0xf]
        %v3711 = vld [vmem:[%s3390 + $0x3e4] sm:$0xf]
        %v3712 = vld [vmem:[%s3390 + $0x3e8] sm:$0xf]
        %v3713 = vld [vmem:[%s3390 + $0x3ec] sm:$0xf]
        %v3714 = vld [vmem:[%s3390 + $0x3f0] sm:$0xf]
        %v3715 = vld [vmem:[%s3390 + $0x3f4] sm:$0xf]
        %v3716 = vld [vmem:[%s3390 + $0x3f8] sm:$0xf]
        %v3717 = vld [vmem:[%s3390 + $0x3fc] sm:$0xf]
        %v3718 = vld [vmem:[%s3390 + $0x400] sm:$0xf]
        %v3719 = vld [vmem:[%s3390 + $0x404] sm:$0xf]
        %v3720 = vld [vmem:[%s3390 + $0x408] sm:$0xf]
        %v3721 = vld [vmem:[%s3390 + $0x40c] sm:$0xf]
        %v3722 = vld [vmem:[%s3390 + $0x410] sm:$0xf]
        %v3723 = vld [vmem:[%s3390 + $0x414] sm:$0xf]
        %v3724 = vld [vmem:[%s3390 + $0x418] sm:$0xf]
        %v3725 = vld [vmem:[%s3390 + $0x41c] sm:$0xf]
        %v3726 = vld [vmem:[%s3390 + $0x420] sm:$0xf]
        %v3727 = vld [vmem:[%s3390 + $0x424] sm:$0xf]
        %v3728 = vld [vmem:[%s3390 + $0x428] sm:$0xf]
        %v3729 = vld [vmem:[%s3390 + $0x42c] sm:$0xf]
        %v3730 = vld [vmem:[%s3390 + $0x430] sm:$0xf]
        %v3731 = vld [vmem:[%s3390 + $0x434] sm:$0xf]
        %v3732 = vld [vmem:[%s3390 + $0x438] sm:$0xf]
        %v3733 = vld [vmem:[%s3390 + $0x43c] sm:$0xf]
        %v3734 = vld [vmem:[%s3390 + $0x440] sm:$0xf]
        %v3735 = vld [vmem:[%s3390 + $0x444] sm:$0xf]
        %v3736 = vld [vmem:[%s3390 + $0x448] sm:$0xf]
        %v3737 = vld [vmem:[%s3390 + $0x44c] sm:$0xf]
        %v3738 = vld [vmem:[%s3390 + $0x450] sm:$0xf]
        %v3739 = vld [vmem:[%s3390 + $0x454] sm:$0xf]
        %v3740 = vld [vmem:[%s3390 + $0x458] sm:$0xf]
        %v3741 = vld [vmem:[%s3390 + $0x45c] sm:$0xf]
        %v3742 = vld [vmem:[%s3390 + $0x460] sm:$0xf]
        %v3743 = vld [vmem:[%s3390 + $0x464] sm:$0xf]
        %v3744 = vld [vmem:[%s3390 + $0x468] sm:$0xf]
        %v3745 = vld [vmem:[%s3390 + $0x46c] sm:$0xf]
        %v3746 = vld [vmem:[%s3390 + $0x470] sm:$0xf]
        %v3747 = vld [vmem:[%s3390 + $0x474] sm:$0xf]
        %v3748 = vld [vmem:[%s3390 + $0x478] sm:$0xf]
        %v3749 = vld [vmem:[%s3390 + $0x47c] sm:$0xf]
        %v3750 = vld [vmem:[%s3390 + $0x480] sm:$0xf]
        %v3751 = vld [vmem:[%s3390 + $0x484] sm:$0xf]
        %v3752 = vld [vmem:[%s3390 + $0x488] sm:$0xf]
        %v3753 = vld [vmem:[%s3390 + $0x48c] sm:$0xf]
        %v3754 = vld [vmem:[%s3390 + $0x490] sm:$0xf]
        %v3755 = vld [vmem:[%s3390 + $0x494] sm:$0xf]
        %v3756 = vld [vmem:[%s3390 + $0x498] sm:$0xf]
        %v3757 = vld [vmem:[%s3390 + $0x49c] sm:$0xf]
        %v3758 = vld [vmem:[%s3390 + $0x4a0] sm:$0xf]
        %v3759 = vld [vmem:[%s3390 + $0x4a4] sm:$0xf]
        %v3760 = vld [vmem:[%s3390 + $0x4a8] sm:$0xf]
        %v3761 = vld [vmem:[%s3390 + $0x4ac] sm:$0xf]
        %v3762 = vld [vmem:[%s3390 + $0x4b0] sm:$0xf]
        %v3763 = vld [vmem:[%s3390 + $0x4b4] sm:$0xf]
        %v3764 = vld [vmem:[%s3390 + $0x4b8] sm:$0xf]
        %v3765 = vld [vmem:[%s3390 + $0x4bc] sm:$0xf]
        %v3766 = vld [vmem:[%s3390 + $0x4c0] sm:$0xf]
        %v3767 = vld [vmem:[%s3390 + $0x4c4] sm:$0xf]
        %v3768 = vld [vmem:[%s3390 + $0x4c8] sm:$0xf]
        %v3769 = vld [vmem:[%s3390 + $0x4cc] sm:$0xf]
        %v3770 = vld [vmem:[%s3390 + $0x4d0] sm:$0xf]
        %v3771 = vld [vmem:[%s3390 + $0x4d4] sm:$0xf]
        %v3772 = vld [vmem:[%s3390 + $0x4d8] sm:$0xf]
        %v3773 = vld [vmem:[%s3390 + $0x4dc] sm:$0xf]
        %v3774 = vld [vmem:[%s3390 + $0x4e0] sm:$0xf]
        %v3775 = vld [vmem:[%s3390 + $0x4e4] sm:$0xf]
        %v3776 = vld [vmem:[%s3390 + $0x4e8] sm:$0xf]
        %v3777 = vld [vmem:[%s3390 + $0x4ec] sm:$0xf]
        %v3778 = vld [vmem:[%s3390 + $0x4f0] sm:$0xf]
        %v3779 = vld [vmem:[%s3390 + $0x4f4] sm:$0xf]
        %v3780 = vld [vmem:[%s3390 + $0x4f8] sm:$0xf]
        %v3781 = vld [vmem:[%s3390 + $0x4fc] sm:$0xf]
        %v3782 = vld [vmem:[%s3390 + $0x500] sm:$0xf]
        %v3783 = vld [vmem:[%s3390 + $0x504] sm:$0xf]
        %v3784 = vld [vmem:[%s3390 + $0x508] sm:$0xf]
        %v3785 = vld [vmem:[%s3390 + $0x50c] sm:$0xf]
        %v3786 = vld [vmem:[%s3390 + $0x510] sm:$0xf]
        %v3787 = vld [vmem:[%s3390 + $0x514] sm:$0xf]
        %v3788 = vld [vmem:[%s3390 + $0x518] sm:$0xf]
        %v3789 = vld [vmem:[%s3390 + $0x51c] sm:$0xf]
        %v3790 = vld [vmem:[%s3390 + $0x520] sm:$0xf]
        %v3791 = vld [vmem:[%s3390 + $0x524] sm:$0xf]
        %v3792 = vld [vmem:[%s3390 + $0x528] sm:$0xf]
        %v3793 = vld [vmem:[%s3390 + $0x52c] sm:$0xf]
        %v3794 = vld [vmem:[%s3390 + $0x530] sm:$0xf]
        %v3795 = vld [vmem:[%s3390 + $0x534] sm:$0xf]
        %v3796 = vld [vmem:[%s3390 + $0x538] sm:$0xf]
        %v3797 = vld [vmem:[%s3390 + $0x53c] sm:$0xf]
        %v3798 = vld [vmem:[%s3390 + $0x540] sm:$0xf]
        %v3799 = vld [vmem:[%s3390 + $0x544] sm:$0xf]
        %v3800 = vld [vmem:[%s3390 + $0x548] sm:$0xf]
        %v3801 = vld [vmem:[%s3390 + $0x54c] sm:$0xf]
        %v3802 = vld [vmem:[%s3390 + $0x550] sm:$0xf]
        %v3803 = vld [vmem:[%s3390 + $0x554] sm:$0xf]
        %v3804 = vld [vmem:[%s3390 + $0x558] sm:$0xf]
        %v3805 = vld [vmem:[%s3390 + $0x55c] sm:$0xf]
        %v3806 = vld [vmem:[%s3390 + $0x560] sm:$0xf]
        %v3807 = vld [vmem:[%s3390 + $0x564] sm:$0xf]
        %v3808 = vld [vmem:[%s3390 + $0x568] sm:$0xf]
        %v3809 = vld [vmem:[%s3390 + $0x56c] sm:$0xf]
        %v3810 = vld [vmem:[%s3390 + $0x570] sm:$0xf]
        %v3811 = vld [vmem:[%s3390 + $0x574] sm:$0xf]
        %v3812 = vld [vmem:[%s3390 + $0x578] sm:$0xf]
        %v3813 = vld [vmem:[%s3390 + $0x57c] sm:$0xf]
        %v3814 = vld [vmem:[%s3390 + $0x580] sm:$0xf]
        %v3815 = vld [vmem:[%s3390 + $0x584] sm:$0xf]
        %v3816 = vld [vmem:[%s3390 + $0x588] sm:$0xf]
        %v3817 = vld [vmem:[%s3390 + $0x58c] sm:$0xf]
        %v3818 = vld [vmem:[%s3390 + $0x590] sm:$0xf]
        %v3819 = vld [vmem:[%s3390 + $0x594] sm:$0xf]
        %v3820 = vld [vmem:[%s3390 + $0x598] sm:$0xf]
        %v3821 = vld [vmem:[%s3390 + $0x59c] sm:$0xf]
        %v3822 = vld [vmem:[%s3390 + $0x5a0] sm:$0xf]
        %v3823 = vld [vmem:[%s3390 + $0x5a4] sm:$0xf]
        %v3824 = vld [vmem:[%s3390 + $0x5a8] sm:$0xf]
        %v3825 = vld [vmem:[%s3390 + $0x5ac] sm:$0xf]
        %v3826 = vld [vmem:[%s3390 + $0x5b0] sm:$0xf]
        %v3827 = vld [vmem:[%s3390 + $0x5b4] sm:$0xf]
        %v3828 = vld [vmem:[%s3390 + $0x5b8] sm:$0xf]
        %v3829 = vld [vmem:[%s3390 + $0x5bc] sm:$0xf]
        %v3830 = vld [vmem:[%s3390 + $0x5c0] sm:$0xf]
        %v3831 = vld [vmem:[%s3390 + $0x5c4] sm:$0xf]
        %v3832 = vld [vmem:[%s3390 + $0x5c8] sm:$0xf]
        %v3833 = vld [vmem:[%s3390 + $0x5cc] sm:$0xf]
        %v3834 = vld [vmem:[%s3390 + $0x5d0] sm:$0xf]
        %v3835 = vld [vmem:[%s3390 + $0x5d4] sm:$0xf]
        %v3836 = vld [vmem:[%s3390 + $0x5d8] sm:$0xf]
        %v3837 = vld [vmem:[%s3390 + $0x5dc] sm:$0xf]
        %v3838 = vld [vmem:[%s3390 + $0x5e0] sm:$0xf]
        %v3839 = vld [vmem:[%s3390 + $0x5e4] sm:$0xf]
        %v3840 = vld [vmem:[%s3390 + $0x5e8] sm:$0xf]
        %v3841 = vld [vmem:[%s3390 + $0x5ec] sm:$0xf]
        %v3842 = vld [vmem:[%s3390 + $0x5f0] sm:$0xf]
        %v3843 = vld [vmem:[%s3390 + $0x5f4] sm:$0xf]
        %v3844 = vld [vmem:[%s3390 + $0x5f8] sm:$0xf]
        %v3845 = vld [vmem:[%s3390 + $0x5fc] sm:$0xf]
        %v3846 = vld [vmem:[%s3390 + $0x600] sm:$0xf]
        %v3847 = vld [vmem:[%s3390 + $0x604] sm:$0xf]
        %v3848 = vld [vmem:[%s3390 + $0x608] sm:$0xf]
        %v3849 = vld [vmem:[%s3390 + $0x60c] sm:$0xf]
        %v3850 = vld [vmem:[%s3390 + $0x610] sm:$0xf]
        %v3851 = vld [vmem:[%s3390 + $0x614] sm:$0xf]
        %v3852 = vld [vmem:[%s3390 + $0x618] sm:$0xf]
        %v3853 = vld [vmem:[%s3390 + $0x61c] sm:$0xf]
        %v3854 = vld [vmem:[%s3423] sm:$0x1]
        %v3856 = vperm.slane %v3854, 0
        %v3884 = vunpack.c.l.b16 %v3436
        %v3885 = vunpack.c.h.b16 %v3436
        %v3886 = vunpack.c.l.b16 %v3437
        %v3887 = vunpack.c.h.b16 %v3437
        %v3888 = vunpack.c.l.b16 %v3438
        %v3889 = vunpack.c.h.b16 %v3438
        %v3890 = vunpack.c.l.b16 %v3439
        %v3891 = vunpack.c.h.b16 %v3439
        %v3892 = vunpack.c.l.b16 %v3440
        %v3893 = vunpack.c.h.b16 %v3440
        %v3894 = vunpack.c.l.b16 %v3441
        %v3895 = vunpack.c.h.b16 %v3441
        %v3896 = vunpack.c.l.b16 %v3442
        %v3897 = vunpack.c.h.b16 %v3442
        %v3898 = vunpack.c.l.b16 %v3443
        %v3899 = vunpack.c.h.b16 %v3443
        %v3900 = vunpack.c.l.b16 %v3444
        %v3901 = vunpack.c.h.b16 %v3444
        %v3902 = vunpack.c.l.b16 %v3445
        %v3903 = vunpack.c.h.b16 %v3445
        %v3904 = vunpack.c.l.b16 %v3446
        %v3905 = vunpack.c.h.b16 %v3446
        %v3906 = vunpack.c.l.b16 %v3447
        %v3907 = vunpack.c.h.b16 %v3447
        %v3908 = vunpack.c.l.b16 %v3448
        %v3909 = vunpack.c.l.b16 %v3449
        %v3910 = vunpack.c.h.b16 %v3449
        %v3911 = vunpack.c.l.b16 %v3450
        %v3912 = vunpack.c.h.b16 %v3450
        %v3913 = vunpack.c.l.b16 %v3451
        %v3914 = vunpack.c.h.b16 %v3451
        %v3915 = vunpack.c.l.b16 %v3452
        %v3916 = vunpack.c.h.b16 %v3452
        %v3917 = vunpack.c.l.b16 %v3453
        %v3918 = vunpack.c.h.b16 %v3453
        %v3919 = vunpack.c.l.b16 %v3454
        %v3920 = vunpack.c.h.b16 %v3454
        %v3921 = vunpack.c.l.b16 %v3455
        %v3922 = vunpack.c.h.b16 %v3455
        %v3923 = vunpack.c.l.b16 %v3456
        %v3924 = vunpack.c.h.b16 %v3456
        %v3925 = vunpack.c.l.b16 %v3457
        %v3926 = vunpack.c.h.b16 %v3457
        %v3927 = vunpack.c.l.b16 %v3458
        %v3928 = vunpack.c.h.b16 %v3458
        %v3929 = vunpack.c.l.b16 %v3459
        %v3930 = vunpack.c.h.b16 %v3459
        %v3931 = vunpack.c.l.b16 %v3460
        %v3932 = vunpack.c.h.b16 %v3460
        %v3933 = vunpack.c.l.b16 %v3461
        %v3934 = vpack.c.b16 %v3909, %v3884
        %v3935 = vpack.c.b16 %v3910, %v3885
        %v3936 = vpack.c.b16 %v3911, %v3886
        %v3937 = vpack.c.b16 %v3912, %v3887
        %v3938 = vpack.c.b16 %v3913, %v3888
        %v3939 = vpack.c.b16 %v3914, %v3889
        %v3940 = vpack.c.b16 %v3915, %v3890
        %v3941 = vpack.c.b16 %v3916, %v3891
        %v3942 = vpack.c.b16 %v3917, %v3892
        %v3943 = vpack.c.b16 %v3918, %v3893
        %v3944 = vpack.c.b16 %v3919, %v3894
        %v3945 = vpack.c.b16 %v3920, %v3895
        %v3946 = vpack.c.b16 %v3921, %v3896
        %v3947 = vpack.c.b16 %v3922, %v3897
        %v3948 = vpack.c.b16 %v3923, %v3898
        %v3949 = vpack.c.b16 %v3924, %v3899
        %v3950 = vpack.c.b16 %v3925, %v3900
        %v3951 = vpack.c.b16 %v3926, %v3901
        %v3952 = vpack.c.b16 %v3927, %v3902
        %v3953 = vpack.c.b16 %v3928, %v3903
        %v3954 = vpack.c.b16 %v3929, %v3904
        %v3955 = vpack.c.b16 %v3930, %v3905
        %v3956 = vpack.c.b16 %v3931, %v3906
        %v3957 = vpack.c.b16 %v3932, %v3907
        %v3958 = vpack.c.b16 %v3933, %v3908
        %v4375 = vunpack.c.l.b16 %v3462
        %v4376 = vunpack.c.l.b16 %v3463
        %v4377 = vunpack.c.l.b16 %v3464
        %v4378 = vunpack.c.l.b16 %v3465
        %v4379 = vunpack.c.l.b16 %v3466
        %v4380 = vunpack.c.l.b16 %v3467
        %v4381 = vunpack.c.l.b16 %v3468
        %v4382 = vunpack.c.l.b16 %v3469
        %v4383 = vunpack.c.l.b16 %v3470
        %v4384 = vunpack.c.l.b16 %v3471
        %v4385 = vunpack.c.l.b16 %v3472
        %v4386 = vunpack.c.l.b16 %v3473
        %v4387 = vunpack.c.l.b16 %v3474
        %v4388 = vunpack.c.l.b16 %v3475
        %v4389 = vunpack.c.l.b16 %v3476
        %v4390 = vunpack.c.l.b16 %v3477
        %v4391 = vunpack.c.l.b16 %v3478
        %v4392 = vunpack.c.l.b16 %v3479
        %v4393 = vunpack.c.l.b16 %v3480
        %v4394 = vunpack.c.l.b16 %v3481
        %v4395 = vunpack.c.l.b16 %v3482
        %v4396 = vunpack.c.l.b16 %v3483
        %v4397 = vunpack.c.l.b16 %v3484
        %v4398 = vunpack.c.l.b16 %v3485
        %v4399 = vunpack.c.l.b16 %v3486
        %v4400 = vunpack.c.l.b16 %v3487
        %v4401 = vunpack.c.l.b16 %v3488
        %v4402 = vunpack.c.l.b16 %v3489
        %v4403 = vunpack.c.l.b16 %v3490
        %v4404 = vunpack.c.l.b16 %v3491
        %v4405 = vunpack.c.l.b16 %v3492
        %v4406 = vunpack.c.l.b16 %v3493
        %v4407 = vunpack.c.l.b16 %v3494
        %v4408 = vunpack.c.l.b16 %v3495
        %v4409 = vunpack.c.l.b16 %v3496
        %v4410 = vunpack.c.l.b16 %v3497
        %v4411 = vunpack.c.l.b16 %v3498
        %v4412 = vunpack.c.l.b16 %v3499
        %v4413 = vunpack.c.l.b16 %v3500
        %v4414 = vunpack.c.l.b16 %v3501
        %v4415 = vunpack.c.l.b16 %v3502
        %v4416 = vunpack.c.l.b16 %v3503
        %v4417 = vunpack.c.l.b16 %v3504
        %v4418 = vunpack.c.l.b16 %v3505
        %v4419 = vunpack.c.l.b16 %v3506
        %v4420 = vunpack.c.l.b16 %v3507
        %v4421 = vunpack.c.l.b16 %v3508
        %v4422 = vunpack.c.l.b16 %v3509
        %v4423 = vunpack.c.l.b16 %v3510
        %v4424 = vunpack.c.l.b16 %v3511
        %v4425 = vunpack.c.l.b16 %v3512
        %v4426 = vunpack.c.l.b16 %v3513
        %v4427 = vunpack.c.l.b16 %v3514
        %v4428 = vunpack.c.l.b16 %v3515
        %v4429 = vunpack.c.l.b16 %v3516
        %v4430 = vunpack.c.l.b16 %v3517
        %v4431 = vunpack.c.l.b16 %v3518
        %v4432 = vunpack.c.l.b16 %v3519
        %v4433 = vunpack.c.l.b16 %v3520
        %v4434 = vunpack.c.l.b16 %v3521
        %v4435 = vunpack.c.l.b16 %v3522
        %v4436 = vunpack.c.l.b16 %v3523
        %v4437 = vunpack.c.l.b16 %v3524
        %v4438 = vunpack.c.l.b16 %v3525
        %v4439 = vunpack.c.l.b16 %v3526
        %v4440 = vunpack.c.l.b16 %v3527
        %v4441 = vunpack.c.l.b16 %v3528
        %v4442 = vunpack.c.l.b16 %v3529
        %v4443 = vunpack.c.l.b16 %v3530
        %v4444 = vunpack.c.l.b16 %v3531
        %v4445 = vunpack.c.l.b16 %v3532
        %v4446 = vunpack.c.l.b16 %v3533
        %v4447 = vunpack.c.l.b16 %v3534
        %v4448 = vunpack.c.l.b16 %v3535
        %v4449 = vunpack.c.l.b16 %v3536
        %v4450 = vunpack.c.l.b16 %v3537
        %v4451 = vunpack.c.l.b16 %v3538
        %v4452 = vunpack.c.l.b16 %v3539
        %v4453 = vunpack.c.l.b16 %v3540
        %v4454 = vunpack.c.l.b16 %v3541
        %v4455 = vunpack.c.l.b16 %v3542
        %v4456 = vunpack.c.l.b16 %v3543
        %v4457 = vunpack.c.l.b16 %v3544
        %v4458 = vunpack.c.l.b16 %v3545
        %v4459 = vunpack.c.l.b16 %v3546
        %v4460 = vunpack.c.l.b16 %v3547
        %v4461 = vunpack.c.l.b16 %v3548
        %v4462 = vunpack.c.l.b16 %v3549
        %v4463 = vunpack.c.l.b16 %v3550
        %v4464 = vunpack.c.l.b16 %v3551
        %v4465 = vunpack.c.l.b16 %v3552
        %v4466 = vunpack.c.l.b16 %v3553
        %v4467 = vunpack.c.l.b16 %v3554
        %v4468 = vunpack.c.l.b16 %v3555
        %v4469 = vunpack.c.l.b16 %v3556
        %v4470 = vunpack.c.l.b16 %v3557
        %v4471 = vunpack.c.l.b16 %v3558
        %v4472 = vunpack.c.l.b16 %v3559
        %v4473 = vunpack.c.l.b16 %v3560
        %v4474 = vunpack.c.l.b16 %v3561
        %v4475 = vunpack.c.l.b16 %v3562
        %v4476 = vunpack.c.l.b16 %v3563
        %v4477 = vunpack.c.l.b16 %v3564
        %v4478 = vunpack.c.l.b16 %v3565
        %v4479 = vunpack.c.l.b16 %v3566
        %v4480 = vunpack.c.l.b16 %v3567
        %v4481 = vunpack.c.l.b16 %v3568
        %v4482 = vunpack.c.l.b16 %v3569
        %v4483 = vunpack.c.l.b16 %v3570
        %v4484 = vunpack.c.l.b16 %v3571
        %v4485 = vunpack.c.l.b16 %v3572
        %v4486 = vunpack.c.l.b16 %v3573
        %v4487 = vunpack.c.l.b16 %v3574
        %v4488 = vunpack.c.l.b16 %v3575
        %v4489 = vunpack.c.l.b16 %v3576
        %v4490 = vunpack.c.l.b16 %v3577
        %v4491 = vunpack.c.l.b16 %v3578
        %v4492 = vunpack.c.l.b16 %v3579
        %v4493 = vunpack.c.l.b16 %v3580
        %v4494 = vunpack.c.l.b16 %v3581
        %v4495 = vunpack.c.l.b16 %v3582
        %v4496 = vunpack.c.l.b16 %v3583
        %v4497 = vunpack.c.l.b16 %v3584
        %v4498 = vunpack.c.l.b16 %v3585
        %v4499 = vunpack.c.l.b16 %v3586
        %v4500 = vunpack.c.l.b16 %v3587
        %v4501 = vunpack.c.l.b16 %v3588
        %v4502 = vunpack.c.l.b16 %v3589
        %v4503 = vunpack.c.l.b16 %v3590
        %v4504 = vunpack.c.l.b16 %v3591
        %v4505 = vunpack.c.l.b16 %v3592
        %v4506 = vunpack.c.l.b16 %v3593
        %v4507 = vunpack.c.l.b16 %v3594
        %v4508 = vunpack.c.l.b16 %v3595
        %v4509 = vunpack.c.l.b16 %v3596
        %v4510 = vunpack.c.l.b16 %v3597
        %v4511 = vunpack.c.l.b16 %v3598
        %v4512 = vunpack.c.l.b16 %v3599
        %v4513 = vunpack.c.l.b16 %v3600
        %v4514 = vunpack.c.l.b16 %v3601
        %v4515 = vunpack.c.l.b16 %v3602
        %v4516 = vunpack.c.l.b16 %v3603
        %v4517 = vunpack.c.l.b16 %v3604
        %v4518 = vunpack.c.l.b16 %v3605
        %v4519 = vunpack.c.l.b16 %v3606
        %v4520 = vunpack.c.l.b16 %v3607
        %v4521 = vunpack.c.l.b16 %v3608
        %v4522 = vunpack.c.l.b16 %v3609
        %v4523 = vunpack.c.l.b16 %v3610
        %v4524 = vunpack.c.l.b16 %v3611
        %v4525 = vunpack.c.l.b16 %v3612
        %v4526 = vunpack.c.l.b16 %v3613
        %v4527 = vunpack.c.l.b16 %v3614
        %v4528 = vunpack.c.l.b16 %v3615
        %v4529 = vunpack.c.l.b16 %v3616
        %v4530 = vunpack.c.l.b16 %v3617
        %v4531 = vunpack.c.l.b16 %v3618
        %v4532 = vunpack.c.l.b16 %v3619
        %v4533 = vunpack.c.l.b16 %v3620
        %v4534 = vunpack.c.l.b16 %v3621
        %v4535 = vunpack.c.l.b16 %v3622
        %v4536 = vunpack.c.l.b16 %v3623
        %v4537 = vunpack.c.l.b16 %v3624
        %v4538 = vunpack.c.l.b16 %v3625
        %v4539 = vunpack.c.l.b16 %v3626
        %v4540 = vunpack.c.l.b16 %v3627
        %v4541 = vunpack.c.l.b16 %v3628
        %v4542 = vunpack.c.l.b16 %v3629
        %v4543 = vunpack.c.l.b16 %v3630
        %v4544 = vunpack.c.l.b16 %v3631
        %v4545 = vunpack.c.l.b16 %v3632
        %v4546 = vunpack.c.l.b16 %v3633
        %v4547 = vunpack.c.l.b16 %v3634
        %v4548 = vunpack.c.l.b16 %v3635
        %v4549 = vunpack.c.l.b16 %v3636
        %v4550 = vunpack.c.l.b16 %v3637
        %v4551 = vunpack.c.l.b16 %v3638
        %v4552 = vunpack.c.l.b16 %v3639
        %v4553 = vunpack.c.l.b16 %v3640
        %v4554 = vunpack.c.l.b16 %v3641
        %v4555 = vunpack.c.l.b16 %v3642
        %v4556 = vunpack.c.l.b16 %v3643
        %v4557 = vunpack.c.l.b16 %v3644
        %v4558 = vunpack.c.l.b16 %v3645
        %v4559 = vunpack.c.l.b16 %v3646
        %v4560 = vunpack.c.l.b16 %v3647
        %v4561 = vunpack.c.l.b16 %v3648
        %v4562 = vunpack.c.l.b16 %v3649
        %v4563 = vunpack.c.l.b16 %v3650
        %v4564 = vunpack.c.l.b16 %v3651
        %v4565 = vunpack.c.l.b16 %v3652
        %v4566 = vunpack.c.l.b16 %v3653
        %v4567 = vunpack.c.l.b16 %v3654
        %v4568 = vunpack.c.l.b16 %v3655
        %v4569 = vunpack.c.l.b16 %v3656
        %v4570 = vunpack.c.l.b16 %v3657
        %v4571 = vunpack.c.l.b16 %v3658
        %v4572 = vunpack.c.l.b16 %v3659
        %v4573 = vunpack.c.l.b16 %v3660
        %v4574 = vunpack.c.l.b16 %v3661
        %v4575 = vunpack.c.l.b16 %v3662
        %v4576 = vunpack.c.l.b16 %v3663
        %v4577 = vunpack.c.l.b16 %v3664
        %v4578 = vunpack.c.l.b16 %v3665
        %v4579 = vunpack.c.l.b16 %v3666
        %v4580 = vunpack.c.l.b16 %v3667
        %v4581 = vunpack.c.l.b16 %v3668
        %v4582 = vunpack.c.l.b16 %v3669
        %v4583 = vunpack.c.l.b16 %v3670
        %v4584 = vunpack.c.l.b16 %v3671
        %v4585 = vunpack.c.l.b16 %v3672
        %v4586 = vunpack.c.l.b16 %v3673
        %v4587 = vunpack.c.l.b16 %v3674
        %v4588 = vunpack.c.l.b16 %v3675
        %v4589 = vunpack.c.l.b16 %v3676
        %v4590 = vunpack.c.l.b16 %v3677
        %v4591 = vunpack.c.l.b16 %v3678
        %v4592 = vunpack.c.l.b16 %v3679
        %v4593 = vunpack.c.l.b16 %v3680
        %v4594 = vunpack.c.l.b16 %v3681
        %v4595 = vunpack.c.l.b16 %v3682
        %v4596 = vunpack.c.l.b16 %v3683
        %v4597 = vunpack.c.l.b16 %v3684
        %v4598 = vunpack.c.l.b16 %v3685
        %v4599 = vunpack.c.l.b16 %v3686
        %v4600 = vunpack.c.l.b16 %v3687
        %v4601 = vunpack.c.l.b16 %v3688
        %v4602 = vunpack.c.l.b16 %v3689
        %v4603 = vunpack.c.l.b16 %v3690
        %v4604 = vunpack.c.l.b16 %v3691
        %v4605 = vunpack.c.l.b16 %v3692
        %v4606 = vunpack.c.l.b16 %v3693
        %v4607 = vunpack.c.l.b16 %v3694
        %v4608 = vunpack.c.l.b16 %v3695
        %v4609 = vunpack.c.l.b16 %v3696
        %v4610 = vunpack.c.l.b16 %v3697
        %v4611 = vunpack.c.l.b16 %v3698
        %v4612 = vunpack.c.l.b16 %v3699
        %v4613 = vunpack.c.l.b16 %v3700
        %v4614 = vunpack.c.l.b16 %v3701
        %v4615 = vunpack.c.l.b16 %v3702
        %v4616 = vunpack.c.l.b16 %v3703
        %v4617 = vunpack.c.l.b16 %v3704
        %v4618 = vunpack.c.l.b16 %v3705
        %v4619 = vunpack.c.l.b16 %v3706
        %v4620 = vunpack.c.l.b16 %v3707
        %v4621 = vunpack.c.l.b16 %v3708
        %v4622 = vunpack.c.l.b16 %v3709
        %v4623 = vunpack.c.l.b16 %v3710
        %v4624 = vunpack.c.l.b16 %v3711
        %v4625 = vunpack.c.l.b16 %v3712
        %v4626 = vunpack.c.l.b16 %v3713
        %v4627 = vunpack.c.l.b16 %v3714
        %v4628 = vunpack.c.l.b16 %v3715
        %v4629 = vunpack.c.l.b16 %v3716
        %v4630 = vunpack.c.l.b16 %v3717
        %v4631 = vunpack.c.l.b16 %v3718
        %v4632 = vunpack.c.l.b16 %v3719
        %v4633 = vunpack.c.l.b16 %v3720
        %v4634 = vunpack.c.l.b16 %v3721
        %v4635 = vunpack.c.l.b16 %v3722
        %v4636 = vunpack.c.l.b16 %v3723
        %v4637 = vunpack.c.l.b16 %v3724
        %v4638 = vunpack.c.l.b16 %v3725
        %v4639 = vunpack.c.l.b16 %v3726
        %v4640 = vunpack.c.l.b16 %v3727
        %v4641 = vunpack.c.l.b16 %v3728
        %v4642 = vunpack.c.l.b16 %v3729
        %v4643 = vunpack.c.l.b16 %v3730
        %v4644 = vunpack.c.l.b16 %v3731
        %v4645 = vunpack.c.l.b16 %v3732
        %v4646 = vunpack.c.l.b16 %v3733
        %v4647 = vunpack.c.l.b16 %v3734
        %v4648 = vunpack.c.l.b16 %v3735
        %v4649 = vunpack.c.l.b16 %v3736
        %v4650 = vunpack.c.l.b16 %v3737
        %v4651 = vunpack.c.l.b16 %v3738
        %v4652 = vunpack.c.l.b16 %v3739
        %v4653 = vunpack.c.l.b16 %v3740
        %v4654 = vunpack.c.l.b16 %v3741
        %v4655 = vunpack.c.l.b16 %v3742
        %v4656 = vunpack.c.l.b16 %v3743
        %v4657 = vunpack.c.l.b16 %v3744
        %v4658 = vunpack.c.l.b16 %v3745
        %v4659 = vunpack.c.l.b16 %v3746
        %v4660 = vunpack.c.l.b16 %v3747
        %v4661 = vunpack.c.l.b16 %v3748
        %v4662 = vunpack.c.l.b16 %v3749
        %v4663 = vunpack.c.l.b16 %v3750
        %v4664 = vunpack.c.l.b16 %v3751
        %v4665 = vunpack.c.l.b16 %v3752
        %v4666 = vunpack.c.l.b16 %v3753
        %v4667 = vunpack.c.l.b16 %v3754
        %v4668 = vunpack.c.l.b16 %v3755
        %v4669 = vunpack.c.l.b16 %v3756
        %v4670 = vunpack.c.l.b16 %v3757
        %v4671 = vunpack.c.l.b16 %v3758
        %v4672 = vunpack.c.l.b16 %v3759
        %v4673 = vunpack.c.l.b16 %v3760
        %v4674 = vunpack.c.l.b16 %v3761
        %v4675 = vunpack.c.l.b16 %v3762
        %v4676 = vunpack.c.l.b16 %v3763
        %v4677 = vunpack.c.l.b16 %v3764
        %v4678 = vunpack.c.l.b16 %v3765
        %v4679 = vunpack.c.l.b16 %v3766
        %v4680 = vunpack.c.l.b16 %v3767
        %v4681 = vunpack.c.l.b16 %v3768
        %v4682 = vunpack.c.l.b16 %v3769
        %v4683 = vunpack.c.l.b16 %v3770
        %v4684 = vunpack.c.l.b16 %v3771
        %v4685 = vunpack.c.l.b16 %v3772
        %v4686 = vunpack.c.l.b16 %v3773
        %v4687 = vunpack.c.l.b16 %v3774
        %v4688 = vunpack.c.l.b16 %v3775
        %v4689 = vunpack.c.l.b16 %v3776
        %v4690 = vunpack.c.l.b16 %v3777
        %v4691 = vunpack.c.l.b16 %v3778
        %v4692 = vunpack.c.l.b16 %v3779
        %v4693 = vunpack.c.l.b16 %v3780
        %v4694 = vunpack.c.l.b16 %v3781
        %v4695 = vunpack.c.l.b16 %v3782
        %v4696 = vunpack.c.l.b16 %v3783
        %v4697 = vunpack.c.l.b16 %v3784
        %v4698 = vunpack.c.l.b16 %v3785
        %v4699 = vunpack.c.l.b16 %v3786
        %v4700 = vunpack.c.l.b16 %v3787
        %v4701 = vunpack.c.l.b16 %v3788
        %v4702 = vunpack.c.l.b16 %v3789
        %v4703 = vunpack.c.l.b16 %v3790
        %v4704 = vunpack.c.l.b16 %v3791
        %v4705 = vunpack.c.l.b16 %v3792
        %v4706 = vunpack.c.l.b16 %v3793
        %v4707 = vunpack.c.l.b16 %v3794
        %v4708 = vunpack.c.l.b16 %v3795
        %v4709 = vunpack.c.l.b16 %v3796
        %v4710 = vunpack.c.l.b16 %v3797
        %v4711 = vunpack.c.l.b16 %v3798
        %v4712 = vunpack.c.l.b16 %v3799
        %v4713 = vunpack.c.l.b16 %v3800
        %v4714 = vunpack.c.l.b16 %v3801
        %v4715 = vunpack.c.l.b16 %v3802
        %v4716 = vunpack.c.l.b16 %v3803
        %v4717 = vunpack.c.l.b16 %v3804
        %v4718 = vunpack.c.l.b16 %v3805
        %v4719 = vunpack.c.l.b16 %v3806
        %v4720 = vunpack.c.l.b16 %v3807
        %v4721 = vunpack.c.l.b16 %v3808
        %v4722 = vunpack.c.l.b16 %v3809
        %v4723 = vunpack.c.l.b16 %v3810
        %v4724 = vunpack.c.l.b16 %v3811
        %v4725 = vunpack.c.l.b16 %v3812
        %v4726 = vunpack.c.l.b16 %v3813
        %v4727 = vunpack.c.l.b16 %v3814
        %v4728 = vunpack.c.l.b16 %v3815
        %v4729 = vunpack.c.l.b16 %v3816
        %v4730 = vunpack.c.l.b16 %v3817
        %v4731 = vunpack.c.l.b16 %v3818
        %v4732 = vunpack.c.l.b16 %v3819
        %v4733 = vunpack.c.l.b16 %v3820
        %v4734 = vunpack.c.l.b16 %v3821
        %v4735 = vunpack.c.l.b16 %v3822
        %v4736 = vunpack.c.l.b16 %v3823
        %v4737 = vunpack.c.l.b16 %v3824
        %v4738 = vunpack.c.l.b16 %v3825
        %v4739 = vunpack.c.l.b16 %v3826
        %v4740 = vunpack.c.l.b16 %v3827
        %v4741 = vunpack.c.l.b16 %v3828
        %v4742 = vunpack.c.l.b16 %v3829
        %v4743 = vunpack.c.l.b16 %v3830
        %v4744 = vunpack.c.l.b16 %v3831
        %v4745 = vunpack.c.l.b16 %v3832
        %v4746 = vunpack.c.l.b16 %v3833
        %v4747 = vunpack.c.l.b16 %v3834
        %v4748 = vunpack.c.l.b16 %v3835
        %v4749 = vunpack.c.l.b16 %v3836
        %v4750 = vunpack.c.l.b16 %v3837
        %v4751 = vunpack.c.l.b16 %v3838
        %v4752 = vunpack.c.l.b16 %v3839
        %v4753 = vunpack.c.l.b16 %v3840
        %v4754 = vunpack.c.l.b16 %v3841
        %v4755 = vunpack.c.l.b16 %v3842
        %v4756 = vunpack.c.l.b16 %v3843
        %v4757 = vunpack.c.l.b16 %v3844
        %v4758 = vunpack.c.l.b16 %v3845
        %v4759 = vunpack.c.l.b16 %v3846
        %v4760 = vunpack.c.l.b16 %v3847
        %v4761 = vunpack.c.l.b16 %v3848
        %v4762 = vunpack.c.l.b16 %v3849
        %v4763 = vunpack.c.l.b16 %v3850
        %v4764 = vunpack.c.l.b16 %v3851
        %v4765 = vunpack.c.l.b16 %v3852
        %v4766 = vunpack.c.l.b16 %v3853
        %v4767 = vpack.c.b16 %v4376, %v4375
        %v4768 = vpack.c.b16 %v4378, %v4377
        %v4769 = vpack.c.b16 %v4380, %v4379
        %v4770 = vpack.c.b16 %v4382, %v4381
        %v4771 = vpack.c.b16 %v4384, %v4383
        %v4772 = vpack.c.b16 %v4386, %v4385
        %v4773 = vpack.c.b16 %v4388, %v4387
        %v4774 = vpack.c.b16 %v4390, %v4389
        %v4775 = vpack.c.b16 %v4392, %v4391
        %v4776 = vpack.c.b16 %v4394, %v4393
        %v4777 = vpack.c.b16 %v4396, %v4395
        %v4778 = vpack.c.b16 %v4398, %v4397
        %v4779 = vpack.c.b16 %v4400, %v4399
        %v4780 = vpack.c.b16 %v4402, %v4401
        %v4781 = vpack.c.b16 %v4404, %v4403
        %v4782 = vpack.c.b16 %v4406, %v4405
        %v4783 = vpack.c.b16 %v4408, %v4407
        %v4784 = vpack.c.b16 %v4410, %v4409
        %v4785 = vpack.c.b16 %v4412, %v4411
        %v4786 = vpack.c.b16 %v4414, %v4413
        %v4787 = vpack.c.b16 %v4416, %v4415
        %v4788 = vpack.c.b16 %v4418, %v4417
        %v4789 = vpack.c.b16 %v4420, %v4419
        %v4790 = vpack.c.b16 %v4422, %v4421
        %v4791 = vpack.c.b16 %v4424, %v4423
        %v4792 = vpack.c.b16 %v4426, %v4425
        %v4793 = vpack.c.b16 %v4428, %v4427
        %v4794 = vpack.c.b16 %v4430, %v4429
        %v4795 = vpack.c.b16 %v4432, %v4431
        %v4796 = vpack.c.b16 %v4434, %v4433
        %v4797 = vpack.c.b16 %v4436, %v4435
        %v4798 = vpack.c.b16 %v4438, %v4437
        %v4799 = vpack.c.b16 %v4440, %v4439
        %v4800 = vpack.c.b16 %v4442, %v4441
        %v4801 = vpack.c.b16 %v4444, %v4443
        %v4802 = vpack.c.b16 %v4446, %v4445
        %v4803 = vpack.c.b16 %v4448, %v4447
        %v4804 = vpack.c.b16 %v4450, %v4449
        %v4805 = vpack.c.b16 %v4452, %v4451
        %v4806 = vpack.c.b16 %v4454, %v4453
        %v4807 = vpack.c.b16 %v4456, %v4455
        %v4808 = vpack.c.b16 %v4458, %v4457
        %v4809 = vpack.c.b16 %v4460, %v4459
        %v4810 = vpack.c.b16 %v4462, %v4461
        %v4811 = vpack.c.b16 %v4464, %v4463
        %v4812 = vpack.c.b16 %v4466, %v4465
        %v4813 = vpack.c.b16 %v4468, %v4467
        %v4814 = vpack.c.b16 %v4470, %v4469
        %v4815 = vpack.c.b16 %v4472, %v4471
        %v4816 = vpack.c.b16 %v4474, %v4473
        %v4817 = vpack.c.b16 %v4476, %v4475
        %v4818 = vpack.c.b16 %v4478, %v4477
        %v4819 = vpack.c.b16 %v4480, %v4479
        %v4820 = vpack.c.b16 %v4482, %v4481
        %v4821 = vpack.c.b16 %v4484, %v4483
        %v4822 = vpack.c.b16 %v4486, %v4485
        %v4823 = vpack.c.b16 %v4488, %v4487
        %v4824 = vpack.c.b16 %v4490, %v4489
        %v4825 = vpack.c.b16 %v4492, %v4491
        %v4826 = vpack.c.b16 %v4494, %v4493
        %v4827 = vpack.c.b16 %v4496, %v4495
        %v4828 = vpack.c.b16 %v4498, %v4497
        %v4829 = vpack.c.b16 %v4500, %v4499
        %v4830 = vpack.c.b16 %v4502, %v4501
        %v4831 = vpack.c.b16 %v4504, %v4503
        %v4832 = vpack.c.b16 %v4506, %v4505
        %v4833 = vpack.c.b16 %v4508, %v4507
        %v4834 = vpack.c.b16 %v4510, %v4509
        %v4835 = vpack.c.b16 %v4512, %v4511
        %v4836 = vpack.c.b16 %v4514, %v4513
        %v4837 = vpack.c.b16 %v4516, %v4515
        %v4838 = vpack.c.b16 %v4518, %v4517
        %v4839 = vpack.c.b16 %v4520, %v4519
        %v4840 = vpack.c.b16 %v4522, %v4521
        %v4841 = vpack.c.b16 %v4524, %v4523
        %v4842 = vpack.c.b16 %v4526, %v4525
        %v4843 = vpack.c.b16 %v4528, %v4527
        %v4844 = vpack.c.b16 %v4530, %v4529
        %v4845 = vpack.c.b16 %v4532, %v4531
        %v4846 = vpack.c.b16 %v4534, %v4533
        %v4847 = vpack.c.b16 %v4536, %v4535
        %v4848 = vpack.c.b16 %v4538, %v4537
        %v4849 = vpack.c.b16 %v4540, %v4539
        %v4850 = vpack.c.b16 %v4542, %v4541
        %v4851 = vpack.c.b16 %v4544, %v4543
        %v4852 = vpack.c.b16 %v4546, %v4545
        %v4853 = vpack.c.b16 %v4548, %v4547
        %v4854 = vpack.c.b16 %v4550, %v4549
        %v4855 = vpack.c.b16 %v4552, %v4551
        %v4856 = vpack.c.b16 %v4554, %v4553
        %v4857 = vpack.c.b16 %v4556, %v4555
        %v4858 = vpack.c.b16 %v4558, %v4557
        %v4859 = vpack.c.b16 %v4560, %v4559
        %v4860 = vpack.c.b16 %v4562, %v4561
        %v4861 = vpack.c.b16 %v4564, %v4563
        %v4862 = vpack.c.b16 %v4566, %v4565
        %v4863 = vpack.c.b16 %v4568, %v4567
        %v4864 = vpack.c.b16 %v4570, %v4569
        %v4865 = vpack.c.b16 %v4572, %v4571
        %v4866 = vpack.c.b16 %v4574, %v4573
        %v4867 = vpack.c.b16 %v4576, %v4575
        %v4868 = vpack.c.b16 %v4578, %v4577
        %v4869 = vpack.c.b16 %v4580, %v4579
        %v4870 = vpack.c.b16 %v4582, %v4581
        %v4871 = vpack.c.b16 %v4584, %v4583
        %v4872 = vpack.c.b16 %v4586, %v4585
        %v4873 = vpack.c.b16 %v4588, %v4587
        %v4874 = vpack.c.b16 %v4590, %v4589
        %v4875 = vpack.c.b16 %v4592, %v4591
        %v4876 = vpack.c.b16 %v4594, %v4593
        %v4877 = vpack.c.b16 %v4596, %v4595
        %v4878 = vpack.c.b16 %v4598, %v4597
        %v4879 = vpack.c.b16 %v4600, %v4599
        %v4880 = vpack.c.b16 %v4602, %v4601
        %v4881 = vpack.c.b16 %v4604, %v4603
        %v4882 = vpack.c.b16 %v4606, %v4605
        %v4883 = vpack.c.b16 %v4608, %v4607
        %v4884 = vpack.c.b16 %v4610, %v4609
        %v4885 = vpack.c.b16 %v4612, %v4611
        %v4886 = vpack.c.b16 %v4614, %v4613
        %v4887 = vpack.c.b16 %v4616, %v4615
        %v4888 = vpack.c.b16 %v4618, %v4617
        %v4889 = vpack.c.b16 %v4620, %v4619
        %v4890 = vpack.c.b16 %v4622, %v4621
        %v4891 = vpack.c.b16 %v4624, %v4623
        %v4892 = vpack.c.b16 %v4626, %v4625
        %v4893 = vpack.c.b16 %v4628, %v4627
        %v4894 = vpack.c.b16 %v4630, %v4629
        %v4895 = vpack.c.b16 %v4632, %v4631
        %v4896 = vpack.c.b16 %v4634, %v4633
        %v4897 = vpack.c.b16 %v4636, %v4635
        %v4898 = vpack.c.b16 %v4638, %v4637
        %v4899 = vpack.c.b16 %v4640, %v4639
        %v4900 = vpack.c.b16 %v4642, %v4641
        %v4901 = vpack.c.b16 %v4644, %v4643
        %v4902 = vpack.c.b16 %v4646, %v4645
        %v4903 = vpack.c.b16 %v4648, %v4647
        %v4904 = vpack.c.b16 %v4650, %v4649
        %v4905 = vpack.c.b16 %v4652, %v4651
        %v4906 = vpack.c.b16 %v4654, %v4653
        %v4907 = vpack.c.b16 %v4656, %v4655
        %v4908 = vpack.c.b16 %v4658, %v4657
        %v4909 = vpack.c.b16 %v4660, %v4659
        %v4910 = vpack.c.b16 %v4662, %v4661
        %v4911 = vpack.c.b16 %v4664, %v4663
        %v4912 = vpack.c.b16 %v4666, %v4665
        %v4913 = vpack.c.b16 %v4668, %v4667
        %v4914 = vpack.c.b16 %v4670, %v4669
        %v4915 = vpack.c.b16 %v4672, %v4671
        %v4916 = vpack.c.b16 %v4674, %v4673
        %v4917 = vpack.c.b16 %v4676, %v4675
        %v4918 = vpack.c.b16 %v4678, %v4677
        %v4919 = vpack.c.b16 %v4680, %v4679
        %v4920 = vpack.c.b16 %v4682, %v4681
        %v4921 = vpack.c.b16 %v4684, %v4683
        %v4922 = vpack.c.b16 %v4686, %v4685
        %v4923 = vpack.c.b16 %v4688, %v4687
        %v4924 = vpack.c.b16 %v4690, %v4689
        %v4925 = vpack.c.b16 %v4692, %v4691
        %v4926 = vpack.c.b16 %v4694, %v4693
        %v4927 = vpack.c.b16 %v4696, %v4695
        %v4928 = vpack.c.b16 %v4698, %v4697
        %v4929 = vpack.c.b16 %v4700, %v4699
        %v4930 = vpack.c.b16 %v4702, %v4701
        %v4931 = vpack.c.b16 %v4704, %v4703
        %v4932 = vpack.c.b16 %v4706, %v4705
        %v4933 = vpack.c.b16 %v4708, %v4707
        %v4934 = vpack.c.b16 %v4710, %v4709
        %v4935 = vpack.c.b16 %v4712, %v4711
        %v4936 = vpack.c.b16 %v4714, %v4713
        %v4937 = vpack.c.b16 %v4716, %v4715
        %v4938 = vpack.c.b16 %v4718, %v4717
        %v4939 = vpack.c.b16 %v4720, %v4719
        %v4940 = vpack.c.b16 %v4722, %v4721
        %v4941 = vpack.c.b16 %v4724, %v4723
        %v4942 = vpack.c.b16 %v4726, %v4725
        %v4943 = vpack.c.b16 %v4728, %v4727
        %v4944 = vpack.c.b16 %v4730, %v4729
        %v4945 = vpack.c.b16 %v4732, %v4731
        %v4946 = vpack.c.b16 %v4734, %v4733
        %v4947 = vpack.c.b16 %v4736, %v4735
        %v4948 = vpack.c.b16 %v4738, %v4737
        %v4949 = vpack.c.b16 %v4740, %v4739
        %v4950 = vpack.c.b16 %v4742, %v4741
        %v4951 = vpack.c.b16 %v4744, %v4743
        %v4952 = vpack.c.b16 %v4746, %v4745
        %v4953 = vpack.c.b16 %v4748, %v4747
        %v4954 = vpack.c.b16 %v4750, %v4749
        %v4955 = vpack.c.b16 %v4752, %v4751
        %v4956 = vpack.c.b16 %v4754, %v4753
        %v4957 = vpack.c.b16 %v4756, %v4755
        %v4958 = vpack.c.b16 %v4758, %v4757
        %v4959 = vpack.c.b16 %v4760, %v4759
        %v4960 = vpack.c.b16 %v4762, %v4761
        %v4961 = vpack.c.b16 %v4764, %v4763
        %v4962 = vpack.c.b16 %v4766, %v4765
        %vm5159 = vcmask 523264
        %v5161 = vsel %vm5159, %v3958, 0
        %5163 = vmatpush.bf16.msra.mxu0 %v4774
        %5164 = vmatpush.bf16.msra.mxu0 %v4773
        %5165 = vmatpush.bf16.msra.mxu0 %v4772
        %5166 = vmatpush.bf16.msra.mxu0 %v4771
        %5167 = vmatpush.bf16.msra.mxu0 %v4770
        %5168 = vmatpush.bf16.msra.mxu0 %v4769
        %5169 = vmatpush.bf16.msra.mxu0 %v4768
        %5170 = vmatpush.bf16.msra.mxu0 %v4767
        %5171 = vmatmul.bf16.gmra.mxu0 %v3934
        %v5172 = vpop.f32.mrf.mxu0
        %v5173 = vadd.f32 %v3856, %v5172
        %v5174 = vpop.f32.mrf.mxu0
        %v5175 = vadd.f32 %v3856, %v5174
        %5176 = vdwg.mxu0
        %5177 = vmatpush.bf16.msra.mxu0 %v4782
        %5178 = vmatpush.bf16.msra.mxu0 %v4781
        %5179 = vmatpush.bf16.msra.mxu0 %v4780
        %5180 = vmatpush.bf16.msra.mxu0 %v4779
        %5181 = vmatpush.bf16.msra.mxu0 %v4778
        %5182 = vmatpush.bf16.msra.mxu0 %v4777
        %5183 = vmatpush.bf16.msra.mxu0 %v4776
        %5184 = vmatpush.bf16.msra.mxu0 %v4775
        %5185 = vmatmul.bf16.gmra.mxu0 %v3935
        %v5186 = vpop.f32.mrf.mxu0
        %v5187 = vadd.f32 %v5173, %v5186
        %v5188 = vpop.f32.mrf.mxu0
        %v5189 = vadd.f32 %v5175, %v5188
        %5190 = vdwg.mxu0
        %5191 = vmatpush.bf16.msra.mxu0 %v4790
        %5192 = vmatpush.bf16.msra.mxu0 %v4789
        %5193 = vmatpush.bf16.msra.mxu0 %v4788
        %5194 = vmatpush.bf16.msra.mxu0 %v4787
        %5195 = vmatpush.bf16.msra.mxu0 %v4786
        %5196 = vmatpush.bf16.msra.mxu0 %v4785
        %5197 = vmatpush.bf16.msra.mxu0 %v4784
        %5198 = vmatpush.bf16.msra.mxu0 %v4783
        %5199 = vmatmul.bf16.gmra.mxu0 %v3936
        %v5200 = vpop.f32.mrf.mxu0
        %v5201 = vadd.f32 %v5187, %v5200
        %v5202 = vpop.f32.mrf.mxu0
        %v5203 = vadd.f32 %v5189, %v5202
        %5204 = vdwg.mxu0
        %5205 = vmatpush.bf16.msra.mxu0 %v4798
        %5206 = vmatpush.bf16.msra.mxu0 %v4797
        %5207 = vmatpush.bf16.msra.mxu0 %v4796
        %5208 = vmatpush.bf16.msra.mxu0 %v4795
        %5209 = vmatpush.bf16.msra.mxu0 %v4794
        %5210 = vmatpush.bf16.msra.mxu0 %v4793
        %5211 = vmatpush.bf16.msra.mxu0 %v4792
        %5212 = vmatpush.bf16.msra.mxu0 %v4791
        %5213 = vmatmul.bf16.gmra.mxu0 %v3937
        %v5214 = vpop.f32.mrf.mxu0
        %v5215 = vadd.f32 %v5201, %v5214
        %v5216 = vpop.f32.mrf.mxu0
        %v5217 = vadd.f32 %v5203, %v5216
        %5218 = vdwg.mxu0
        %5219 = vmatpush.bf16.msra.mxu0 %v4806
        %5220 = vmatpush.bf16.msra.mxu0 %v4805
        %5221 = vmatpush.bf16.msra.mxu0 %v4804
        %5222 = vmatpush.bf16.msra.mxu0 %v4803
        %5223 = vmatpush.bf16.msra.mxu0 %v4802
        %5224 = vmatpush.bf16.msra.mxu0 %v4801
        %5225 = vmatpush.bf16.msra.mxu0 %v4800
        %5226 = vmatpush.bf16.msra.mxu0 %v4799
        %5227 = vmatmul.bf16.gmra.mxu0 %v3938
        %v5228 = vpop.f32.mrf.mxu0
        %v5229 = vadd.f32 %v5215, %v5228
        %v5230 = vpop.f32.mrf.mxu0
        %v5231 = vadd.f32 %v5217, %v5230
        %5232 = vdwg.mxu0
        %5233 = vmatpush.bf16.msra.mxu0 %v4814
        %5234 = vmatpush.bf16.msra.mxu0 %v4813
        %5235 = vmatpush.bf16.msra.mxu0 %v4812
        %5236 = vmatpush.bf16.msra.mxu0 %v4811
        %5237 = vmatpush.bf16.msra.mxu0 %v4810
        %5238 = vmatpush.bf16.msra.mxu0 %v4809
        %5239 = vmatpush.bf16.msra.mxu0 %v4808
        %5240 = vmatpush.bf16.msra.mxu0 %v4807
        %5241 = vmatmul.bf16.gmra.mxu0 %v3939
        %v5242 = vpop.f32.mrf.mxu0
        %v5243 = vadd.f32 %v5229, %v5242
        %v5244 = vpop.f32.mrf.mxu0
        %v5245 = vadd.f32 %v5231, %v5244
        %5246 = vdwg.mxu0
        %5247 = vmatpush.bf16.msra.mxu0 %v4822
        %5248 = vmatpush.bf16.msra.mxu0 %v4821
        %5249 = vmatpush.bf16.msra.mxu0 %v4820
        %5250 = vmatpush.bf16.msra.mxu0 %v4819
        %5251 = vmatpush.bf16.msra.mxu0 %v4818
        %5252 = vmatpush.bf16.msra.mxu0 %v4817
        %5253 = vmatpush.bf16.msra.mxu0 %v4816
        %5254 = vmatpush.bf16.msra.mxu0 %v4815
        %5255 = vmatmul.bf16.gmra.mxu0 %v3940
        %v5256 = vpop.f32.mrf.mxu0
        %v5257 = vadd.f32 %v5243, %v5256
        %v5258 = vpop.f32.mrf.mxu0
        %v5259 = vadd.f32 %v5245, %v5258
        %5260 = vdwg.mxu0
        %5261 = vmatpush.bf16.msra.mxu0 %v4830
        %5262 = vmatpush.bf16.msra.mxu0 %v4829
        %5263 = vmatpush.bf16.msra.mxu0 %v4828
        %5264 = vmatpush.bf16.msra.mxu0 %v4827
        %5265 = vmatpush.bf16.msra.mxu0 %v4826
        %5266 = vmatpush.bf16.msra.mxu0 %v4825
        %5267 = vmatpush.bf16.msra.mxu0 %v4824
        %5268 = vmatpush.bf16.msra.mxu0 %v4823
        %5269 = vmatmul.bf16.gmra.mxu0 %v3941
        %v5270 = vpop.f32.mrf.mxu0
        %v5271 = vadd.f32 %v5257, %v5270
        %v5272 = vpop.f32.mrf.mxu0
        %v5273 = vadd.f32 %v5259, %v5272
        %5274 = vdwg.mxu0
        %5275 = vmatpush.bf16.msra.mxu0 %v4838
        %5276 = vmatpush.bf16.msra.mxu0 %v4837
        %5277 = vmatpush.bf16.msra.mxu0 %v4836
        %5278 = vmatpush.bf16.msra.mxu0 %v4835
        %5279 = vmatpush.bf16.msra.mxu0 %v4834
        %5280 = vmatpush.bf16.msra.mxu0 %v4833
        %5281 = vmatpush.bf16.msra.mxu0 %v4832
        %5282 = vmatpush.bf16.msra.mxu0 %v4831
        %5283 = vmatmul.bf16.gmra.mxu0 %v3942
        %v5284 = vpop.f32.mrf.mxu0
        %v5285 = vadd.f32 %v5271, %v5284
        %v5286 = vpop.f32.mrf.mxu0
        %v5287 = vadd.f32 %v5273, %v5286
        %5288 = vdwg.mxu0
        %5289 = vmatpush.bf16.msra.mxu0 %v4846
        %5290 = vmatpush.bf16.msra.mxu0 %v4845
        %5291 = vmatpush.bf16.msra.mxu0 %v4844
        %5292 = vmatpush.bf16.msra.mxu0 %v4843
        %5293 = vmatpush.bf16.msra.mxu0 %v4842
        %5294 = vmatpush.bf16.msra.mxu0 %v4841
        %5295 = vmatpush.bf16.msra.mxu0 %v4840
        %5296 = vmatpush.bf16.msra.mxu0 %v4839
        %5297 = vmatmul.bf16.gmra.mxu0 %v3943
        %v5298 = vpop.f32.mrf.mxu0
        %v5299 = vadd.f32 %v5285, %v5298
        %v5300 = vpop.f32.mrf.mxu0
        %v5301 = vadd.f32 %v5287, %v5300
        %5302 = vdwg.mxu0
        %5303 = vmatpush.bf16.msra.mxu0 %v4854
        %5304 = vmatpush.bf16.msra.mxu0 %v4853
        %5305 = vmatpush.bf16.msra.mxu0 %v4852
        %5306 = vmatpush.bf16.msra.mxu0 %v4851
        %5307 = vmatpush.bf16.msra.mxu0 %v4850
        %5308 = vmatpush.bf16.msra.mxu0 %v4849
        %5309 = vmatpush.bf16.msra.mxu0 %v4848
        %5310 = vmatpush.bf16.msra.mxu0 %v4847
        %5311 = vmatmul.bf16.gmra.mxu0 %v3944
        %v5312 = vpop.f32.mrf.mxu0
        %v5313 = vadd.f32 %v5299, %v5312
        %v5314 = vpop.f32.mrf.mxu0
        %v5315 = vadd.f32 %v5301, %v5314
        %5316 = vdwg.mxu0
        %5317 = vmatpush.bf16.msra.mxu0 %v4862
        %5318 = vmatpush.bf16.msra.mxu0 %v4861
        %5319 = vmatpush.bf16.msra.mxu0 %v4860
        %5320 = vmatpush.bf16.msra.mxu0 %v4859
        %5321 = vmatpush.bf16.msra.mxu0 %v4858
        %5322 = vmatpush.bf16.msra.mxu0 %v4857
        %5323 = vmatpush.bf16.msra.mxu0 %v4856
        %5324 = vmatpush.bf16.msra.mxu0 %v4855
        %5325 = vmatmul.bf16.gmra.mxu0 %v3945
        %v5326 = vpop.f32.mrf.mxu0
        %v5327 = vadd.f32 %v5313, %v5326
        %v5328 = vpop.f32.mrf.mxu0
        %v5329 = vadd.f32 %v5315, %v5328
        %5330 = vdwg.mxu0
        %5331 = vmatpush.bf16.msra.mxu0 %v4870
        %5332 = vmatpush.bf16.msra.mxu0 %v4869
        %5333 = vmatpush.bf16.msra.mxu0 %v4868
        %5334 = vmatpush.bf16.msra.mxu0 %v4867
        %5335 = vmatpush.bf16.msra.mxu0 %v4866
        %5336 = vmatpush.bf16.msra.mxu0 %v4865
        %5337 = vmatpush.bf16.msra.mxu0 %v4864
        %5338 = vmatpush.bf16.msra.mxu0 %v4863
        %5339 = vmatmul.bf16.gmra.mxu0 %v3946
        %v5340 = vpop.f32.mrf.mxu0
        %v5341 = vadd.f32 %v5327, %v5340
        %v5342 = vpop.f32.mrf.mxu0
        %v5343 = vadd.f32 %v5329, %v5342
        %5344 = vdwg.mxu0
        %5345 = vmatpush.bf16.msra.mxu0 %v4878
        %5346 = vmatpush.bf16.msra.mxu0 %v4877
        %5347 = vmatpush.bf16.msra.mxu0 %v4876
        %5348 = vmatpush.bf16.msra.mxu0 %v4875
        %5349 = vmatpush.bf16.msra.mxu0 %v4874
        %5350 = vmatpush.bf16.msra.mxu0 %v4873
        %5351 = vmatpush.bf16.msra.mxu0 %v4872
        %5352 = vmatpush.bf16.msra.mxu0 %v4871
        %5353 = vmatmul.bf16.gmra.mxu0 %v3947
        %v5354 = vpop.f32.mrf.mxu0
        %v5355 = vadd.f32 %v5341, %v5354
        %v5356 = vpop.f32.mrf.mxu0
        %v5357 = vadd.f32 %v5343, %v5356
        %5358 = vdwg.mxu0
        %5359 = vmatpush.bf16.msra.mxu0 %v4886
        %5360 = vmatpush.bf16.msra.mxu0 %v4885
        %5361 = vmatpush.bf16.msra.mxu0 %v4884
        %5362 = vmatpush.bf16.msra.mxu0 %v4883
        %5363 = vmatpush.bf16.msra.mxu0 %v4882
        %5364 = vmatpush.bf16.msra.mxu0 %v4881
        %5365 = vmatpush.bf16.msra.mxu0 %v4880
        %5366 = vmatpush.bf16.msra.mxu0 %v4879
        %5367 = vmatmul.bf16.gmra.mxu0 %v3948
        %v5368 = vpop.f32.mrf.mxu0
        %v5369 = vadd.f32 %v5355, %v5368
        %v5370 = vpop.f32.mrf.mxu0
        %v5371 = vadd.f32 %v5357, %v5370
        %5372 = vdwg.mxu0
        %5373 = vmatpush.bf16.msra.mxu0 %v4894
        %5374 = vmatpush.bf16.msra.mxu0 %v4893
        %5375 = vmatpush.bf16.msra.mxu0 %v4892
        %5376 = vmatpush.bf16.msra.mxu0 %v4891
        %5377 = vmatpush.bf16.msra.mxu0 %v4890
        %5378 = vmatpush.bf16.msra.mxu0 %v4889
        %5379 = vmatpush.bf16.msra.mxu0 %v4888
        %5380 = vmatpush.bf16.msra.mxu0 %v4887
        %5381 = vmatmul.bf16.gmra.mxu0 %v3949
        %v5382 = vpop.f32.mrf.mxu0
        %v5383 = vadd.f32 %v5369, %v5382
        %v5384 = vpop.f32.mrf.mxu0
        %v5385 = vadd.f32 %v5371, %v5384
        %5386 = vdwg.mxu0
        %5387 = vmatpush.bf16.msra.mxu0 %v4902
        %5388 = vmatpush.bf16.msra.mxu0 %v4901
        %5389 = vmatpush.bf16.msra.mxu0 %v4900
        %5390 = vmatpush.bf16.msra.mxu0 %v4899
        %5391 = vmatpush.bf16.msra.mxu0 %v4898
        %5392 = vmatpush.bf16.msra.mxu0 %v4897
        %5393 = vmatpush.bf16.msra.mxu0 %v4896
        %5394 = vmatpush.bf16.msra.mxu0 %v4895
        %5395 = vmatmul.bf16.gmra.mxu0 %v3950
        %v5396 = vpop.f32.mrf.mxu0
        %v5397 = vadd.f32 %v5383, %v5396
        %v5398 = vpop.f32.mrf.mxu0
        %v5399 = vadd.f32 %v5385, %v5398
        %5400 = vdwg.mxu0
        %5401 = vmatpush.bf16.msra.mxu0 %v4910
        %5402 = vmatpush.bf16.msra.mxu0 %v4909
        %5403 = vmatpush.bf16.msra.mxu0 %v4908
        %5404 = vmatpush.bf16.msra.mxu0 %v4907
        %5405 = vmatpush.bf16.msra.mxu0 %v4906
        %5406 = vmatpush.bf16.msra.mxu0 %v4905
        %5407 = vmatpush.bf16.msra.mxu0 %v4904
        %5408 = vmatpush.bf16.msra.mxu0 %v4903
        %5409 = vmatmul.bf16.gmra.mxu0 %v3951
        %v5410 = vpop.f32.mrf.mxu0
        %v5411 = vadd.f32 %v5397, %v5410
        %v5412 = vpop.f32.mrf.mxu0
        %v5413 = vadd.f32 %v5399, %v5412
        %5414 = vdwg.mxu0
        %5415 = vmatpush.bf16.msra.mxu0 %v4918
        %5416 = vmatpush.bf16.msra.mxu0 %v4917
        %5417 = vmatpush.bf16.msra.mxu0 %v4916
        %5418 = vmatpush.bf16.msra.mxu0 %v4915
        %5419 = vmatpush.bf16.msra.mxu0 %v4914
        %5420 = vmatpush.bf16.msra.mxu0 %v4913
        %5421 = vmatpush.bf16.msra.mxu0 %v4912
        %5422 = vmatpush.bf16.msra.mxu0 %v4911
        %5423 = vmatmul.bf16.gmra.mxu0 %v3952
        %v5424 = vpop.f32.mrf.mxu0
        %v5425 = vadd.f32 %v5411, %v5424
        %v5426 = vpop.f32.mrf.mxu0
        %v5427 = vadd.f32 %v5413, %v5426
        %5428 = vdwg.mxu0
        %5429 = vmatpush.bf16.msra.mxu0 %v4926
        %5430 = vmatpush.bf16.msra.mxu0 %v4925
        %5431 = vmatpush.bf16.msra.mxu0 %v4924
        %5432 = vmatpush.bf16.msra.mxu0 %v4923
        %5433 = vmatpush.bf16.msra.mxu0 %v4922
        %5434 = vmatpush.bf16.msra.mxu0 %v4921
        %5435 = vmatpush.bf16.msra.mxu0 %v4920
        %5436 = vmatpush.bf16.msra.mxu0 %v4919
        %5437 = vmatmul.bf16.gmra.mxu0 %v3953
        %v5438 = vpop.f32.mrf.mxu0
        %v5439 = vadd.f32 %v5425, %v5438
        %v5440 = vpop.f32.mrf.mxu0
        %v5441 = vadd.f32 %v5427, %v5440
        %5442 = vdwg.mxu0
        %5443 = vmatpush.bf16.msra.mxu0 %v4934
        %5444 = vmatpush.bf16.msra.mxu0 %v4933
        %5445 = vmatpush.bf16.msra.mxu0 %v4932
        %5446 = vmatpush.bf16.msra.mxu0 %v4931
        %5447 = vmatpush.bf16.msra.mxu0 %v4930
        %5448 = vmatpush.bf16.msra.mxu0 %v4929
        %5449 = vmatpush.bf16.msra.mxu0 %v4928
        %5450 = vmatpush.bf16.msra.mxu0 %v4927
        %5451 = vmatmul.bf16.gmra.mxu0 %v3954
        %v5452 = vpop.f32.mrf.mxu0
        %v5453 = vadd.f32 %v5439, %v5452
        %v5454 = vpop.f32.mrf.mxu0
        %v5455 = vadd.f32 %v5441, %v5454
        %5456 = vdwg.mxu0
        %5457 = vmatpush.bf16.msra.mxu0 %v4942
        %5458 = vmatpush.bf16.msra.mxu0 %v4941
        %5459 = vmatpush.bf16.msra.mxu0 %v4940
        %5460 = vmatpush.bf16.msra.mxu0 %v4939
        %5461 = vmatpush.bf16.msra.mxu0 %v4938
        %5462 = vmatpush.bf16.msra.mxu0 %v4937
        %5463 = vmatpush.bf16.msra.mxu0 %v4936
        %5464 = vmatpush.bf16.msra.mxu0 %v4935
        %5465 = vmatmul.bf16.gmra.mxu0 %v3955
        %v5466 = vpop.f32.mrf.mxu0
        %v5467 = vadd.f32 %v5453, %v5466
        %v5468 = vpop.f32.mrf.mxu0
        %v5469 = vadd.f32 %v5455, %v5468
        %5470 = vdwg.mxu0
        %5471 = vmatpush.bf16.msra.mxu0 %v4950
        %5472 = vmatpush.bf16.msra.mxu0 %v4949
        %5473 = vmatpush.bf16.msra.mxu0 %v4948
        %5474 = vmatpush.bf16.msra.mxu0 %v4947
        %5475 = vmatpush.bf16.msra.mxu0 %v4946
        %5476 = vmatpush.bf16.msra.mxu0 %v4945
        %5477 = vmatpush.bf16.msra.mxu0 %v4944
        %5478 = vmatpush.bf16.msra.mxu0 %v4943
        %5479 = vmatmul.bf16.gmra.mxu0 %v3956
        %v5480 = vpop.f32.mrf.mxu0
        %v5481 = vadd.f32 %v5467, %v5480
        %v5482 = vpop.f32.mrf.mxu0
        %v5483 = vadd.f32 %v5469, %v5482
        %5484 = vdwg.mxu0
        %5485 = vmatpush.bf16.msra.mxu0 %v4958
        %5486 = vmatpush.bf16.msra.mxu0 %v4957
        %5487 = vmatpush.bf16.msra.mxu0 %v4956
        %5488 = vmatpush.bf16.msra.mxu0 %v4955
        %5489 = vmatpush.bf16.msra.mxu0 %v4954
        %5490 = vmatpush.bf16.msra.mxu0 %v4953
        %5491 = vmatpush.bf16.msra.mxu0 %v4952
        %5492 = vmatpush.bf16.msra.mxu0 %v4951
        %5493 = vmatmul.bf16.gmra.mxu0 %v3957
        %v5494 = vpop.f32.mrf.mxu0
        %v5495 = vadd.f32 %v5481, %v5494
        %v5496 = vpop.f32.mrf.mxu0
        %v5497 = vadd.f32 %v5483, %v5496
        %5498 = vdwg.mxu0
        %5499 = vmatpush.bf16.msra.mxu0 0
        %5500 = vmatpush.bf16.msra.mxu0 0
        %5501 = vmatpush.bf16.msra.mxu0 0
        %5502 = vmatpush.bf16.msra.mxu0 0
        %5503 = vmatpush.bf16.msra.mxu0 %v4962
        %5504 = vmatpush.bf16.msra.mxu0 %v4961
        %5505 = vmatpush.bf16.msra.mxu0 %v4960
        %5506 = vmatpush.bf16.msra.mxu0 %v4959
        %5507 = vmatmul.bf16.gmra.mxu0 %v5161
        %v5508 = vpop.f32.mrf.mxu0
        %v5509 = vadd.f32 %v5495, %v5508
        %v5510 = vpop.f32.mrf.mxu0
        %v5511 = vadd.f32 %v5497, %v5510
        %5512 = vdwg.mxu0
        %v5513 = vmax.f32 %v5509, 0.0
        %v5514 = vmax.f32 %v5511, 0.0
        %v5515 = vpack.c.bf16 %v5514, %v5513
        %v5516 = vld [vmem:[%s3428] sm:$0xf]
        %v5517 = vld [vmem:[%s3428 + $0x4] sm:$0xf]
        %v5518 = vld [vmem:[%s3428 + $0x8] sm:$0xf]
        %v5519 = vld [vmem:[%s3428 + $0xc] sm:$0xf]
        %v5520 = vld [vmem:[%s3428 + $0x10] sm:$0xf]
        %v5521 = vld [vmem:[%s3428 + $0x14] sm:$0xf]
        %v5522 = vld [vmem:[%s3428 + $0x18] sm:$0xf]
        %v5523 = vld [vmem:[%s3428 + $0x1c] sm:$0xf]
        %v5524 = vld [vmem:[%s3428 + $0x20] sm:$0xf]
        %v5525 = vld [vmem:[%s3428 + $0x24] sm:$0xf]
        %v5526 = vld [vmem:[%s3428 + $0x28] sm:$0xf]
        %v5527 = vld [vmem:[%s3428 + $0x2c] sm:$0xf]
        %v5528 = vld [vmem:[%s3428 + $0x30] sm:$0xf]
        %v5529 = vld [vmem:[%s3428 + $0x34] sm:$0xf]
        %v5530 = vld [vmem:[%s3428 + $0x38] sm:$0xf]
        %v5531 = vld [vmem:[%s3428 + $0x3c] sm:$0xf]
        %v5548 = vunpack.c.l.b16 %v5516
        %v5549 = vunpack.c.l.b16 %v5517
        %v5550 = vunpack.c.l.b16 %v5518
        %v5551 = vunpack.c.l.b16 %v5519
        %v5552 = vunpack.c.l.b16 %v5520
        %v5553 = vunpack.c.l.b16 %v5521
        %v5554 = vunpack.c.l.b16 %v5522
        %v5555 = vunpack.c.l.b16 %v5523
        %v5556 = vunpack.c.l.b16 %v5524
        %v5557 = vunpack.c.l.b16 %v5525
        %v5558 = vunpack.c.l.b16 %v5526
        %v5559 = vunpack.c.l.b16 %v5527
        %v5560 = vunpack.c.l.b16 %v5528
        %v5561 = vunpack.c.l.b16 %v5529
        %v5562 = vunpack.c.l.b16 %v5530
        %v5563 = vunpack.c.l.b16 %v5531
        %v5564 = vpack.c.b16 %v5549, %v5548
        %v5565 = vpack.c.b16 %v5551, %v5550
        %v5566 = vpack.c.b16 %v5553, %v5552
        %v5567 = vpack.c.b16 %v5555, %v5554
        %v5568 = vpack.c.b16 %v5557, %v5556
        %v5569 = vpack.c.b16 %v5559, %v5558
        %v5570 = vpack.c.b16 %v5561, %v5560
        %v5571 = vpack.c.b16 %v5563, %v5562
        %5580 = vmatpush.bf16.msra.mxu0 %v5571
        %5581 = vmatpush.bf16.msra.mxu0 %v5570
        %5582 = vmatpush.bf16.msra.mxu0 %v5569
        %5583 = vmatpush.bf16.msra.mxu0 %v5568
        %5584 = vmatpush.bf16.msra.mxu0 %v5567
        %5585 = vmatpush.bf16.msra.mxu0 %v5566
        %5586 = vmatpush.bf16.msra.mxu0 %v5565
        %5587 = vmatpush.bf16.msra.mxu0 %v5564
        %5588 = vmatmul.bf16.gmra.mxu0 %v5515
        %v5589 = vpop.f32.mrf.mxu0
        %v5590 = vadd.f32 0.0, %v5589
        %v5591 = vpop.f32.mrf.mxu0
        %v5592 = vadd.f32 0.0, %v5591
        %5593 = vdwg.mxu0
        %5594 = vst [vmem:[%s3434] sm:$0xff] %v5590
        %5595 = vst [vmem:[%s3434 + $0x8] sm:$0xff] %v5592
        %p5596 = scmp.lt.s32.totalorder %s15, 3
        %s5597 = scalar_select %p5596, %s15, 3
        %s5598 = smul.addr %s5597, 2
        %s5599 = smul.addr %s5598, 8
        %s5600 = scalar_lea.vmem %s4, %s5599
        // Predicated region
        $region89: #{dqn_forward.7} parent=83 // pred_check
          %p5601 = pneg %p132
        $region90: #{dqn_forward.7} parent=83 // pred_check_branch
          %5603 = sbr.rel (%p5601) target = $region92
        $region91: #{dqn_forward.7} parent=83 // pred_region
          _
        $region92: #{dqn_forward.7} parent=83 // pred_fallthru
          _
      $region84: #{dqn_forward.7} parent=5 // pred_fallthru
        _
      %p5604 = scmp.le.s32.totalorder 2, %s10
      // Predicated region
      $region93: #{dqn_forward.7} parent=5 // pred_check
        %p5605 = pneg %p5604
      $region94: #{dqn_forward.7} parent=5 // pred_check_branch
        %5607 = sbr.rel (%p5605) target = $region96
      $region95: #{dqn_forward.7} parent=5 // pred_region
        %s5608 = ssub.s32 %s10, 2
        // Predicated region
        $region97: #{dqn_forward.7} parent=95 // pred_check
          %p5609 = pneg %p138
        $region98: #{dqn_forward.7} parent=95 // pred_check_branch
          %5611 = sbr.rel (%p5609) target = $region100
        $region99: #{dqn_forward.7} parent=95 // pred_region
          %p5612 = scmp.lt.s32.totalorder %s16, 3
          %s5613 = scalar_select %p5612, %s16, 3
          %s5614 = smul.addr %s5613, 2
          %s5615 = smul.addr %s5614, 8
          %s5616 = scalar_lea.vmem %s4, %s5615
        $region100: #{dqn_forward.7} parent=95 // pred_fallthru
          _
      $region96: #{dqn_forward.7} parent=5 // pred_fallthru
        _
    $region6: #{dqn_forward.7} parent=1 // loop_footer
      %s14 = sadd.s32 1, %s10
    $region7: #{dqn_forward.7} parent=1 // loop_footer_branch
      %9 = sbr.rel target = $region3
    $region8: #{dqn_forward.7} parent=1 // loop_exit
      _

</llo_original>
